<compile_context>
chip_gen: v6e
topology: v6e:2x2x1
jax: 0.10.0
libtpu: 0.0.40
codegen_flags: <defaults>
</compile_context>

<pallas_src>
import jax
import jax.numpy as jnp
from jax.experimental import pallas as pl


# ----------------------------------------------------------------------------
# In-kernel helpers (operate on VMEM values; everything stays 2-D)
# ----------------------------------------------------------------------------
def _softmax_last(x):
    m = jnp.max(x, axis=-1, keepdims=True)
    e = jnp.exp(x - m)
    return e / jnp.sum(e, axis=-1, keepdims=True)


def _lstm_from_gates(gates, c):
    """PyTorch LSTMCell update given pre-activation gates (i|f|g|o order)."""
    H = gates.shape[-1] // 4
    sig = jax.nn.sigmoid(gates)          # one full-width EUP pass covers i, f, o
    i = sig[:, 0:H]
    f = sig[:, H:2 * H]
    o = sig[:, 3 * H:4 * H]
    g = jnp.tanh(gates[:, 2 * H:3 * H])
    c_new = f * c + i * g
    h_new = o * jnp.tanh(c_new)
    return h_new, c_new


def _attention_xproj(mats, wqkv, wout, bout, wx, bt):
    """Multi_Cross_Attention_Layer + pre-projection onto the t-LSTM input weights.

    mats: list of B per-batch (S, F) matrices (the per-batch sequences).
    Returns list of B per-batch (S, 4*Hd) matrices:
        cross_attention(x)[:, b, :] @ t_wih + fused_t_bias
    """
    F = mats[0].shape[1]
    dims_qkT = (((1,), (1,)), ((), ()))          # contract last dims: q @ k.T
    xprojs = []
    for xb in mats:
        pb = jnp.dot(xb, wqkv, preferred_element_type=jnp.float32)   # (S, 6F)
        q_t = pb[:, 0 * F:1 * F]
        k_t = pb[:, 1 * F:2 * F]
        v_t = pb[:, 2 * F:3 * F]
        q_d = pb[:, 3 * F:4 * F]
        k_d = pb[:, 4 * F:5 * F]
        v_d = pb[:, 5 * F:6 * F]
        a_t = _softmax_last(jax.lax.dot_general(
            q_d, k_t, dims_qkT, preferred_element_type=jnp.float32))
        a_d = _softmax_last(jax.lax.dot_general(
            q_t, k_d, dims_qkT, preferred_element_type=jnp.float32))
        ctx = jnp.concatenate(
            [jnp.dot(a_t, v_t, preferred_element_type=jnp.float32),
             jnp.dot(a_d, v_d, preferred_element_type=jnp.float32)], axis=-1)
        att = jnp.dot(ctx, wout, preferred_element_type=jnp.float32) + bout
        xprojs.append(jnp.dot(att, wx, preferred_element_type=jnp.float32) + bt)
    return xprojs


def _grid_recurrence(xprojs, w_ht, w_hd, b_d):
    """GridLSTM time loop with fused weights: 2 MXU matmuls per step."""
    B = len(xprojs)
    S = xprojs[0].shape[0]
    Hd = w_ht.shape[0] // 2
    z = jnp.zeros((B, Hd), jnp.float32)
    h_t, c_t, h_d, c_d = z, z, z, z
    seq_t, seq_d = [], []
    for s in range(S):                      # static unroll (S is a trace-time const)
        xt = jnp.concatenate([xp[s:s + 1, :] for xp in xprojs], axis=0)  # (B, 4Hd)
        # gates_t = (x_t + d_Linear(h_d_old)) @ t_wih + h_t_old @ t_whh + biases
        gates_t = xt + jnp.dot(jnp.concatenate([h_d, h_t], axis=-1), w_ht,
                               preferred_element_type=jnp.float32)
        h_t, c_t = _lstm_from_gates(gates_t, c_t)
        seq_t.append(h_t)
        # gates_d = (t_Linear(h_t_new) + d_Linear(h_d_old)) @ d_wih
        #           + h_d_old @ d_whh + biases      (d_Linear(h_d) deduped)
        gates_d = jnp.dot(jnp.concatenate([h_t, h_d], axis=-1), w_hd,
                          preferred_element_type=jnp.float32) + b_d
        h_d, c_d = _lstm_from_gates(gates_d, c_d)
        seq_d.append(h_d)
    return seq_t, seq_d


# ----------------------------------------------------------------------------
# The single fused kernel: encoder GridLSTM -> decoder GridLSTM -> output heads
# ----------------------------------------------------------------------------
def net_kernel(x_ref,
               e_wqkv, e_wout, e_bout, e_wx, e_bt, e_wht, e_whd, e_bd,
               g_wqkv, g_wout, g_bout, g_wx, g_bt, g_wht, g_whd, g_bd,
               f_wt, f_bt, f_wd, f_bd,
               out_t_ref, out_d_ref):
    B, S, _ = x_ref.shape

    # ---- encoder layer (cross attention + recurrence) ----
    x_mats = [x_ref[b] for b in range(B)]                       # (S, Din) each
    xp1 = _attention_xproj(x_mats, e_wqkv[...], e_wout[...], e_bout[...],
                           e_wx[...], e_bt[...])
    seq_t1, _ = _grid_recurrence(xp1, e_wht[...], e_whd[...], e_bd[...])
    # (the encoder's d-stream per-step outputs are never consumed -> not stored)

    # regroup encoder h_t sequence per batch for the decoder attention
    enc_mats = [jnp.concatenate([seq_t1[s][b:b + 1, :] for s in range(S)], axis=0)
                for b in range(B)]                              # (S, Hd) each

    # ---- decoder layer ----
    xp2 = _attention_xproj(enc_mats, g_wqkv[...], g_wout[...], g_bout[...],
                           g_wx[...], g_bt[...])
    seq_t2, seq_d2 = _grid_recurrence(xp2, g_wht[...], g_whd[...], g_bd[...])

    # ---- final t/d heads: one matmul each over the whole flattened sequence ----
    flat_t = jnp.concatenate(seq_t2, axis=0)                    # (S*B, Hd), (s,b)-major
    flat_d = jnp.concatenate(seq_d2, axis=0)
    out_t_ref[...] = (jnp.dot(flat_t, f_wt[...],
                              preferred_element_type=jnp.float32) + f_bt[...])
    out_d_ref[...] = (jnp.dot(flat_d, f_wd[...],
                              preferred_element_type=jnp.float32) + f_bd[...])


def mul_grid_lstm_net(x, fp):
    """x: (S, B, input_size); fp: fused params from fuse_net_params."""
    S, B, _ = x.shape
    enc, dec = fp["enc"], fp["dec"]
    f_wt, f_bt = fp["t_lin"]
    f_wd, f_bd = fp["d_lin"]
    Dout = f_wt.shape[1]
    x_bsf = jnp.transpose(x, (1, 0, 2))   # tiny glue permute (torch .permute(1,0,2))
    out_t, out_d = pl.pallas_call(
        net_kernel,
        out_shape=(jax.ShapeDtypeStruct((S * B, Dout), jnp.float32),
                   jax.ShapeDtypeStruct((S * B, Dout), jnp.float32)),
    )(x_bsf,
      enc["wqkv"], enc["wout"], enc["bout"], enc["wx"], enc["bt"],
      enc["wht"], enc["whd"], enc["bd"],
      dec["wqkv"], dec["wout"], dec["bout"], dec["wx"], dec["bt"],
      dec["wht"], dec["whd"], dec["bd"],
      f_wt, f_bt, f_wd, f_bd)
    # free row-major reshapes back to (S, B, Dout)
    return out_t.reshape(S, B, Dout), out_d.reshape(S, B, Dout)


# ----------------------------------------------------------------------------
# Parameter construction (weights stored pre-transposed: (in, out)) + fusion
# ----------------------------------------------------------------------------
def make_linear(key, in_dim, out_dim, bias=True):
    k1, k2 = jax.random.split(key)
    bound = 1.0 / (in_dim ** 0.5)
    w = jax.random.uniform(k1, (in_dim, out_dim), jnp.float32, -bound, bound)
    if bias:
        b = jax.random.uniform(k2, (1, out_dim), jnp.float32, -bound, bound)
        return w, b
    return w


def make_lstm_cell(key, in_dim, hidden):
    k1, k2, k3, k4 = jax.random.split(key, 4)
    bound = 1.0 / (hidden ** 0.5)
    wih = jax.random.uniform(k1, (in_dim, 4 * hidden), jnp.float32, -bound, bound)
    whh = jax.random.uniform(k2, (hidden, 4 * hidden), jnp.float32, -bound, bound)
    bih = jax.random.uniform(k3, (1, 4 * hidden), jnp.float32, -bound, bound)
    bhh = jax.random.uniform(k4, (1, 4 * hidden), jnp.float32, -bound, bound)
    return wih, whh, bih, bhh


def make_grid_lstm_params(key, input_size, hidden_dim):
    ks = jax.random.split(key, 11)
    p = {}
    # Multi_Cross_Attention_Layer(hidden_dim=input_size)
    p["ca_wq_t"] = make_linear(ks[0], input_size, input_size, bias=False)
    p["ca_wk_t"] = make_linear(ks[1], input_size, input_size, bias=False)
    p["ca_wv_t"] = make_linear(ks[2], input_size, input_size, bias=False)
    p["ca_wq_d"] = make_linear(ks[3], input_size, input_size, bias=False)
    p["ca_wk_d"] = make_linear(ks[4], input_size, input_size, bias=False)
    p["ca_wv_d"] = make_linear(ks[5], input_size, input_size, bias=False)
    p["ca_w_out"], p["ca_b_out"] = make_linear(ks[6], 2 * input_size, input_size)
    # LSTM cells
    p["t_wih"], p["t_whh"], p["t_bih"], p["t_bhh"] = make_lstm_cell(
        ks[7], input_size, hidden_dim)
    p["d_wih"], p["d_whh"], p["d_bih"], p["d_bhh"] = make_lstm_cell(
        ks[8], input_size, hidden_dim)
    # t_Linear / d_Linear (hidden_dim -> input_size)
    p["tl_w"], p["tl_b"] = make_linear(ks[9], hidden_dim, input_size)
    p["dl_w"], p["dl_b"] = make_linear(ks[10], hidden_dim, input_size)
    return p


def make_net_params(key, input_size, hidden_dim):
    k1, k2, k3, k4 = jax.random.split(key, 4)
    return {
        "enc": make_grid_lstm_params(k1, input_size, hidden_dim),
        "dec": make_grid_lstm_params(k2, hidden_dim, hidden_dim),
        "t_lin": make_linear(k3, hidden_dim, input_size),
        "d_lin": make_linear(k4, hidden_dim, input_size),
    }


def fuse_layer_params(p):
    """Trace-time algebraic fusion of one GridLSTM layer (run once, outside jit)."""
    wqkv = jnp.concatenate([p["ca_wq_t"], p["ca_wk_t"], p["ca_wv_t"],
                            p["ca_wq_d"], p["ca_wk_d"], p["ca_wv_d"]], axis=1)
    # t-cell: gates_t = x@t_wih + h_d@(dl_w@t_wih) + h_t@t_whh
    #                   + (dl_b@t_wih + t_bih + t_bhh)
    w_ht = jnp.concatenate([p["dl_w"] @ p["t_wih"], p["t_whh"]], axis=0)
    b_t = p["dl_b"] @ p["t_wih"] + p["t_bih"] + p["t_bhh"]
    # d-cell: gates_d = h_t_new@(tl_w@d_wih) + h_d@(dl_w@d_wih + d_whh)
    #                   + ((tl_b + dl_b)@d_wih + d_bih + d_bhh)
    w_hd = jnp.concatenate([p["tl_w"] @ p["d_wih"],
                            p["dl_w"] @ p["d_wih"] + p["d_whh"]], axis=0)
    b_d = (p["tl_b"] + p["dl_b"]) @ p["d_wih"] + p["d_bih"] + p["d_bhh"]
    return {"wqkv": wqkv, "wout": p["ca_w_out"], "bout": p["ca_b_out"],
            "wx": p["t_wih"], "bt": b_t, "wht": w_ht, "whd": w_hd, "bd": b_d}


def fuse_net_params(params):
    return {"enc": fuse_layer_params(params["enc"]),
            "dec": fuse_layer_params(params["dec"]),
            "t_lin": params["t_lin"], "d_lin": params["d_lin"]}


# ----------------------------------------------------------------------------
# Plain-JAX literal reference (unfused), used as a numerical cross-check
# ----------------------------------------------------------------------------
def reference_forward(x, params):
    HIGH = jax.lax.Precision.HIGHEST

    def linear(v, w, b=None):
        out = jnp.dot(v, w, precision=HIGH)
        return out if b is None else out + b

    def attention(xs, p):  # xs: (S, B, F)
        xb = jnp.transpose(xs, (1, 0, 2))
        q_t, k_t, v_t = (linear(xb, p["ca_wq_t"]), linear(xb, p["ca_wk_t"]),
                         linear(xb, p["ca_wv_t"]))
        q_d, k_d, v_d = (linear(xb, p["ca_wq_d"]), linear(xb, p["ca_wk_d"]),
                         linear(xb, p["ca_wv_d"]))
        a_t = jax.nn.softmax(jnp.einsum("bqf,bkf->bqk", q_d, k_t, precision=HIGH), -1)
        a_d = jax.nn.softmax(jnp.einsum("bqf,bkf->bqk", q_t, k_d, precision=HIGH), -1)
        o_t = jnp.einsum("bqk,bkf->bqf", a_t, v_t, precision=HIGH)
        o_d = jnp.einsum("bqk,bkf->bqf", a_d, v_d, precision=HIGH)
        cat = jnp.transpose(jnp.concatenate([o_t, o_d], axis=-1), (1, 0, 2))
        return linear(cat, p["ca_w_out"], p["ca_b_out"])

    def lstm_cell(xv, h, c, wih, whh, bih, bhh):
        H = whh.shape[0]
        gates = linear(xv, wih, bih) + linear(h, whh, bhh)
        i = jax.nn.sigmoid(gates[:, :H])
        f = jax.nn.sigmoid(gates[:, H:2 * H])
        g = jnp.tanh(gates[:, 2 * H:3 * H])
        o = jax.nn.sigmoid(gates[:, 3 * H:])
        c_new = f * c + i * g
        return o * jnp.tanh(c_new), c_new

    def grid_layer(xs, p, Hd):
        xa = attention(xs, p)
        S, B, _ = xa.shape
        h_t = c_t = h_d = c_d = jnp.zeros((B, Hd), jnp.float32)
        outs_t, outs_d = [], []
        for s in range(S):
            d2h_t = linear(h_d, p["dl_w"], p["dl_b"])
            h_t, c_t = lstm_cell(xa[s] + d2h_t, h_t, c_t,
                                 p["t_wih"], p["t_whh"], p["t_bih"], p["t_bhh"])
            outs_t.append(h_t)
            t2h_d = linear(h_t, p["tl_w"], p["tl_b"])
            d2h_d = linear(h_d, p["dl_w"], p["dl_b"])
            h_d, c_d = lstm_cell(t2h_d + d2h_d, h_d, c_d,
                                 p["d_wih"], p["d_whh"], p["d_bih"], p["d_bhh"])
            outs_d.append(h_d)
        return jnp.stack(outs_t, 0), jnp.stack(outs_d, 0)

    Hd = params["t_lin"][0].shape[0]
    o_t, _ = grid_layer(x, params["enc"], Hd)
    o_t1, o_d1 = grid_layer(o_t, params["dec"], Hd)
    wt, bt = params["t_lin"]
    wd, bd = params["d_lin"]
    return linear(o_t1, wt, bt), linear(o_d1, wd, bd)


if __name__ == "__main__":
    S, B, Din, Hd = 8, 2, 16, 32  # seq, batch, input_size, hidden_dim
    key = jax.random.PRNGKey(0)
    kx, kp = jax.random.split(key)
    x = jax.random.normal(kx, (S, B, Din), jnp.float32)
    params = make_net_params(kp, Din, Hd)
    fused = fuse_net_params(params)        # one-time weight fusion, outside jit

    fwd = jax.jit(mul_grid_lstm_net)
    out_t, out_d = fwd(x, fused)
    jax.block_until_ready((out_t, out_d))

    assert out_t.shape == (S, B, Din), out_t.shape
    assert out_d.shape == (S, B, Din), out_d.shape
    assert out_t.dtype == jnp.float32 and out_d.dtype == jnp.float32

    # numerical cross-check against the literal (unfused) formulation
    ref_t, ref_d = reference_forward(x, params)
    err_t = float(jnp.max(jnp.abs(out_t - ref_t)))
    err_d = float(jnp.max(jnp.abs(out_d - ref_d)))
    assert err_t < 2e-2 and err_d < 2e-2, (err_t, err_d)

    print("KERNEL_OK")
</pallas_src>

<mosaic_0001>
module attributes {stable_mosaic.version = 11 : i64} {
  func.func @net_kernel(%arg0: memref<2x8x16xf32, #tpu.memory_space<vmem>>, %arg1: memref<16x96xf32, #tpu.memory_space<vmem>>, %arg2: memref<32x16xf32, #tpu.memory_space<vmem>>, %arg3: memref<1x16xf32, #tpu.memory_space<vmem>>, %arg4: memref<16x128xf32, #tpu.memory_space<vmem>>, %arg5: memref<1x128xf32, #tpu.memory_space<vmem>>, %arg6: memref<64x128xf32, #tpu.memory_space<vmem>>, %arg7: memref<64x128xf32, #tpu.memory_space<vmem>>, %arg8: memref<1x128xf32, #tpu.memory_space<vmem>>, %arg9: memref<32x192xf32, #tpu.memory_space<vmem>>, %arg10: memref<64x32xf32, #tpu.memory_space<vmem>>, %arg11: memref<1x32xf32, #tpu.memory_space<vmem>>, %arg12: memref<32x128xf32, #tpu.memory_space<vmem>>, %arg13: memref<1x128xf32, #tpu.memory_space<vmem>>, %arg14: memref<64x128xf32, #tpu.memory_space<vmem>>, %arg15: memref<64x128xf32, #tpu.memory_space<vmem>>, %arg16: memref<1x128xf32, #tpu.memory_space<vmem>>, %arg17: memref<32x16xf32, #tpu.memory_space<vmem>>, %arg18: memref<1x16xf32, #tpu.memory_space<vmem>>, %arg19: memref<32x16xf32, #tpu.memory_space<vmem>>, %arg20: memref<1x16xf32, #tpu.memory_space<vmem>>, %arg21: memref<16x16xf32, #tpu.memory_space<vmem>>, %arg22: memref<16x16xf32, #tpu.memory_space<vmem>>) attributes {dimension_semantics = [], scalar_prefetch = 0 : i64, scratch_operands = 0 : i64, tpu.core_type = #tpu.core_type<tc>} {
    %c0 = arith.constant 0 : index
    %c0_0 = arith.constant 0 : index
    %c0_1 = arith.constant 0 : index
    %0 = vector.load %arg0[%c0, %c0_0, %c0_1] : memref<2x8x16xf32, #tpu.memory_space<vmem>>, vector<1x8x16xf32>
    %1 = vector.shape_cast %0 : vector<1x8x16xf32> to vector<8x16xf32>
    %c1 = arith.constant 1 : index
    %c0_2 = arith.constant 0 : index
    %c0_3 = arith.constant 0 : index
    %2 = vector.load %arg0[%c1, %c0_2, %c0_3] : memref<2x8x16xf32, #tpu.memory_space<vmem>>, vector<1x8x16xf32>
    %3 = vector.shape_cast %2 : vector<1x8x16xf32> to vector<8x16xf32>
    %c0_4 = arith.constant 0 : index
    %c0_5 = arith.constant 0 : index
    %4 = vector.load %arg1[%c0_4, %c0_5] : memref<16x96xf32, #tpu.memory_space<vmem>>, vector<16x96xf32>
    %c0_6 = arith.constant 0 : index
    %c0_7 = arith.constant 0 : index
    %5 = vector.load %arg2[%c0_6, %c0_7] : memref<32x16xf32, #tpu.memory_space<vmem>>, vector<32x16xf32>
    %c0_8 = arith.constant 0 : index
    %c0_9 = arith.constant 0 : index
    %6 = vector.load %arg3[%c0_8, %c0_9] : memref<1x16xf32, #tpu.memory_space<vmem>>, vector<1x16xf32>
    %c0_10 = arith.constant 0 : index
    %c0_11 = arith.constant 0 : index
    %7 = vector.load %arg4[%c0_10, %c0_11] : memref<16x128xf32, #tpu.memory_space<vmem>>, vector<16x128xf32>
    %c0_12 = arith.constant 0 : index
    %c0_13 = arith.constant 0 : index
    %8 = vector.load %arg5[%c0_12, %c0_13] : memref<1x128xf32, #tpu.memory_space<vmem>>, vector<1x128xf32>
    %cst = arith.constant dense<0.000000e+00> : vector<8x96xf32>
    %9 = tpu.matmul %1, %4, %cst {dimension_numbers = #tpu.dot_dimension_numbers<[1], [0], [0], [1], [0, 0, 1, 1], [], []>} : vector<8x16xf32>, vector<16x96xf32>, vector<8x96xf32> -> vector<8x96xf32>
    %10 = vector.extract_strided_slice %9 {offsets = [0, 0], sizes = [8, 16], strides = [1, 1]} : vector<8x96xf32> to vector<8x16xf32>
    %11 = vector.extract_strided_slice %9 {offsets = [0, 16], sizes = [8, 16], strides = [1, 1]} : vector<8x96xf32> to vector<8x16xf32>
    %12 = vector.extract_strided_slice %9 {offsets = [0, 32], sizes = [8, 16], strides = [1, 1]} : vector<8x96xf32> to vector<8x16xf32>
    %13 = vector.extract_strided_slice %9 {offsets = [0, 48], sizes = [8, 16], strides = [1, 1]} : vector<8x96xf32> to vector<8x16xf32>
    %14 = vector.extract_strided_slice %9 {offsets = [0, 64], sizes = [8, 16], strides = [1, 1]} : vector<8x96xf32> to vector<8x16xf32>
    %15 = vector.extract_strided_slice %9 {offsets = [0, 80], sizes = [8, 16], strides = [1, 1]} : vector<8x96xf32> to vector<8x16xf32>
    %cst_14 = arith.constant dense<0.000000e+00> : vector<8x8xf32>
    %16 = tpu.matmul %13, %11, %cst_14 {dimension_numbers = #tpu.dot_dimension_numbers<[1], [1], [0], [0], [0, 0, 1, 0], [], []>} : vector<8x16xf32>, vector<8x16xf32>, vector<8x8xf32> -> vector<8x8xf32>
    %cst_15 = arith.constant dense<0xFF800000> : vector<8xf32>
    %17 = vector.multi_reduction <maximumf>, %16, %cst_15 [1] : vector<8x8xf32> to vector<8xf32>
    %18 = vector.shape_cast %17 : vector<8xf32> to vector<8x1xf32>
    %19 = vector.broadcast %18 : vector<8x1xf32> to vector<8x8xf32>
    %20 = arith.subf %16, %19 : vector<8x8xf32>
    %21 = math.exp %20 : vector<8x8xf32>
    %cst_16 = arith.constant dense<0.000000e+00> : vector<8xf32>
    %22 = vector.multi_reduction <add>, %21, %cst_16 [1] : vector<8x8xf32> to vector<8xf32>
    %23 = vector.shape_cast %22 : vector<8xf32> to vector<8x1xf32>
    %24 = vector.broadcast %23 : vector<8x1xf32> to vector<8x8xf32>
    %25 = arith.divf %21, %24 : vector<8x8xf32>
    %cst_17 = arith.constant dense<0.000000e+00> : vector<8x8xf32>
    %26 = tpu.matmul %10, %14, %cst_17 {dimension_numbers = #tpu.dot_dimension_numbers<[1], [1], [0], [0], [0, 0, 1, 0], [], []>} : vector<8x16xf32>, vector<8x16xf32>, vector<8x8xf32> -> vector<8x8xf32>
    %cst_18 = arith.constant dense<0xFF800000> : vector<8xf32>
    %27 = vector.multi_reduction <maximumf>, %26, %cst_18 [1] : vector<8x8xf32> to vector<8xf32>
    %28 = vector.shape_cast %27 : vector<8xf32> to vector<8x1xf32>
    %29 = vector.broadcast %28 : vector<8x1xf32> to vector<8x8xf32>
    %30 = arith.subf %26, %29 : vector<8x8xf32>
    %31 = math.exp %30 : vector<8x8xf32>
    %cst_19 = arith.constant dense<0.000000e+00> : vector<8xf32>
    %32 = vector.multi_reduction <add>, %31, %cst_19 [1] : vector<8x8xf32> to vector<8xf32>
    %33 = vector.shape_cast %32 : vector<8xf32> to vector<8x1xf32>
    %34 = vector.broadcast %33 : vector<8x1xf32> to vector<8x8xf32>
    %35 = arith.divf %31, %34 : vector<8x8xf32>
    %cst_20 = arith.constant dense<0.000000e+00> : vector<8x16xf32>
    %36 = tpu.matmul %25, %12, %cst_20 {dimension_numbers = #tpu.dot_dimension_numbers<[1], [0], [0], [1], [0, 0, 1, 1], [], []>} : vector<8x8xf32>, vector<8x16xf32>, vector<8x16xf32> -> vector<8x16xf32>
    %cst_21 = arith.constant dense<0.000000e+00> : vector<8x16xf32>
    %37 = tpu.matmul %35, %15, %cst_21 {dimension_numbers = #tpu.dot_dimension_numbers<[1], [0], [0], [1], [0, 0, 1, 1], [], []>} : vector<8x8xf32>, vector<8x16xf32>, vector<8x16xf32> -> vector<8x16xf32>
    %38 = tpu.concatenate %36, %37 in 1 : vector<8x16xf32>, vector<8x16xf32> -> vector<8x32xf32>
    %cst_22 = arith.constant dense<0.000000e+00> : vector<8x16xf32>
    %39 = tpu.matmul %38, %5, %cst_22 {dimension_numbers = #tpu.dot_dimension_numbers<[1], [0], [0], [1], [0, 0, 1, 1], [], []>} : vector<8x32xf32>, vector<32x16xf32>, vector<8x16xf32> -> vector<8x16xf32>
    %40 = vector.broadcast %6 : vector<1x16xf32> to vector<8x16xf32>
    %41 = arith.addf %39, %40 : vector<8x16xf32>
    %cst_23 = arith.constant dense<0.000000e+00> : vector<8x128xf32>
    %42 = tpu.matmul %41, %7, %cst_23 {dimension_numbers = #tpu.dot_dimension_numbers<[1], [0], [0], [1], [0, 0, 1, 1], [], []>} : vector<8x16xf32>, vector<16x128xf32>, vector<8x128xf32> -> vector<8x128xf32>
    %43 = vector.broadcast %8 : vector<1x128xf32> to vector<8x128xf32>
    %44 = arith.addf %42, %43 : vector<8x128xf32>
    %cst_24 = arith.constant dense<0.000000e+00> : vector<8x96xf32>
    %45 = tpu.matmul %3, %4, %cst_24 {dimension_numbers = #tpu.dot_dimension_numbers<[1], [0], [0], [1], [0, 0, 1, 1], [], []>} : vector<8x16xf32>, vector<16x96xf32>, vector<8x96xf32> -> vector<8x96xf32>
    %46 = vector.extract_strided_slice %45 {offsets = [0, 0], sizes = [8, 16], strides = [1, 1]} : vector<8x96xf32> to vector<8x16xf32>
    %47 = vector.extract_strided_slice %45 {offsets = [0, 16], sizes = [8, 16], strides = [1, 1]} : vector<8x96xf32> to vector<8x16xf32>
    %48 = vector.extract_strided_slice %45 {offsets = [0, 32], sizes = [8, 16], strides = [1, 1]} : vector<8x96xf32> to vector<8x16xf32>
    %49 = vector.extract_strided_slice %45 {offsets = [0, 48], sizes = [8, 16], strides = [1, 1]} : vector<8x96xf32> to vector<8x16xf32>
    %50 = vector.extract_strided_slice %45 {offsets = [0, 64], sizes = [8, 16], strides = [1, 1]} : vector<8x96xf32> to vector<8x16xf32>
    %51 = vector.extract_strided_slice %45 {offsets = [0, 80], sizes = [8, 16], strides = [1, 1]} : vector<8x96xf32> to vector<8x16xf32>
    %cst_25 = arith.constant dense<0.000000e+00> : vector<8x8xf32>
    %52 = tpu.matmul %49, %47, %cst_25 {dimension_numbers = #tpu.dot_dimension_numbers<[1], [1], [0], [0], [0, 0, 1, 0], [], []>} : vector<8x16xf32>, vector<8x16xf32>, vector<8x8xf32> -> vector<8x8xf32>
    %cst_26 = arith.constant dense<0xFF800000> : vector<8xf32>
    %53 = vector.multi_reduction <maximumf>, %52, %cst_26 [1] : vector<8x8xf32> to vector<8xf32>
    %54 = vector.shape_cast %53 : vector<8xf32> to vector<8x1xf32>
    %55 = vector.broadcast %54 : vector<8x1xf32> to vector<8x8xf32>
    %56 = arith.subf %52, %55 : vector<8x8xf32>
    %57 = math.exp %56 : vector<8x8xf32>
    %cst_27 = arith.constant dense<0.000000e+00> : vector<8xf32>
    %58 = vector.multi_reduction <add>, %57, %cst_27 [1] : vector<8x8xf32> to vector<8xf32>
    %59 = vector.shape_cast %58 : vector<8xf32> to vector<8x1xf32>
    %60 = vector.broadcast %59 : vector<8x1xf32> to vector<8x8xf32>
    %61 = arith.divf %57, %60 : vector<8x8xf32>
    %cst_28 = arith.constant dense<0.000000e+00> : vector<8x8xf32>
    %62 = tpu.matmul %46, %50, %cst_28 {dimension_numbers = #tpu.dot_dimension_numbers<[1], [1], [0], [0], [0, 0, 1, 0], [], []>} : vector<8x16xf32>, vector<8x16xf32>, vector<8x8xf32> -> vector<8x8xf32>
    %cst_29 = arith.constant dense<0xFF800000> : vector<8xf32>
    %63 = vector.multi_reduction <maximumf>, %62, %cst_29 [1] : vector<8x8xf32> to vector<8xf32>
    %64 = vector.shape_cast %63 : vector<8xf32> to vector<8x1xf32>
    %65 = vector.broadcast %64 : vector<8x1xf32> to vector<8x8xf32>
    %66 = arith.subf %62, %65 : vector<8x8xf32>
    %67 = math.exp %66 : vector<8x8xf32>
    %cst_30 = arith.constant dense<0.000000e+00> : vector<8xf32>
    %68 = vector.multi_reduction <add>, %67, %cst_30 [1] : vector<8x8xf32> to vector<8xf32>
    %69 = vector.shape_cast %68 : vector<8xf32> to vector<8x1xf32>
    %70 = vector.broadcast %69 : vector<8x1xf32> to vector<8x8xf32>
    %71 = arith.divf %67, %70 : vector<8x8xf32>
    %cst_31 = arith.constant dense<0.000000e+00> : vector<8x16xf32>
    %72 = tpu.matmul %61, %48, %cst_31 {dimension_numbers = #tpu.dot_dimension_numbers<[1], [0], [0], [1], [0, 0, 1, 1], [], []>} : vector<8x8xf32>, vector<8x16xf32>, vector<8x16xf32> -> vector<8x16xf32>
    %cst_32 = arith.constant dense<0.000000e+00> : vector<8x16xf32>
    %73 = tpu.matmul %71, %51, %cst_32 {dimension_numbers = #tpu.dot_dimension_numbers<[1], [0], [0], [1], [0, 0, 1, 1], [], []>} : vector<8x8xf32>, vector<8x16xf32>, vector<8x16xf32> -> vector<8x16xf32>
    %74 = tpu.concatenate %72, %73 in 1 : vector<8x16xf32>, vector<8x16xf32> -> vector<8x32xf32>
    %cst_33 = arith.constant dense<0.000000e+00> : vector<8x16xf32>
    %75 = tpu.matmul %74, %5, %cst_33 {dimension_numbers = #tpu.dot_dimension_numbers<[1], [0], [0], [1], [0, 0, 1, 1], [], []>} : vector<8x32xf32>, vector<32x16xf32>, vector<8x16xf32> -> vector<8x16xf32>
    %76 = vector.broadcast %6 : vector<1x16xf32> to vector<8x16xf32>
    %77 = arith.addf %75, %76 : vector<8x16xf32>
    %cst_34 = arith.constant dense<0.000000e+00> : vector<8x128xf32>
    %78 = tpu.matmul %77, %7, %cst_34 {dimension_numbers = #tpu.dot_dimension_numbers<[1], [0], [0], [1], [0, 0, 1, 1], [], []>} : vector<8x16xf32>, vector<16x128xf32>, vector<8x128xf32> -> vector<8x128xf32>
    %79 = vector.broadcast %8 : vector<1x128xf32> to vector<8x128xf32>
    %80 = arith.addf %78, %79 : vector<8x128xf32>
    %c0_35 = arith.constant 0 : index
    %c0_36 = arith.constant 0 : index
    %81 = vector.load %arg6[%c0_35, %c0_36] : memref<64x128xf32, #tpu.memory_space<vmem>>, vector<64x128xf32>
    %c0_37 = arith.constant 0 : index
    %c0_38 = arith.constant 0 : index
    %82 = vector.load %arg7[%c0_37, %c0_38] : memref<64x128xf32, #tpu.memory_space<vmem>>, vector<64x128xf32>
    %c0_39 = arith.constant 0 : index
    %c0_40 = arith.constant 0 : index
    %83 = vector.load %arg8[%c0_39, %c0_40] : memref<1x128xf32, #tpu.memory_space<vmem>>, vector<1x128xf32>
    %cst_41 = arith.constant 0.000000e+00 : f32
    %84 = vector.broadcast %cst_41 : f32 to vector<2x32xf32>
    %85 = vector.extract_strided_slice %44 {offsets = [0, 0], sizes = [1, 128], strides = [1, 1]} : vector<8x128xf32> to vector<1x128xf32>
    %86 = vector.extract_strided_slice %80 {offsets = [0, 0], sizes = [1, 128], strides = [1, 1]} : vector<8x128xf32> to vector<1x128xf32>
    %87 = tpu.concatenate %85, %86 in 0 : vector<1x128xf32>, vector<1x128xf32> -> vector<2x128xf32>
    %88 = tpu.concatenate %84, %84 in 1 : vector<2x32xf32>, vector<2x32xf32> -> vector<2x64xf32>
    %cst_42 = arith.constant dense<0.000000e+00> : vector<2x128xf32>
    %89 = tpu.matmul %88, %81, %cst_42 {dimension_numbers = #tpu.dot_dimension_numbers<[1], [0], [0], [1], [0, 0, 1, 1], [], []>} : vector<2x64xf32>, vector<64x128xf32>, vector<2x128xf32> -> vector<2x128xf32>
    %90 = arith.addf %87, %89 : vector<2x128xf32>
    %91 = arith.negf %90 : vector<2x128xf32>
    %92 = math.exp %91 : vector<2x128xf32>
    %cst_43 = arith.constant 1.000000e+00 : f32
    %93 = vector.broadcast %cst_43 : f32 to vector<2x128xf32>
    %94 = arith.addf %93, %92 : vector<2x128xf32>
    %95 = arith.divf %93, %94 : vector<2x128xf32>
    %96 = vector.extract_strided_slice %95 {offsets = [0, 0], sizes = [2, 32], strides = [1, 1]} : vector<2x128xf32> to vector<2x32xf32>
    %97 = vector.extract_strided_slice %95 {offsets = [0, 32], sizes = [2, 32], strides = [1, 1]} : vector<2x128xf32> to vector<2x32xf32>
    %98 = vector.extract_strided_slice %95 {offsets = [0, 96], sizes = [2, 32], strides = [1, 1]} : vector<2x128xf32> to vector<2x32xf32>
    %99 = vector.extract_strided_slice %90 {offsets = [0, 64], sizes = [2, 32], strides = [1, 1]} : vector<2x128xf32> to vector<2x32xf32>
    %100 = math.tanh %99 : vector<2x32xf32>
    %101 = arith.mulf %97, %84 : vector<2x32xf32>
    %102 = arith.mulf %96, %100 : vector<2x32xf32>
    %103 = arith.addf %101, %102 : vector<2x32xf32>
    %104 = math.tanh %103 : vector<2x32xf32>
    %105 = arith.mulf %98, %104 : vector<2x32xf32>
    %106 = tpu.concatenate %105, %84 in 1 : vector<2x32xf32>, vector<2x32xf32> -> vector<2x64xf32>
    %cst_44 = arith.constant dense<0.000000e+00> : vector<2x128xf32>
    %107 = tpu.matmul %106, %82, %cst_44 {dimension_numbers = #tpu.dot_dimension_numbers<[1], [0], [0], [1], [0, 0, 1, 1], [], []>} : vector<2x64xf32>, vector<64x128xf32>, vector<2x128xf32> -> vector<2x128xf32>
    %108 = vector.broadcast %83 : vector<1x128xf32> to vector<2x128xf32>
    %109 = arith.addf %107, %108 : vector<2x128xf32>
    %110 = arith.negf %109 : vector<2x128xf32>
    %111 = math.exp %110 : vector<2x128xf32>
    %cst_45 = arith.constant 1.000000e+00 : f32
    %112 = vector.broadcast %cst_45 : f32 to vector<2x128xf32>
    %113 = arith.addf %112, %111 : vector<2x128xf32>
    %114 = arith.divf %112, %113 : vector<2x128xf32>
    %115 = vector.extract_strided_slice %114 {offsets = [0, 0], sizes = [2, 32], strides = [1, 1]} : vector<2x128xf32> to vector<2x32xf32>
    %116 = vector.extract_strided_slice %114 {offsets = [0, 32], sizes = [2, 32], strides = [1, 1]} : vector<2x128xf32> to vector<2x32xf32>
    %117 = vector.extract_strided_slice %114 {offsets = [0, 96], sizes = [2, 32], strides = [1, 1]} : vector<2x128xf32> to vector<2x32xf32>
    %118 = vector.extract_strided_slice %109 {offsets = [0, 64], sizes = [2, 32], strides = [1, 1]} : vector<2x128xf32> to vector<2x32xf32>
    %119 = math.tanh %118 : vector<2x32xf32>
    %120 = arith.mulf %116, %84 : vector<2x32xf32>
    %121 = arith.mulf %115, %119 : vector<2x32xf32>
    %122 = arith.addf %120, %121 : vector<2x32xf32>
    %123 = math.tanh %122 : vector<2x32xf32>
    %124 = arith.mulf %117, %123 : vector<2x32xf32>
    %125 = vector.extract_strided_slice %44 {offsets = [1, 0], sizes = [1, 128], strides = [1, 1]} : vector<8x128xf32> to vector<1x128xf32>
    %126 = vector.extract_strided_slice %80 {offsets = [1, 0], sizes = [1, 128], strides = [1, 1]} : vector<8x128xf32> to vector<1x128xf32>
    %127 = tpu.concatenate %125, %126 in 0 : vector<1x128xf32>, vector<1x128xf32> -> vector<2x128xf32>
    %128 = tpu.concatenate %124, %105 in 1 : vector<2x32xf32>, vector<2x32xf32> -> vector<2x64xf32>
    %cst_46 = arith.constant dense<0.000000e+00> : vector<2x128xf32>
    %129 = tpu.matmul %128, %81, %cst_46 {dimension_numbers = #tpu.dot_dimension_numbers<[1], [0], [0], [1], [0, 0, 1, 1], [], []>} : vector<2x64xf32>, vector<64x128xf32>, vector<2x128xf32> -> vector<2x128xf32>
    %130 = arith.addf %127, %129 : vector<2x128xf32>
    %131 = arith.negf %130 : vector<2x128xf32>
    %132 = math.exp %131 : vector<2x128xf32>
    %cst_47 = arith.constant 1.000000e+00 : f32
    %133 = vector.broadcast %cst_47 : f32 to vector<2x128xf32>
    %134 = arith.addf %133, %132 : vector<2x128xf32>
    %135 = arith.divf %133, %134 : vector<2x128xf32>
    %136 = vector.extract_strided_slice %135 {offsets = [0, 0], sizes = [2, 32], strides = [1, 1]} : vector<2x128xf32> to vector<2x32xf32>
    %137 = vector.extract_strided_slice %135 {offsets = [0, 32], sizes = [2, 32], strides = [1, 1]} : vector<2x128xf32> to vector<2x32xf32>
    %138 = vector.extract_strided_slice %135 {offsets = [0, 96], sizes = [2, 32], strides = [1, 1]} : vector<2x128xf32> to vector<2x32xf32>
    %139 = vector.extract_strided_slice %130 {offsets = [0, 64], sizes = [2, 32], strides = [1, 1]} : vector<2x128xf32> to vector<2x32xf32>
    %140 = math.tanh %139 : vector<2x32xf32>
    %141 = arith.mulf %137, %103 : vector<2x32xf32>
    %142 = arith.mulf %136, %140 : vector<2x32xf32>
    %143 = arith.addf %141, %142 : vector<2x32xf32>
    %144 = math.tanh %143 : vector<2x32xf32>
    %145 = arith.mulf %138, %144 : vector<2x32xf32>
    %146 = tpu.concatenate %145, %124 in 1 : vector<2x32xf32>, vector<2x32xf32> -> vector<2x64xf32>
    %cst_48 = arith.constant dense<0.000000e+00> : vector<2x128xf32>
    %147 = tpu.matmul %146, %82, %cst_48 {dimension_numbers = #tpu.dot_dimension_numbers<[1], [0], [0], [1], [0, 0, 1, 1], [], []>} : vector<2x64xf32>, vector<64x128xf32>, vector<2x128xf32> -> vector<2x128xf32>
    %148 = vector.broadcast %83 : vector<1x128xf32> to vector<2x128xf32>
    %149 = arith.addf %147, %148 : vector<2x128xf32>
    %150 = arith.negf %149 : vector<2x128xf32>
    %151 = math.exp %150 : vector<2x128xf32>
    %cst_49 = arith.constant 1.000000e+00 : f32
    %152 = vector.broadcast %cst_49 : f32 to vector<2x128xf32>
    %153 = arith.addf %152, %151 : vector<2x128xf32>
    %154 = arith.divf %152, %153 : vector<2x128xf32>
    %155 = vector.extract_strided_slice %154 {offsets = [0, 0], sizes = [2, 32], strides = [1, 1]} : vector<2x128xf32> to vector<2x32xf32>
    %156 = vector.extract_strided_slice %154 {offsets = [0, 32], sizes = [2, 32], strides = [1, 1]} : vector<2x128xf32> to vector<2x32xf32>
    %157 = vector.extract_strided_slice %154 {offsets = [0, 96], sizes = [2, 32], strides = [1, 1]} : vector<2x128xf32> to vector<2x32xf32>
    %158 = vector.extract_strided_slice %149 {offsets = [0, 64], sizes = [2, 32], strides = [1, 1]} : vector<2x128xf32> to vector<2x32xf32>
    %159 = math.tanh %158 : vector<2x32xf32>
    %160 = arith.mulf %156, %122 : vector<2x32xf32>
    %161 = arith.mulf %155, %159 : vector<2x32xf32>
    %162 = arith.addf %160, %161 : vector<2x32xf32>
    %163 = math.tanh %162 : vector<2x32xf32>
    %164 = arith.mulf %157, %163 : vector<2x32xf32>
    %165 = vector.extract_strided_slice %44 {offsets = [2, 0], sizes = [1, 128], strides = [1, 1]} : vector<8x128xf32> to vector<1x128xf32>
    %166 = vector.extract_strided_slice %80 {offsets = [2, 0], sizes = [1, 128], strides = [1, 1]} : vector<8x128xf32> to vector<1x128xf32>
    %167 = tpu.concatenate %165, %166 in 0 : vector<1x128xf32>, vector<1x128xf32> -> vector<2x128xf32>
    %168 = tpu.concatenate %164, %145 in 1 : vector<2x32xf32>, vector<2x32xf32> -> vector<2x64xf32>
    %cst_50 = arith.constant dense<0.000000e+00> : vector<2x128xf32>
    %169 = tpu.matmul %168, %81, %cst_50 {dimension_numbers = #tpu.dot_dimension_numbers<[1], [0], [0], [1], [0, 0, 1, 1], [], []>} : vector<2x64xf32>, vector<64x128xf32>, vector<2x128xf32> -> vector<2x128xf32>
    %170 = arith.addf %167, %169 : vector<2x128xf32>
    %171 = arith.negf %170 : vector<2x128xf32>
    %172 = math.exp %171 : vector<2x128xf32>
    %cst_51 = arith.constant 1.000000e+00 : f32
    %173 = vector.broadcast %cst_51 : f32 to vector<2x128xf32>
    %174 = arith.addf %173, %172 : vector<2x128xf32>
    %175 = arith.divf %173, %174 : vector<2x128xf32>
    %176 = vector.extract_strided_slice %175 {offsets = [0, 0], sizes = [2, 32], strides = [1, 1]} : vector<2x128xf32> to vector<2x32xf32>
    %177 = vector.extract_strided_slice %175 {offsets = [0, 32], sizes = [2, 32], strides = [1, 1]} : vector<2x128xf32> to vector<2x32xf32>
    %178 = vector.extract_strided_slice %175 {offsets = [0, 96], sizes = [2, 32], strides = [1, 1]} : vector<2x128xf32> to vector<2x32xf32>
    %179 = vector.extract_strided_slice %170 {offsets = [0, 64], sizes = [2, 32], strides = [1, 1]} : vector<2x128xf32> to vector<2x32xf32>
    %180 = math.tanh %179 : vector<2x32xf32>
    %181 = arith.mulf %177, %143 : vector<2x32xf32>
    %182 = arith.mulf %176, %180 : vector<2x32xf32>
    %183 = arith.addf %181, %182 : vector<2x32xf32>
    %184 = math.tanh %183 : vector<2x32xf32>
    %185 = arith.mulf %178, %184 : vector<2x32xf32>
    %186 = tpu.concatenate %185, %164 in 1 : vector<2x32xf32>, vector<2x32xf32> -> vector<2x64xf32>
    %cst_52 = arith.constant dense<0.000000e+00> : vector<2x128xf32>
    %187 = tpu.matmul %186, %82, %cst_52 {dimension_numbers = #tpu.dot_dimension_numbers<[1], [0], [0], [1], [0, 0, 1, 1], [], []>} : vector<2x64xf32>, vector<64x128xf32>, vector<2x128xf32> -> vector<2x128xf32>
    %188 = vector.broadcast %83 : vector<1x128xf32> to vector<2x128xf32>
    %189 = arith.addf %187, %188 : vector<2x128xf32>
    %190 = arith.negf %189 : vector<2x128xf32>
    %191 = math.exp %190 : vector<2x128xf32>
    %cst_53 = arith.constant 1.000000e+00 : f32
    %192 = vector.broadcast %cst_53 : f32 to vector<2x128xf32>
    %193 = arith.addf %192, %191 : vector<2x128xf32>
    %194 = arith.divf %192, %193 : vector<2x128xf32>
    %195 = vector.extract_strided_slice %194 {offsets = [0, 0], sizes = [2, 32], strides = [1, 1]} : vector<2x128xf32> to vector<2x32xf32>
    %196 = vector.extract_strided_slice %194 {offsets = [0, 32], sizes = [2, 32], strides = [1, 1]} : vector<2x128xf32> to vector<2x32xf32>
    %197 = vector.extract_strided_slice %194 {offsets = [0, 96], sizes = [2, 32], strides = [1, 1]} : vector<2x128xf32> to vector<2x32xf32>
    %198 = vector.extract_strided_slice %189 {offsets = [0, 64], sizes = [2, 32], strides = [1, 1]} : vector<2x128xf32> to vector<2x32xf32>
    %199 = math.tanh %198 : vector<2x32xf32>
    %200 = arith.mulf %196, %162 : vector<2x32xf32>
    %201 = arith.mulf %195, %199 : vector<2x32xf32>
    %202 = arith.addf %200, %201 : vector<2x32xf32>
    %203 = math.tanh %202 : vector<2x32xf32>
    %204 = arith.mulf %197, %203 : vector<2x32xf32>
    %205 = vector.extract_strided_slice %44 {offsets = [3, 0], sizes = [1, 128], strides = [1, 1]} : vector<8x128xf32> to vector<1x128xf32>
    %206 = vector.extract_strided_slice %80 {offsets = [3, 0], sizes = [1, 128], strides = [1, 1]} : vector<8x128xf32> to vector<1x128xf32>
    %207 = tpu.concatenate %205, %206 in 0 : vector<1x128xf32>, vector<1x128xf32> -> vector<2x128xf32>
    %208 = tpu.concatenate %204, %185 in 1 : vector<2x32xf32>, vector<2x32xf32> -> vector<2x64xf32>
    %cst_54 = arith.constant dense<0.000000e+00> : vector<2x128xf32>
    %209 = tpu.matmul %208, %81, %cst_54 {dimension_numbers = #tpu.dot_dimension_numbers<[1], [0], [0], [1], [0, 0, 1, 1], [], []>} : vector<2x64xf32>, vector<64x128xf32>, vector<2x128xf32> -> vector<2x128xf32>
    %210 = arith.addf %207, %209 : vector<2x128xf32>
    %211 = arith.negf %210 : vector<2x128xf32>
    %212 = math.exp %211 : vector<2x128xf32>
    %cst_55 = arith.constant 1.000000e+00 : f32
    %213 = vector.broadcast %cst_55 : f32 to vector<2x128xf32>
    %214 = arith.addf %213, %212 : vector<2x128xf32>
    %215 = arith.divf %213, %214 : vector<2x128xf32>
    %216 = vector.extract_strided_slice %215 {offsets = [0, 0], sizes = [2, 32], strides = [1, 1]} : vector<2x128xf32> to vector<2x32xf32>
    %217 = vector.extract_strided_slice %215 {offsets = [0, 32], sizes = [2, 32], strides = [1, 1]} : vector<2x128xf32> to vector<2x32xf32>
    %218 = vector.extract_strided_slice %215 {offsets = [0, 96], sizes = [2, 32], strides = [1, 1]} : vector<2x128xf32> to vector<2x32xf32>
    %219 = vector.extract_strided_slice %210 {offsets = [0, 64], sizes = [2, 32], strides = [1, 1]} : vector<2x128xf32> to vector<2x32xf32>
    %220 = math.tanh %219 : vector<2x32xf32>
    %221 = arith.mulf %217, %183 : vector<2x32xf32>
    %222 = arith.mulf %216, %220 : vector<2x32xf32>
    %223 = arith.addf %221, %222 : vector<2x32xf32>
    %224 = math.tanh %223 : vector<2x32xf32>
    %225 = arith.mulf %218, %224 : vector<2x32xf32>
    %226 = tpu.concatenate %225, %204 in 1 : vector<2x32xf32>, vector<2x32xf32> -> vector<2x64xf32>
    %cst_56 = arith.constant dense<0.000000e+00> : vector<2x128xf32>
    %227 = tpu.matmul %226, %82, %cst_56 {dimension_numbers = #tpu.dot_dimension_numbers<[1], [0], [0], [1], [0, 0, 1, 1], [], []>} : vector<2x64xf32>, vector<64x128xf32>, vector<2x128xf32> -> vector<2x128xf32>
    %228 = vector.broadcast %83 : vector<1x128xf32> to vector<2x128xf32>
    %229 = arith.addf %227, %228 : vector<2x128xf32>
    %230 = arith.negf %229 : vector<2x128xf32>
    %231 = math.exp %230 : vector<2x128xf32>
    %cst_57 = arith.constant 1.000000e+00 : f32
    %232 = vector.broadcast %cst_57 : f32 to vector<2x128xf32>
    %233 = arith.addf %232, %231 : vector<2x128xf32>
    %234 = arith.divf %232, %233 : vector<2x128xf32>
    %235 = vector.extract_strided_slice %234 {offsets = [0, 0], sizes = [2, 32], strides = [1, 1]} : vector<2x128xf32> to vector<2x32xf32>
    %236 = vector.extract_strided_slice %234 {offsets = [0, 32], sizes = [2, 32], strides = [1, 1]} : vector<2x128xf32> to vector<2x32xf32>
    %237 = vector.extract_strided_slice %234 {offsets = [0, 96], sizes = [2, 32], strides = [1, 1]} : vector<2x128xf32> to vector<2x32xf32>
    %238 = vector.extract_strided_slice %229 {offsets = [0, 64], sizes = [2, 32], strides = [1, 1]} : vector<2x128xf32> to vector<2x32xf32>
    %239 = math.tanh %238 : vector<2x32xf32>
    %240 = arith.mulf %236, %202 : vector<2x32xf32>
    %241 = arith.mulf %235, %239 : vector<2x32xf32>
    %242 = arith.addf %240, %241 : vector<2x32xf32>
    %243 = math.tanh %242 : vector<2x32xf32>
    %244 = arith.mulf %237, %243 : vector<2x32xf32>
    %245 = vector.extract_strided_slice %44 {offsets = [4, 0], sizes = [1, 128], strides = [1, 1]} : vector<8x128xf32> to vector<1x128xf32>
    %246 = vector.extract_strided_slice %80 {offsets = [4, 0], sizes = [1, 128], strides = [1, 1]} : vector<8x128xf32> to vector<1x128xf32>
    %247 = tpu.concatenate %245, %246 in 0 : vector<1x128xf32>, vector<1x128xf32> -> vector<2x128xf32>
    %248 = tpu.concatenate %244, %225 in 1 : vector<2x32xf32>, vector<2x32xf32> -> vector<2x64xf32>
    %cst_58 = arith.constant dense<0.000000e+00> : vector<2x128xf32>
    %249 = tpu.matmul %248, %81, %cst_58 {dimension_numbers = #tpu.dot_dimension_numbers<[1], [0], [0], [1], [0, 0, 1, 1], [], []>} : vector<2x64xf32>, vector<64x128xf32>, vector<2x128xf32> -> vector<2x128xf32>
    %250 = arith.addf %247, %249 : vector<2x128xf32>
    %251 = arith.negf %250 : vector<2x128xf32>
    %252 = math.exp %251 : vector<2x128xf32>
    %cst_59 = arith.constant 1.000000e+00 : f32
    %253 = vector.broadcast %cst_59 : f32 to vector<2x128xf32>
    %254 = arith.addf %253, %252 : vector<2x128xf32>
    %255 = arith.divf %253, %254 : vector<2x128xf32>
    %256 = vector.extract_strided_slice %255 {offsets = [0, 0], sizes = [2, 32], strides = [1, 1]} : vector<2x128xf32> to vector<2x32xf32>
    %257 = vector.extract_strided_slice %255 {offsets = [0, 32], sizes = [2, 32], strides = [1, 1]} : vector<2x128xf32> to vector<2x32xf32>
    %258 = vector.extract_strided_slice %255 {offsets = [0, 96], sizes = [2, 32], strides = [1, 1]} : vector<2x128xf32> to vector<2x32xf32>
    %259 = vector.extract_strided_slice %250 {offsets = [0, 64], sizes = [2, 32], strides = [1, 1]} : vector<2x128xf32> to vector<2x32xf32>
    %260 = math.tanh %259 : vector<2x32xf32>
    %261 = arith.mulf %257, %223 : vector<2x32xf32>
    %262 = arith.mulf %256, %260 : vector<2x32xf32>
    %263 = arith.addf %261, %262 : vector<2x32xf32>
    %264 = math.tanh %263 : vector<2x32xf32>
    %265 = arith.mulf %258, %264 : vector<2x32xf32>
    %266 = tpu.concatenate %265, %244 in 1 : vector<2x32xf32>, vector<2x32xf32> -> vector<2x64xf32>
    %cst_60 = arith.constant dense<0.000000e+00> : vector<2x128xf32>
    %267 = tpu.matmul %266, %82, %cst_60 {dimension_numbers = #tpu.dot_dimension_numbers<[1], [0], [0], [1], [0, 0, 1, 1], [], []>} : vector<2x64xf32>, vector<64x128xf32>, vector<2x128xf32> -> vector<2x128xf32>
    %268 = vector.broadcast %83 : vector<1x128xf32> to vector<2x128xf32>
    %269 = arith.addf %267, %268 : vector<2x128xf32>
    %270 = arith.negf %269 : vector<2x128xf32>
    %271 = math.exp %270 : vector<2x128xf32>
    %cst_61 = arith.constant 1.000000e+00 : f32
    %272 = vector.broadcast %cst_61 : f32 to vector<2x128xf32>
    %273 = arith.addf %272, %271 : vector<2x128xf32>
    %274 = arith.divf %272, %273 : vector<2x128xf32>
    %275 = vector.extract_strided_slice %274 {offsets = [0, 0], sizes = [2, 32], strides = [1, 1]} : vector<2x128xf32> to vector<2x32xf32>
    %276 = vector.extract_strided_slice %274 {offsets = [0, 32], sizes = [2, 32], strides = [1, 1]} : vector<2x128xf32> to vector<2x32xf32>
    %277 = vector.extract_strided_slice %274 {offsets = [0, 96], sizes = [2, 32], strides = [1, 1]} : vector<2x128xf32> to vector<2x32xf32>
    %278 = vector.extract_strided_slice %269 {offsets = [0, 64], sizes = [2, 32], strides = [1, 1]} : vector<2x128xf32> to vector<2x32xf32>
    %279 = math.tanh %278 : vector<2x32xf32>
    %280 = arith.mulf %276, %242 : vector<2x32xf32>
    %281 = arith.mulf %275, %279 : vector<2x32xf32>
    %282 = arith.addf %280, %281 : vector<2x32xf32>
    %283 = math.tanh %282 : vector<2x32xf32>
    %284 = arith.mulf %277, %283 : vector<2x32xf32>
    %285 = vector.extract_strided_slice %44 {offsets = [5, 0], sizes = [1, 128], strides = [1, 1]} : vector<8x128xf32> to vector<1x128xf32>
    %286 = vector.extract_strided_slice %80 {offsets = [5, 0], sizes = [1, 128], strides = [1, 1]} : vector<8x128xf32> to vector<1x128xf32>
    %287 = tpu.concatenate %285, %286 in 0 : vector<1x128xf32>, vector<1x128xf32> -> vector<2x128xf32>
    %288 = tpu.concatenate %284, %265 in 1 : vector<2x32xf32>, vector<2x32xf32> -> vector<2x64xf32>
    %cst_62 = arith.constant dense<0.000000e+00> : vector<2x128xf32>
    %289 = tpu.matmul %288, %81, %cst_62 {dimension_numbers = #tpu.dot_dimension_numbers<[1], [0], [0], [1], [0, 0, 1, 1], [], []>} : vector<2x64xf32>, vector<64x128xf32>, vector<2x128xf32> -> vector<2x128xf32>
    %290 = arith.addf %287, %289 : vector<2x128xf32>
    %291 = arith.negf %290 : vector<2x128xf32>
    %292 = math.exp %291 : vector<2x128xf32>
    %cst_63 = arith.constant 1.000000e+00 : f32
    %293 = vector.broadcast %cst_63 : f32 to vector<2x128xf32>
    %294 = arith.addf %293, %292 : vector<2x128xf32>
    %295 = arith.divf %293, %294 : vector<2x128xf32>
    %296 = vector.extract_strided_slice %295 {offsets = [0, 0], sizes = [2, 32], strides = [1, 1]} : vector<2x128xf32> to vector<2x32xf32>
    %297 = vector.extract_strided_slice %295 {offsets = [0, 32], sizes = [2, 32], strides = [1, 1]} : vector<2x128xf32> to vector<2x32xf32>
    %298 = vector.extract_strided_slice %295 {offsets = [0, 96], sizes = [2, 32], strides = [1, 1]} : vector<2x128xf32> to vector<2x32xf32>
    %299 = vector.extract_strided_slice %290 {offsets = [0, 64], sizes = [2, 32], strides = [1, 1]} : vector<2x128xf32> to vector<2x32xf32>
    %300 = math.tanh %299 : vector<2x32xf32>
    %301 = arith.mulf %297, %263 : vector<2x32xf32>
    %302 = arith.mulf %296, %300 : vector<2x32xf32>
    %303 = arith.addf %301, %302 : vector<2x32xf32>
    %304 = math.tanh %303 : vector<2x32xf32>
    %305 = arith.mulf %298, %304 : vector<2x32xf32>
    %306 = tpu.concatenate %305, %284 in 1 : vector<2x32xf32>, vector<2x32xf32> -> vector<2x64xf32>
    %cst_64 = arith.constant dense<0.000000e+00> : vector<2x128xf32>
    %307 = tpu.matmul %306, %82, %cst_64 {dimension_numbers = #tpu.dot_dimension_numbers<[1], [0], [0], [1], [0, 0, 1, 1], [], []>} : vector<2x64xf32>, vector<64x128xf32>, vector<2x128xf32> -> vector<2x128xf32>
    %308 = vector.broadcast %83 : vector<1x128xf32> to vector<2x128xf32>
    %309 = arith.addf %307, %308 : vector<2x128xf32>
    %310 = arith.negf %309 : vector<2x128xf32>
    %311 = math.exp %310 : vector<2x128xf32>
    %cst_65 = arith.constant 1.000000e+00 : f32
    %312 = vector.broadcast %cst_65 : f32 to vector<2x128xf32>
    %313 = arith.addf %312, %311 : vector<2x128xf32>
    %314 = arith.divf %312, %313 : vector<2x128xf32>
    %315 = vector.extract_strided_slice %314 {offsets = [0, 0], sizes = [2, 32], strides = [1, 1]} : vector<2x128xf32> to vector<2x32xf32>
    %316 = vector.extract_strided_slice %314 {offsets = [0, 32], sizes = [2, 32], strides = [1, 1]} : vector<2x128xf32> to vector<2x32xf32>
    %317 = vector.extract_strided_slice %314 {offsets = [0, 96], sizes = [2, 32], strides = [1, 1]} : vector<2x128xf32> to vector<2x32xf32>
    %318 = vector.extract_strided_slice %309 {offsets = [0, 64], sizes = [2, 32], strides = [1, 1]} : vector<2x128xf32> to vector<2x32xf32>
    %319 = math.tanh %318 : vector<2x32xf32>
    %320 = arith.mulf %316, %282 : vector<2x32xf32>
    %321 = arith.mulf %315, %319 : vector<2x32xf32>
    %322 = arith.addf %320, %321 : vector<2x32xf32>
    %323 = math.tanh %322 : vector<2x32xf32>
    %324 = arith.mulf %317, %323 : vector<2x32xf32>
    %325 = vector.extract_strided_slice %44 {offsets = [6, 0], sizes = [1, 128], strides = [1, 1]} : vector<8x128xf32> to vector<1x128xf32>
    %326 = vector.extract_strided_slice %80 {offsets = [6, 0], sizes = [1, 128], strides = [1, 1]} : vector<8x128xf32> to vector<1x128xf32>
    %327 = tpu.concatenate %325, %326 in 0 : vector<1x128xf32>, vector<1x128xf32> -> vector<2x128xf32>
    %328 = tpu.concatenate %324, %305 in 1 : vector<2x32xf32>, vector<2x32xf32> -> vector<2x64xf32>
    %cst_66 = arith.constant dense<0.000000e+00> : vector<2x128xf32>
    %329 = tpu.matmul %328, %81, %cst_66 {dimension_numbers = #tpu.dot_dimension_numbers<[1], [0], [0], [1], [0, 0, 1, 1], [], []>} : vector<2x64xf32>, vector<64x128xf32>, vector<2x128xf32> -> vector<2x128xf32>
    %330 = arith.addf %327, %329 : vector<2x128xf32>
    %331 = arith.negf %330 : vector<2x128xf32>
    %332 = math.exp %331 : vector<2x128xf32>
    %cst_67 = arith.constant 1.000000e+00 : f32
    %333 = vector.broadcast %cst_67 : f32 to vector<2x128xf32>
    %334 = arith.addf %333, %332 : vector<2x128xf32>
    %335 = arith.divf %333, %334 : vector<2x128xf32>
    %336 = vector.extract_strided_slice %335 {offsets = [0, 0], sizes = [2, 32], strides = [1, 1]} : vector<2x128xf32> to vector<2x32xf32>
    %337 = vector.extract_strided_slice %335 {offsets = [0, 32], sizes = [2, 32], strides = [1, 1]} : vector<2x128xf32> to vector<2x32xf32>
    %338 = vector.extract_strided_slice %335 {offsets = [0, 96], sizes = [2, 32], strides = [1, 1]} : vector<2x128xf32> to vector<2x32xf32>
    %339 = vector.extract_strided_slice %330 {offsets = [0, 64], sizes = [2, 32], strides = [1, 1]} : vector<2x128xf32> to vector<2x32xf32>
    %340 = math.tanh %339 : vector<2x32xf32>
    %341 = arith.mulf %337, %303 : vector<2x32xf32>
    %342 = arith.mulf %336, %340 : vector<2x32xf32>
    %343 = arith.addf %341, %342 : vector<2x32xf32>
    %344 = math.tanh %343 : vector<2x32xf32>
    %345 = arith.mulf %338, %344 : vector<2x32xf32>
    %346 = tpu.concatenate %345, %324 in 1 : vector<2x32xf32>, vector<2x32xf32> -> vector<2x64xf32>
    %cst_68 = arith.constant dense<0.000000e+00> : vector<2x128xf32>
    %347 = tpu.matmul %346, %82, %cst_68 {dimension_numbers = #tpu.dot_dimension_numbers<[1], [0], [0], [1], [0, 0, 1, 1], [], []>} : vector<2x64xf32>, vector<64x128xf32>, vector<2x128xf32> -> vector<2x128xf32>
    %348 = vector.broadcast %83 : vector<1x128xf32> to vector<2x128xf32>
    %349 = arith.addf %347, %348 : vector<2x128xf32>
    %350 = arith.negf %349 : vector<2x128xf32>
    %351 = math.exp %350 : vector<2x128xf32>
    %cst_69 = arith.constant 1.000000e+00 : f32
    %352 = vector.broadcast %cst_69 : f32 to vector<2x128xf32>
    %353 = arith.addf %352, %351 : vector<2x128xf32>
    %354 = arith.divf %352, %353 : vector<2x128xf32>
    %355 = vector.extract_strided_slice %354 {offsets = [0, 0], sizes = [2, 32], strides = [1, 1]} : vector<2x128xf32> to vector<2x32xf32>
    %356 = vector.extract_strided_slice %354 {offsets = [0, 32], sizes = [2, 32], strides = [1, 1]} : vector<2x128xf32> to vector<2x32xf32>
    %357 = vector.extract_strided_slice %354 {offsets = [0, 96], sizes = [2, 32], strides = [1, 1]} : vector<2x128xf32> to vector<2x32xf32>
    %358 = vector.extract_strided_slice %349 {offsets = [0, 64], sizes = [2, 32], strides = [1, 1]} : vector<2x128xf32> to vector<2x32xf32>
    %359 = math.tanh %358 : vector<2x32xf32>
    %360 = arith.mulf %356, %322 : vector<2x32xf32>
    %361 = arith.mulf %355, %359 : vector<2x32xf32>
    %362 = arith.addf %360, %361 : vector<2x32xf32>
    %363 = math.tanh %362 : vector<2x32xf32>
    %364 = arith.mulf %357, %363 : vector<2x32xf32>
    %365 = vector.extract_strided_slice %44 {offsets = [7, 0], sizes = [1, 128], strides = [1, 1]} : vector<8x128xf32> to vector<1x128xf32>
    %366 = vector.extract_strided_slice %80 {offsets = [7, 0], sizes = [1, 128], strides = [1, 1]} : vector<8x128xf32> to vector<1x128xf32>
    %367 = tpu.concatenate %365, %366 in 0 : vector<1x128xf32>, vector<1x128xf32> -> vector<2x128xf32>
    %368 = tpu.concatenate %364, %345 in 1 : vector<2x32xf32>, vector<2x32xf32> -> vector<2x64xf32>
    %cst_70 = arith.constant dense<0.000000e+00> : vector<2x128xf32>
    %369 = tpu.matmul %368, %81, %cst_70 {dimension_numbers = #tpu.dot_dimension_numbers<[1], [0], [0], [1], [0, 0, 1, 1], [], []>} : vector<2x64xf32>, vector<64x128xf32>, vector<2x128xf32> -> vector<2x128xf32>
    %370 = arith.addf %367, %369 : vector<2x128xf32>
    %371 = arith.negf %370 : vector<2x128xf32>
    %372 = math.exp %371 : vector<2x128xf32>
    %cst_71 = arith.constant 1.000000e+00 : f32
    %373 = vector.broadcast %cst_71 : f32 to vector<2x128xf32>
    %374 = arith.addf %373, %372 : vector<2x128xf32>
    %375 = arith.divf %373, %374 : vector<2x128xf32>
    %376 = vector.extract_strided_slice %375 {offsets = [0, 0], sizes = [2, 32], strides = [1, 1]} : vector<2x128xf32> to vector<2x32xf32>
    %377 = vector.extract_strided_slice %375 {offsets = [0, 32], sizes = [2, 32], strides = [1, 1]} : vector<2x128xf32> to vector<2x32xf32>
    %378 = vector.extract_strided_slice %375 {offsets = [0, 96], sizes = [2, 32], strides = [1, 1]} : vector<2x128xf32> to vector<2x32xf32>
    %379 = vector.extract_strided_slice %370 {offsets = [0, 64], sizes = [2, 32], strides = [1, 1]} : vector<2x128xf32> to vector<2x32xf32>
    %380 = math.tanh %379 : vector<2x32xf32>
    %381 = arith.mulf %377, %343 : vector<2x32xf32>
    %382 = arith.mulf %376, %380 : vector<2x32xf32>
    %383 = arith.addf %381, %382 : vector<2x32xf32>
    %384 = math.tanh %383 : vector<2x32xf32>
    %385 = arith.mulf %378, %384 : vector<2x32xf32>
    %386 = vector.extract_strided_slice %105 {offsets = [0, 0], sizes = [1, 32], strides = [1, 1]} : vector<2x32xf32> to vector<1x32xf32>
    %387 = vector.extract_strided_slice %145 {offsets = [0, 0], sizes = [1, 32], strides = [1, 1]} : vector<2x32xf32> to vector<1x32xf32>
    %388 = vector.extract_strided_slice %185 {offsets = [0, 0], sizes = [1, 32], strides = [1, 1]} : vector<2x32xf32> to vector<1x32xf32>
    %389 = vector.extract_strided_slice %225 {offsets = [0, 0], sizes = [1, 32], strides = [1, 1]} : vector<2x32xf32> to vector<1x32xf32>
    %390 = vector.extract_strided_slice %265 {offsets = [0, 0], sizes = [1, 32], strides = [1, 1]} : vector<2x32xf32> to vector<1x32xf32>
    %391 = vector.extract_strided_slice %305 {offsets = [0, 0], sizes = [1, 32], strides = [1, 1]} : vector<2x32xf32> to vector<1x32xf32>
    %392 = vector.extract_strided_slice %345 {offsets = [0, 0], sizes = [1, 32], strides = [1, 1]} : vector<2x32xf32> to vector<1x32xf32>
    %393 = vector.extract_strided_slice %385 {offsets = [0, 0], sizes = [1, 32], strides = [1, 1]} : vector<2x32xf32> to vector<1x32xf32>
    %394 = tpu.concatenate %386, %387, %388, %389, %390, %391, %392, %393 in 0 : vector<1x32xf32>, vector<1x32xf32>, vector<1x32xf32>, vector<1x32xf32>, vector<1x32xf32>, vector<1x32xf32>, vector<1x32xf32>, vector<1x32xf32> -> vector<8x32xf32>
    %395 = vector.extract_strided_slice %105 {offsets = [1, 0], sizes = [1, 32], strides = [1, 1]} : vector<2x32xf32> to vector<1x32xf32>
    %396 = vector.extract_strided_slice %145 {offsets = [1, 0], sizes = [1, 32], strides = [1, 1]} : vector<2x32xf32> to vector<1x32xf32>
    %397 = vector.extract_strided_slice %185 {offsets = [1, 0], sizes = [1, 32], strides = [1, 1]} : vector<2x32xf32> to vector<1x32xf32>
    %398 = vector.extract_strided_slice %225 {offsets = [1, 0], sizes = [1, 32], strides = [1, 1]} : vector<2x32xf32> to vector<1x32xf32>
    %399 = vector.extract_strided_slice %265 {offsets = [1, 0], sizes = [1, 32], strides = [1, 1]} : vector<2x32xf32> to vector<1x32xf32>
    %400 = vector.extract_strided_slice %305 {offsets = [1, 0], sizes = [1, 32], strides = [1, 1]} : vector<2x32xf32> to vector<1x32xf32>
    %401 = vector.extract_strided_slice %345 {offsets = [1, 0], sizes = [1, 32], strides = [1, 1]} : vector<2x32xf32> to vector<1x32xf32>
    %402 = vector.extract_strided_slice %385 {offsets = [1, 0], sizes = [1, 32], strides = [1, 1]} : vector<2x32xf32> to vector<1x32xf32>
    %403 = tpu.concatenate %395, %396, %397, %398, %399, %400, %401, %402 in 0 : vector<1x32xf32>, vector<1x32xf32>, vector<1x32xf32>, vector<1x32xf32>, vector<1x32xf32>, vector<1x32xf32>, vector<1x32xf32>, vector<1x32xf32> -> vector<8x32xf32>
    %c0_72 = arith.constant 0 : index
    %c0_73 = arith.constant 0 : index
    %404 = vector.load %arg9[%c0_72, %c0_73] : memref<32x192xf32, #tpu.memory_space<vmem>>, vector<32x192xf32>
    %c0_74 = arith.constant 0 : index
    %c0_75 = arith.constant 0 : index
    %405 = vector.load %arg10[%c0_74, %c0_75] : memref<64x32xf32, #tpu.memory_space<vmem>>, vector<64x32xf32>
    %c0_76 = arith.constant 0 : index
    %c0_77 = arith.constant 0 : index
    %406 = vector.load %arg11[%c0_76, %c0_77] : memref<1x32xf32, #tpu.memory_space<vmem>>, vector<1x32xf32>
    %c0_78 = arith.constant 0 : index
    %c0_79 = arith.constant 0 : index
    %407 = vector.load %arg12[%c0_78, %c0_79] : memref<32x128xf32, #tpu.memory_space<vmem>>, vector<32x128xf32>
    %c0_80 = arith.constant 0 : index
    %c0_81 = arith.constant 0 : index
    %408 = vector.load %arg13[%c0_80, %c0_81] : memref<1x128xf32, #tpu.memory_space<vmem>>, vector<1x128xf32>
    %cst_82 = arith.constant dense<0.000000e+00> : vector<8x192xf32>
    %409 = tpu.matmul %394, %404, %cst_82 {dimension_numbers = #tpu.dot_dimension_numbers<[1], [0], [0], [1], [0, 0, 1, 1], [], []>} : vector<8x32xf32>, vector<32x192xf32>, vector<8x192xf32> -> vector<8x192xf32>
    %410 = vector.extract_strided_slice %409 {offsets = [0, 0], sizes = [8, 32], strides = [1, 1]} : vector<8x192xf32> to vector<8x32xf32>
    %411 = vector.extract_strided_slice %409 {offsets = [0, 32], sizes = [8, 32], strides = [1, 1]} : vector<8x192xf32> to vector<8x32xf32>
    %412 = vector.extract_strided_slice %409 {offsets = [0, 64], sizes = [8, 32], strides = [1, 1]} : vector<8x192xf32> to vector<8x32xf32>
    %413 = vector.extract_strided_slice %409 {offsets = [0, 96], sizes = [8, 32], strides = [1, 1]} : vector<8x192xf32> to vector<8x32xf32>
    %414 = vector.extract_strided_slice %409 {offsets = [0, 128], sizes = [8, 32], strides = [1, 1]} : vector<8x192xf32> to vector<8x32xf32>
    %415 = vector.extract_strided_slice %409 {offsets = [0, 160], sizes = [8, 32], strides = [1, 1]} : vector<8x192xf32> to vector<8x32xf32>
    %cst_83 = arith.constant dense<0.000000e+00> : vector<8x8xf32>
    %416 = tpu.matmul %413, %411, %cst_83 {dimension_numbers = #tpu.dot_dimension_numbers<[1], [1], [0], [0], [0, 0, 1, 0], [], []>} : vector<8x32xf32>, vector<8x32xf32>, vector<8x8xf32> -> vector<8x8xf32>
    %cst_84 = arith.constant dense<0xFF800000> : vector<8xf32>
    %417 = vector.multi_reduction <maximumf>, %416, %cst_84 [1] : vector<8x8xf32> to vector<8xf32>
    %418 = vector.shape_cast %417 : vector<8xf32> to vector<8x1xf32>
    %419 = vector.broadcast %418 : vector<8x1xf32> to vector<8x8xf32>
    %420 = arith.subf %416, %419 : vector<8x8xf32>
    %421 = math.exp %420 : vector<8x8xf32>
    %cst_85 = arith.constant dense<0.000000e+00> : vector<8xf32>
    %422 = vector.multi_reduction <add>, %421, %cst_85 [1] : vector<8x8xf32> to vector<8xf32>
    %423 = vector.shape_cast %422 : vector<8xf32> to vector<8x1xf32>
    %424 = vector.broadcast %423 : vector<8x1xf32> to vector<8x8xf32>
    %425 = arith.divf %421, %424 : vector<8x8xf32>
    %cst_86 = arith.constant dense<0.000000e+00> : vector<8x8xf32>
    %426 = tpu.matmul %410, %414, %cst_86 {dimension_numbers = #tpu.dot_dimension_numbers<[1], [1], [0], [0], [0, 0, 1, 0], [], []>} : vector<8x32xf32>, vector<8x32xf32>, vector<8x8xf32> -> vector<8x8xf32>
    %cst_87 = arith.constant dense<0xFF800000> : vector<8xf32>
    %427 = vector.multi_reduction <maximumf>, %426, %cst_87 [1] : vector<8x8xf32> to vector<8xf32>
    %428 = vector.shape_cast %427 : vector<8xf32> to vector<8x1xf32>
    %429 = vector.broadcast %428 : vector<8x1xf32> to vector<8x8xf32>
    %430 = arith.subf %426, %429 : vector<8x8xf32>
    %431 = math.exp %430 : vector<8x8xf32>
    %cst_88 = arith.constant dense<0.000000e+00> : vector<8xf32>
    %432 = vector.multi_reduction <add>, %431, %cst_88 [1] : vector<8x8xf32> to vector<8xf32>
    %433 = vector.shape_cast %432 : vector<8xf32> to vector<8x1xf32>
    %434 = vector.broadcast %433 : vector<8x1xf32> to vector<8x8xf32>
    %435 = arith.divf %431, %434 : vector<8x8xf32>
    %cst_89 = arith.constant dense<0.000000e+00> : vector<8x32xf32>
    %436 = tpu.matmul %425, %412, %cst_89 {dimension_numbers = #tpu.dot_dimension_numbers<[1], [0], [0], [1], [0, 0, 1, 1], [], []>} : vector<8x8xf32>, vector<8x32xf32>, vector<8x32xf32> -> vector<8x32xf32>
    %cst_90 = arith.constant dense<0.000000e+00> : vector<8x32xf32>
    %437 = tpu.matmul %435, %415, %cst_90 {dimension_numbers = #tpu.dot_dimension_numbers<[1], [0], [0], [1], [0, 0, 1, 1], [], []>} : vector<8x8xf32>, vector<8x32xf32>, vector<8x32xf32> -> vector<8x32xf32>
    %438 = tpu.concatenate %436, %437 in 1 : vector<8x32xf32>, vector<8x32xf32> -> vector<8x64xf32>
    %cst_91 = arith.constant dense<0.000000e+00> : vector<8x32xf32>
    %439 = tpu.matmul %438, %405, %cst_91 {dimension_numbers = #tpu.dot_dimension_numbers<[1], [0], [0], [1], [0, 0, 1, 1], [], []>} : vector<8x64xf32>, vector<64x32xf32>, vector<8x32xf32> -> vector<8x32xf32>
    %440 = vector.broadcast %406 : vector<1x32xf32> to vector<8x32xf32>
    %441 = arith.addf %439, %440 : vector<8x32xf32>
    %cst_92 = arith.constant dense<0.000000e+00> : vector<8x128xf32>
    %442 = tpu.matmul %441, %407, %cst_92 {dimension_numbers = #tpu.dot_dimension_numbers<[1], [0], [0], [1], [0, 0, 1, 1], [], []>} : vector<8x32xf32>, vector<32x128xf32>, vector<8x128xf32> -> vector<8x128xf32>
    %443 = vector.broadcast %408 : vector<1x128xf32> to vector<8x128xf32>
    %444 = arith.addf %442, %443 : vector<8x128xf32>
    %cst_93 = arith.constant dense<0.000000e+00> : vector<8x192xf32>
    %445 = tpu.matmul %403, %404, %cst_93 {dimension_numbers = #tpu.dot_dimension_numbers<[1], [0], [0], [1], [0, 0, 1, 1], [], []>} : vector<8x32xf32>, vector<32x192xf32>, vector<8x192xf32> -> vector<8x192xf32>
    %446 = vector.extract_strided_slice %445 {offsets = [0, 0], sizes = [8, 32], strides = [1, 1]} : vector<8x192xf32> to vector<8x32xf32>
    %447 = vector.extract_strided_slice %445 {offsets = [0, 32], sizes = [8, 32], strides = [1, 1]} : vector<8x192xf32> to vector<8x32xf32>
    %448 = vector.extract_strided_slice %445 {offsets = [0, 64], sizes = [8, 32], strides = [1, 1]} : vector<8x192xf32> to vector<8x32xf32>
    %449 = vector.extract_strided_slice %445 {offsets = [0, 96], sizes = [8, 32], strides = [1, 1]} : vector<8x192xf32> to vector<8x32xf32>
    %450 = vector.extract_strided_slice %445 {offsets = [0, 128], sizes = [8, 32], strides = [1, 1]} : vector<8x192xf32> to vector<8x32xf32>
    %451 = vector.extract_strided_slice %445 {offsets = [0, 160], sizes = [8, 32], strides = [1, 1]} : vector<8x192xf32> to vector<8x32xf32>
    %cst_94 = arith.constant dense<0.000000e+00> : vector<8x8xf32>
    %452 = tpu.matmul %449, %447, %cst_94 {dimension_numbers = #tpu.dot_dimension_numbers<[1], [1], [0], [0], [0, 0, 1, 0], [], []>} : vector<8x32xf32>, vector<8x32xf32>, vector<8x8xf32> -> vector<8x8xf32>
    %cst_95 = arith.constant dense<0xFF800000> : vector<8xf32>
    %453 = vector.multi_reduction <maximumf>, %452, %cst_95 [1] : vector<8x8xf32> to vector<8xf32>
    %454 = vector.shape_cast %453 : vector<8xf32> to vector<8x1xf32>
    %455 = vector.broadcast %454 : vector<8x1xf32> to vector<8x8xf32>
    %456 = arith.subf %452, %455 : vector<8x8xf32>
    %457 = math.exp %456 : vector<8x8xf32>
    %cst_96 = arith.constant dense<0.000000e+00> : vector<8xf32>
    %458 = vector.multi_reduction <add>, %457, %cst_96 [1] : vector<8x8xf32> to vector<8xf32>
    %459 = vector.shape_cast %458 : vector<8xf32> to vector<8x1xf32>
    %460 = vector.broadcast %459 : vector<8x1xf32> to vector<8x8xf32>
    %461 = arith.divf %457, %460 : vector<8x8xf32>
    %cst_97 = arith.constant dense<0.000000e+00> : vector<8x8xf32>
    %462 = tpu.matmul %446, %450, %cst_97 {dimension_numbers = #tpu.dot_dimension_numbers<[1], [1], [0], [0], [0, 0, 1, 0], [], []>} : vector<8x32xf32>, vector<8x32xf32>, vector<8x8xf32> -> vector<8x8xf32>
    %cst_98 = arith.constant dense<0xFF800000> : vector<8xf32>
    %463 = vector.multi_reduction <maximumf>, %462, %cst_98 [1] : vector<8x8xf32> to vector<8xf32>
    %464 = vector.shape_cast %463 : vector<8xf32> to vector<8x1xf32>
    %465 = vector.broadcast %464 : vector<8x1xf32> to vector<8x8xf32>
    %466 = arith.subf %462, %465 : vector<8x8xf32>
    %467 = math.exp %466 : vector<8x8xf32>
    %cst_99 = arith.constant dense<0.000000e+00> : vector<8xf32>
    %468 = vector.multi_reduction <add>, %467, %cst_99 [1] : vector<8x8xf32> to vector<8xf32>
    %469 = vector.shape_cast %468 : vector<8xf32> to vector<8x1xf32>
    %470 = vector.broadcast %469 : vector<8x1xf32> to vector<8x8xf32>
    %471 = arith.divf %467, %470 : vector<8x8xf32>
    %cst_100 = arith.constant dense<0.000000e+00> : vector<8x32xf32>
    %472 = tpu.matmul %461, %448, %cst_100 {dimension_numbers = #tpu.dot_dimension_numbers<[1], [0], [0], [1], [0, 0, 1, 1], [], []>} : vector<8x8xf32>, vector<8x32xf32>, vector<8x32xf32> -> vector<8x32xf32>
    %cst_101 = arith.constant dense<0.000000e+00> : vector<8x32xf32>
    %473 = tpu.matmul %471, %451, %cst_101 {dimension_numbers = #tpu.dot_dimension_numbers<[1], [0], [0], [1], [0, 0, 1, 1], [], []>} : vector<8x8xf32>, vector<8x32xf32>, vector<8x32xf32> -> vector<8x32xf32>
    %474 = tpu.concatenate %472, %473 in 1 : vector<8x32xf32>, vector<8x32xf32> -> vector<8x64xf32>
    %cst_102 = arith.constant dense<0.000000e+00> : vector<8x32xf32>
    %475 = tpu.matmul %474, %405, %cst_102 {dimension_numbers = #tpu.dot_dimension_numbers<[1], [0], [0], [1], [0, 0, 1, 1], [], []>} : vector<8x64xf32>, vector<64x32xf32>, vector<8x32xf32> -> vector<8x32xf32>
    %476 = vector.broadcast %406 : vector<1x32xf32> to vector<8x32xf32>
    %477 = arith.addf %475, %476 : vector<8x32xf32>
    %cst_103 = arith.constant dense<0.000000e+00> : vector<8x128xf32>
    %478 = tpu.matmul %477, %407, %cst_103 {dimension_numbers = #tpu.dot_dimension_numbers<[1], [0], [0], [1], [0, 0, 1, 1], [], []>} : vector<8x32xf32>, vector<32x128xf32>, vector<8x128xf32> -> vector<8x128xf32>
    %479 = vector.broadcast %408 : vector<1x128xf32> to vector<8x128xf32>
    %480 = arith.addf %478, %479 : vector<8x128xf32>
    %c0_104 = arith.constant 0 : index
    %c0_105 = arith.constant 0 : index
    %481 = vector.load %arg14[%c0_104, %c0_105] : memref<64x128xf32, #tpu.memory_space<vmem>>, vector<64x128xf32>
    %c0_106 = arith.constant 0 : index
    %c0_107 = arith.constant 0 : index
    %482 = vector.load %arg15[%c0_106, %c0_107] : memref<64x128xf32, #tpu.memory_space<vmem>>, vector<64x128xf32>
    %c0_108 = arith.constant 0 : index
    %c0_109 = arith.constant 0 : index
    %483 = vector.load %arg16[%c0_108, %c0_109] : memref<1x128xf32, #tpu.memory_space<vmem>>, vector<1x128xf32>
    %cst_110 = arith.constant 0.000000e+00 : f32
    %484 = vector.broadcast %cst_110 : f32 to vector<2x32xf32>
    %485 = vector.extract_strided_slice %444 {offsets = [0, 0], sizes = [1, 128], strides = [1, 1]} : vector<8x128xf32> to vector<1x128xf32>
    %486 = vector.extract_strided_slice %480 {offsets = [0, 0], sizes = [1, 128], strides = [1, 1]} : vector<8x128xf32> to vector<1x128xf32>
    %487 = tpu.concatenate %485, %486 in 0 : vector<1x128xf32>, vector<1x128xf32> -> vector<2x128xf32>
    %488 = tpu.concatenate %484, %484 in 1 : vector<2x32xf32>, vector<2x32xf32> -> vector<2x64xf32>
    %cst_111 = arith.constant dense<0.000000e+00> : vector<2x128xf32>
    %489 = tpu.matmul %488, %481, %cst_111 {dimension_numbers = #tpu.dot_dimension_numbers<[1], [0], [0], [1], [0, 0, 1, 1], [], []>} : vector<2x64xf32>, vector<64x128xf32>, vector<2x128xf32> -> vector<2x128xf32>
    %490 = arith.addf %487, %489 : vector<2x128xf32>
    %491 = arith.negf %490 : vector<2x128xf32>
    %492 = math.exp %491 : vector<2x128xf32>
    %cst_112 = arith.constant 1.000000e+00 : f32
    %493 = vector.broadcast %cst_112 : f32 to vector<2x128xf32>
    %494 = arith.addf %493, %492 : vector<2x128xf32>
    %495 = arith.divf %493, %494 : vector<2x128xf32>
    %496 = vector.extract_strided_slice %495 {offsets = [0, 0], sizes = [2, 32], strides = [1, 1]} : vector<2x128xf32> to vector<2x32xf32>
    %497 = vector.extract_strided_slice %495 {offsets = [0, 32], sizes = [2, 32], strides = [1, 1]} : vector<2x128xf32> to vector<2x32xf32>
    %498 = vector.extract_strided_slice %495 {offsets = [0, 96], sizes = [2, 32], strides = [1, 1]} : vector<2x128xf32> to vector<2x32xf32>
    %499 = vector.extract_strided_slice %490 {offsets = [0, 64], sizes = [2, 32], strides = [1, 1]} : vector<2x128xf32> to vector<2x32xf32>
    %500 = math.tanh %499 : vector<2x32xf32>
    %501 = arith.mulf %497, %484 : vector<2x32xf32>
    %502 = arith.mulf %496, %500 : vector<2x32xf32>
    %503 = arith.addf %501, %502 : vector<2x32xf32>
    %504 = math.tanh %503 : vector<2x32xf32>
    %505 = arith.mulf %498, %504 : vector<2x32xf32>
    %506 = tpu.concatenate %505, %484 in 1 : vector<2x32xf32>, vector<2x32xf32> -> vector<2x64xf32>
    %cst_113 = arith.constant dense<0.000000e+00> : vector<2x128xf32>
    %507 = tpu.matmul %506, %482, %cst_113 {dimension_numbers = #tpu.dot_dimension_numbers<[1], [0], [0], [1], [0, 0, 1, 1], [], []>} : vector<2x64xf32>, vector<64x128xf32>, vector<2x128xf32> -> vector<2x128xf32>
    %508 = vector.broadcast %483 : vector<1x128xf32> to vector<2x128xf32>
    %509 = arith.addf %507, %508 : vector<2x128xf32>
    %510 = arith.negf %509 : vector<2x128xf32>
    %511 = math.exp %510 : vector<2x128xf32>
    %cst_114 = arith.constant 1.000000e+00 : f32
    %512 = vector.broadcast %cst_114 : f32 to vector<2x128xf32>
    %513 = arith.addf %512, %511 : vector<2x128xf32>
    %514 = arith.divf %512, %513 : vector<2x128xf32>
    %515 = vector.extract_strided_slice %514 {offsets = [0, 0], sizes = [2, 32], strides = [1, 1]} : vector<2x128xf32> to vector<2x32xf32>
    %516 = vector.extract_strided_slice %514 {offsets = [0, 32], sizes = [2, 32], strides = [1, 1]} : vector<2x128xf32> to vector<2x32xf32>
    %517 = vector.extract_strided_slice %514 {offsets = [0, 96], sizes = [2, 32], strides = [1, 1]} : vector<2x128xf32> to vector<2x32xf32>
    %518 = vector.extract_strided_slice %509 {offsets = [0, 64], sizes = [2, 32], strides = [1, 1]} : vector<2x128xf32> to vector<2x32xf32>
    %519 = math.tanh %518 : vector<2x32xf32>
    %520 = arith.mulf %516, %484 : vector<2x32xf32>
    %521 = arith.mulf %515, %519 : vector<2x32xf32>
    %522 = arith.addf %520, %521 : vector<2x32xf32>
    %523 = math.tanh %522 : vector<2x32xf32>
    %524 = arith.mulf %517, %523 : vector<2x32xf32>
    %525 = vector.extract_strided_slice %444 {offsets = [1, 0], sizes = [1, 128], strides = [1, 1]} : vector<8x128xf32> to vector<1x128xf32>
    %526 = vector.extract_strided_slice %480 {offsets = [1, 0], sizes = [1, 128], strides = [1, 1]} : vector<8x128xf32> to vector<1x128xf32>
    %527 = tpu.concatenate %525, %526 in 0 : vector<1x128xf32>, vector<1x128xf32> -> vector<2x128xf32>
    %528 = tpu.concatenate %524, %505 in 1 : vector<2x32xf32>, vector<2x32xf32> -> vector<2x64xf32>
    %cst_115 = arith.constant dense<0.000000e+00> : vector<2x128xf32>
    %529 = tpu.matmul %528, %481, %cst_115 {dimension_numbers = #tpu.dot_dimension_numbers<[1], [0], [0], [1], [0, 0, 1, 1], [], []>} : vector<2x64xf32>, vector<64x128xf32>, vector<2x128xf32> -> vector<2x128xf32>
    %530 = arith.addf %527, %529 : vector<2x128xf32>
    %531 = arith.negf %530 : vector<2x128xf32>
    %532 = math.exp %531 : vector<2x128xf32>
    %cst_116 = arith.constant 1.000000e+00 : f32
    %533 = vector.broadcast %cst_116 : f32 to vector<2x128xf32>
    %534 = arith.addf %533, %532 : vector<2x128xf32>
    %535 = arith.divf %533, %534 : vector<2x128xf32>
    %536 = vector.extract_strided_slice %535 {offsets = [0, 0], sizes = [2, 32], strides = [1, 1]} : vector<2x128xf32> to vector<2x32xf32>
    %537 = vector.extract_strided_slice %535 {offsets = [0, 32], sizes = [2, 32], strides = [1, 1]} : vector<2x128xf32> to vector<2x32xf32>
    %538 = vector.extract_strided_slice %535 {offsets = [0, 96], sizes = [2, 32], strides = [1, 1]} : vector<2x128xf32> to vector<2x32xf32>
    %539 = vector.extract_strided_slice %530 {offsets = [0, 64], sizes = [2, 32], strides = [1, 1]} : vector<2x128xf32> to vector<2x32xf32>
    %540 = math.tanh %539 : vector<2x32xf32>
    %541 = arith.mulf %537, %503 : vector<2x32xf32>
    %542 = arith.mulf %536, %540 : vector<2x32xf32>
    %543 = arith.addf %541, %542 : vector<2x32xf32>
    %544 = math.tanh %543 : vector<2x32xf32>
    %545 = arith.mulf %538, %544 : vector<2x32xf32>
    %546 = tpu.concatenate %545, %524 in 1 : vector<2x32xf32>, vector<2x32xf32> -> vector<2x64xf32>
    %cst_117 = arith.constant dense<0.000000e+00> : vector<2x128xf32>
    %547 = tpu.matmul %546, %482, %cst_117 {dimension_numbers = #tpu.dot_dimension_numbers<[1], [0], [0], [1], [0, 0, 1, 1], [], []>} : vector<2x64xf32>, vector<64x128xf32>, vector<2x128xf32> -> vector<2x128xf32>
    %548 = vector.broadcast %483 : vector<1x128xf32> to vector<2x128xf32>
    %549 = arith.addf %547, %548 : vector<2x128xf32>
    %550 = arith.negf %549 : vector<2x128xf32>
    %551 = math.exp %550 : vector<2x128xf32>
    %cst_118 = arith.constant 1.000000e+00 : f32
    %552 = vector.broadcast %cst_118 : f32 to vector<2x128xf32>
    %553 = arith.addf %552, %551 : vector<2x128xf32>
    %554 = arith.divf %552, %553 : vector<2x128xf32>
    %555 = vector.extract_strided_slice %554 {offsets = [0, 0], sizes = [2, 32], strides = [1, 1]} : vector<2x128xf32> to vector<2x32xf32>
    %556 = vector.extract_strided_slice %554 {offsets = [0, 32], sizes = [2, 32], strides = [1, 1]} : vector<2x128xf32> to vector<2x32xf32>
    %557 = vector.extract_strided_slice %554 {offsets = [0, 96], sizes = [2, 32], strides = [1, 1]} : vector<2x128xf32> to vector<2x32xf32>
    %558 = vector.extract_strided_slice %549 {offsets = [0, 64], sizes = [2, 32], strides = [1, 1]} : vector<2x128xf32> to vector<2x32xf32>
    %559 = math.tanh %558 : vector<2x32xf32>
    %560 = arith.mulf %556, %522 : vector<2x32xf32>
    %561 = arith.mulf %555, %559 : vector<2x32xf32>
    %562 = arith.addf %560, %561 : vector<2x32xf32>
    %563 = math.tanh %562 : vector<2x32xf32>
    %564 = arith.mulf %557, %563 : vector<2x32xf32>
    %565 = vector.extract_strided_slice %444 {offsets = [2, 0], sizes = [1, 128], strides = [1, 1]} : vector<8x128xf32> to vector<1x128xf32>
    %566 = vector.extract_strided_slice %480 {offsets = [2, 0], sizes = [1, 128], strides = [1, 1]} : vector<8x128xf32> to vector<1x128xf32>
    %567 = tpu.concatenate %565, %566 in 0 : vector<1x128xf32>, vector<1x128xf32> -> vector<2x128xf32>
    %568 = tpu.concatenate %564, %545 in 1 : vector<2x32xf32>, vector<2x32xf32> -> vector<2x64xf32>
    %cst_119 = arith.constant dense<0.000000e+00> : vector<2x128xf32>
    %569 = tpu.matmul %568, %481, %cst_119 {dimension_numbers = #tpu.dot_dimension_numbers<[1], [0], [0], [1], [0, 0, 1, 1], [], []>} : vector<2x64xf32>, vector<64x128xf32>, vector<2x128xf32> -> vector<2x128xf32>
    %570 = arith.addf %567, %569 : vector<2x128xf32>
    %571 = arith.negf %570 : vector<2x128xf32>
    %572 = math.exp %571 : vector<2x128xf32>
    %cst_120 = arith.constant 1.000000e+00 : f32
    %573 = vector.broadcast %cst_120 : f32 to vector<2x128xf32>
    %574 = arith.addf %573, %572 : vector<2x128xf32>
    %575 = arith.divf %573, %574 : vector<2x128xf32>
    %576 = vector.extract_strided_slice %575 {offsets = [0, 0], sizes = [2, 32], strides = [1, 1]} : vector<2x128xf32> to vector<2x32xf32>
    %577 = vector.extract_strided_slice %575 {offsets = [0, 32], sizes = [2, 32], strides = [1, 1]} : vector<2x128xf32> to vector<2x32xf32>
    %578 = vector.extract_strided_slice %575 {offsets = [0, 96], sizes = [2, 32], strides = [1, 1]} : vector<2x128xf32> to vector<2x32xf32>
    %579 = vector.extract_strided_slice %570 {offsets = [0, 64], sizes = [2, 32], strides = [1, 1]} : vector<2x128xf32> to vector<2x32xf32>
    %580 = math.tanh %579 : vector<2x32xf32>
    %581 = arith.mulf %577, %543 : vector<2x32xf32>
    %582 = arith.mulf %576, %580 : vector<2x32xf32>
    %583 = arith.addf %581, %582 : vector<2x32xf32>
    %584 = math.tanh %583 : vector<2x32xf32>
    %585 = arith.mulf %578, %584 : vector<2x32xf32>
    %586 = tpu.concatenate %585, %564 in 1 : vector<2x32xf32>, vector<2x32xf32> -> vector<2x64xf32>
    %cst_121 = arith.constant dense<0.000000e+00> : vector<2x128xf32>
    %587 = tpu.matmul %586, %482, %cst_121 {dimension_numbers = #tpu.dot_dimension_numbers<[1], [0], [0], [1], [0, 0, 1, 1], [], []>} : vector<2x64xf32>, vector<64x128xf32>, vector<2x128xf32> -> vector<2x128xf32>
    %588 = vector.broadcast %483 : vector<1x128xf32> to vector<2x128xf32>
    %589 = arith.addf %587, %588 : vector<2x128xf32>
    %590 = arith.negf %589 : vector<2x128xf32>
    %591 = math.exp %590 : vector<2x128xf32>
    %cst_122 = arith.constant 1.000000e+00 : f32
    %592 = vector.broadcast %cst_122 : f32 to vector<2x128xf32>
    %593 = arith.addf %592, %591 : vector<2x128xf32>
    %594 = arith.divf %592, %593 : vector<2x128xf32>
    %595 = vector.extract_strided_slice %594 {offsets = [0, 0], sizes = [2, 32], strides = [1, 1]} : vector<2x128xf32> to vector<2x32xf32>
    %596 = vector.extract_strided_slice %594 {offsets = [0, 32], sizes = [2, 32], strides = [1, 1]} : vector<2x128xf32> to vector<2x32xf32>
    %597 = vector.extract_strided_slice %594 {offsets = [0, 96], sizes = [2, 32], strides = [1, 1]} : vector<2x128xf32> to vector<2x32xf32>
    %598 = vector.extract_strided_slice %589 {offsets = [0, 64], sizes = [2, 32], strides = [1, 1]} : vector<2x128xf32> to vector<2x32xf32>
    %599 = math.tanh %598 : vector<2x32xf32>
    %600 = arith.mulf %596, %562 : vector<2x32xf32>
    %601 = arith.mulf %595, %599 : vector<2x32xf32>
    %602 = arith.addf %600, %601 : vector<2x32xf32>
    %603 = math.tanh %602 : vector<2x32xf32>
    %604 = arith.mulf %597, %603 : vector<2x32xf32>
    %605 = vector.extract_strided_slice %444 {offsets = [3, 0], sizes = [1, 128], strides = [1, 1]} : vector<8x128xf32> to vector<1x128xf32>
    %606 = vector.extract_strided_slice %480 {offsets = [3, 0], sizes = [1, 128], strides = [1, 1]} : vector<8x128xf32> to vector<1x128xf32>
    %607 = tpu.concatenate %605, %606 in 0 : vector<1x128xf32>, vector<1x128xf32> -> vector<2x128xf32>
    %608 = tpu.concatenate %604, %585 in 1 : vector<2x32xf32>, vector<2x32xf32> -> vector<2x64xf32>
    %cst_123 = arith.constant dense<0.000000e+00> : vector<2x128xf32>
    %609 = tpu.matmul %608, %481, %cst_123 {dimension_numbers = #tpu.dot_dimension_numbers<[1], [0], [0], [1], [0, 0, 1, 1], [], []>} : vector<2x64xf32>, vector<64x128xf32>, vector<2x128xf32> -> vector<2x128xf32>
    %610 = arith.addf %607, %609 : vector<2x128xf32>
    %611 = arith.negf %610 : vector<2x128xf32>
    %612 = math.exp %611 : vector<2x128xf32>
    %cst_124 = arith.constant 1.000000e+00 : f32
    %613 = vector.broadcast %cst_124 : f32 to vector<2x128xf32>
    %614 = arith.addf %613, %612 : vector<2x128xf32>
    %615 = arith.divf %613, %614 : vector<2x128xf32>
    %616 = vector.extract_strided_slice %615 {offsets = [0, 0], sizes = [2, 32], strides = [1, 1]} : vector<2x128xf32> to vector<2x32xf32>
    %617 = vector.extract_strided_slice %615 {offsets = [0, 32], sizes = [2, 32], strides = [1, 1]} : vector<2x128xf32> to vector<2x32xf32>
    %618 = vector.extract_strided_slice %615 {offsets = [0, 96], sizes = [2, 32], strides = [1, 1]} : vector<2x128xf32> to vector<2x32xf32>
    %619 = vector.extract_strided_slice %610 {offsets = [0, 64], sizes = [2, 32], strides = [1, 1]} : vector<2x128xf32> to vector<2x32xf32>
    %620 = math.tanh %619 : vector<2x32xf32>
    %621 = arith.mulf %617, %583 : vector<2x32xf32>
    %622 = arith.mulf %616, %620 : vector<2x32xf32>
    %623 = arith.addf %621, %622 : vector<2x32xf32>
    %624 = math.tanh %623 : vector<2x32xf32>
    %625 = arith.mulf %618, %624 : vector<2x32xf32>
    %626 = tpu.concatenate %625, %604 in 1 : vector<2x32xf32>, vector<2x32xf32> -> vector<2x64xf32>
    %cst_125 = arith.constant dense<0.000000e+00> : vector<2x128xf32>
    %627 = tpu.matmul %626, %482, %cst_125 {dimension_numbers = #tpu.dot_dimension_numbers<[1], [0], [0], [1], [0, 0, 1, 1], [], []>} : vector<2x64xf32>, vector<64x128xf32>, vector<2x128xf32> -> vector<2x128xf32>
    %628 = vector.broadcast %483 : vector<1x128xf32> to vector<2x128xf32>
    %629 = arith.addf %627, %628 : vector<2x128xf32>
    %630 = arith.negf %629 : vector<2x128xf32>
    %631 = math.exp %630 : vector<2x128xf32>
    %cst_126 = arith.constant 1.000000e+00 : f32
    %632 = vector.broadcast %cst_126 : f32 to vector<2x128xf32>
    %633 = arith.addf %632, %631 : vector<2x128xf32>
    %634 = arith.divf %632, %633 : vector<2x128xf32>
    %635 = vector.extract_strided_slice %634 {offsets = [0, 0], sizes = [2, 32], strides = [1, 1]} : vector<2x128xf32> to vector<2x32xf32>
    %636 = vector.extract_strided_slice %634 {offsets = [0, 32], sizes = [2, 32], strides = [1, 1]} : vector<2x128xf32> to vector<2x32xf32>
    %637 = vector.extract_strided_slice %634 {offsets = [0, 96], sizes = [2, 32], strides = [1, 1]} : vector<2x128xf32> to vector<2x32xf32>
    %638 = vector.extract_strided_slice %629 {offsets = [0, 64], sizes = [2, 32], strides = [1, 1]} : vector<2x128xf32> to vector<2x32xf32>
    %639 = math.tanh %638 : vector<2x32xf32>
    %640 = arith.mulf %636, %602 : vector<2x32xf32>
    %641 = arith.mulf %635, %639 : vector<2x32xf32>
    %642 = arith.addf %640, %641 : vector<2x32xf32>
    %643 = math.tanh %642 : vector<2x32xf32>
    %644 = arith.mulf %637, %643 : vector<2x32xf32>
    %645 = vector.extract_strided_slice %444 {offsets = [4, 0], sizes = [1, 128], strides = [1, 1]} : vector<8x128xf32> to vector<1x128xf32>
    %646 = vector.extract_strided_slice %480 {offsets = [4, 0], sizes = [1, 128], strides = [1, 1]} : vector<8x128xf32> to vector<1x128xf32>
    %647 = tpu.concatenate %645, %646 in 0 : vector<1x128xf32>, vector<1x128xf32> -> vector<2x128xf32>
    %648 = tpu.concatenate %644, %625 in 1 : vector<2x32xf32>, vector<2x32xf32> -> vector<2x64xf32>
    %cst_127 = arith.constant dense<0.000000e+00> : vector<2x128xf32>
    %649 = tpu.matmul %648, %481, %cst_127 {dimension_numbers = #tpu.dot_dimension_numbers<[1], [0], [0], [1], [0, 0, 1, 1], [], []>} : vector<2x64xf32>, vector<64x128xf32>, vector<2x128xf32> -> vector<2x128xf32>
    %650 = arith.addf %647, %649 : vector<2x128xf32>
    %651 = arith.negf %650 : vector<2x128xf32>
    %652 = math.exp %651 : vector<2x128xf32>
    %cst_128 = arith.constant 1.000000e+00 : f32
    %653 = vector.broadcast %cst_128 : f32 to vector<2x128xf32>
    %654 = arith.addf %653, %652 : vector<2x128xf32>
    %655 = arith.divf %653, %654 : vector<2x128xf32>
    %656 = vector.extract_strided_slice %655 {offsets = [0, 0], sizes = [2, 32], strides = [1, 1]} : vector<2x128xf32> to vector<2x32xf32>
    %657 = vector.extract_strided_slice %655 {offsets = [0, 32], sizes = [2, 32], strides = [1, 1]} : vector<2x128xf32> to vector<2x32xf32>
    %658 = vector.extract_strided_slice %655 {offsets = [0, 96], sizes = [2, 32], strides = [1, 1]} : vector<2x128xf32> to vector<2x32xf32>
    %659 = vector.extract_strided_slice %650 {offsets = [0, 64], sizes = [2, 32], strides = [1, 1]} : vector<2x128xf32> to vector<2x32xf32>
    %660 = math.tanh %659 : vector<2x32xf32>
    %661 = arith.mulf %657, %623 : vector<2x32xf32>
    %662 = arith.mulf %656, %660 : vector<2x32xf32>
    %663 = arith.addf %661, %662 : vector<2x32xf32>
    %664 = math.tanh %663 : vector<2x32xf32>
    %665 = arith.mulf %658, %664 : vector<2x32xf32>
    %666 = tpu.concatenate %665, %644 in 1 : vector<2x32xf32>, vector<2x32xf32> -> vector<2x64xf32>
    %cst_129 = arith.constant dense<0.000000e+00> : vector<2x128xf32>
    %667 = tpu.matmul %666, %482, %cst_129 {dimension_numbers = #tpu.dot_dimension_numbers<[1], [0], [0], [1], [0, 0, 1, 1], [], []>} : vector<2x64xf32>, vector<64x128xf32>, vector<2x128xf32> -> vector<2x128xf32>
    %668 = vector.broadcast %483 : vector<1x128xf32> to vector<2x128xf32>
    %669 = arith.addf %667, %668 : vector<2x128xf32>
    %670 = arith.negf %669 : vector<2x128xf32>
    %671 = math.exp %670 : vector<2x128xf32>
    %cst_130 = arith.constant 1.000000e+00 : f32
    %672 = vector.broadcast %cst_130 : f32 to vector<2x128xf32>
    %673 = arith.addf %672, %671 : vector<2x128xf32>
    %674 = arith.divf %672, %673 : vector<2x128xf32>
    %675 = vector.extract_strided_slice %674 {offsets = [0, 0], sizes = [2, 32], strides = [1, 1]} : vector<2x128xf32> to vector<2x32xf32>
    %676 = vector.extract_strided_slice %674 {offsets = [0, 32], sizes = [2, 32], strides = [1, 1]} : vector<2x128xf32> to vector<2x32xf32>
    %677 = vector.extract_strided_slice %674 {offsets = [0, 96], sizes = [2, 32], strides = [1, 1]} : vector<2x128xf32> to vector<2x32xf32>
    %678 = vector.extract_strided_slice %669 {offsets = [0, 64], sizes = [2, 32], strides = [1, 1]} : vector<2x128xf32> to vector<2x32xf32>
    %679 = math.tanh %678 : vector<2x32xf32>
    %680 = arith.mulf %676, %642 : vector<2x32xf32>
    %681 = arith.mulf %675, %679 : vector<2x32xf32>
    %682 = arith.addf %680, %681 : vector<2x32xf32>
    %683 = math.tanh %682 : vector<2x32xf32>
    %684 = arith.mulf %677, %683 : vector<2x32xf32>
    %685 = vector.extract_strided_slice %444 {offsets = [5, 0], sizes = [1, 128], strides = [1, 1]} : vector<8x128xf32> to vector<1x128xf32>
    %686 = vector.extract_strided_slice %480 {offsets = [5, 0], sizes = [1, 128], strides = [1, 1]} : vector<8x128xf32> to vector<1x128xf32>
    %687 = tpu.concatenate %685, %686 in 0 : vector<1x128xf32>, vector<1x128xf32> -> vector<2x128xf32>
    %688 = tpu.concatenate %684, %665 in 1 : vector<2x32xf32>, vector<2x32xf32> -> vector<2x64xf32>
    %cst_131 = arith.constant dense<0.000000e+00> : vector<2x128xf32>
    %689 = tpu.matmul %688, %481, %cst_131 {dimension_numbers = #tpu.dot_dimension_numbers<[1], [0], [0], [1], [0, 0, 1, 1], [], []>} : vector<2x64xf32>, vector<64x128xf32>, vector<2x128xf32> -> vector<2x128xf32>
    %690 = arith.addf %687, %689 : vector<2x128xf32>
    %691 = arith.negf %690 : vector<2x128xf32>
    %692 = math.exp %691 : vector<2x128xf32>
    %cst_132 = arith.constant 1.000000e+00 : f32
    %693 = vector.broadcast %cst_132 : f32 to vector<2x128xf32>
    %694 = arith.addf %693, %692 : vector<2x128xf32>
    %695 = arith.divf %693, %694 : vector<2x128xf32>
    %696 = vector.extract_strided_slice %695 {offsets = [0, 0], sizes = [2, 32], strides = [1, 1]} : vector<2x128xf32> to vector<2x32xf32>
    %697 = vector.extract_strided_slice %695 {offsets = [0, 32], sizes = [2, 32], strides = [1, 1]} : vector<2x128xf32> to vector<2x32xf32>
    %698 = vector.extract_strided_slice %695 {offsets = [0, 96], sizes = [2, 32], strides = [1, 1]} : vector<2x128xf32> to vector<2x32xf32>
    %699 = vector.extract_strided_slice %690 {offsets = [0, 64], sizes = [2, 32], strides = [1, 1]} : vector<2x128xf32> to vector<2x32xf32>
    %700 = math.tanh %699 : vector<2x32xf32>
    %701 = arith.mulf %697, %663 : vector<2x32xf32>
    %702 = arith.mulf %696, %700 : vector<2x32xf32>
    %703 = arith.addf %701, %702 : vector<2x32xf32>
    %704 = math.tanh %703 : vector<2x32xf32>
    %705 = arith.mulf %698, %704 : vector<2x32xf32>
    %706 = tpu.concatenate %705, %684 in 1 : vector<2x32xf32>, vector<2x32xf32> -> vector<2x64xf32>
    %cst_133 = arith.constant dense<0.000000e+00> : vector<2x128xf32>
    %707 = tpu.matmul %706, %482, %cst_133 {dimension_numbers = #tpu.dot_dimension_numbers<[1], [0], [0], [1], [0, 0, 1, 1], [], []>} : vector<2x64xf32>, vector<64x128xf32>, vector<2x128xf32> -> vector<2x128xf32>
    %708 = vector.broadcast %483 : vector<1x128xf32> to vector<2x128xf32>
    %709 = arith.addf %707, %708 : vector<2x128xf32>
    %710 = arith.negf %709 : vector<2x128xf32>
    %711 = math.exp %710 : vector<2x128xf32>
    %cst_134 = arith.constant 1.000000e+00 : f32
    %712 = vector.broadcast %cst_134 : f32 to vector<2x128xf32>
    %713 = arith.addf %712, %711 : vector<2x128xf32>
    %714 = arith.divf %712, %713 : vector<2x128xf32>
    %715 = vector.extract_strided_slice %714 {offsets = [0, 0], sizes = [2, 32], strides = [1, 1]} : vector<2x128xf32> to vector<2x32xf32>
    %716 = vector.extract_strided_slice %714 {offsets = [0, 32], sizes = [2, 32], strides = [1, 1]} : vector<2x128xf32> to vector<2x32xf32>
    %717 = vector.extract_strided_slice %714 {offsets = [0, 96], sizes = [2, 32], strides = [1, 1]} : vector<2x128xf32> to vector<2x32xf32>
    %718 = vector.extract_strided_slice %709 {offsets = [0, 64], sizes = [2, 32], strides = [1, 1]} : vector<2x128xf32> to vector<2x32xf32>
    %719 = math.tanh %718 : vector<2x32xf32>
    %720 = arith.mulf %716, %682 : vector<2x32xf32>
    %721 = arith.mulf %715, %719 : vector<2x32xf32>
    %722 = arith.addf %720, %721 : vector<2x32xf32>
    %723 = math.tanh %722 : vector<2x32xf32>
    %724 = arith.mulf %717, %723 : vector<2x32xf32>
    %725 = vector.extract_strided_slice %444 {offsets = [6, 0], sizes = [1, 128], strides = [1, 1]} : vector<8x128xf32> to vector<1x128xf32>
    %726 = vector.extract_strided_slice %480 {offsets = [6, 0], sizes = [1, 128], strides = [1, 1]} : vector<8x128xf32> to vector<1x128xf32>
    %727 = tpu.concatenate %725, %726 in 0 : vector<1x128xf32>, vector<1x128xf32> -> vector<2x128xf32>
    %728 = tpu.concatenate %724, %705 in 1 : vector<2x32xf32>, vector<2x32xf32> -> vector<2x64xf32>
    %cst_135 = arith.constant dense<0.000000e+00> : vector<2x128xf32>
    %729 = tpu.matmul %728, %481, %cst_135 {dimension_numbers = #tpu.dot_dimension_numbers<[1], [0], [0], [1], [0, 0, 1, 1], [], []>} : vector<2x64xf32>, vector<64x128xf32>, vector<2x128xf32> -> vector<2x128xf32>
    %730 = arith.addf %727, %729 : vector<2x128xf32>
    %731 = arith.negf %730 : vector<2x128xf32>
    %732 = math.exp %731 : vector<2x128xf32>
    %cst_136 = arith.constant 1.000000e+00 : f32
    %733 = vector.broadcast %cst_136 : f32 to vector<2x128xf32>
    %734 = arith.addf %733, %732 : vector<2x128xf32>
    %735 = arith.divf %733, %734 : vector<2x128xf32>
    %736 = vector.extract_strided_slice %735 {offsets = [0, 0], sizes = [2, 32], strides = [1, 1]} : vector<2x128xf32> to vector<2x32xf32>
    %737 = vector.extract_strided_slice %735 {offsets = [0, 32], sizes = [2, 32], strides = [1, 1]} : vector<2x128xf32> to vector<2x32xf32>
    %738 = vector.extract_strided_slice %735 {offsets = [0, 96], sizes = [2, 32], strides = [1, 1]} : vector<2x128xf32> to vector<2x32xf32>
    %739 = vector.extract_strided_slice %730 {offsets = [0, 64], sizes = [2, 32], strides = [1, 1]} : vector<2x128xf32> to vector<2x32xf32>
    %740 = math.tanh %739 : vector<2x32xf32>
    %741 = arith.mulf %737, %703 : vector<2x32xf32>
    %742 = arith.mulf %736, %740 : vector<2x32xf32>
    %743 = arith.addf %741, %742 : vector<2x32xf32>
    %744 = math.tanh %743 : vector<2x32xf32>
    %745 = arith.mulf %738, %744 : vector<2x32xf32>
    %746 = tpu.concatenate %745, %724 in 1 : vector<2x32xf32>, vector<2x32xf32> -> vector<2x64xf32>
    %cst_137 = arith.constant dense<0.000000e+00> : vector<2x128xf32>
    %747 = tpu.matmul %746, %482, %cst_137 {dimension_numbers = #tpu.dot_dimension_numbers<[1], [0], [0], [1], [0, 0, 1, 1], [], []>} : vector<2x64xf32>, vector<64x128xf32>, vector<2x128xf32> -> vector<2x128xf32>
    %748 = vector.broadcast %483 : vector<1x128xf32> to vector<2x128xf32>
    %749 = arith.addf %747, %748 : vector<2x128xf32>
    %750 = arith.negf %749 : vector<2x128xf32>
    %751 = math.exp %750 : vector<2x128xf32>
    %cst_138 = arith.constant 1.000000e+00 : f32
    %752 = vector.broadcast %cst_138 : f32 to vector<2x128xf32>
    %753 = arith.addf %752, %751 : vector<2x128xf32>
    %754 = arith.divf %752, %753 : vector<2x128xf32>
    %755 = vector.extract_strided_slice %754 {offsets = [0, 0], sizes = [2, 32], strides = [1, 1]} : vector<2x128xf32> to vector<2x32xf32>
    %756 = vector.extract_strided_slice %754 {offsets = [0, 32], sizes = [2, 32], strides = [1, 1]} : vector<2x128xf32> to vector<2x32xf32>
    %757 = vector.extract_strided_slice %754 {offsets = [0, 96], sizes = [2, 32], strides = [1, 1]} : vector<2x128xf32> to vector<2x32xf32>
    %758 = vector.extract_strided_slice %749 {offsets = [0, 64], sizes = [2, 32], strides = [1, 1]} : vector<2x128xf32> to vector<2x32xf32>
    %759 = math.tanh %758 : vector<2x32xf32>
    %760 = arith.mulf %756, %722 : vector<2x32xf32>
    %761 = arith.mulf %755, %759 : vector<2x32xf32>
    %762 = arith.addf %760, %761 : vector<2x32xf32>
    %763 = math.tanh %762 : vector<2x32xf32>
    %764 = arith.mulf %757, %763 : vector<2x32xf32>
    %765 = vector.extract_strided_slice %444 {offsets = [7, 0], sizes = [1, 128], strides = [1, 1]} : vector<8x128xf32> to vector<1x128xf32>
    %766 = vector.extract_strided_slice %480 {offsets = [7, 0], sizes = [1, 128], strides = [1, 1]} : vector<8x128xf32> to vector<1x128xf32>
    %767 = tpu.concatenate %765, %766 in 0 : vector<1x128xf32>, vector<1x128xf32> -> vector<2x128xf32>
    %768 = tpu.concatenate %764, %745 in 1 : vector<2x32xf32>, vector<2x32xf32> -> vector<2x64xf32>
    %cst_139 = arith.constant dense<0.000000e+00> : vector<2x128xf32>
    %769 = tpu.matmul %768, %481, %cst_139 {dimension_numbers = #tpu.dot_dimension_numbers<[1], [0], [0], [1], [0, 0, 1, 1], [], []>} : vector<2x64xf32>, vector<64x128xf32>, vector<2x128xf32> -> vector<2x128xf32>
    %770 = arith.addf %767, %769 : vector<2x128xf32>
    %771 = arith.negf %770 : vector<2x128xf32>
    %772 = math.exp %771 : vector<2x128xf32>
    %cst_140 = arith.constant 1.000000e+00 : f32
    %773 = vector.broadcast %cst_140 : f32 to vector<2x128xf32>
    %774 = arith.addf %773, %772 : vector<2x128xf32>
    %775 = arith.divf %773, %774 : vector<2x128xf32>
    %776 = vector.extract_strided_slice %775 {offsets = [0, 0], sizes = [2, 32], strides = [1, 1]} : vector<2x128xf32> to vector<2x32xf32>
    %777 = vector.extract_strided_slice %775 {offsets = [0, 32], sizes = [2, 32], strides = [1, 1]} : vector<2x128xf32> to vector<2x32xf32>
    %778 = vector.extract_strided_slice %775 {offsets = [0, 96], sizes = [2, 32], strides = [1, 1]} : vector<2x128xf32> to vector<2x32xf32>
    %779 = vector.extract_strided_slice %770 {offsets = [0, 64], sizes = [2, 32], strides = [1, 1]} : vector<2x128xf32> to vector<2x32xf32>
    %780 = math.tanh %779 : vector<2x32xf32>
    %781 = arith.mulf %777, %743 : vector<2x32xf32>
    %782 = arith.mulf %776, %780 : vector<2x32xf32>
    %783 = arith.addf %781, %782 : vector<2x32xf32>
    %784 = math.tanh %783 : vector<2x32xf32>
    %785 = arith.mulf %778, %784 : vector<2x32xf32>
    %786 = tpu.concatenate %785, %764 in 1 : vector<2x32xf32>, vector<2x32xf32> -> vector<2x64xf32>
    %cst_141 = arith.constant dense<0.000000e+00> : vector<2x128xf32>
    %787 = tpu.matmul %786, %482, %cst_141 {dimension_numbers = #tpu.dot_dimension_numbers<[1], [0], [0], [1], [0, 0, 1, 1], [], []>} : vector<2x64xf32>, vector<64x128xf32>, vector<2x128xf32> -> vector<2x128xf32>
    %788 = vector.broadcast %483 : vector<1x128xf32> to vector<2x128xf32>
    %789 = arith.addf %787, %788 : vector<2x128xf32>
    %790 = arith.negf %789 : vector<2x128xf32>
    %791 = math.exp %790 : vector<2x128xf32>
    %cst_142 = arith.constant 1.000000e+00 : f32
    %792 = vector.broadcast %cst_142 : f32 to vector<2x128xf32>
    %793 = arith.addf %792, %791 : vector<2x128xf32>
    %794 = arith.divf %792, %793 : vector<2x128xf32>
    %795 = vector.extract_strided_slice %794 {offsets = [0, 0], sizes = [2, 32], strides = [1, 1]} : vector<2x128xf32> to vector<2x32xf32>
    %796 = vector.extract_strided_slice %794 {offsets = [0, 32], sizes = [2, 32], strides = [1, 1]} : vector<2x128xf32> to vector<2x32xf32>
    %797 = vector.extract_strided_slice %794 {offsets = [0, 96], sizes = [2, 32], strides = [1, 1]} : vector<2x128xf32> to vector<2x32xf32>
    %798 = vector.extract_strided_slice %789 {offsets = [0, 64], sizes = [2, 32], strides = [1, 1]} : vector<2x128xf32> to vector<2x32xf32>
    %799 = math.tanh %798 : vector<2x32xf32>
    %800 = arith.mulf %796, %762 : vector<2x32xf32>
    %801 = arith.mulf %795, %799 : vector<2x32xf32>
    %802 = arith.addf %800, %801 : vector<2x32xf32>
    %803 = math.tanh %802 : vector<2x32xf32>
    %804 = arith.mulf %797, %803 : vector<2x32xf32>
    %805 = tpu.concatenate %505, %545, %585, %625, %665, %705, %745, %785 in 0 : vector<2x32xf32>, vector<2x32xf32>, vector<2x32xf32>, vector<2x32xf32>, vector<2x32xf32>, vector<2x32xf32>, vector<2x32xf32>, vector<2x32xf32> -> vector<16x32xf32>
    %806 = tpu.concatenate %524, %564, %604, %644, %684, %724, %764, %804 in 0 : vector<2x32xf32>, vector<2x32xf32>, vector<2x32xf32>, vector<2x32xf32>, vector<2x32xf32>, vector<2x32xf32>, vector<2x32xf32>, vector<2x32xf32> -> vector<16x32xf32>
    %c0_143 = arith.constant 0 : index
    %c0_144 = arith.constant 0 : index
    %807 = vector.load %arg17[%c0_143, %c0_144] : memref<32x16xf32, #tpu.memory_space<vmem>>, vector<32x16xf32>
    %cst_145 = arith.constant dense<0.000000e+00> : vector<16x16xf32>
    %808 = tpu.matmul %805, %807, %cst_145 {dimension_numbers = #tpu.dot_dimension_numbers<[1], [0], [0], [1], [0, 0, 1, 1], [], []>} : vector<16x32xf32>, vector<32x16xf32>, vector<16x16xf32> -> vector<16x16xf32>
    %c0_146 = arith.constant 0 : index
    %c0_147 = arith.constant 0 : index
    %809 = vector.load %arg18[%c0_146, %c0_147] : memref<1x16xf32, #tpu.memory_space<vmem>>, vector<1x16xf32>
    %810 = vector.broadcast %809 : vector<1x16xf32> to vector<16x16xf32>
    %811 = arith.addf %808, %810 : vector<16x16xf32>
    %c0_148 = arith.constant 0 : index
    %c0_149 = arith.constant 0 : index
    %812 = vector.load %arg21[%c0_148, %c0_149] : memref<16x16xf32, #tpu.memory_space<vmem>>, vector<16x16xf32>
    tpu.vector_store %arg21[%c0_148, %c0_149], %811 {strides = array<i32>} : memref<16x16xf32, #tpu.memory_space<vmem>>, vector<16x16xf32>,
    %c0_150 = arith.constant 0 : index
    %c0_151 = arith.constant 0 : index
    %813 = vector.load %arg19[%c0_150, %c0_151] : memref<32x16xf32, #tpu.memory_space<vmem>>, vector<32x16xf32>
    %cst_152 = arith.constant dense<0.000000e+00> : vector<16x16xf32>
    %814 = tpu.matmul %806, %813, %cst_152 {dimension_numbers = #tpu.dot_dimension_numbers<[1], [0], [0], [1], [0, 0, 1, 1], [], []>} : vector<16x32xf32>, vector<32x16xf32>, vector<16x16xf32> -> vector<16x16xf32>
    %c0_153 = arith.constant 0 : index
    %c0_154 = arith.constant 0 : index
    %815 = vector.load %arg20[%c0_153, %c0_154] : memref<1x16xf32, #tpu.memory_space<vmem>>, vector<1x16xf32>
    %816 = vector.broadcast %815 : vector<1x16xf32> to vector<16x16xf32>
    %817 = arith.addf %814, %816 : vector<16x16xf32>
    %c0_155 = arith.constant 0 : index
    %c0_156 = arith.constant 0 : index
    %818 = vector.load %arg22[%c0_155, %c0_156] : memref<16x16xf32, #tpu.memory_space<vmem>>, vector<16x16xf32>
    tpu.vector_store %arg22[%c0_155, %c0_156], %817 {strides = array<i32>} : memref<16x16xf32, #tpu.memory_space<vmem>>, vector<16x16xf32>,
    return
  }
}

</mosaic_0001>

<llo_original>
// kernel: mul_grid_lstm_net.1
$region0: #{mul_grid_lstm_net.1}
  #allocation0 [shape = 'u32[]', space=smem, size = 0x4, offset = 0x4, fixed_abs, tag = 'smem constant byte address 0x4 - core index']
  #allocation1 [shape = 'u32[144,128]{1,0:T(1,128)}', space=vmem, size = 0x12000, scoped, tag = 'internal scratch']
  %s0 = inlined_call_operand.vmem [shape: f32[2,8,16], index: 0, kind: input, shape index: {}]
  %s1 = inlined_call_operand.hbm [shape: f32[16,96], index: 1, kind: input, shape index: {}]
  %s2 = inlined_call_operand.vmem [shape: f32[32,16], index: 2, kind: input, shape index: {}]
  %s3 = inlined_call_operand.hbm [shape: f32[1,16], index: 3, kind: input, shape index: {}]
  %s4 = inlined_call_operand.hbm [shape: f32[16,128], index: 4, kind: input, shape index: {}]
  %s5 = inlined_call_operand.hbm [shape: f32[1,128], index: 5, kind: input, shape index: {}]
  %s6 = inlined_call_operand.vmem [shape: f32[64,128], index: 6, kind: input, shape index: {}]
  %s7 = inlined_call_operand.vmem [shape: f32[64,128], index: 7, kind: input, shape index: {}]
  %s8 = inlined_call_operand.hbm [shape: f32[1,128], index: 8, kind: input, shape index: {}]
  %s9 = inlined_call_operand.vmem [shape: f32[32,192], index: 9, kind: input, shape index: {}]
  %s10 = inlined_call_operand.vmem [shape: f32[64,32], index: 10, kind: input, shape index: {}]
  %s11 = inlined_call_operand.hbm [shape: f32[1,32], index: 11, kind: input, shape index: {}]
  %s12 = inlined_call_operand.vmem [shape: f32[32,128], index: 12, kind: input, shape index: {}]
  %s13 = inlined_call_operand.hbm [shape: f32[1,128], index: 13, kind: input, shape index: {}]
  %s14 = inlined_call_operand.vmem [shape: f32[64,128], index: 14, kind: input, shape index: {}]
  %s15 = inlined_call_operand.hbm [shape: f32[64,128], index: 15, kind: input, shape index: {}]
  %s16 = inlined_call_operand.hbm [shape: f32[1,128], index: 16, kind: input, shape index: {}]
  %s17 = inlined_call_operand.vmem [shape: f32[32,16], index: 17, kind: input, shape index: {}]
  %s18 = inlined_call_operand.vmem [shape: f32[1,16], index: 18, kind: input, shape index: {}]
  %s19 = inlined_call_operand.vmem [shape: f32[32,16], index: 19, kind: input, shape index: {}]
  %s20 = inlined_call_operand.hbm [shape: f32[1,16], index: 20, kind: input, shape index: {}]
  %s21 = inlined_call_operand.hbm [shape: f32[16,16], index: 21, kind: output, shape index: {0}]
  %s22 = inlined_call_operand.hbm [shape: f32[16,16], index: 22, kind: output, shape index: {1}]
  %23 = xla_tuple %s21, %s22
  %s24 = sld [smem:[#allocation0]]
  $region142: #{mul_grid_lstm_net.1} parent=0
    _
  %s26 = ssub.s32 1, %s24
  %s27 = scalar_select 0, %s26, %s24
  $region1: #{mul_grid_lstm_net.1} parent=0
    #allocation2 [shape = 'u8[8192]{0}', space=vmem, size = 0x2000, scoped, tag = 'input window, operand 1, single buffered']
    #allocation3 [shape = 's32[1]{0}', space=sflag, size = 0x4, scoped, tag = 'scoped memory for mul_grid_lstm_net.1']
    #allocation4 [shape = 's32[1]{0}', space=sflag, size = 0x4, scoped, tag = 'scoped memory for mul_grid_lstm_net.1']
    #allocation5 [shape = 'u8[512]{0}', space=vmem, size = 0x400, scoped, tag = 'input window, operand 3, single buffered']
    #allocation6 [shape = 's32[1]{0}', space=sflag, size = 0x4, scoped, tag = 'scoped memory for mul_grid_lstm_net.1']
    #allocation7 [shape = 'u8[8192]{0}', space=vmem, size = 0x2000, scoped, tag = 'input window, operand 4, single buffered']
    #allocation8 [shape = 'u8[512]{0}', space=vmem, size = 0x400, scoped, tag = 'input window, operand 5, single buffered']
    #allocation9 [shape = 's32[1]{0}', space=sflag, size = 0x4, scoped, tag = 'scoped memory for mul_grid_lstm_net.1']
    #allocation10 [shape = 'u8[512]{0}', space=vmem, size = 0x400, scoped, tag = 'input window, operand 8, single buffered']
    #allocation11 [shape = 'u8[512]{0}', space=vmem, size = 0x400, scoped, tag = 'input window, operand 11, single buffered']
    #allocation12 [shape = 's32[1]{0}', space=sflag, size = 0x4, scoped, tag = 'scoped memory for mul_grid_lstm_net.1']
    #allocation13 [shape = 'u8[512]{0}', space=vmem, size = 0x400, scoped, tag = 'input window, operand 13, single buffered']
    #allocation14 [shape = 'u8[32768]{0}', space=vmem, size = 0x8000, scoped, tag = 'input window, operand 15, single buffered']
    #allocation15 [shape = 's32[1]{0}', space=sflag, size = 0x4, scoped, tag = 'scoped memory for mul_grid_lstm_net.1']
    #allocation16 [shape = 'u8[512]{0}', space=vmem, size = 0x400, scoped, tag = 'input window, operand 16, single buffered']
    #allocation17 [shape = 'u8[512]{0}', space=vmem, size = 0x400, scoped, tag = 'input window, operand 20, single buffered']
    #allocation18 [shape = 's32[1]{0}', space=sflag, size = 0x4, scoped, tag = 'scoped memory for mul_grid_lstm_net.1']
    #allocation19 [shape = 'u8[8192]{0}', space=vmem, size = 0x2000, scoped, tag = 'output window, operand 0, single buffered']
    #allocation20 [shape = 'u8[8192]{0}', space=vmem, size = 0x2000, scoped, tag = 'output window, operand 1, single buffered']
    #allocation21 [shape = 's32[1]{0}', space=sflag, size = 0x4, scoped, tag = 'scoped memory for mul_grid_lstm_net.1']
    %28 = vsyncpa [#allocation3], 0
    %29 = vsyncpa [#allocation6], 0
    %30 = vsyncpa [#allocation9], 0
    %31 = vsyncpa [#allocation12], 0
    %32 = vsyncpa [#allocation15], 0
    %33 = vsyncpa [#allocation18], 0
    %34 = vsyncpa [#allocation4], 0
    %35 = vsyncpa [#allocation21], 0
    // Predicated region
    $region2: #{mul_grid_lstm_net.1} parent=1 // pred_check
      _
    $region3: #{mul_grid_lstm_net.1} parent=1 // pred_check_branch
      %37 = sbr.rel (0) target = $region5
    $region4: #{mul_grid_lstm_net.1} parent=1 // pred_region
      _
    $region5: #{mul_grid_lstm_net.1} parent=1 // pred_fallthru
      _
    // Predicated region
    $region6: #{mul_grid_lstm_net.1} parent=1 // pred_check
      _
    $region7: #{mul_grid_lstm_net.1} parent=1 // pred_check_branch
      %39 = sbr.rel (0) target = $region9
    $region8: #{mul_grid_lstm_net.1} parent=1 // pred_region
      %s41 = ssub.s32 256, 256
      %42 = vsyncadd [#allocation3], %s41
      %s43 = sshll.u32 [#allocation2], 4
      %s44 = int_to_ptr.vmem [resolvable:$true] %s43
      %49 = dma.hbm_to_vmem [thread:$0]  %s1, 256, %s44, [#allocation3], 128, 128, 8
    $region9: #{mul_grid_lstm_net.1} parent=1 // pred_fallthru
      _
    // Predicated region
    $region10: #{mul_grid_lstm_net.1} parent=1 // pred_check
      _
    $region11: #{mul_grid_lstm_net.1} parent=1 // pred_check_branch
      %51 = sbr.rel (0) target = $region13
    $region12: #{mul_grid_lstm_net.1} parent=1 // pred_region
      _
    $region13: #{mul_grid_lstm_net.1} parent=1 // pred_fallthru
      _
    // Predicated region
    $region14: #{mul_grid_lstm_net.1} parent=1 // pred_check
      _
    $region15: #{mul_grid_lstm_net.1} parent=1 // pred_check_branch
      %53 = sbr.rel (0) target = $region17
    $region16: #{mul_grid_lstm_net.1} parent=1 // pred_region
      %s55 = ssub.s32 16, 16
      %56 = vsyncadd [#allocation6], %s55
      %s58 = sshll.u32 [#allocation5], 4
      %s59 = int_to_ptr.vmem [resolvable:$true] %s58
      %61 = dma.hbm_to_vmem [thread:$0]  %s3, 16, %s59, [#allocation6]
    $region17: #{mul_grid_lstm_net.1} parent=1 // pred_fallthru
      _
    // Predicated region
    $region18: #{mul_grid_lstm_net.1} parent=1 // pred_check
      _
    $region19: #{mul_grid_lstm_net.1} parent=1 // pred_check_branch
      %63 = sbr.rel (0) target = $region21
    $region20: #{mul_grid_lstm_net.1} parent=1 // pred_region
      %s65 = ssub.s32 256, 256
      %66 = vsyncadd [#allocation6], %s65
      %s67 = sshll.u32 [#allocation7], 4
      %s68 = int_to_ptr.vmem [resolvable:$true] %s67
      %73 = dma.hbm_to_vmem [thread:$0]  %s4, 256, %s68, [#allocation6], 128, 128, 8
    $region21: #{mul_grid_lstm_net.1} parent=1 // pred_fallthru
      _
    // Predicated region
    $region22: #{mul_grid_lstm_net.1} parent=1 // pred_check
      _
    $region23: #{mul_grid_lstm_net.1} parent=1 // pred_check_branch
      %75 = sbr.rel (0) target = $region25
    $region24: #{mul_grid_lstm_net.1} parent=1 // pred_region
      %s77 = ssub.s32 16, 16
      %78 = vsyncadd [#allocation9], %s77
      %s80 = sshll.u32 [#allocation8], 4
      %s81 = int_to_ptr.vmem [resolvable:$true] %s80
      %83 = dma.hbm_to_vmem [thread:$0]  %s5, 16, %s81, [#allocation9]
    $region25: #{mul_grid_lstm_net.1} parent=1 // pred_fallthru
      _
    // Predicated region
    $region26: #{mul_grid_lstm_net.1} parent=1 // pred_check
      _
    $region27: #{mul_grid_lstm_net.1} parent=1 // pred_check_branch
      %85 = sbr.rel (0) target = $region29
    $region28: #{mul_grid_lstm_net.1} parent=1 // pred_region
      _
    $region29: #{mul_grid_lstm_net.1} parent=1 // pred_fallthru
      _
    // Predicated region
    $region30: #{mul_grid_lstm_net.1} parent=1 // pred_check
      _
    $region31: #{mul_grid_lstm_net.1} parent=1 // pred_check_branch
      %87 = sbr.rel (0) target = $region33
    $region32: #{mul_grid_lstm_net.1} parent=1 // pred_region
      _
    $region33: #{mul_grid_lstm_net.1} parent=1 // pred_fallthru
      _
    // Predicated region
    $region34: #{mul_grid_lstm_net.1} parent=1 // pred_check
      _
    $region35: #{mul_grid_lstm_net.1} parent=1 // pred_check_branch
      %89 = sbr.rel (0) target = $region37
    $region36: #{mul_grid_lstm_net.1} parent=1 // pred_region
      %s91 = ssub.s32 16, 16
      %92 = vsyncadd [#allocation9], %s91
      %s94 = sshll.u32 [#allocation10], 4
      %s95 = int_to_ptr.vmem [resolvable:$true] %s94
      %97 = dma.hbm_to_vmem [thread:$0]  %s8, 16, %s95, [#allocation9]
    $region37: #{mul_grid_lstm_net.1} parent=1 // pred_fallthru
      _
    // Predicated region
    $region38: #{mul_grid_lstm_net.1} parent=1 // pred_check
      _
    $region39: #{mul_grid_lstm_net.1} parent=1 // pred_check_branch
      %99 = sbr.rel (0) target = $region41
    $region40: #{mul_grid_lstm_net.1} parent=1 // pred_region
      _
    $region41: #{mul_grid_lstm_net.1} parent=1 // pred_fallthru
      _
    // Predicated region
    $region42: #{mul_grid_lstm_net.1} parent=1 // pred_check
      _
    $region43: #{mul_grid_lstm_net.1} parent=1 // pred_check_branch
      %101 = sbr.rel (0) target = $region45
    $region44: #{mul_grid_lstm_net.1} parent=1 // pred_region
      _
    $region45: #{mul_grid_lstm_net.1} parent=1 // pred_fallthru
      _
    // Predicated region
    $region46: #{mul_grid_lstm_net.1} parent=1 // pred_check
      _
    $region47: #{mul_grid_lstm_net.1} parent=1 // pred_check_branch
      %103 = sbr.rel (0) target = $region49
    $region48: #{mul_grid_lstm_net.1} parent=1 // pred_region
      %s105 = ssub.s32 16, 16
      %106 = vsyncadd [#allocation12], %s105
      %s108 = sshll.u32 [#allocation11], 4
      %s109 = int_to_ptr.vmem [resolvable:$true] %s108
      %111 = dma.hbm_to_vmem [thread:$0]  %s11, 16, %s109, [#allocation12]
    $region49: #{mul_grid_lstm_net.1} parent=1 // pred_fallthru
      _
    // Predicated region
    $region50: #{mul_grid_lstm_net.1} parent=1 // pred_check
      _
    $region51: #{mul_grid_lstm_net.1} parent=1 // pred_check_branch
      %113 = sbr.rel (0) target = $region53
    $region52: #{mul_grid_lstm_net.1} parent=1 // pred_region
      _
    $region53: #{mul_grid_lstm_net.1} parent=1 // pred_fallthru
      _
    // Predicated region
    $region54: #{mul_grid_lstm_net.1} parent=1 // pred_check
      _
    $region55: #{mul_grid_lstm_net.1} parent=1 // pred_check_branch
      %115 = sbr.rel (0) target = $region57
    $region56: #{mul_grid_lstm_net.1} parent=1 // pred_region
      %s117 = ssub.s32 16, 16
      %118 = vsyncadd [#allocation12], %s117
      %s120 = sshll.u32 [#allocation13], 4
      %s121 = int_to_ptr.vmem [resolvable:$true] %s120
      %123 = dma.hbm_to_vmem [thread:$0]  %s13, 16, %s121, [#allocation12]
    $region57: #{mul_grid_lstm_net.1} parent=1 // pred_fallthru
      _
    // Predicated region
    $region58: #{mul_grid_lstm_net.1} parent=1 // pred_check
      _
    $region59: #{mul_grid_lstm_net.1} parent=1 // pred_check_branch
      %125 = sbr.rel (0) target = $region61
    $region60: #{mul_grid_lstm_net.1} parent=1 // pred_region
      _
    $region61: #{mul_grid_lstm_net.1} parent=1 // pred_fallthru
      _
    // Predicated region
    $region62: #{mul_grid_lstm_net.1} parent=1 // pred_check
      _
    $region63: #{mul_grid_lstm_net.1} parent=1 // pred_check_branch
      %127 = sbr.rel (0) target = $region65
    $region64: #{mul_grid_lstm_net.1} parent=1 // pred_region
      %s129 = ssub.s32 1024, 1024
      %130 = vsyncadd [#allocation15], %s129
      %s131 = sshll.u32 [#allocation14], 4
      %s132 = int_to_ptr.vmem [resolvable:$true] %s131
      %137 = dma.hbm_to_vmem [thread:$0]  %s15, 1024, %s132, [#allocation15], 128, 128, 8
    $region65: #{mul_grid_lstm_net.1} parent=1 // pred_fallthru
      _
    // Predicated region
    $region66: #{mul_grid_lstm_net.1} parent=1 // pred_check
      _
    $region67: #{mul_grid_lstm_net.1} parent=1 // pred_check_branch
      %139 = sbr.rel (0) target = $region69
    $region68: #{mul_grid_lstm_net.1} parent=1 // pred_region
      %s141 = ssub.s32 16, 16
      %142 = vsyncadd [#allocation15], %s141
      %s144 = sshll.u32 [#allocation16], 4
      %s145 = int_to_ptr.vmem [resolvable:$true] %s144
      %147 = dma.hbm_to_vmem [thread:$0]  %s16, 16, %s145, [#allocation15]
    $region69: #{mul_grid_lstm_net.1} parent=1 // pred_fallthru
      _
    // Predicated region
    $region70: #{mul_grid_lstm_net.1} parent=1 // pred_check
      _
    $region71: #{mul_grid_lstm_net.1} parent=1 // pred_check_branch
      %149 = sbr.rel (0) target = $region73
    $region72: #{mul_grid_lstm_net.1} parent=1 // pred_region
      _
    $region73: #{mul_grid_lstm_net.1} parent=1 // pred_fallthru
      _
    // Predicated region
    $region74: #{mul_grid_lstm_net.1} parent=1 // pred_check
      _
    $region75: #{mul_grid_lstm_net.1} parent=1 // pred_check_branch
      %151 = sbr.rel (0) target = $region77
    $region76: #{mul_grid_lstm_net.1} parent=1 // pred_region
      _
    $region77: #{mul_grid_lstm_net.1} parent=1 // pred_fallthru
      _
    // Predicated region
    $region78: #{mul_grid_lstm_net.1} parent=1 // pred_check
      _
    $region79: #{mul_grid_lstm_net.1} parent=1 // pred_check_branch
      %153 = sbr.rel (0) target = $region81
    $region80: #{mul_grid_lstm_net.1} parent=1 // pred_region
      _
    $region81: #{mul_grid_lstm_net.1} parent=1 // pred_fallthru
      _
    // Predicated region
    $region82: #{mul_grid_lstm_net.1} parent=1 // pred_check
      _
    $region83: #{mul_grid_lstm_net.1} parent=1 // pred_check_branch
      %155 = sbr.rel (0) target = $region85
    $region84: #{mul_grid_lstm_net.1} parent=1 // pred_region
      %s157 = ssub.s32 16, 16
      %158 = vsyncadd [#allocation18], %s157
      %s160 = sshll.u32 [#allocation17], 4
      %s161 = int_to_ptr.vmem [resolvable:$true] %s160
      %163 = dma.hbm_to_vmem [thread:$0]  %s20, 16, %s161, [#allocation18]
    $region85: #{mul_grid_lstm_net.1} parent=1 // pred_fallthru
      _
    // Predicated region
    $region86: #{mul_grid_lstm_net.1} parent=1 // pred_check
      _
    $region87: #{mul_grid_lstm_net.1} parent=1 // pred_check_branch
      %165 = sbr.rel (0) target = $region89
    $region88: #{mul_grid_lstm_net.1} parent=1 // pred_region
      %166 = dma.done [#allocation3], 256
    $region89: #{mul_grid_lstm_net.1} parent=1 // pred_fallthru
      _
    // Predicated region
    $region90: #{mul_grid_lstm_net.1} parent=1 // pred_check
      _
    $region91: #{mul_grid_lstm_net.1} parent=1 // pred_check_branch
      %168 = sbr.rel (0) target = $region93
    $region92: #{mul_grid_lstm_net.1} parent=1 // pred_region
      %169 = dma.done [#allocation6], 16
    $region93: #{mul_grid_lstm_net.1} parent=1 // pred_fallthru
      _
    // Predicated region
    $region94: #{mul_grid_lstm_net.1} parent=1 // pred_check
      _
    $region95: #{mul_grid_lstm_net.1} parent=1 // pred_check_branch
      %171 = sbr.rel (0) target = $region97
    $region96: #{mul_grid_lstm_net.1} parent=1 // pred_region
      %172 = dma.done [#allocation6], 256
    $region97: #{mul_grid_lstm_net.1} parent=1 // pred_fallthru
      _
    // Predicated region
    $region98: #{mul_grid_lstm_net.1} parent=1 // pred_check
      _
    $region99: #{mul_grid_lstm_net.1} parent=1 // pred_check_branch
      %174 = sbr.rel (0) target = $region101
    $region100: #{mul_grid_lstm_net.1} parent=1 // pred_region
      %175 = dma.done [#allocation9], 16
    $region101: #{mul_grid_lstm_net.1} parent=1 // pred_fallthru
      _
    // Predicated region
    $region102: #{mul_grid_lstm_net.1} parent=1 // pred_check
      _
    $region103: #{mul_grid_lstm_net.1} parent=1 // pred_check_branch
      %177 = sbr.rel (0) target = $region105
    $region104: #{mul_grid_lstm_net.1} parent=1 // pred_region
      %178 = dma.done [#allocation9], 16
    $region105: #{mul_grid_lstm_net.1} parent=1 // pred_fallthru
      _
    // Predicated region
    $region106: #{mul_grid_lstm_net.1} parent=1 // pred_check
      _
    $region107: #{mul_grid_lstm_net.1} parent=1 // pred_check_branch
      %180 = sbr.rel (0) target = $region109
    $region108: #{mul_grid_lstm_net.1} parent=1 // pred_region
      %181 = dma.done [#allocation12], 16
    $region109: #{mul_grid_lstm_net.1} parent=1 // pred_fallthru
      _
    // Predicated region
    $region110: #{mul_grid_lstm_net.1} parent=1 // pred_check
      _
    $region111: #{mul_grid_lstm_net.1} parent=1 // pred_check_branch
      %183 = sbr.rel (0) target = $region113
    $region112: #{mul_grid_lstm_net.1} parent=1 // pred_region
      %184 = dma.done [#allocation12], 16
    $region113: #{mul_grid_lstm_net.1} parent=1 // pred_fallthru
      _
    // Predicated region
    $region114: #{mul_grid_lstm_net.1} parent=1 // pred_check
      _
    $region115: #{mul_grid_lstm_net.1} parent=1 // pred_check_branch
      %186 = sbr.rel (0) target = $region117
    $region116: #{mul_grid_lstm_net.1} parent=1 // pred_region
      %187 = dma.done [#allocation15], 1024
    $region117: #{mul_grid_lstm_net.1} parent=1 // pred_fallthru
      _
    // Predicated region
    $region118: #{mul_grid_lstm_net.1} parent=1 // pred_check
      _
    $region119: #{mul_grid_lstm_net.1} parent=1 // pred_check_branch
      %189 = sbr.rel (0) target = $region121
    $region120: #{mul_grid_lstm_net.1} parent=1 // pred_region
      %190 = dma.done [#allocation15], 16
    $region121: #{mul_grid_lstm_net.1} parent=1 // pred_fallthru
      _
    // Predicated region
    $region122: #{mul_grid_lstm_net.1} parent=1 // pred_check
      _
    $region123: #{mul_grid_lstm_net.1} parent=1 // pred_check_branch
      %192 = sbr.rel (0) target = $region125
    $region124: #{mul_grid_lstm_net.1} parent=1 // pred_region
      %193 = dma.done [#allocation18], 16
    $region125: #{mul_grid_lstm_net.1} parent=1 // pred_fallthru
      _
    %v194 = vld [vmem:[%s0] sm:$0xff]
    %s195 = scalar_lea.vmem %s0, 8
    %v196 = vld [vmem:[%s195] sm:$0xff]
    %v197 = vld [vmem:[#allocation2] sm:$0xff]
    %v198 = vld [vmem:[#allocation2 + $0x8] sm:$0xff]
    %v199 = vld [vmem:[%s2] sm:$0xff]
    %v200 = vld [vmem:[%s2 + $0x8] sm:$0xff]
    %v201 = vld [vmem:[%s2 + $0x10] sm:$0xff]
    %v202 = vld [vmem:[%s2 + $0x18] sm:$0xff]
    %v203 = vld [vmem:[#allocation5] sm:$0x1]
    %v204 = vld [vmem:[#allocation7] sm:$0xff]
    %v205 = vld [vmem:[#allocation7 + $0x8] sm:$0xff]
    %v206 = vld [vmem:[#allocation8] sm:$0x1]
    %vm207 = vcmask 130048
    %v209 = vsel %vm207, %v194, 0
    %211 = vmatprep.subr.mxu0 0.0
    %212 = vmatpush1.msra.mxu0 0.0
    %213 = vmatprep.subr.mxu0 0.0
    %214 = vmatpush1.msra.mxu0 0.0
    %215 = vmatprep.subr.mxu0 0.0
    %216 = vmatpush1.msra.mxu0 0.0
    %217 = vmatprep.subr.mxu0 0.0
    %218 = vmatpush1.msra.mxu0 0.0
    %219 = vmatprep.subr.mxu0 0.0
    %220 = vmatpush1.msra.mxu0 0.0
    %221 = vmatprep.subr.mxu0 0.0
    %222 = vmatpush1.msra.mxu0 0.0
    %223 = vmatprep.subr.mxu0 0.0
    %224 = vmatpush1.msra.mxu0 0.0
    %225 = vmatprep.subr.mxu0 0.0
    %226 = vmatpush1.msra.mxu0 0.0
    %227 = vmatprep.subr.mxu0 0.0
    %228 = vmatpush1.msra.mxu0 0.0
    %229 = vmatprep.subr.mxu0 0.0
    %230 = vmatpush1.msra.mxu0 0.0
    %231 = vmatprep.subr.mxu0 0.0
    %232 = vmatpush1.msra.mxu0 0.0
    %233 = vmatprep.subr.mxu0 0.0
    %234 = vmatpush1.msra.mxu0 0.0
    %235 = vmatprep.subr.mxu0 0.0
    %236 = vmatpush1.msra.mxu0 0.0
    %237 = vmatprep.subr.mxu0 0.0
    %238 = vmatpush1.msra.mxu0 0.0
    %239 = vmatprep.subr.mxu0 0.0
    %240 = vmatpush1.msra.mxu0 %v198
    %241 = vmatprep.subr.mxu0 0.0
    %242 = vmatpush1.msra.mxu0 %v197
    %243 = vmatprep.subr.mxu0 0.0
    %244 = vmatpush2.msra.mxu0 0.0
    %245 = vmatprep.subr.mxu0 0.0
    %246 = vmatpush2.msra.mxu0 0.0
    %247 = vmatprep.subr.mxu0 0.0
    %248 = vmatpush2.msra.mxu0 0.0
    %249 = vmatprep.subr.mxu0 0.0
    %250 = vmatpush2.msra.mxu0 0.0
    %251 = vmatprep.subr.mxu0 0.0
    %252 = vmatpush2.msra.mxu0 0.0
    %253 = vmatprep.subr.mxu0 0.0
    %254 = vmatpush2.msra.mxu0 0.0
    %255 = vmatprep.subr.mxu0 0.0
    %256 = vmatpush2.msra.mxu0 0.0
    %257 = vmatprep.subr.mxu0 0.0
    %258 = vmatpush2.msra.mxu0 0.0
    %259 = vmatprep.subr.mxu0 0.0
    %260 = vmatpush2.msra.mxu0 0.0
    %261 = vmatprep.subr.mxu0 0.0
    %262 = vmatpush2.msra.mxu0 0.0
    %263 = vmatprep.subr.mxu0 0.0
    %264 = vmatpush2.msra.mxu0 0.0
    %265 = vmatprep.subr.mxu0 0.0
    %266 = vmatpush2.msra.mxu0 0.0
    %267 = vmatprep.subr.mxu0 0.0
    %268 = vmatpush2.msra.mxu0 0.0
    %269 = vmatprep.subr.mxu0 0.0
    %270 = vmatpush2.msra.mxu0 0.0
    %271 = vmatprep.subr.mxu0 0.0
    %272 = vmatpush2.msra.mxu0 0.0
    %273 = vmatprep.subr.mxu0 0.0
    %274 = vmatpush2.msra.mxu0 0.0
    %275 = vmatprep.mubr.f32.mxu0 0.0
    %276 = vmatmul.mubr.f32.gmra.mxu0 %v209
    %v277 = vpop.f32.mrf.mxu0
    %v278 = vadd.f32 0.0, %v277
    %v279 = vpop.f32.mrf.mxu0
    %280 = vdwg.mxu0
    %282 = vrot.lane.b32.xlu0 %v278, 80
    %v283 = vpop.permute.xlu0 %282
    %284 = vrot.lane.b32.xlu0 %v278, 112
    %v285 = vpop.permute.xlu0 %284
    %v286 = vsel %vm207, %v283, 0
    %v288 = vsel %vm207, %v285, 0
    %290 = vmatprep.subr.mxu0 0.0
    %291 = vmatpush1.xpose.msra.mxu0 0.0
    %292 = vmatprep.subr.mxu0 0.0
    %293 = vmatpush1.xpose.msra.mxu0 0.0
    %294 = vmatprep.subr.mxu0 0.0
    %295 = vmatpush1.xpose.msra.mxu0 0.0
    %296 = vmatprep.subr.mxu0 0.0
    %297 = vmatpush1.xpose.msra.mxu0 0.0
    %298 = vmatprep.subr.mxu0 0.0
    %299 = vmatpush1.xpose.msra.mxu0 0.0
    %300 = vmatprep.subr.mxu0 0.0
    %301 = vmatpush1.xpose.msra.mxu0 0.0
    %302 = vmatprep.subr.mxu0 0.0
    %303 = vmatpush1.xpose.msra.mxu0 0.0
    %304 = vmatprep.subr.mxu0 0.0
    %305 = vmatpush1.xpose.msra.mxu0 0.0
    %306 = vmatprep.subr.mxu0 0.0
    %307 = vmatpush1.xpose.msra.mxu0 0.0
    %308 = vmatprep.subr.mxu0 0.0
    %309 = vmatpush1.xpose.msra.mxu0 0.0
    %310 = vmatprep.subr.mxu0 0.0
    %311 = vmatpush1.xpose.msra.mxu0 0.0
    %312 = vmatprep.subr.mxu0 0.0
    %313 = vmatpush1.xpose.msra.mxu0 0.0
    %314 = vmatprep.subr.mxu0 0.0
    %315 = vmatpush1.xpose.msra.mxu0 0.0
    %316 = vmatprep.subr.mxu0 0.0
    %317 = vmatpush1.xpose.msra.mxu0 0.0
    %318 = vmatprep.subr.mxu0 0.0
    %319 = vmatpush1.xpose.msra.mxu0 0.0
    %320 = vmatprep.subr.mxu0 0.0
    %321 = vmatpush1.xpose.msra.mxu0 %v288
    %322 = vmatprep.subr.mxu0 0.0
    %323 = vmatpush2.xpose.msra.mxu0 0.0
    %324 = vmatprep.subr.mxu0 0.0
    %325 = vmatpush2.xpose.msra.mxu0 0.0
    %326 = vmatprep.subr.mxu0 0.0
    %327 = vmatpush2.xpose.msra.mxu0 0.0
    %328 = vmatprep.subr.mxu0 0.0
    %329 = vmatpush2.xpose.msra.mxu0 0.0
    %330 = vmatprep.subr.mxu0 0.0
    %331 = vmatpush2.xpose.msra.mxu0 0.0
    %332 = vmatprep.subr.mxu0 0.0
    %333 = vmatpush2.xpose.msra.mxu0 0.0
    %334 = vmatprep.subr.mxu0 0.0
    %335 = vmatpush2.xpose.msra.mxu0 0.0
    %336 = vmatprep.subr.mxu0 0.0
    %337 = vmatpush2.xpose.msra.mxu0 0.0
    %338 = vmatprep.subr.mxu0 0.0
    %339 = vmatpush2.xpose.msra.mxu0 0.0
    %340 = vmatprep.subr.mxu0 0.0
    %341 = vmatpush2.xpose.msra.mxu0 0.0
    %342 = vmatprep.subr.mxu0 0.0
    %343 = vmatpush2.xpose.msra.mxu0 0.0
    %344 = vmatprep.subr.mxu0 0.0
    %345 = vmatpush2.xpose.msra.mxu0 0.0
    %346 = vmatprep.subr.mxu0 0.0
    %347 = vmatpush2.xpose.msra.mxu0 0.0
    %348 = vmatprep.subr.mxu0 0.0
    %349 = vmatpush2.xpose.msra.mxu0 0.0
    %350 = vmatprep.subr.mxu0 0.0
    %351 = vmatpush2.xpose.msra.mxu0 0.0
    %352 = vmatprep.subr.mxu0 0.0
    %353 = vmatpush2.xpose.msra.mxu0 0.0
    %354 = vmatprep.mubr.f32.mxu0 0.0
    %355 = vmatmul.mubr.f32.gmra.mxu0 %v286
    %v356 = vpop.f32.mrf.mxu0
    %v357 = vadd.f32 0.0, %v356
    %v358 = vpop.f32.mrf.mxu0
    %359 = vdwg.mxu0
    %vm360 = vcmask 64512
    %v361 = vsel %vm360, %v357, -inf
    %362 = vmax.xlane.f32.xlu0 %v361
    %v363 = vpop.xlane.xlu0 %362
    %v364 = vsub.f32 %v357, %v363
    %v365 = vmul.f32 %v364, 1.442695
    %v366 = vpow.pop %v365
    %v367 = vsel %vm360, %v366, 0.0
    %368 = vadd.xlane.f32.xlu0 %v367
    %v369 = vpop.xlane.xlu0 %368
    %v370 = vrcp.pop %v369
    %v371 = vmul.f32 %v366, %v370
    %372 = vrot.lane.b32.xlu0 %v278, 64
    %v373 = vpop.permute.xlu0 %372
    %v374 = vsel %vm207, %v278, 0
    %v376 = vsel %vm207, %v373, 0
    %378 = vmatprep.subr.mxu0 0.0
    %379 = vmatpush1.xpose.msra.mxu0 0.0
    %380 = vmatprep.subr.mxu0 0.0
    %381 = vmatpush1.xpose.msra.mxu0 0.0
    %382 = vmatprep.subr.mxu0 0.0
    %383 = vmatpush1.xpose.msra.mxu0 0.0
    %384 = vmatprep.subr.mxu0 0.0
    %385 = vmatpush1.xpose.msra.mxu0 0.0
    %386 = vmatprep.subr.mxu0 0.0
    %387 = vmatpush1.xpose.msra.mxu0 0.0
    %388 = vmatprep.subr.mxu0 0.0
    %389 = vmatpush1.xpose.msra.mxu0 0.0
    %390 = vmatprep.subr.mxu0 0.0
    %391 = vmatpush1.xpose.msra.mxu0 0.0
    %392 = vmatprep.subr.mxu0 0.0
    %393 = vmatpush1.xpose.msra.mxu0 0.0
    %394 = vmatprep.subr.mxu0 0.0
    %395 = vmatpush1.xpose.msra.mxu0 0.0
    %396 = vmatprep.subr.mxu0 0.0
    %397 = vmatpush1.xpose.msra.mxu0 0.0
    %398 = vmatprep.subr.mxu0 0.0
    %399 = vmatpush1.xpose.msra.mxu0 0.0
    %400 = vmatprep.subr.mxu0 0.0
    %401 = vmatpush1.xpose.msra.mxu0 0.0
    %402 = vmatprep.subr.mxu0 0.0
    %403 = vmatpush1.xpose.msra.mxu0 0.0
    %404 = vmatprep.subr.mxu0 0.0
    %405 = vmatpush1.xpose.msra.mxu0 0.0
    %406 = vmatprep.subr.mxu0 0.0
    %407 = vmatpush1.xpose.msra.mxu0 0.0
    %408 = vmatprep.subr.mxu0 0.0
    %409 = vmatpush1.xpose.msra.mxu0 %v376
    %410 = vmatprep.subr.mxu0 0.0
    %411 = vmatpush2.xpose.msra.mxu0 0.0
    %412 = vmatprep.subr.mxu0 0.0
    %413 = vmatpush2.xpose.msra.mxu0 0.0
    %414 = vmatprep.subr.mxu0 0.0
    %415 = vmatpush2.xpose.msra.mxu0 0.0
    %416 = vmatprep.subr.mxu0 0.0
    %417 = vmatpush2.xpose.msra.mxu0 0.0
    %418 = vmatprep.subr.mxu0 0.0
    %419 = vmatpush2.xpose.msra.mxu0 0.0
    %420 = vmatprep.subr.mxu0 0.0
    %421 = vmatpush2.xpose.msra.mxu0 0.0
    %422 = vmatprep.subr.mxu0 0.0
    %423 = vmatpush2.xpose.msra.mxu0 0.0
    %424 = vmatprep.subr.mxu0 0.0
    %425 = vmatpush2.xpose.msra.mxu0 0.0
    %426 = vmatprep.subr.mxu0 0.0
    %427 = vmatpush2.xpose.msra.mxu0 0.0
    %428 = vmatprep.subr.mxu0 0.0
    %429 = vmatpush2.xpose.msra.mxu0 0.0
    %430 = vmatprep.subr.mxu0 0.0
    %431 = vmatpush2.xpose.msra.mxu0 0.0
    %432 = vmatprep.subr.mxu0 0.0
    %433 = vmatpush2.xpose.msra.mxu0 0.0
    %434 = vmatprep.subr.mxu0 0.0
    %435 = vmatpush2.xpose.msra.mxu0 0.0
    %436 = vmatprep.subr.mxu0 0.0
    %437 = vmatpush2.xpose.msra.mxu0 0.0
    %438 = vmatprep.subr.mxu0 0.0
    %439 = vmatpush2.xpose.msra.mxu0 0.0
    %440 = vmatprep.subr.mxu0 0.0
    %441 = vmatpush2.xpose.msra.mxu0 0.0
    %442 = vmatprep.mubr.f32.mxu0 0.0
    %443 = vmatmul.mubr.f32.gmra.mxu0 %v374
    %v444 = vpop.f32.mrf.mxu0
    %v445 = vadd.f32 0.0, %v444
    %v446 = vpop.f32.mrf.mxu0
    %447 = vdwg.mxu0
    %v448 = vsel %vm360, %v445, -inf
    %449 = vmax.xlane.f32.xlu0 %v448
    %v450 = vpop.xlane.xlu0 %449
    %v451 = vsub.f32 %v445, %v450
    %v452 = vmul.f32 %v451, 1.442695
    %v453 = vpow.pop %v452
    %v454 = vsel %vm360, %v453, 0.0
    %455 = vadd.xlane.f32.xlu0 %v454
    %v456 = vpop.xlane.xlu0 %455
    %v457 = vrcp.pop %v456
    %v458 = vmul.f32 %v453, %v457
    %459 = vrot.lane.b32.xlu0 %v278, 96
    %v460 = vpop.permute.xlu0 %459
    %v463 = vsel %vm360, %v371, 0
    %465 = vmatprep.subr.mxu0 0.0
    %466 = vmatpush1.msra.mxu0 0.0
    %467 = vmatprep.subr.mxu0 0.0
    %468 = vmatpush1.msra.mxu0 0.0
    %469 = vmatprep.subr.mxu0 0.0
    %470 = vmatpush1.msra.mxu0 0.0
    %471 = vmatprep.subr.mxu0 0.0
    %472 = vmatpush1.msra.mxu0 0.0
    %473 = vmatprep.subr.mxu0 0.0
    %474 = vmatpush1.msra.mxu0 0.0
    %475 = vmatprep.subr.mxu0 0.0
    %476 = vmatpush1.msra.mxu0 0.0
    %477 = vmatprep.subr.mxu0 0.0
    %478 = vmatpush1.msra.mxu0 0.0
    %479 = vmatprep.subr.mxu0 0.0
    %480 = vmatpush1.msra.mxu0 0.0
    %481 = vmatprep.subr.mxu0 0.0
    %482 = vmatpush1.msra.mxu0 0.0
    %483 = vmatprep.subr.mxu0 0.0
    %484 = vmatpush1.msra.mxu0 0.0
    %485 = vmatprep.subr.mxu0 0.0
    %486 = vmatpush1.msra.mxu0 0.0
    %487 = vmatprep.subr.mxu0 0.0
    %488 = vmatpush1.msra.mxu0 0.0
    %489 = vmatprep.subr.mxu0 0.0
    %490 = vmatpush1.msra.mxu0 0.0
    %491 = vmatprep.subr.mxu0 0.0
    %492 = vmatpush1.msra.mxu0 0.0
    %493 = vmatprep.subr.mxu0 0.0
    %494 = vmatpush1.msra.mxu0 0.0
    %495 = vmatprep.subr.mxu0 0.0
    %496 = vmatpush1.msra.mxu0 %v460
    %497 = vmatprep.subr.mxu0 0.0
    %498 = vmatpush2.msra.mxu0 0.0
    %499 = vmatprep.subr.mxu0 0.0
    %500 = vmatpush2.msra.mxu0 0.0
    %501 = vmatprep.subr.mxu0 0.0
    %502 = vmatpush2.msra.mxu0 0.0
    %503 = vmatprep.subr.mxu0 0.0
    %504 = vmatpush2.msra.mxu0 0.0
    %505 = vmatprep.subr.mxu0 0.0
    %506 = vmatpush2.msra.mxu0 0.0
    %507 = vmatprep.subr.mxu0 0.0
    %508 = vmatpush2.msra.mxu0 0.0
    %509 = vmatprep.subr.mxu0 0.0
    %510 = vmatpush2.msra.mxu0 0.0
    %511 = vmatprep.subr.mxu0 0.0
    %512 = vmatpush2.msra.mxu0 0.0
    %513 = vmatprep.subr.mxu0 0.0
    %514 = vmatpush2.msra.mxu0 0.0
    %515 = vmatprep.subr.mxu0 0.0
    %516 = vmatpush2.msra.mxu0 0.0
    %517 = vmatprep.subr.mxu0 0.0
    %518 = vmatpush2.msra.mxu0 0.0
    %519 = vmatprep.subr.mxu0 0.0
    %520 = vmatpush2.msra.mxu0 0.0
    %521 = vmatprep.subr.mxu0 0.0
    %522 = vmatpush2.msra.mxu0 0.0
    %523 = vmatprep.subr.mxu0 0.0
    %524 = vmatpush2.msra.mxu0 0.0
    %525 = vmatprep.subr.mxu0 0.0
    %526 = vmatpush2.msra.mxu0 0.0
    %527 = vmatprep.subr.mxu0 0.0
    %528 = vmatpush2.msra.mxu0 0.0
    %529 = vmatprep.mubr.f32.mxu0 0.0
    %530 = vmatmul.mubr.f32.gmra.mxu0 %v463
    %v531 = vpop.f32.mrf.mxu0
    %v532 = vadd.f32 0.0, %v531
    %v533 = vpop.f32.mrf.mxu0
    %534 = vdwg.mxu0
    %535 = vrot.lane.b32.xlu0 %v278, 48
    %v536 = vpop.permute.xlu0 %535
    %v539 = vsel %vm360, %v458, 0
    %541 = vmatprep.subr.mxu0 0.0
    %542 = vmatpush1.msra.mxu0 0.0
    %543 = vmatprep.subr.mxu0 0.0
    %544 = vmatpush1.msra.mxu0 0.0
    %545 = vmatprep.subr.mxu0 0.0
    %546 = vmatpush1.msra.mxu0 0.0
    %547 = vmatprep.subr.mxu0 0.0
    %548 = vmatpush1.msra.mxu0 0.0
    %549 = vmatprep.subr.mxu0 0.0
    %550 = vmatpush1.msra.mxu0 0.0
    %551 = vmatprep.subr.mxu0 0.0
    %552 = vmatpush1.msra.mxu0 0.0
    %553 = vmatprep.subr.mxu0 0.0
    %554 = vmatpush1.msra.mxu0 0.0
    %555 = vmatprep.subr.mxu0 0.0
    %556 = vmatpush1.msra.mxu0 0.0
    %557 = vmatprep.subr.mxu0 0.0
    %558 = vmatpush1.msra.mxu0 0.0
    %559 = vmatprep.subr.mxu0 0.0
    %560 = vmatpush1.msra.mxu0 0.0
    %561 = vmatprep.subr.mxu0 0.0
    %562 = vmatpush1.msra.mxu0 0.0
    %563 = vmatprep.subr.mxu0 0.0
    %564 = vmatpush1.msra.mxu0 0.0
    %565 = vmatprep.subr.mxu0 0.0
    %566 = vmatpush1.msra.mxu0 0.0
    %567 = vmatprep.subr.mxu0 0.0
    %568 = vmatpush1.msra.mxu0 0.0
    %569 = vmatprep.subr.mxu0 0.0
    %570 = vmatpush1.msra.mxu0 0.0
    %571 = vmatprep.subr.mxu0 0.0
    %572 = vmatpush1.msra.mxu0 %v536
    %573 = vmatprep.subr.mxu0 0.0
    %574 = vmatpush2.msra.mxu0 0.0
    %575 = vmatprep.subr.mxu0 0.0
    %576 = vmatpush2.msra.mxu0 0.0
    %577 = vmatprep.subr.mxu0 0.0
    %578 = vmatpush2.msra.mxu0 0.0
    %579 = vmatprep.subr.mxu0 0.0
    %580 = vmatpush2.msra.mxu0 0.0
    %581 = vmatprep.subr.mxu0 0.0
    %582 = vmatpush2.msra.mxu0 0.0
    %583 = vmatprep.subr.mxu0 0.0
    %584 = vmatpush2.msra.mxu0 0.0
    %585 = vmatprep.subr.mxu0 0.0
    %586 = vmatpush2.msra.mxu0 0.0
    %587 = vmatprep.subr.mxu0 0.0
    %588 = vmatpush2.msra.mxu0 0.0
    %589 = vmatprep.subr.mxu0 0.0
    %590 = vmatpush2.msra.mxu0 0.0
    %591 = vmatprep.subr.mxu0 0.0
    %592 = vmatpush2.msra.mxu0 0.0
    %593 = vmatprep.subr.mxu0 0.0
    %594 = vmatpush2.msra.mxu0 0.0
    %595 = vmatprep.subr.mxu0 0.0
    %596 = vmatpush2.msra.mxu0 0.0
    %597 = vmatprep.subr.mxu0 0.0
    %598 = vmatpush2.msra.mxu0 0.0
    %599 = vmatprep.subr.mxu0 0.0
    %600 = vmatpush2.msra.mxu0 0.0
    %601 = vmatprep.subr.mxu0 0.0
    %602 = vmatpush2.msra.mxu0 0.0
    %603 = vmatprep.subr.mxu0 0.0
    %604 = vmatpush2.msra.mxu0 0.0
    %605 = vmatprep.mubr.f32.mxu0 0.0
    %606 = vmatmul.mubr.f32.gmra.mxu0 %v539
    %v607 = vpop.f32.mrf.mxu0
    %v608 = vadd.f32 0.0, %v607
    %v609 = vpop.f32.mrf.mxu0
    %610 = vdwg.mxu0
    %612 = vrot.lane.b32.xlu0 %v608, 16
    %v613 = vpop.permute.xlu0 %612
    %v615 = vsel %vm207, %v532, %v613
    %v617 = vlaneseq
    %v618 = vshrl.u32 %v617, 7
    %v619 = vsub.s32 0, %v618
    %v620 = vrot.slane %v203, %v619
    %vm622 = vcmask 261120
    %v624 = vsel %vm622, %v615, 0
    %626 = vmatprep.subr.mxu0 0.0
    %627 = vmatpush1.msra.mxu0 0.0
    %628 = vmatprep.subr.mxu0 0.0
    %629 = vmatpush1.msra.mxu0 0.0
    %630 = vmatprep.subr.mxu0 0.0
    %631 = vmatpush1.msra.mxu0 0.0
    %632 = vmatprep.subr.mxu0 0.0
    %633 = vmatpush1.msra.mxu0 0.0
    %634 = vmatprep.subr.mxu0 0.0
    %635 = vmatpush1.msra.mxu0 0.0
    %636 = vmatprep.subr.mxu0 0.0
    %637 = vmatpush1.msra.mxu0 0.0
    %638 = vmatprep.subr.mxu0 0.0
    %639 = vmatpush1.msra.mxu0 0.0
    %640 = vmatprep.subr.mxu0 0.0
    %641 = vmatpush1.msra.mxu0 0.0
    %642 = vmatprep.subr.mxu0 0.0
    %643 = vmatpush1.msra.mxu0 0.0
    %644 = vmatprep.subr.mxu0 0.0
    %645 = vmatpush1.msra.mxu0 0.0
    %646 = vmatprep.subr.mxu0 0.0
    %647 = vmatpush1.msra.mxu0 0.0
    %648 = vmatprep.subr.mxu0 0.0
    %649 = vmatpush1.msra.mxu0 0.0
    %650 = vmatprep.subr.mxu0 0.0
    %651 = vmatpush1.msra.mxu0 %v202
    %652 = vmatprep.subr.mxu0 0.0
    %653 = vmatpush1.msra.mxu0 %v201
    %654 = vmatprep.subr.mxu0 0.0
    %655 = vmatpush1.msra.mxu0 %v200
    %656 = vmatprep.subr.mxu0 0.0
    %657 = vmatpush1.msra.mxu0 %v199
    %658 = vmatprep.subr.mxu0 0.0
    %659 = vmatpush2.msra.mxu0 0.0
    %660 = vmatprep.subr.mxu0 0.0
    %661 = vmatpush2.msra.mxu0 0.0
    %662 = vmatprep.subr.mxu0 0.0
    %663 = vmatpush2.msra.mxu0 0.0
    %664 = vmatprep.subr.mxu0 0.0
    %665 = vmatpush2.msra.mxu0 0.0
    %666 = vmatprep.subr.mxu0 0.0
    %667 = vmatpush2.msra.mxu0 0.0
    %668 = vmatprep.subr.mxu0 0.0
    %669 = vmatpush2.msra.mxu0 0.0
    %670 = vmatprep.subr.mxu0 0.0
    %671 = vmatpush2.msra.mxu0 0.0
    %672 = vmatprep.subr.mxu0 0.0
    %673 = vmatpush2.msra.mxu0 0.0
    %674 = vmatprep.subr.mxu0 0.0
    %675 = vmatpush2.msra.mxu0 0.0
    %676 = vmatprep.subr.mxu0 0.0
    %677 = vmatpush2.msra.mxu0 0.0
    %678 = vmatprep.subr.mxu0 0.0
    %679 = vmatpush2.msra.mxu0 0.0
    %680 = vmatprep.subr.mxu0 0.0
    %681 = vmatpush2.msra.mxu0 0.0
    %682 = vmatprep.subr.mxu0 0.0
    %683 = vmatpush2.msra.mxu0 0.0
    %684 = vmatprep.subr.mxu0 0.0
    %685 = vmatpush2.msra.mxu0 0.0
    %686 = vmatprep.subr.mxu0 0.0
    %687 = vmatpush2.msra.mxu0 0.0
    %688 = vmatprep.subr.mxu0 0.0
    %689 = vmatpush2.msra.mxu0 0.0
    %690 = vmatprep.mubr.f32.mxu0 0.0
    %691 = vmatmul.mubr.f32.gmra.mxu0 %v624
    %v692 = vpop.f32.mrf.mxu0
    %v693 = vadd.f32 %v620, %v692
    %v694 = vpop.f32.mrf.mxu0
    %695 = vdwg.mxu0
    %v697 = vlaneseq
    %v698 = vshrl.u32 %v697, 7
    %v699 = vsub.s32 0, %v698
    %v700 = vrot.slane %v206, %v699
    %v703 = vsel %vm207, %v693, 0
    %705 = vmatprep.subr.mxu0 0.0
    %706 = vmatpush1.msra.mxu0 0.0
    %707 = vmatprep.subr.mxu0 0.0
    %708 = vmatpush1.msra.mxu0 0.0
    %709 = vmatprep.subr.mxu0 0.0
    %710 = vmatpush1.msra.mxu0 0.0
    %711 = vmatprep.subr.mxu0 0.0
    %712 = vmatpush1.msra.mxu0 0.0
    %713 = vmatprep.subr.mxu0 0.0
    %714 = vmatpush1.msra.mxu0 0.0
    %715 = vmatprep.subr.mxu0 0.0
    %716 = vmatpush1.msra.mxu0 0.0
    %717 = vmatprep.subr.mxu0 0.0
    %718 = vmatpush1.msra.mxu0 0.0
    %719 = vmatprep.subr.mxu0 0.0
    %720 = vmatpush1.msra.mxu0 0.0
    %721 = vmatprep.subr.mxu0 0.0
    %722 = vmatpush1.msra.mxu0 0.0
    %723 = vmatprep.subr.mxu0 0.0
    %724 = vmatpush1.msra.mxu0 0.0
    %725 = vmatprep.subr.mxu0 0.0
    %726 = vmatpush1.msra.mxu0 0.0
    %727 = vmatprep.subr.mxu0 0.0
    %728 = vmatpush1.msra.mxu0 0.0
    %729 = vmatprep.subr.mxu0 0.0
    %730 = vmatpush1.msra.mxu0 0.0
    %731 = vmatprep.subr.mxu0 0.0
    %732 = vmatpush1.msra.mxu0 0.0
    %733 = vmatprep.subr.mxu0 0.0
    %734 = vmatpush1.msra.mxu0 %v205
    %735 = vmatprep.subr.mxu0 0.0
    %736 = vmatpush1.msra.mxu0 %v204
    %737 = vmatprep.subr.mxu0 0.0
    %738 = vmatpush2.msra.mxu0 0.0
    %739 = vmatprep.subr.mxu0 0.0
    %740 = vmatpush2.msra.mxu0 0.0
    %741 = vmatprep.subr.mxu0 0.0
    %742 = vmatpush2.msra.mxu0 0.0
    %743 = vmatprep.subr.mxu0 0.0
    %744 = vmatpush2.msra.mxu0 0.0
    %745 = vmatprep.subr.mxu0 0.0
    %746 = vmatpush2.msra.mxu0 0.0
    %747 = vmatprep.subr.mxu0 0.0
    %748 = vmatpush2.msra.mxu0 0.0
    %749 = vmatprep.subr.mxu0 0.0
    %750 = vmatpush2.msra.mxu0 0.0
    %751 = vmatprep.subr.mxu0 0.0
    %752 = vmatpush2.msra.mxu0 0.0
    %753 = vmatprep.subr.mxu0 0.0
    %754 = vmatpush2.msra.mxu0 0.0
    %755 = vmatprep.subr.mxu0 0.0
    %756 = vmatpush2.msra.mxu0 0.0
    %757 = vmatprep.subr.mxu0 0.0
    %758 = vmatpush2.msra.mxu0 0.0
    %759 = vmatprep.subr.mxu0 0.0
    %760 = vmatpush2.msra.mxu0 0.0
    %761 = vmatprep.subr.mxu0 0.0
    %762 = vmatpush2.msra.mxu0 0.0
    %763 = vmatprep.subr.mxu0 0.0
    %764 = vmatpush2.msra.mxu0 0.0
    %765 = vmatprep.subr.mxu0 0.0
    %766 = vmatpush2.msra.mxu0 0.0
    %767 = vmatprep.subr.mxu0 0.0
    %768 = vmatpush2.msra.mxu0 0.0
    %769 = vmatprep.mubr.f32.mxu0 0.0
    %770 = vmatmul.mubr.f32.gmra.mxu0 %v703
    %v771 = vpop.f32.mrf.mxu0
    %v772 = vadd.f32 %v700, %v771
    %v773 = vpop.f32.mrf.mxu0
    %774 = vdwg.mxu0
    %v776 = vsel %vm207, %v196, 0
    %778 = vmatprep.subr.mxu0 0.0
    %779 = vmatpush1.msra.mxu0 0.0
    %780 = vmatprep.subr.mxu0 0.0
    %781 = vmatpush1.msra.mxu0 0.0
    %782 = vmatprep.subr.mxu0 0.0
    %783 = vmatpush1.msra.mxu0 0.0
    %784 = vmatprep.subr.mxu0 0.0
    %785 = vmatpush1.msra.mxu0 0.0
    %786 = vmatprep.subr.mxu0 0.0
    %787 = vmatpush1.msra.mxu0 0.0
    %788 = vmatprep.subr.mxu0 0.0
    %789 = vmatpush1.msra.mxu0 0.0
    %790 = vmatprep.subr.mxu0 0.0
    %791 = vmatpush1.msra.mxu0 0.0
    %792 = vmatprep.subr.mxu0 0.0
    %793 = vmatpush1.msra.mxu0 0.0
    %794 = vmatprep.subr.mxu0 0.0
    %795 = vmatpush1.msra.mxu0 0.0
    %796 = vmatprep.subr.mxu0 0.0
    %797 = vmatpush1.msra.mxu0 0.0
    %798 = vmatprep.subr.mxu0 0.0
    %799 = vmatpush1.msra.mxu0 0.0
    %800 = vmatprep.subr.mxu0 0.0
    %801 = vmatpush1.msra.mxu0 0.0
    %802 = vmatprep.subr.mxu0 0.0
    %803 = vmatpush1.msra.mxu0 0.0
    %804 = vmatprep.subr.mxu0 0.0
    %805 = vmatpush1.msra.mxu0 0.0
    %806 = vmatprep.subr.mxu0 0.0
    %807 = vmatpush1.msra.mxu0 %v198
    %808 = vmatprep.subr.mxu0 0.0
    %809 = vmatpush1.msra.mxu0 %v197
    %810 = vmatprep.subr.mxu0 0.0
    %811 = vmatpush2.msra.mxu0 0.0
    %812 = vmatprep.subr.mxu0 0.0
    %813 = vmatpush2.msra.mxu0 0.0
    %814 = vmatprep.subr.mxu0 0.0
    %815 = vmatpush2.msra.mxu0 0.0
    %816 = vmatprep.subr.mxu0 0.0
    %817 = vmatpush2.msra.mxu0 0.0
    %818 = vmatprep.subr.mxu0 0.0
    %819 = vmatpush2.msra.mxu0 0.0
    %820 = vmatprep.subr.mxu0 0.0
    %821 = vmatpush2.msra.mxu0 0.0
    %822 = vmatprep.subr.mxu0 0.0
    %823 = vmatpush2.msra.mxu0 0.0
    %824 = vmatprep.subr.mxu0 0.0
    %825 = vmatpush2.msra.mxu0 0.0
    %826 = vmatprep.subr.mxu0 0.0
    %827 = vmatpush2.msra.mxu0 0.0
    %828 = vmatprep.subr.mxu0 0.0
    %829 = vmatpush2.msra.mxu0 0.0
    %830 = vmatprep.subr.mxu0 0.0
    %831 = vmatpush2.msra.mxu0 0.0
    %832 = vmatprep.subr.mxu0 0.0
    %833 = vmatpush2.msra.mxu0 0.0
    %834 = vmatprep.subr.mxu0 0.0
    %835 = vmatpush2.msra.mxu0 0.0
    %836 = vmatprep.subr.mxu0 0.0
    %837 = vmatpush2.msra.mxu0 0.0
    %838 = vmatprep.subr.mxu0 0.0
    %839 = vmatpush2.msra.mxu0 0.0
    %840 = vmatprep.subr.mxu0 0.0
    %841 = vmatpush2.msra.mxu0 0.0
    %842 = vmatprep.mubr.f32.mxu0 0.0
    %843 = vmatmul.mubr.f32.gmra.mxu0 %v776
    %v844 = vpop.f32.mrf.mxu0
    %v845 = vadd.f32 0.0, %v844
    %v846 = vpop.f32.mrf.mxu0
    %847 = vdwg.mxu0
    %849 = vrot.lane.b32.xlu0 %v845, 80
    %v850 = vpop.permute.xlu0 %849
    %851 = vrot.lane.b32.xlu0 %v845, 112
    %v852 = vpop.permute.xlu0 %851
    %v853 = vsel %vm207, %v850, 0
    %v855 = vsel %vm207, %v852, 0
    %857 = vmatprep.subr.mxu0 0.0
    %858 = vmatpush1.xpose.msra.mxu0 0.0
    %859 = vmatprep.subr.mxu0 0.0
    %860 = vmatpush1.xpose.msra.mxu0 0.0
    %861 = vmatprep.subr.mxu0 0.0
    %862 = vmatpush1.xpose.msra.mxu0 0.0
    %863 = vmatprep.subr.mxu0 0.0
    %864 = vmatpush1.xpose.msra.mxu0 0.0
    %865 = vmatprep.subr.mxu0 0.0
    %866 = vmatpush1.xpose.msra.mxu0 0.0
    %867 = vmatprep.subr.mxu0 0.0
    %868 = vmatpush1.xpose.msra.mxu0 0.0
    %869 = vmatprep.subr.mxu0 0.0
    %870 = vmatpush1.xpose.msra.mxu0 0.0
    %871 = vmatprep.subr.mxu0 0.0
    %872 = vmatpush1.xpose.msra.mxu0 0.0
    %873 = vmatprep.subr.mxu0 0.0
    %874 = vmatpush1.xpose.msra.mxu0 0.0
    %875 = vmatprep.subr.mxu0 0.0
    %876 = vmatpush1.xpose.msra.mxu0 0.0
    %877 = vmatprep.subr.mxu0 0.0
    %878 = vmatpush1.xpose.msra.mxu0 0.0
    %879 = vmatprep.subr.mxu0 0.0
    %880 = vmatpush1.xpose.msra.mxu0 0.0
    %881 = vmatprep.subr.mxu0 0.0
    %882 = vmatpush1.xpose.msra.mxu0 0.0
    %883 = vmatprep.subr.mxu0 0.0
    %884 = vmatpush1.xpose.msra.mxu0 0.0
    %885 = vmatprep.subr.mxu0 0.0
    %886 = vmatpush1.xpose.msra.mxu0 0.0
    %887 = vmatprep.subr.mxu0 0.0
    %888 = vmatpush1.xpose.msra.mxu0 %v855
    %889 = vmatprep.subr.mxu0 0.0
    %890 = vmatpush2.xpose.msra.mxu0 0.0
    %891 = vmatprep.subr.mxu0 0.0
    %892 = vmatpush2.xpose.msra.mxu0 0.0
    %893 = vmatprep.subr.mxu0 0.0
    %894 = vmatpush2.xpose.msra.mxu0 0.0
    %895 = vmatprep.subr.mxu0 0.0
    %896 = vmatpush2.xpose.msra.mxu0 0.0
    %897 = vmatprep.subr.mxu0 0.0
    %898 = vmatpush2.xpose.msra.mxu0 0.0
    %899 = vmatprep.subr.mxu0 0.0
    %900 = vmatpush2.xpose.msra.mxu0 0.0
    %901 = vmatprep.subr.mxu0 0.0
    %902 = vmatpush2.xpose.msra.mxu0 0.0
    %903 = vmatprep.subr.mxu0 0.0
    %904 = vmatpush2.xpose.msra.mxu0 0.0
    %905 = vmatprep.subr.mxu0 0.0
    %906 = vmatpush2.xpose.msra.mxu0 0.0
    %907 = vmatprep.subr.mxu0 0.0
    %908 = vmatpush2.xpose.msra.mxu0 0.0
    %909 = vmatprep.subr.mxu0 0.0
    %910 = vmatpush2.xpose.msra.mxu0 0.0
    %911 = vmatprep.subr.mxu0 0.0
    %912 = vmatpush2.xpose.msra.mxu0 0.0
    %913 = vmatprep.subr.mxu0 0.0
    %914 = vmatpush2.xpose.msra.mxu0 0.0
    %915 = vmatprep.subr.mxu0 0.0
    %916 = vmatpush2.xpose.msra.mxu0 0.0
    %917 = vmatprep.subr.mxu0 0.0
    %918 = vmatpush2.xpose.msra.mxu0 0.0
    %919 = vmatprep.subr.mxu0 0.0
    %920 = vmatpush2.xpose.msra.mxu0 0.0
    %921 = vmatprep.mubr.f32.mxu0 0.0
    %922 = vmatmul.mubr.f32.gmra.mxu0 %v853
    %v923 = vpop.f32.mrf.mxu0
    %v924 = vadd.f32 0.0, %v923
    %v925 = vpop.f32.mrf.mxu0
    %926 = vdwg.mxu0
    %v927 = vsel %vm360, %v924, -inf
    %928 = vmax.xlane.f32.xlu0 %v927
    %v929 = vpop.xlane.xlu0 %928
    %v930 = vsub.f32 %v924, %v929
    %v931 = vmul.f32 %v930, 1.442695
    %v932 = vpow.pop %v931
    %v933 = vsel %vm360, %v932, 0.0
    %934 = vadd.xlane.f32.xlu0 %v933
    %v935 = vpop.xlane.xlu0 %934
    %v936 = vrcp.pop %v935
    %v937 = vmul.f32 %v932, %v936
    %938 = vrot.lane.b32.xlu0 %v845, 64
    %v939 = vpop.permute.xlu0 %938
    %v940 = vsel %vm207, %v845, 0
    %v942 = vsel %vm207, %v939, 0
    %944 = vmatprep.subr.mxu0 0.0
    %945 = vmatpush1.xpose.msra.mxu0 0.0
    %946 = vmatprep.subr.mxu0 0.0
    %947 = vmatpush1.xpose.msra.mxu0 0.0
    %948 = vmatprep.subr.mxu0 0.0
    %949 = vmatpush1.xpose.msra.mxu0 0.0
    %950 = vmatprep.subr.mxu0 0.0
    %951 = vmatpush1.xpose.msra.mxu0 0.0
    %952 = vmatprep.subr.mxu0 0.0
    %953 = vmatpush1.xpose.msra.mxu0 0.0
    %954 = vmatprep.subr.mxu0 0.0
    %955 = vmatpush1.xpose.msra.mxu0 0.0
    %956 = vmatprep.subr.mxu0 0.0
    %957 = vmatpush1.xpose.msra.mxu0 0.0
    %958 = vmatprep.subr.mxu0 0.0
    %959 = vmatpush1.xpose.msra.mxu0 0.0
    %960 = vmatprep.subr.mxu0 0.0
    %961 = vmatpush1.xpose.msra.mxu0 0.0
    %962 = vmatprep.subr.mxu0 0.0
    %963 = vmatpush1.xpose.msra.mxu0 0.0
    %964 = vmatprep.subr.mxu0 0.0
    %965 = vmatpush1.xpose.msra.mxu0 0.0
    %966 = vmatprep.subr.mxu0 0.0
    %967 = vmatpush1.xpose.msra.mxu0 0.0
    %968 = vmatprep.subr.mxu0 0.0
    %969 = vmatpush1.xpose.msra.mxu0 0.0
    %970 = vmatprep.subr.mxu0 0.0
    %971 = vmatpush1.xpose.msra.mxu0 0.0
    %972 = vmatprep.subr.mxu0 0.0
    %973 = vmatpush1.xpose.msra.mxu0 0.0
    %974 = vmatprep.subr.mxu0 0.0
    %975 = vmatpush1.xpose.msra.mxu0 %v942
    %976 = vmatprep.subr.mxu0 0.0
    %977 = vmatpush2.xpose.msra.mxu0 0.0
    %978 = vmatprep.subr.mxu0 0.0
    %979 = vmatpush2.xpose.msra.mxu0 0.0
    %980 = vmatprep.subr.mxu0 0.0
    %981 = vmatpush2.xpose.msra.mxu0 0.0
    %982 = vmatprep.subr.mxu0 0.0
    %983 = vmatpush2.xpose.msra.mxu0 0.0
    %984 = vmatprep.subr.mxu0 0.0
    %985 = vmatpush2.xpose.msra.mxu0 0.0
    %986 = vmatprep.subr.mxu0 0.0
    %987 = vmatpush2.xpose.msra.mxu0 0.0
    %988 = vmatprep.subr.mxu0 0.0
    %989 = vmatpush2.xpose.msra.mxu0 0.0
    %990 = vmatprep.subr.mxu0 0.0
    %991 = vmatpush2.xpose.msra.mxu0 0.0
    %992 = vmatprep.subr.mxu0 0.0
    %993 = vmatpush2.xpose.msra.mxu0 0.0
    %994 = vmatprep.subr.mxu0 0.0
    %995 = vmatpush2.xpose.msra.mxu0 0.0
    %996 = vmatprep.subr.mxu0 0.0
    %997 = vmatpush2.xpose.msra.mxu0 0.0
    %998 = vmatprep.subr.mxu0 0.0
    %999 = vmatpush2.xpose.msra.mxu0 0.0
    %1000 = vmatprep.subr.mxu0 0.0
    %1001 = vmatpush2.xpose.msra.mxu0 0.0
    %1002 = vmatprep.subr.mxu0 0.0
    %1003 = vmatpush2.xpose.msra.mxu0 0.0
    %1004 = vmatprep.subr.mxu0 0.0
    %1005 = vmatpush2.xpose.msra.mxu0 0.0
    %1006 = vmatprep.subr.mxu0 0.0
    %1007 = vmatpush2.xpose.msra.mxu0 0.0
    %1008 = vmatprep.mubr.f32.mxu0 0.0
    %1009 = vmatmul.mubr.f32.gmra.mxu0 %v940
    %v1010 = vpop.f32.mrf.mxu0
    %v1011 = vadd.f32 0.0, %v1010
    %v1012 = vpop.f32.mrf.mxu0
    %1013 = vdwg.mxu0
    %v1014 = vsel %vm360, %v1011, -inf
    %1015 = vmax.xlane.f32.xlu0 %v1014
    %v1016 = vpop.xlane.xlu0 %1015
    %v1017 = vsub.f32 %v1011, %v1016
    %v1018 = vmul.f32 %v1017, 1.442695
    %v1019 = vpow.pop %v1018
    %v1020 = vsel %vm360, %v1019, 0.0
    %1021 = vadd.xlane.f32.xlu0 %v1020
    %v1022 = vpop.xlane.xlu0 %1021
    %v1023 = vrcp.pop %v1022
    %v1024 = vmul.f32 %v1019, %v1023
    %1025 = vrot.lane.b32.xlu0 %v845, 96
    %v1026 = vpop.permute.xlu0 %1025
    %v1029 = vsel %vm360, %v937, 0
    %1031 = vmatprep.subr.mxu0 0.0
    %1032 = vmatpush1.msra.mxu0 0.0
    %1033 = vmatprep.subr.mxu0 0.0
    %1034 = vmatpush1.msra.mxu0 0.0
    %1035 = vmatprep.subr.mxu0 0.0
    %1036 = vmatpush1.msra.mxu0 0.0
    %1037 = vmatprep.subr.mxu0 0.0
    %1038 = vmatpush1.msra.mxu0 0.0
    %1039 = vmatprep.subr.mxu0 0.0
    %1040 = vmatpush1.msra.mxu0 0.0
    %1041 = vmatprep.subr.mxu0 0.0
    %1042 = vmatpush1.msra.mxu0 0.0
    %1043 = vmatprep.subr.mxu0 0.0
    %1044 = vmatpush1.msra.mxu0 0.0
    %1045 = vmatprep.subr.mxu0 0.0
    %1046 = vmatpush1.msra.mxu0 0.0
    %1047 = vmatprep.subr.mxu0 0.0
    %1048 = vmatpush1.msra.mxu0 0.0
    %1049 = vmatprep.subr.mxu0 0.0
    %1050 = vmatpush1.msra.mxu0 0.0
    %1051 = vmatprep.subr.mxu0 0.0
    %1052 = vmatpush1.msra.mxu0 0.0
    %1053 = vmatprep.subr.mxu0 0.0
    %1054 = vmatpush1.msra.mxu0 0.0
    %1055 = vmatprep.subr.mxu0 0.0
    %1056 = vmatpush1.msra.mxu0 0.0
    %1057 = vmatprep.subr.mxu0 0.0
    %1058 = vmatpush1.msra.mxu0 0.0
    %1059 = vmatprep.subr.mxu0 0.0
    %1060 = vmatpush1.msra.mxu0 0.0
    %1061 = vmatprep.subr.mxu0 0.0
    %1062 = vmatpush1.msra.mxu0 %v1026
    %1063 = vmatprep.subr.mxu0 0.0
    %1064 = vmatpush2.msra.mxu0 0.0
    %1065 = vmatprep.subr.mxu0 0.0
    %1066 = vmatpush2.msra.mxu0 0.0
    %1067 = vmatprep.subr.mxu0 0.0
    %1068 = vmatpush2.msra.mxu0 0.0
    %1069 = vmatprep.subr.mxu0 0.0
    %1070 = vmatpush2.msra.mxu0 0.0
    %1071 = vmatprep.subr.mxu0 0.0
    %1072 = vmatpush2.msra.mxu0 0.0
    %1073 = vmatprep.subr.mxu0 0.0
    %1074 = vmatpush2.msra.mxu0 0.0
    %1075 = vmatprep.subr.mxu0 0.0
    %1076 = vmatpush2.msra.mxu0 0.0
    %1077 = vmatprep.subr.mxu0 0.0
    %1078 = vmatpush2.msra.mxu0 0.0
    %1079 = vmatprep.subr.mxu0 0.0
    %1080 = vmatpush2.msra.mxu0 0.0
    %1081 = vmatprep.subr.mxu0 0.0
    %1082 = vmatpush2.msra.mxu0 0.0
    %1083 = vmatprep.subr.mxu0 0.0
    %1084 = vmatpush2.msra.mxu0 0.0
    %1085 = vmatprep.subr.mxu0 0.0
    %1086 = vmatpush2.msra.mxu0 0.0
    %1087 = vmatprep.subr.mxu0 0.0
    %1088 = vmatpush2.msra.mxu0 0.0
    %1089 = vmatprep.subr.mxu0 0.0
    %1090 = vmatpush2.msra.mxu0 0.0
    %1091 = vmatprep.subr.mxu0 0.0
    %1092 = vmatpush2.msra.mxu0 0.0
    %1093 = vmatprep.subr.mxu0 0.0
    %1094 = vmatpush2.msra.mxu0 0.0
    %1095 = vmatprep.mubr.f32.mxu0 0.0
    %1096 = vmatmul.mubr.f32.gmra.mxu0 %v1029
    %v1097 = vpop.f32.mrf.mxu0
    %v1098 = vadd.f32 0.0, %v1097
    %v1099 = vpop.f32.mrf.mxu0
    %1100 = vdwg.mxu0
    %1101 = vrot.lane.b32.xlu0 %v845, 48
    %v1102 = vpop.permute.xlu0 %1101
    %v1105 = vsel %vm360, %v1024, 0
    %1107 = vmatprep.subr.mxu0 0.0
    %1108 = vmatpush1.msra.mxu0 0.0
    %1109 = vmatprep.subr.mxu0 0.0
    %1110 = vmatpush1.msra.mxu0 0.0
    %1111 = vmatprep.subr.mxu0 0.0
    %1112 = vmatpush1.msra.mxu0 0.0
    %1113 = vmatprep.subr.mxu0 0.0
    %1114 = vmatpush1.msra.mxu0 0.0
    %1115 = vmatprep.subr.mxu0 0.0
    %1116 = vmatpush1.msra.mxu0 0.0
    %1117 = vmatprep.subr.mxu0 0.0
    %1118 = vmatpush1.msra.mxu0 0.0
    %1119 = vmatprep.subr.mxu0 0.0
    %1120 = vmatpush1.msra.mxu0 0.0
    %1121 = vmatprep.subr.mxu0 0.0
    %1122 = vmatpush1.msra.mxu0 0.0
    %1123 = vmatprep.subr.mxu0 0.0
    %1124 = vmatpush1.msra.mxu0 0.0
    %1125 = vmatprep.subr.mxu0 0.0
    %1126 = vmatpush1.msra.mxu0 0.0
    %1127 = vmatprep.subr.mxu0 0.0
    %1128 = vmatpush1.msra.mxu0 0.0
    %1129 = vmatprep.subr.mxu0 0.0
    %1130 = vmatpush1.msra.mxu0 0.0
    %1131 = vmatprep.subr.mxu0 0.0
    %1132 = vmatpush1.msra.mxu0 0.0
    %1133 = vmatprep.subr.mxu0 0.0
    %1134 = vmatpush1.msra.mxu0 0.0
    %1135 = vmatprep.subr.mxu0 0.0
    %1136 = vmatpush1.msra.mxu0 0.0
    %1137 = vmatprep.subr.mxu0 0.0
    %1138 = vmatpush1.msra.mxu0 %v1102
    %1139 = vmatprep.subr.mxu0 0.0
    %1140 = vmatpush2.msra.mxu0 0.0
    %1141 = vmatprep.subr.mxu0 0.0
    %1142 = vmatpush2.msra.mxu0 0.0
    %1143 = vmatprep.subr.mxu0 0.0
    %1144 = vmatpush2.msra.mxu0 0.0
    %1145 = vmatprep.subr.mxu0 0.0
    %1146 = vmatpush2.msra.mxu0 0.0
    %1147 = vmatprep.subr.mxu0 0.0
    %1148 = vmatpush2.msra.mxu0 0.0
    %1149 = vmatprep.subr.mxu0 0.0
    %1150 = vmatpush2.msra.mxu0 0.0
    %1151 = vmatprep.subr.mxu0 0.0
    %1152 = vmatpush2.msra.mxu0 0.0
    %1153 = vmatprep.subr.mxu0 0.0
    %1154 = vmatpush2.msra.mxu0 0.0
    %1155 = vmatprep.subr.mxu0 0.0
    %1156 = vmatpush2.msra.mxu0 0.0
    %1157 = vmatprep.subr.mxu0 0.0
    %1158 = vmatpush2.msra.mxu0 0.0
    %1159 = vmatprep.subr.mxu0 0.0
    %1160 = vmatpush2.msra.mxu0 0.0
    %1161 = vmatprep.subr.mxu0 0.0
    %1162 = vmatpush2.msra.mxu0 0.0
    %1163 = vmatprep.subr.mxu0 0.0
    %1164 = vmatpush2.msra.mxu0 0.0
    %1165 = vmatprep.subr.mxu0 0.0
    %1166 = vmatpush2.msra.mxu0 0.0
    %1167 = vmatprep.subr.mxu0 0.0
    %1168 = vmatpush2.msra.mxu0 0.0
    %1169 = vmatprep.subr.mxu0 0.0
    %1170 = vmatpush2.msra.mxu0 0.0
    %1171 = vmatprep.mubr.f32.mxu0 0.0
    %1172 = vmatmul.mubr.f32.gmra.mxu0 %v1105
    %v1173 = vpop.f32.mrf.mxu0
    %v1174 = vadd.f32 0.0, %v1173
    %v1175 = vpop.f32.mrf.mxu0
    %1176 = vdwg.mxu0
    %1178 = vrot.lane.b32.xlu0 %v1174, 16
    %v1179 = vpop.permute.xlu0 %1178
    %v1181 = vsel %vm207, %v1098, %v1179
    %v1183 = vsel %vm622, %v1181, 0
    %1185 = vmatprep.subr.mxu0 0.0
    %1186 = vmatpush1.msra.mxu0 0.0
    %1187 = vmatprep.subr.mxu0 0.0
    %1188 = vmatpush1.msra.mxu0 0.0
    %1189 = vmatprep.subr.mxu0 0.0
    %1190 = vmatpush1.msra.mxu0 0.0
    %1191 = vmatprep.subr.mxu0 0.0
    %1192 = vmatpush1.msra.mxu0 0.0
    %1193 = vmatprep.subr.mxu0 0.0
    %1194 = vmatpush1.msra.mxu0 0.0
    %1195 = vmatprep.subr.mxu0 0.0
    %1196 = vmatpush1.msra.mxu0 0.0
    %1197 = vmatprep.subr.mxu0 0.0
    %1198 = vmatpush1.msra.mxu0 0.0
    %1199 = vmatprep.subr.mxu0 0.0
    %1200 = vmatpush1.msra.mxu0 0.0
    %1201 = vmatprep.subr.mxu0 0.0
    %1202 = vmatpush1.msra.mxu0 0.0
    %1203 = vmatprep.subr.mxu0 0.0
    %1204 = vmatpush1.msra.mxu0 0.0
    %1205 = vmatprep.subr.mxu0 0.0
    %1206 = vmatpush1.msra.mxu0 0.0
    %1207 = vmatprep.subr.mxu0 0.0
    %1208 = vmatpush1.msra.mxu0 0.0
    %1209 = vmatprep.subr.mxu0 0.0
    %1210 = vmatpush1.msra.mxu0 %v202
    %1211 = vmatprep.subr.mxu0 0.0
    %1212 = vmatpush1.msra.mxu0 %v201
    %1213 = vmatprep.subr.mxu0 0.0
    %1214 = vmatpush1.msra.mxu0 %v200
    %1215 = vmatprep.subr.mxu0 0.0
    %1216 = vmatpush1.msra.mxu0 %v199
    %1217 = vmatprep.subr.mxu0 0.0
    %1218 = vmatpush2.msra.mxu0 0.0
    %1219 = vmatprep.subr.mxu0 0.0
    %1220 = vmatpush2.msra.mxu0 0.0
    %1221 = vmatprep.subr.mxu0 0.0
    %1222 = vmatpush2.msra.mxu0 0.0
    %1223 = vmatprep.subr.mxu0 0.0
    %1224 = vmatpush2.msra.mxu0 0.0
    %1225 = vmatprep.subr.mxu0 0.0
    %1226 = vmatpush2.msra.mxu0 0.0
    %1227 = vmatprep.subr.mxu0 0.0
    %1228 = vmatpush2.msra.mxu0 0.0
    %1229 = vmatprep.subr.mxu0 0.0
    %1230 = vmatpush2.msra.mxu0 0.0
    %1231 = vmatprep.subr.mxu0 0.0
    %1232 = vmatpush2.msra.mxu0 0.0
    %1233 = vmatprep.subr.mxu0 0.0
    %1234 = vmatpush2.msra.mxu0 0.0
    %1235 = vmatprep.subr.mxu0 0.0
    %1236 = vmatpush2.msra.mxu0 0.0
    %1237 = vmatprep.subr.mxu0 0.0
    %1238 = vmatpush2.msra.mxu0 0.0
    %1239 = vmatprep.subr.mxu0 0.0
    %1240 = vmatpush2.msra.mxu0 0.0
    %1241 = vmatprep.subr.mxu0 0.0
    %1242 = vmatpush2.msra.mxu0 0.0
    %1243 = vmatprep.subr.mxu0 0.0
    %1244 = vmatpush2.msra.mxu0 0.0
    %1245 = vmatprep.subr.mxu0 0.0
    %1246 = vmatpush2.msra.mxu0 0.0
    %1247 = vmatprep.subr.mxu0 0.0
    %1248 = vmatpush2.msra.mxu0 0.0
    %1249 = vmatprep.mubr.f32.mxu0 0.0
    %1250 = vmatmul.mubr.f32.gmra.mxu0 %v1183
    %v1251 = vpop.f32.mrf.mxu0
    %v1252 = vadd.f32 %v620, %v1251
    %v1253 = vpop.f32.mrf.mxu0
    %1254 = vdwg.mxu0
    %v1256 = vsel %vm207, %v1252, 0
    %1258 = vmatprep.subr.mxu0 0.0
    %1259 = vmatpush1.msra.mxu0 0.0
    %1260 = vmatprep.subr.mxu0 0.0
    %1261 = vmatpush1.msra.mxu0 0.0
    %1262 = vmatprep.subr.mxu0 0.0
    %1263 = vmatpush1.msra.mxu0 0.0
    %1264 = vmatprep.subr.mxu0 0.0
    %1265 = vmatpush1.msra.mxu0 0.0
    %1266 = vmatprep.subr.mxu0 0.0
    %1267 = vmatpush1.msra.mxu0 0.0
    %1268 = vmatprep.subr.mxu0 0.0
    %1269 = vmatpush1.msra.mxu0 0.0
    %1270 = vmatprep.subr.mxu0 0.0
    %1271 = vmatpush1.msra.mxu0 0.0
    %1272 = vmatprep.subr.mxu0 0.0
    %1273 = vmatpush1.msra.mxu0 0.0
    %1274 = vmatprep.subr.mxu0 0.0
    %1275 = vmatpush1.msra.mxu0 0.0
    %1276 = vmatprep.subr.mxu0 0.0
    %1277 = vmatpush1.msra.mxu0 0.0
    %1278 = vmatprep.subr.mxu0 0.0
    %1279 = vmatpush1.msra.mxu0 0.0
    %1280 = vmatprep.subr.mxu0 0.0
    %1281 = vmatpush1.msra.mxu0 0.0
    %1282 = vmatprep.subr.mxu0 0.0
    %1283 = vmatpush1.msra.mxu0 0.0
    %1284 = vmatprep.subr.mxu0 0.0
    %1285 = vmatpush1.msra.mxu0 0.0
    %1286 = vmatprep.subr.mxu0 0.0
    %1287 = vmatpush1.msra.mxu0 %v205
    %1288 = vmatprep.subr.mxu0 0.0
    %1289 = vmatpush1.msra.mxu0 %v204
    %1290 = vmatprep.subr.mxu0 0.0
    %1291 = vmatpush2.msra.mxu0 0.0
    %1292 = vmatprep.subr.mxu0 0.0
    %1293 = vmatpush2.msra.mxu0 0.0
    %1294 = vmatprep.subr.mxu0 0.0
    %1295 = vmatpush2.msra.mxu0 0.0
    %1296 = vmatprep.subr.mxu0 0.0
    %1297 = vmatpush2.msra.mxu0 0.0
    %1298 = vmatprep.subr.mxu0 0.0
    %1299 = vmatpush2.msra.mxu0 0.0
    %1300 = vmatprep.subr.mxu0 0.0
    %1301 = vmatpush2.msra.mxu0 0.0
    %1302 = vmatprep.subr.mxu0 0.0
    %1303 = vmatpush2.msra.mxu0 0.0
    %1304 = vmatprep.subr.mxu0 0.0
    %1305 = vmatpush2.msra.mxu0 0.0
    %1306 = vmatprep.subr.mxu0 0.0
    %1307 = vmatpush2.msra.mxu0 0.0
    %1308 = vmatprep.subr.mxu0 0.0
    %1309 = vmatpush2.msra.mxu0 0.0
    %1310 = vmatprep.subr.mxu0 0.0
    %1311 = vmatpush2.msra.mxu0 0.0
    %1312 = vmatprep.subr.mxu0 0.0
    %1313 = vmatpush2.msra.mxu0 0.0
    %1314 = vmatprep.subr.mxu0 0.0
    %1315 = vmatpush2.msra.mxu0 0.0
    %1316 = vmatprep.subr.mxu0 0.0
    %1317 = vmatpush2.msra.mxu0 0.0
    %1318 = vmatprep.subr.mxu0 0.0
    %1319 = vmatpush2.msra.mxu0 0.0
    %1320 = vmatprep.subr.mxu0 0.0
    %1321 = vmatpush2.msra.mxu0 0.0
    %1322 = vmatprep.mubr.f32.mxu0 0.0
    %1323 = vmatmul.mubr.f32.gmra.mxu0 %v1256
    %v1324 = vpop.f32.mrf.mxu0
    %v1325 = vadd.f32 %v700, %v1324
    %v1326 = vpop.f32.mrf.mxu0
    %1327 = vdwg.mxu0
    %v1328 = vld [vmem:[%s6] sm:$0xff]
    %v1329 = vld [vmem:[%s6 + $0x8] sm:$0xff]
    %v1330 = vld [vmem:[%s6 + $0x10] sm:$0xff]
    %v1331 = vld [vmem:[%s6 + $0x18] sm:$0xff]
    %v1332 = vld [vmem:[%s6 + $0x20] sm:$0xff]
    %v1333 = vld [vmem:[%s6 + $0x28] sm:$0xff]
    %v1334 = vld [vmem:[%s6 + $0x30] sm:$0xff]
    %v1335 = vld [vmem:[%s6 + $0x38] sm:$0xff]
    %v1336 = vld [vmem:[%s7] sm:$0xff]
    %v1337 = vld [vmem:[%s7 + $0x8] sm:$0xff]
    %v1338 = vld [vmem:[%s7 + $0x10] sm:$0xff]
    %v1339 = vld [vmem:[%s7 + $0x18] sm:$0xff]
    %v1340 = vld [vmem:[%s7 + $0x20] sm:$0xff]
    %v1341 = vld [vmem:[%s7 + $0x28] sm:$0xff]
    %v1342 = vld [vmem:[%s7 + $0x30] sm:$0xff]
    %v1343 = vld [vmem:[%s7 + $0x38] sm:$0xff]
    %v1344 = vld [vmem:[#allocation10] sm:$0x1]
    %v1346 = vrot.slane %v1325, 7
    %vm1348 = vcmask 1040384
    %v1349 = vsel %vm1348, %v772, %v1346
    %vm1350 = vcmask 523264
    %v1352 = vsel %vm1350, 0.0, 0
    %1354 = vmatprep.subr.mxu0 0.0
    %1355 = vmatpush1.msra.mxu0 0.0
    %1356 = vmatprep.subr.mxu0 0.0
    %1357 = vmatpush1.msra.mxu0 0.0
    %1358 = vmatprep.subr.mxu0 0.0
    %1359 = vmatpush1.msra.mxu0 0.0
    %1360 = vmatprep.subr.mxu0 0.0
    %1361 = vmatpush1.msra.mxu0 0.0
    %1362 = vmatprep.subr.mxu0 0.0
    %1363 = vmatpush1.msra.mxu0 0.0
    %1364 = vmatprep.subr.mxu0 0.0
    %1365 = vmatpush1.msra.mxu0 0.0
    %1366 = vmatprep.subr.mxu0 0.0
    %1367 = vmatpush1.msra.mxu0 0.0
    %1368 = vmatprep.subr.mxu0 0.0
    %1369 = vmatpush1.msra.mxu0 0.0
    %1370 = vmatprep.subr.mxu0 0.0
    %1371 = vmatpush1.msra.mxu0 %v1335
    %1372 = vmatprep.subr.mxu0 0.0
    %1373 = vmatpush1.msra.mxu0 %v1334
    %1374 = vmatprep.subr.mxu0 0.0
    %1375 = vmatpush1.msra.mxu0 %v1333
    %1376 = vmatprep.subr.mxu0 0.0
    %1377 = vmatpush1.msra.mxu0 %v1332
    %1378 = vmatprep.subr.mxu0 0.0
    %1379 = vmatpush1.msra.mxu0 %v1331
    %1380 = vmatprep.subr.mxu0 0.0
    %1381 = vmatpush1.msra.mxu0 %v1330
    %1382 = vmatprep.subr.mxu0 0.0
    %1383 = vmatpush1.msra.mxu0 %v1329
    %1384 = vmatprep.subr.mxu0 0.0
    %1385 = vmatpush1.msra.mxu0 %v1328
    %1386 = vmatprep.subr.mxu0 0.0
    %1387 = vmatpush2.msra.mxu0 0.0
    %1388 = vmatprep.subr.mxu0 0.0
    %1389 = vmatpush2.msra.mxu0 0.0
    %1390 = vmatprep.subr.mxu0 0.0
    %1391 = vmatpush2.msra.mxu0 0.0
    %1392 = vmatprep.subr.mxu0 0.0
    %1393 = vmatpush2.msra.mxu0 0.0
    %1394 = vmatprep.subr.mxu0 0.0
    %1395 = vmatpush2.msra.mxu0 0.0
    %1396 = vmatprep.subr.mxu0 0.0
    %1397 = vmatpush2.msra.mxu0 0.0
    %1398 = vmatprep.subr.mxu0 0.0
    %1399 = vmatpush2.msra.mxu0 0.0
    %1400 = vmatprep.subr.mxu0 0.0
    %1401 = vmatpush2.msra.mxu0 0.0
    %1402 = vmatprep.subr.mxu0 0.0
    %1403 = vmatpush2.msra.mxu0 0.0
    %1404 = vmatprep.subr.mxu0 0.0
    %1405 = vmatpush2.msra.mxu0 0.0
    %1406 = vmatprep.subr.mxu0 0.0
    %1407 = vmatpush2.msra.mxu0 0.0
    %1408 = vmatprep.subr.mxu0 0.0
    %1409 = vmatpush2.msra.mxu0 0.0
    %1410 = vmatprep.subr.mxu0 0.0
    %1411 = vmatpush2.msra.mxu0 0.0
    %1412 = vmatprep.subr.mxu0 0.0
    %1413 = vmatpush2.msra.mxu0 0.0
    %1414 = vmatprep.subr.mxu0 0.0
    %1415 = vmatpush2.msra.mxu0 0.0
    %1416 = vmatprep.subr.mxu0 0.0
    %1417 = vmatpush2.msra.mxu0 0.0
    %1418 = vmatprep.mubr.f32.mxu0 0.0
    %1419 = vmatmul.mubr.f32.gmra.mxu0 %v1352
    %v1420 = vpop.f32.mrf.mxu0
    %v1421 = vadd.f32 0.0, %v1420
    %v1422 = vpop.f32.mrf.mxu0
    %1423 = vdwg.mxu0
    %v1424 = vadd.f32 %v1349, %v1421
    %v1425 = vxor.u32 %v1424, 2147483648
    %v1426 = vmul.f32 %v1425, 1.442695
    %v1427 = vpow.pop %v1426
    %v1428 = vadd.f32 %v1427, 1.0
    %v1429 = vrcp.pop %v1428
    %v1430 = vmul.f32 1.0, %v1429
    %v1431 = vtanh.pop %v1424
    %v1432 = vmul.f32 %v1430, 0.0
    %1434 = vrot.lane.b32.xlu0 %v1431, 64
    %v1435 = vpop.permute.xlu0 %1434
    %v1437 = vmul.f32 %v1430, %v1435
    %1439 = vrot.lane.b32.xlu0 %v1437, 32
    %v1440 = vpop.permute.xlu0 %1439
    %v1442 = vadd.f32 %v1432, %v1440
    %v1443 = vtanh.pop %v1442
    %1445 = vrot.lane.b32.xlu0 %v1443, 64
    %v1446 = vpop.permute.xlu0 %1445
    %v1448 = vmul.f32 %v1430, %v1446
    %1450 = vrot.lane.b32.xlu0 %v1448, 32
    %v1451 = vpop.permute.xlu0 %1450
    %v1453 = vsel %vm622, %v1451, 0.0
    %v1455 = vlaneseq
    %v1456 = vshrl.u32 %v1455, 7
    %v1457 = vsub.s32 0, %v1456
    %v1458 = vrot.slane %v1344, %v1457
    %v1461 = vsel %vm1350, %v1453, 0
    %1463 = vmatprep.subr.mxu0 0.0
    %1464 = vmatpush1.msra.mxu0 0.0
    %1465 = vmatprep.subr.mxu0 0.0
    %1466 = vmatpush1.msra.mxu0 0.0
    %1467 = vmatprep.subr.mxu0 0.0
    %1468 = vmatpush1.msra.mxu0 0.0
    %1469 = vmatprep.subr.mxu0 0.0
    %1470 = vmatpush1.msra.mxu0 0.0
    %1471 = vmatprep.subr.mxu0 0.0
    %1472 = vmatpush1.msra.mxu0 0.0
    %1473 = vmatprep.subr.mxu0 0.0
    %1474 = vmatpush1.msra.mxu0 0.0
    %1475 = vmatprep.subr.mxu0 0.0
    %1476 = vmatpush1.msra.mxu0 0.0
    %1477 = vmatprep.subr.mxu0 0.0
    %1478 = vmatpush1.msra.mxu0 0.0
    %1479 = vmatprep.subr.mxu0 0.0
    %1480 = vmatpush1.msra.mxu0 %v1343
    %1481 = vmatprep.subr.mxu0 0.0
    %1482 = vmatpush1.msra.mxu0 %v1342
    %1483 = vmatprep.subr.mxu0 0.0
    %1484 = vmatpush1.msra.mxu0 %v1341
    %1485 = vmatprep.subr.mxu0 0.0
    %1486 = vmatpush1.msra.mxu0 %v1340
    %1487 = vmatprep.subr.mxu0 0.0
    %1488 = vmatpush1.msra.mxu0 %v1339
    %1489 = vmatprep.subr.mxu0 0.0
    %1490 = vmatpush1.msra.mxu0 %v1338
    %1491 = vmatprep.subr.mxu0 0.0
    %1492 = vmatpush1.msra.mxu0 %v1337
    %1493 = vmatprep.subr.mxu0 0.0
    %1494 = vmatpush1.msra.mxu0 %v1336
    %1495 = vmatprep.subr.mxu0 0.0
    %1496 = vmatpush2.msra.mxu0 0.0
    %1497 = vmatprep.subr.mxu0 0.0
    %1498 = vmatpush2.msra.mxu0 0.0
    %1499 = vmatprep.subr.mxu0 0.0
    %1500 = vmatpush2.msra.mxu0 0.0
    %1501 = vmatprep.subr.mxu0 0.0
    %1502 = vmatpush2.msra.mxu0 0.0
    %1503 = vmatprep.subr.mxu0 0.0
    %1504 = vmatpush2.msra.mxu0 0.0
    %1505 = vmatprep.subr.mxu0 0.0
    %1506 = vmatpush2.msra.mxu0 0.0
    %1507 = vmatprep.subr.mxu0 0.0
    %1508 = vmatpush2.msra.mxu0 0.0
    %1509 = vmatprep.subr.mxu0 0.0
    %1510 = vmatpush2.msra.mxu0 0.0
    %1511 = vmatprep.subr.mxu0 0.0
    %1512 = vmatpush2.msra.mxu0 0.0
    %1513 = vmatprep.subr.mxu0 0.0
    %1514 = vmatpush2.msra.mxu0 0.0
    %1515 = vmatprep.subr.mxu0 0.0
    %1516 = vmatpush2.msra.mxu0 0.0
    %1517 = vmatprep.subr.mxu0 0.0
    %1518 = vmatpush2.msra.mxu0 0.0
    %1519 = vmatprep.subr.mxu0 0.0
    %1520 = vmatpush2.msra.mxu0 0.0
    %1521 = vmatprep.subr.mxu0 0.0
    %1522 = vmatpush2.msra.mxu0 0.0
    %1523 = vmatprep.subr.mxu0 0.0
    %1524 = vmatpush2.msra.mxu0 0.0
    %1525 = vmatprep.subr.mxu0 0.0
    %1526 = vmatpush2.msra.mxu0 0.0
    %1527 = vmatprep.mubr.f32.mxu0 0.0
    %1528 = vmatmul.mubr.f32.gmra.mxu0 %v1461
    %v1529 = vpop.f32.mrf.mxu0
    %v1530 = vadd.f32 %v1458, %v1529
    %v1531 = vpop.f32.mrf.mxu0
    %1532 = vdwg.mxu0
    %v1533 = vxor.u32 %v1530, 2147483648
    %v1534 = vmul.f32 %v1533, 1.442695
    %v1535 = vpow.pop %v1534
    %v1536 = vadd.f32 %v1535, 1.0
    %v1537 = vrcp.pop %v1536
    %v1538 = vmul.f32 1.0, %v1537
    %v1539 = vtanh.pop %v1530
    %v1540 = vmul.f32 %v1538, 0.0
    %1542 = vrot.lane.b32.xlu0 %v1539, 64
    %v1543 = vpop.permute.xlu0 %1542
    %v1545 = vmul.f32 %v1538, %v1543
    %1547 = vrot.lane.b32.xlu0 %v1545, 32
    %v1548 = vpop.permute.xlu0 %1547
    %v1550 = vadd.f32 %v1540, %v1548
    %v1551 = vtanh.pop %v1550
    %1553 = vrot.lane.b32.xlu0 %v1551, 64
    %v1554 = vpop.permute.xlu0 %1553
    %v1556 = vmul.f32 %v1538, %v1554
    %v1558 = vrot.slane %v772, 1
    %v1560 = vsel %vm1348, %v1558, %v1325
    %1562 = vrot.lane.b32.xlu0 %v1556, 32
    %v1563 = vpop.permute.xlu0 %1562
    %1565 = vrot.lane.b32.xlu0 %v1448, 64
    %v1566 = vpop.permute.xlu0 %1565
    %v1568 = vsel %vm622, %v1563, %v1566
    %v1570 = vsel %vm1350, %v1568, 0
    %1572 = vmatprep.subr.mxu0 0.0
    %1573 = vmatpush1.msra.mxu0 0.0
    %1574 = vmatprep.subr.mxu0 0.0
    %1575 = vmatpush1.msra.mxu0 0.0
    %1576 = vmatprep.subr.mxu0 0.0
    %1577 = vmatpush1.msra.mxu0 0.0
    %1578 = vmatprep.subr.mxu0 0.0
    %1579 = vmatpush1.msra.mxu0 0.0
    %1580 = vmatprep.subr.mxu0 0.0
    %1581 = vmatpush1.msra.mxu0 0.0
    %1582 = vmatprep.subr.mxu0 0.0
    %1583 = vmatpush1.msra.mxu0 0.0
    %1584 = vmatprep.subr.mxu0 0.0
    %1585 = vmatpush1.msra.mxu0 0.0
    %1586 = vmatprep.subr.mxu0 0.0
    %1587 = vmatpush1.msra.mxu0 0.0
    %1588 = vmatprep.subr.mxu0 0.0
    %1589 = vmatpush1.msra.mxu0 %v1335
    %1590 = vmatprep.subr.mxu0 0.0
    %1591 = vmatpush1.msra.mxu0 %v1334
    %1592 = vmatprep.subr.mxu0 0.0
    %1593 = vmatpush1.msra.mxu0 %v1333
    %1594 = vmatprep.subr.mxu0 0.0
    %1595 = vmatpush1.msra.mxu0 %v1332
    %1596 = vmatprep.subr.mxu0 0.0
    %1597 = vmatpush1.msra.mxu0 %v1331
    %1598 = vmatprep.subr.mxu0 0.0
    %1599 = vmatpush1.msra.mxu0 %v1330
    %1600 = vmatprep.subr.mxu0 0.0
    %1601 = vmatpush1.msra.mxu0 %v1329
    %1602 = vmatprep.subr.mxu0 0.0
    %1603 = vmatpush1.msra.mxu0 %v1328
    %1604 = vmatprep.subr.mxu0 0.0
    %1605 = vmatpush2.msra.mxu0 0.0
    %1606 = vmatprep.subr.mxu0 0.0
    %1607 = vmatpush2.msra.mxu0 0.0
    %1608 = vmatprep.subr.mxu0 0.0
    %1609 = vmatpush2.msra.mxu0 0.0
    %1610 = vmatprep.subr.mxu0 0.0
    %1611 = vmatpush2.msra.mxu0 0.0
    %1612 = vmatprep.subr.mxu0 0.0
    %1613 = vmatpush2.msra.mxu0 0.0
    %1614 = vmatprep.subr.mxu0 0.0
    %1615 = vmatpush2.msra.mxu0 0.0
    %1616 = vmatprep.subr.mxu0 0.0
    %1617 = vmatpush2.msra.mxu0 0.0
    %1618 = vmatprep.subr.mxu0 0.0
    %1619 = vmatpush2.msra.mxu0 0.0
    %1620 = vmatprep.subr.mxu0 0.0
    %1621 = vmatpush2.msra.mxu0 0.0
    %1622 = vmatprep.subr.mxu0 0.0
    %1623 = vmatpush2.msra.mxu0 0.0
    %1624 = vmatprep.subr.mxu0 0.0
    %1625 = vmatpush2.msra.mxu0 0.0
    %1626 = vmatprep.subr.mxu0 0.0
    %1627 = vmatpush2.msra.mxu0 0.0
    %1628 = vmatprep.subr.mxu0 0.0
    %1629 = vmatpush2.msra.mxu0 0.0
    %1630 = vmatprep.subr.mxu0 0.0
    %1631 = vmatpush2.msra.mxu0 0.0
    %1632 = vmatprep.subr.mxu0 0.0
    %1633 = vmatpush2.msra.mxu0 0.0
    %1634 = vmatprep.subr.mxu0 0.0
    %1635 = vmatpush2.msra.mxu0 0.0
    %1636 = vmatprep.mubr.f32.mxu0 0.0
    %1637 = vmatmul.mubr.f32.gmra.mxu0 %v1570
    %v1638 = vpop.f32.mrf.mxu0
    %v1639 = vadd.f32 0.0, %v1638
    %v1640 = vpop.f32.mrf.mxu0
    %1641 = vdwg.mxu0
    %v1642 = vadd.f32 %v1560, %v1639
    %v1643 = vxor.u32 %v1642, 2147483648
    %v1644 = vmul.f32 %v1643, 1.442695
    %v1645 = vpow.pop %v1644
    %v1646 = vadd.f32 %v1645, 1.0
    %v1647 = vrcp.pop %v1646
    %v1648 = vmul.f32 1.0, %v1647
    %v1649 = vtanh.pop %v1642
    %v1650 = vmul.f32 %v1648, %v1442
    %1652 = vrot.lane.b32.xlu0 %v1649, 64
    %v1653 = vpop.permute.xlu0 %1652
    %v1655 = vmul.f32 %v1648, %v1653
    %1657 = vrot.lane.b32.xlu0 %v1655, 32
    %v1658 = vpop.permute.xlu0 %1657
    %v1660 = vadd.f32 %v1650, %v1658
    %v1661 = vtanh.pop %v1660
    %1663 = vrot.lane.b32.xlu0 %v1661, 64
    %v1664 = vpop.permute.xlu0 %1663
    %v1666 = vmul.f32 %v1648, %v1664
    %1668 = vrot.lane.b32.xlu0 %v1666, 32
    %v1669 = vpop.permute.xlu0 %1668
    %1671 = vrot.lane.b32.xlu0 %v1556, 64
    %v1672 = vpop.permute.xlu0 %1671
    %v1674 = vsel %vm622, %v1669, %v1672
    %v1676 = vsel %vm1350, %v1674, 0
    %1678 = vmatprep.subr.mxu0 0.0
    %1679 = vmatpush1.msra.mxu0 0.0
    %1680 = vmatprep.subr.mxu0 0.0
    %1681 = vmatpush1.msra.mxu0 0.0
    %1682 = vmatprep.subr.mxu0 0.0
    %1683 = vmatpush1.msra.mxu0 0.0
    %1684 = vmatprep.subr.mxu0 0.0
    %1685 = vmatpush1.msra.mxu0 0.0
    %1686 = vmatprep.subr.mxu0 0.0
    %1687 = vmatpush1.msra.mxu0 0.0
    %1688 = vmatprep.subr.mxu0 0.0
    %1689 = vmatpush1.msra.mxu0 0.0
    %1690 = vmatprep.subr.mxu0 0.0
    %1691 = vmatpush1.msra.mxu0 0.0
    %1692 = vmatprep.subr.mxu0 0.0
    %1693 = vmatpush1.msra.mxu0 0.0
    %1694 = vmatprep.subr.mxu0 0.0
    %1695 = vmatpush1.msra.mxu0 %v1343
    %1696 = vmatprep.subr.mxu0 0.0
    %1697 = vmatpush1.msra.mxu0 %v1342
    %1698 = vmatprep.subr.mxu0 0.0
    %1699 = vmatpush1.msra.mxu0 %v1341
    %1700 = vmatprep.subr.mxu0 0.0
    %1701 = vmatpush1.msra.mxu0 %v1340
    %1702 = vmatprep.subr.mxu0 0.0
    %1703 = vmatpush1.msra.mxu0 %v1339
    %1704 = vmatprep.subr.mxu0 0.0
    %1705 = vmatpush1.msra.mxu0 %v1338
    %1706 = vmatprep.subr.mxu0 0.0
    %1707 = vmatpush1.msra.mxu0 %v1337
    %1708 = vmatprep.subr.mxu0 0.0
    %1709 = vmatpush1.msra.mxu0 %v1336
    %1710 = vmatprep.subr.mxu0 0.0
    %1711 = vmatpush2.msra.mxu0 0.0
    %1712 = vmatprep.subr.mxu0 0.0
    %1713 = vmatpush2.msra.mxu0 0.0
    %1714 = vmatprep.subr.mxu0 0.0
    %1715 = vmatpush2.msra.mxu0 0.0
    %1716 = vmatprep.subr.mxu0 0.0
    %1717 = vmatpush2.msra.mxu0 0.0
    %1718 = vmatprep.subr.mxu0 0.0
    %1719 = vmatpush2.msra.mxu0 0.0
    %1720 = vmatprep.subr.mxu0 0.0
    %1721 = vmatpush2.msra.mxu0 0.0
    %1722 = vmatprep.subr.mxu0 0.0
    %1723 = vmatpush2.msra.mxu0 0.0
    %1724 = vmatprep.subr.mxu0 0.0
    %1725 = vmatpush2.msra.mxu0 0.0
    %1726 = vmatprep.subr.mxu0 0.0
    %1727 = vmatpush2.msra.mxu0 0.0
    %1728 = vmatprep.subr.mxu0 0.0
    %1729 = vmatpush2.msra.mxu0 0.0
    %1730 = vmatprep.subr.mxu0 0.0
    %1731 = vmatpush2.msra.mxu0 0.0
    %1732 = vmatprep.subr.mxu0 0.0
    %1733 = vmatpush2.msra.mxu0 0.0
    %1734 = vmatprep.subr.mxu0 0.0
    %1735 = vmatpush2.msra.mxu0 0.0
    %1736 = vmatprep.subr.mxu0 0.0
    %1737 = vmatpush2.msra.mxu0 0.0
    %1738 = vmatprep.subr.mxu0 0.0
    %1739 = vmatpush2.msra.mxu0 0.0
    %1740 = vmatprep.subr.mxu0 0.0
    %1741 = vmatpush2.msra.mxu0 0.0
    %1742 = vmatprep.mubr.f32.mxu0 0.0
    %1743 = vmatmul.mubr.f32.gmra.mxu0 %v1676
    %v1744 = vpop.f32.mrf.mxu0
    %v1745 = vadd.f32 %v1458, %v1744
    %v1746 = vpop.f32.mrf.mxu0
    %1747 = vdwg.mxu0
    %v1748 = vxor.u32 %v1745, 2147483648
    %v1749 = vmul.f32 %v1748, 1.442695
    %v1750 = vpow.pop %v1749
    %v1751 = vadd.f32 %v1750, 1.0
    %v1752 = vrcp.pop %v1751
    %v1753 = vmul.f32 1.0, %v1752
    %v1754 = vtanh.pop %v1745
    %v1755 = vmul.f32 %v1753, %v1550
    %1757 = vrot.lane.b32.xlu0 %v1754, 64
    %v1758 = vpop.permute.xlu0 %1757
    %v1760 = vmul.f32 %v1753, %v1758
    %1762 = vrot.lane.b32.xlu0 %v1760, 32
    %v1763 = vpop.permute.xlu0 %1762
    %v1765 = vadd.f32 %v1755, %v1763
    %v1766 = vtanh.pop %v1765
    %1768 = vrot.lane.b32.xlu0 %v1766, 64
    %v1769 = vpop.permute.xlu0 %1768
    %v1771 = vmul.f32 %v1753, %v1769
    %v1772 = vrot.slane %v772, 2
    %v1774 = vrot.slane %v1325, 1
    %v1776 = vsel %vm1348, %v1772, %v1774
    %1778 = vrot.lane.b32.xlu0 %v1771, 32
    %v1779 = vpop.permute.xlu0 %1778
    %1781 = vrot.lane.b32.xlu0 %v1666, 64
    %v1782 = vpop.permute.xlu0 %1781
    %v1784 = vsel %vm622, %v1779, %v1782
    %v1786 = vsel %vm1350, %v1784, 0
    %1788 = vmatprep.subr.mxu0 0.0
    %1789 = vmatpush1.msra.mxu0 0.0
    %1790 = vmatprep.subr.mxu0 0.0
    %1791 = vmatpush1.msra.mxu0 0.0
    %1792 = vmatprep.subr.mxu0 0.0
    %1793 = vmatpush1.msra.mxu0 0.0
    %1794 = vmatprep.subr.mxu0 0.0
    %1795 = vmatpush1.msra.mxu0 0.0
    %1796 = vmatprep.subr.mxu0 0.0
    %1797 = vmatpush1.msra.mxu0 0.0
    %1798 = vmatprep.subr.mxu0 0.0
    %1799 = vmatpush1.msra.mxu0 0.0
    %1800 = vmatprep.subr.mxu0 0.0
    %1801 = vmatpush1.msra.mxu0 0.0
    %1802 = vmatprep.subr.mxu0 0.0
    %1803 = vmatpush1.msra.mxu0 0.0
    %1804 = vmatprep.subr.mxu0 0.0
    %1805 = vmatpush1.msra.mxu0 %v1335
    %1806 = vmatprep.subr.mxu0 0.0
    %1807 = vmatpush1.msra.mxu0 %v1334
    %1808 = vmatprep.subr.mxu0 0.0
    %1809 = vmatpush1.msra.mxu0 %v1333
    %1810 = vmatprep.subr.mxu0 0.0
    %1811 = vmatpush1.msra.mxu0 %v1332
    %1812 = vmatprep.subr.mxu0 0.0
    %1813 = vmatpush1.msra.mxu0 %v1331
    %1814 = vmatprep.subr.mxu0 0.0
    %1815 = vmatpush1.msra.mxu0 %v1330
    %1816 = vmatprep.subr.mxu0 0.0
    %1817 = vmatpush1.msra.mxu0 %v1329
    %1818 = vmatprep.subr.mxu0 0.0
    %1819 = vmatpush1.msra.mxu0 %v1328
    %1820 = vmatprep.subr.mxu0 0.0
    %1821 = vmatpush2.msra.mxu0 0.0
    %1822 = vmatprep.subr.mxu0 0.0
    %1823 = vmatpush2.msra.mxu0 0.0
    %1824 = vmatprep.subr.mxu0 0.0
    %1825 = vmatpush2.msra.mxu0 0.0
    %1826 = vmatprep.subr.mxu0 0.0
    %1827 = vmatpush2.msra.mxu0 0.0
    %1828 = vmatprep.subr.mxu0 0.0
    %1829 = vmatpush2.msra.mxu0 0.0
    %1830 = vmatprep.subr.mxu0 0.0
    %1831 = vmatpush2.msra.mxu0 0.0
    %1832 = vmatprep.subr.mxu0 0.0
    %1833 = vmatpush2.msra.mxu0 0.0
    %1834 = vmatprep.subr.mxu0 0.0
    %1835 = vmatpush2.msra.mxu0 0.0
    %1836 = vmatprep.subr.mxu0 0.0
    %1837 = vmatpush2.msra.mxu0 0.0
    %1838 = vmatprep.subr.mxu0 0.0
    %1839 = vmatpush2.msra.mxu0 0.0
    %1840 = vmatprep.subr.mxu0 0.0
    %1841 = vmatpush2.msra.mxu0 0.0
    %1842 = vmatprep.subr.mxu0 0.0
    %1843 = vmatpush2.msra.mxu0 0.0
    %1844 = vmatprep.subr.mxu0 0.0
    %1845 = vmatpush2.msra.mxu0 0.0
    %1846 = vmatprep.subr.mxu0 0.0
    %1847 = vmatpush2.msra.mxu0 0.0
    %1848 = vmatprep.subr.mxu0 0.0
    %1849 = vmatpush2.msra.mxu0 0.0
    %1850 = vmatprep.subr.mxu0 0.0
    %1851 = vmatpush2.msra.mxu0 0.0
    %1852 = vmatprep.mubr.f32.mxu0 0.0
    %1853 = vmatmul.mubr.f32.gmra.mxu0 %v1786
    %v1854 = vpop.f32.mrf.mxu0
    %v1855 = vadd.f32 0.0, %v1854
    %v1856 = vpop.f32.mrf.mxu0
    %1857 = vdwg.mxu0
    %v1858 = vadd.f32 %v1776, %v1855
    %v1859 = vxor.u32 %v1858, 2147483648
    %v1860 = vmul.f32 %v1859, 1.442695
    %v1861 = vpow.pop %v1860
    %v1862 = vadd.f32 %v1861, 1.0
    %v1863 = vrcp.pop %v1862
    %v1864 = vmul.f32 1.0, %v1863
    %v1865 = vtanh.pop %v1858
    %v1866 = vmul.f32 %v1864, %v1660
    %1868 = vrot.lane.b32.xlu0 %v1865, 64
    %v1869 = vpop.permute.xlu0 %1868
    %v1871 = vmul.f32 %v1864, %v1869
    %1873 = vrot.lane.b32.xlu0 %v1871, 32
    %v1874 = vpop.permute.xlu0 %1873
    %v1876 = vadd.f32 %v1866, %v1874
    %v1877 = vtanh.pop %v1876
    %1879 = vrot.lane.b32.xlu0 %v1877, 64
    %v1880 = vpop.permute.xlu0 %1879
    %v1882 = vmul.f32 %v1864, %v1880
    %1884 = vrot.lane.b32.xlu0 %v1882, 32
    %v1885 = vpop.permute.xlu0 %1884
    %1887 = vrot.lane.b32.xlu0 %v1771, 64
    %v1888 = vpop.permute.xlu0 %1887
    %v1890 = vsel %vm622, %v1885, %v1888
    %v1892 = vsel %vm1350, %v1890, 0
    %1894 = vmatprep.subr.mxu0 0.0
    %1895 = vmatpush1.msra.mxu0 0.0
    %1896 = vmatprep.subr.mxu0 0.0
    %1897 = vmatpush1.msra.mxu0 0.0
    %1898 = vmatprep.subr.mxu0 0.0
    %1899 = vmatpush1.msra.mxu0 0.0
    %1900 = vmatprep.subr.mxu0 0.0
    %1901 = vmatpush1.msra.mxu0 0.0
    %1902 = vmatprep.subr.mxu0 0.0
    %1903 = vmatpush1.msra.mxu0 0.0
    %1904 = vmatprep.subr.mxu0 0.0
    %1905 = vmatpush1.msra.mxu0 0.0
    %1906 = vmatprep.subr.mxu0 0.0
    %1907 = vmatpush1.msra.mxu0 0.0
    %1908 = vmatprep.subr.mxu0 0.0
    %1909 = vmatpush1.msra.mxu0 0.0
    %1910 = vmatprep.subr.mxu0 0.0
    %1911 = vmatpush1.msra.mxu0 %v1343
    %1912 = vmatprep.subr.mxu0 0.0
    %1913 = vmatpush1.msra.mxu0 %v1342
    %1914 = vmatprep.subr.mxu0 0.0
    %1915 = vmatpush1.msra.mxu0 %v1341
    %1916 = vmatprep.subr.mxu0 0.0
    %1917 = vmatpush1.msra.mxu0 %v1340
    %1918 = vmatprep.subr.mxu0 0.0
    %1919 = vmatpush1.msra.mxu0 %v1339
    %1920 = vmatprep.subr.mxu0 0.0
    %1921 = vmatpush1.msra.mxu0 %v1338
    %1922 = vmatprep.subr.mxu0 0.0
    %1923 = vmatpush1.msra.mxu0 %v1337
    %1924 = vmatprep.subr.mxu0 0.0
    %1925 = vmatpush1.msra.mxu0 %v1336
    %1926 = vmatprep.subr.mxu0 0.0
    %1927 = vmatpush2.msra.mxu0 0.0
    %1928 = vmatprep.subr.mxu0 0.0
    %1929 = vmatpush2.msra.mxu0 0.0
    %1930 = vmatprep.subr.mxu0 0.0
    %1931 = vmatpush2.msra.mxu0 0.0
    %1932 = vmatprep.subr.mxu0 0.0
    %1933 = vmatpush2.msra.mxu0 0.0
    %1934 = vmatprep.subr.mxu0 0.0
    %1935 = vmatpush2.msra.mxu0 0.0
    %1936 = vmatprep.subr.mxu0 0.0
    %1937 = vmatpush2.msra.mxu0 0.0
    %1938 = vmatprep.subr.mxu0 0.0
    %1939 = vmatpush2.msra.mxu0 0.0
    %1940 = vmatprep.subr.mxu0 0.0
    %1941 = vmatpush2.msra.mxu0 0.0
    %1942 = vmatprep.subr.mxu0 0.0
    %1943 = vmatpush2.msra.mxu0 0.0
    %1944 = vmatprep.subr.mxu0 0.0
    %1945 = vmatpush2.msra.mxu0 0.0
    %1946 = vmatprep.subr.mxu0 0.0
    %1947 = vmatpush2.msra.mxu0 0.0
    %1948 = vmatprep.subr.mxu0 0.0
    %1949 = vmatpush2.msra.mxu0 0.0
    %1950 = vmatprep.subr.mxu0 0.0
    %1951 = vmatpush2.msra.mxu0 0.0
    %1952 = vmatprep.subr.mxu0 0.0
    %1953 = vmatpush2.msra.mxu0 0.0
    %1954 = vmatprep.subr.mxu0 0.0
    %1955 = vmatpush2.msra.mxu0 0.0
    %1956 = vmatprep.subr.mxu0 0.0
    %1957 = vmatpush2.msra.mxu0 0.0
    %1958 = vmatprep.mubr.f32.mxu0 0.0
    %1959 = vmatmul.mubr.f32.gmra.mxu0 %v1892
    %v1960 = vpop.f32.mrf.mxu0
    %v1961 = vadd.f32 %v1458, %v1960
    %v1962 = vpop.f32.mrf.mxu0
    %1963 = vdwg.mxu0
    %v1964 = vxor.u32 %v1961, 2147483648
    %v1965 = vmul.f32 %v1964, 1.442695
    %v1966 = vpow.pop %v1965
    %v1967 = vadd.f32 %v1966, 1.0
    %v1968 = vrcp.pop %v1967
    %v1969 = vmul.f32 1.0, %v1968
    %v1970 = vtanh.pop %v1961
    %v1971 = vmul.f32 %v1969, %v1765
    %1973 = vrot.lane.b32.xlu0 %v1970, 64
    %v1974 = vpop.permute.xlu0 %1973
    %v1976 = vmul.f32 %v1969, %v1974
    %1978 = vrot.lane.b32.xlu0 %v1976, 32
    %v1979 = vpop.permute.xlu0 %1978
    %v1981 = vadd.f32 %v1971, %v1979
    %v1982 = vtanh.pop %v1981
    %1984 = vrot.lane.b32.xlu0 %v1982, 64
    %v1985 = vpop.permute.xlu0 %1984
    %v1987 = vmul.f32 %v1969, %v1985
    %v1988 = vrot.slane %v772, 3
    %v1990 = vrot.slane %v1325, 2
    %v1992 = vsel %vm1348, %v1988, %v1990
    %1994 = vrot.lane.b32.xlu0 %v1987, 32
    %v1995 = vpop.permute.xlu0 %1994
    %1997 = vrot.lane.b32.xlu0 %v1882, 64
    %v1998 = vpop.permute.xlu0 %1997
    %v2000 = vsel %vm622, %v1995, %v1998
    %v2002 = vsel %vm1350, %v2000, 0
    %2004 = vmatprep.subr.mxu0 0.0
    %2005 = vmatpush1.msra.mxu0 0.0
    %2006 = vmatprep.subr.mxu0 0.0
    %2007 = vmatpush1.msra.mxu0 0.0
    %2008 = vmatprep.subr.mxu0 0.0
    %2009 = vmatpush1.msra.mxu0 0.0
    %2010 = vmatprep.subr.mxu0 0.0
    %2011 = vmatpush1.msra.mxu0 0.0
    %2012 = vmatprep.subr.mxu0 0.0
    %2013 = vmatpush1.msra.mxu0 0.0
    %2014 = vmatprep.subr.mxu0 0.0
    %2015 = vmatpush1.msra.mxu0 0.0
    %2016 = vmatprep.subr.mxu0 0.0
    %2017 = vmatpush1.msra.mxu0 0.0
    %2018 = vmatprep.subr.mxu0 0.0
    %2019 = vmatpush1.msra.mxu0 0.0
    %2020 = vmatprep.subr.mxu0 0.0
    %2021 = vmatpush1.msra.mxu0 %v1335
    %2022 = vmatprep.subr.mxu0 0.0
    %2023 = vmatpush1.msra.mxu0 %v1334
    %2024 = vmatprep.subr.mxu0 0.0
    %2025 = vmatpush1.msra.mxu0 %v1333
    %2026 = vmatprep.subr.mxu0 0.0
    %2027 = vmatpush1.msra.mxu0 %v1332
    %2028 = vmatprep.subr.mxu0 0.0
    %2029 = vmatpush1.msra.mxu0 %v1331
    %2030 = vmatprep.subr.mxu0 0.0
    %2031 = vmatpush1.msra.mxu0 %v1330
    %2032 = vmatprep.subr.mxu0 0.0
    %2033 = vmatpush1.msra.mxu0 %v1329
    %2034 = vmatprep.subr.mxu0 0.0
    %2035 = vmatpush1.msra.mxu0 %v1328
    %2036 = vmatprep.subr.mxu0 0.0
    %2037 = vmatpush2.msra.mxu0 0.0
    %2038 = vmatprep.subr.mxu0 0.0
    %2039 = vmatpush2.msra.mxu0 0.0
    %2040 = vmatprep.subr.mxu0 0.0
    %2041 = vmatpush2.msra.mxu0 0.0
    %2042 = vmatprep.subr.mxu0 0.0
    %2043 = vmatpush2.msra.mxu0 0.0
    %2044 = vmatprep.subr.mxu0 0.0
    %2045 = vmatpush2.msra.mxu0 0.0
    %2046 = vmatprep.subr.mxu0 0.0
    %2047 = vmatpush2.msra.mxu0 0.0
    %2048 = vmatprep.subr.mxu0 0.0
    %2049 = vmatpush2.msra.mxu0 0.0
    %2050 = vmatprep.subr.mxu0 0.0
    %2051 = vmatpush2.msra.mxu0 0.0
    %2052 = vmatprep.subr.mxu0 0.0
    %2053 = vmatpush2.msra.mxu0 0.0
    %2054 = vmatprep.subr.mxu0 0.0
    %2055 = vmatpush2.msra.mxu0 0.0
    %2056 = vmatprep.subr.mxu0 0.0
    %2057 = vmatpush2.msra.mxu0 0.0
    %2058 = vmatprep.subr.mxu0 0.0
    %2059 = vmatpush2.msra.mxu0 0.0
    %2060 = vmatprep.subr.mxu0 0.0
    %2061 = vmatpush2.msra.mxu0 0.0
    %2062 = vmatprep.subr.mxu0 0.0
    %2063 = vmatpush2.msra.mxu0 0.0
    %2064 = vmatprep.subr.mxu0 0.0
    %2065 = vmatpush2.msra.mxu0 0.0
    %2066 = vmatprep.subr.mxu0 0.0
    %2067 = vmatpush2.msra.mxu0 0.0
    %2068 = vmatprep.mubr.f32.mxu0 0.0
    %2069 = vmatmul.mubr.f32.gmra.mxu0 %v2002
    %v2070 = vpop.f32.mrf.mxu0
    %v2071 = vadd.f32 0.0, %v2070
    %v2072 = vpop.f32.mrf.mxu0
    %2073 = vdwg.mxu0
    %v2074 = vadd.f32 %v1992, %v2071
    %v2075 = vxor.u32 %v2074, 2147483648
    %v2076 = vmul.f32 %v2075, 1.442695
    %v2077 = vpow.pop %v2076
    %v2078 = vadd.f32 %v2077, 1.0
    %v2079 = vrcp.pop %v2078
    %v2080 = vmul.f32 1.0, %v2079
    %v2081 = vtanh.pop %v2074
    %v2082 = vmul.f32 %v2080, %v1876
    %2084 = vrot.lane.b32.xlu0 %v2081, 64
    %v2085 = vpop.permute.xlu0 %2084
    %v2087 = vmul.f32 %v2080, %v2085
    %2089 = vrot.lane.b32.xlu0 %v2087, 32
    %v2090 = vpop.permute.xlu0 %2089
    %v2092 = vadd.f32 %v2082, %v2090
    %v2093 = vtanh.pop %v2092
    %2095 = vrot.lane.b32.xlu0 %v2093, 64
    %v2096 = vpop.permute.xlu0 %2095
    %v2098 = vmul.f32 %v2080, %v2096
    %2100 = vrot.lane.b32.xlu0 %v2098, 32
    %v2101 = vpop.permute.xlu0 %2100
    %2103 = vrot.lane.b32.xlu0 %v1987, 64
    %v2104 = vpop.permute.xlu0 %2103
    %v2106 = vsel %vm622, %v2101, %v2104
    %v2108 = vsel %vm1350, %v2106, 0
    %2110 = vmatprep.subr.mxu0 0.0
    %2111 = vmatpush1.msra.mxu0 0.0
    %2112 = vmatprep.subr.mxu0 0.0
    %2113 = vmatpush1.msra.mxu0 0.0
    %2114 = vmatprep.subr.mxu0 0.0
    %2115 = vmatpush1.msra.mxu0 0.0
    %2116 = vmatprep.subr.mxu0 0.0
    %2117 = vmatpush1.msra.mxu0 0.0
    %2118 = vmatprep.subr.mxu0 0.0
    %2119 = vmatpush1.msra.mxu0 0.0
    %2120 = vmatprep.subr.mxu0 0.0
    %2121 = vmatpush1.msra.mxu0 0.0
    %2122 = vmatprep.subr.mxu0 0.0
    %2123 = vmatpush1.msra.mxu0 0.0
    %2124 = vmatprep.subr.mxu0 0.0
    %2125 = vmatpush1.msra.mxu0 0.0
    %2126 = vmatprep.subr.mxu0 0.0
    %2127 = vmatpush1.msra.mxu0 %v1343
    %2128 = vmatprep.subr.mxu0 0.0
    %2129 = vmatpush1.msra.mxu0 %v1342
    %2130 = vmatprep.subr.mxu0 0.0
    %2131 = vmatpush1.msra.mxu0 %v1341
    %2132 = vmatprep.subr.mxu0 0.0
    %2133 = vmatpush1.msra.mxu0 %v1340
    %2134 = vmatprep.subr.mxu0 0.0
    %2135 = vmatpush1.msra.mxu0 %v1339
    %2136 = vmatprep.subr.mxu0 0.0
    %2137 = vmatpush1.msra.mxu0 %v1338
    %2138 = vmatprep.subr.mxu0 0.0
    %2139 = vmatpush1.msra.mxu0 %v1337
    %2140 = vmatprep.subr.mxu0 0.0
    %2141 = vmatpush1.msra.mxu0 %v1336
    %2142 = vmatprep.subr.mxu0 0.0
    %2143 = vmatpush2.msra.mxu0 0.0
    %2144 = vmatprep.subr.mxu0 0.0
    %2145 = vmatpush2.msra.mxu0 0.0
    %2146 = vmatprep.subr.mxu0 0.0
    %2147 = vmatpush2.msra.mxu0 0.0
    %2148 = vmatprep.subr.mxu0 0.0
    %2149 = vmatpush2.msra.mxu0 0.0
    %2150 = vmatprep.subr.mxu0 0.0
    %2151 = vmatpush2.msra.mxu0 0.0
    %2152 = vmatprep.subr.mxu0 0.0
    %2153 = vmatpush2.msra.mxu0 0.0
    %2154 = vmatprep.subr.mxu0 0.0
    %2155 = vmatpush2.msra.mxu0 0.0
    %2156 = vmatprep.subr.mxu0 0.0
    %2157 = vmatpush2.msra.mxu0 0.0
    %2158 = vmatprep.subr.mxu0 0.0
    %2159 = vmatpush2.msra.mxu0 0.0
    %2160 = vmatprep.subr.mxu0 0.0
    %2161 = vmatpush2.msra.mxu0 0.0
    %2162 = vmatprep.subr.mxu0 0.0
    %2163 = vmatpush2.msra.mxu0 0.0
    %2164 = vmatprep.subr.mxu0 0.0
    %2165 = vmatpush2.msra.mxu0 0.0
    %2166 = vmatprep.subr.mxu0 0.0
    %2167 = vmatpush2.msra.mxu0 0.0
    %2168 = vmatprep.subr.mxu0 0.0
    %2169 = vmatpush2.msra.mxu0 0.0
    %2170 = vmatprep.subr.mxu0 0.0
    %2171 = vmatpush2.msra.mxu0 0.0
    %2172 = vmatprep.subr.mxu0 0.0
    %2173 = vmatpush2.msra.mxu0 0.0
    %2174 = vmatprep.mubr.f32.mxu0 0.0
    %2175 = vmatmul.mubr.f32.gmra.mxu0 %v2108
    %v2176 = vpop.f32.mrf.mxu0
    %v2177 = vadd.f32 %v1458, %v2176
    %v2178 = vpop.f32.mrf.mxu0
    %2179 = vdwg.mxu0
    %v2180 = vxor.u32 %v2177, 2147483648
    %v2181 = vmul.f32 %v2180, 1.442695
    %v2182 = vpow.pop %v2181
    %v2183 = vadd.f32 %v2182, 1.0
    %v2184 = vrcp.pop %v2183
    %v2185 = vmul.f32 1.0, %v2184
    %v2186 = vtanh.pop %v2177
    %v2187 = vmul.f32 %v2185, %v1981
    %2189 = vrot.lane.b32.xlu0 %v2186, 64
    %v2190 = vpop.permute.xlu0 %2189
    %v2192 = vmul.f32 %v2185, %v2190
    %2194 = vrot.lane.b32.xlu0 %v2192, 32
    %v2195 = vpop.permute.xlu0 %2194
    %v2197 = vadd.f32 %v2187, %v2195
    %v2198 = vtanh.pop %v2197
    %2200 = vrot.lane.b32.xlu0 %v2198, 64
    %v2201 = vpop.permute.xlu0 %2200
    %v2203 = vmul.f32 %v2185, %v2201
    %v2204 = vrot.slane %v772, 4
    %v2206 = vrot.slane %v1325, 3
    %v2208 = vsel %vm1348, %v2204, %v2206
    %2210 = vrot.lane.b32.xlu0 %v2203, 32
    %v2211 = vpop.permute.xlu0 %2210
    %2213 = vrot.lane.b32.xlu0 %v2098, 64
    %v2214 = vpop.permute.xlu0 %2213
    %v2216 = vsel %vm622, %v2211, %v2214
    %v2218 = vsel %vm1350, %v2216, 0
    %2220 = vmatprep.subr.mxu0 0.0
    %2221 = vmatpush1.msra.mxu0 0.0
    %2222 = vmatprep.subr.mxu0 0.0
    %2223 = vmatpush1.msra.mxu0 0.0
    %2224 = vmatprep.subr.mxu0 0.0
    %2225 = vmatpush1.msra.mxu0 0.0
    %2226 = vmatprep.subr.mxu0 0.0
    %2227 = vmatpush1.msra.mxu0 0.0
    %2228 = vmatprep.subr.mxu0 0.0
    %2229 = vmatpush1.msra.mxu0 0.0
    %2230 = vmatprep.subr.mxu0 0.0
    %2231 = vmatpush1.msra.mxu0 0.0
    %2232 = vmatprep.subr.mxu0 0.0
    %2233 = vmatpush1.msra.mxu0 0.0
    %2234 = vmatprep.subr.mxu0 0.0
    %2235 = vmatpush1.msra.mxu0 0.0
    %2236 = vmatprep.subr.mxu0 0.0
    %2237 = vmatpush1.msra.mxu0 %v1335
    %2238 = vmatprep.subr.mxu0 0.0
    %2239 = vmatpush1.msra.mxu0 %v1334
    %2240 = vmatprep.subr.mxu0 0.0
    %2241 = vmatpush1.msra.mxu0 %v1333
    %2242 = vmatprep.subr.mxu0 0.0
    %2243 = vmatpush1.msra.mxu0 %v1332
    %2244 = vmatprep.subr.mxu0 0.0
    %2245 = vmatpush1.msra.mxu0 %v1331
    %2246 = vmatprep.subr.mxu0 0.0
    %2247 = vmatpush1.msra.mxu0 %v1330
    %2248 = vmatprep.subr.mxu0 0.0
    %2249 = vmatpush1.msra.mxu0 %v1329
    %2250 = vmatprep.subr.mxu0 0.0
    %2251 = vmatpush1.msra.mxu0 %v1328
    %2252 = vmatprep.subr.mxu0 0.0
    %2253 = vmatpush2.msra.mxu0 0.0
    %2254 = vmatprep.subr.mxu0 0.0
    %2255 = vmatpush2.msra.mxu0 0.0
    %2256 = vmatprep.subr.mxu0 0.0
    %2257 = vmatpush2.msra.mxu0 0.0
    %2258 = vmatprep.subr.mxu0 0.0
    %2259 = vmatpush2.msra.mxu0 0.0
    %2260 = vmatprep.subr.mxu0 0.0
    %2261 = vmatpush2.msra.mxu0 0.0
    %2262 = vmatprep.subr.mxu0 0.0
    %2263 = vmatpush2.msra.mxu0 0.0
    %2264 = vmatprep.subr.mxu0 0.0
    %2265 = vmatpush2.msra.mxu0 0.0
    %2266 = vmatprep.subr.mxu0 0.0
    %2267 = vmatpush2.msra.mxu0 0.0
    %2268 = vmatprep.subr.mxu0 0.0
    %2269 = vmatpush2.msra.mxu0 0.0
    %2270 = vmatprep.subr.mxu0 0.0
    %2271 = vmatpush2.msra.mxu0 0.0
    %2272 = vmatprep.subr.mxu0 0.0
    %2273 = vmatpush2.msra.mxu0 0.0
    %2274 = vmatprep.subr.mxu0 0.0
    %2275 = vmatpush2.msra.mxu0 0.0
    %2276 = vmatprep.subr.mxu0 0.0
    %2277 = vmatpush2.msra.mxu0 0.0
    %2278 = vmatprep.subr.mxu0 0.0
    %2279 = vmatpush2.msra.mxu0 0.0
    %2280 = vmatprep.subr.mxu0 0.0
    %2281 = vmatpush2.msra.mxu0 0.0
    %2282 = vmatprep.subr.mxu0 0.0
    %2283 = vmatpush2.msra.mxu0 0.0
    %2284 = vmatprep.mubr.f32.mxu0 0.0
    %2285 = vmatmul.mubr.f32.gmra.mxu0 %v2218
    %v2286 = vpop.f32.mrf.mxu0
    %v2287 = vadd.f32 0.0, %v2286
    %v2288 = vpop.f32.mrf.mxu0
    %2289 = vdwg.mxu0
    %v2290 = vadd.f32 %v2208, %v2287
    %v2291 = vxor.u32 %v2290, 2147483648
    %v2292 = vmul.f32 %v2291, 1.442695
    %v2293 = vpow.pop %v2292
    %v2294 = vadd.f32 %v2293, 1.0
    %v2295 = vrcp.pop %v2294
    %v2296 = vmul.f32 1.0, %v2295
    %v2297 = vtanh.pop %v2290
    %v2298 = vmul.f32 %v2296, %v2092
    %2300 = vrot.lane.b32.xlu0 %v2297, 64
    %v2301 = vpop.permute.xlu0 %2300
    %v2303 = vmul.f32 %v2296, %v2301
    %2305 = vrot.lane.b32.xlu0 %v2303, 32
    %v2306 = vpop.permute.xlu0 %2305
    %v2308 = vadd.f32 %v2298, %v2306
    %v2309 = vtanh.pop %v2308
    %2311 = vrot.lane.b32.xlu0 %v2309, 64
    %v2312 = vpop.permute.xlu0 %2311
    %v2314 = vmul.f32 %v2296, %v2312
    %2316 = vrot.lane.b32.xlu0 %v2314, 32
    %v2317 = vpop.permute.xlu0 %2316
    %2319 = vrot.lane.b32.xlu0 %v2203, 64
    %v2320 = vpop.permute.xlu0 %2319
    %v2322 = vsel %vm622, %v2317, %v2320
    %v2324 = vsel %vm1350, %v2322, 0
    %2326 = vmatprep.subr.mxu0 0.0
    %2327 = vmatpush1.msra.mxu0 0.0
    %2328 = vmatprep.subr.mxu0 0.0
    %2329 = vmatpush1.msra.mxu0 0.0
    %2330 = vmatprep.subr.mxu0 0.0
    %2331 = vmatpush1.msra.mxu0 0.0
    %2332 = vmatprep.subr.mxu0 0.0
    %2333 = vmatpush1.msra.mxu0 0.0
    %2334 = vmatprep.subr.mxu0 0.0
    %2335 = vmatpush1.msra.mxu0 0.0
    %2336 = vmatprep.subr.mxu0 0.0
    %2337 = vmatpush1.msra.mxu0 0.0
    %2338 = vmatprep.subr.mxu0 0.0
    %2339 = vmatpush1.msra.mxu0 0.0
    %2340 = vmatprep.subr.mxu0 0.0
    %2341 = vmatpush1.msra.mxu0 0.0
    %2342 = vmatprep.subr.mxu0 0.0
    %2343 = vmatpush1.msra.mxu0 %v1343
    %2344 = vmatprep.subr.mxu0 0.0
    %2345 = vmatpush1.msra.mxu0 %v1342
    %2346 = vmatprep.subr.mxu0 0.0
    %2347 = vmatpush1.msra.mxu0 %v1341
    %2348 = vmatprep.subr.mxu0 0.0
    %2349 = vmatpush1.msra.mxu0 %v1340
    %2350 = vmatprep.subr.mxu0 0.0
    %2351 = vmatpush1.msra.mxu0 %v1339
    %2352 = vmatprep.subr.mxu0 0.0
    %2353 = vmatpush1.msra.mxu0 %v1338
    %2354 = vmatprep.subr.mxu0 0.0
    %2355 = vmatpush1.msra.mxu0 %v1337
    %2356 = vmatprep.subr.mxu0 0.0
    %2357 = vmatpush1.msra.mxu0 %v1336
    %2358 = vmatprep.subr.mxu0 0.0
    %2359 = vmatpush2.msra.mxu0 0.0
    %2360 = vmatprep.subr.mxu0 0.0
    %2361 = vmatpush2.msra.mxu0 0.0
    %2362 = vmatprep.subr.mxu0 0.0
    %2363 = vmatpush2.msra.mxu0 0.0
    %2364 = vmatprep.subr.mxu0 0.0
    %2365 = vmatpush2.msra.mxu0 0.0
    %2366 = vmatprep.subr.mxu0 0.0
    %2367 = vmatpush2.msra.mxu0 0.0
    %2368 = vmatprep.subr.mxu0 0.0
    %2369 = vmatpush2.msra.mxu0 0.0
    %2370 = vmatprep.subr.mxu0 0.0
    %2371 = vmatpush2.msra.mxu0 0.0
    %2372 = vmatprep.subr.mxu0 0.0
    %2373 = vmatpush2.msra.mxu0 0.0
    %2374 = vmatprep.subr.mxu0 0.0
    %2375 = vmatpush2.msra.mxu0 0.0
    %2376 = vmatprep.subr.mxu0 0.0
    %2377 = vmatpush2.msra.mxu0 0.0
    %2378 = vmatprep.subr.mxu0 0.0
    %2379 = vmatpush2.msra.mxu0 0.0
    %2380 = vmatprep.subr.mxu0 0.0
    %2381 = vmatpush2.msra.mxu0 0.0
    %2382 = vmatprep.subr.mxu0 0.0
    %2383 = vmatpush2.msra.mxu0 0.0
    %2384 = vmatprep.subr.mxu0 0.0
    %2385 = vmatpush2.msra.mxu0 0.0
    %2386 = vmatprep.subr.mxu0 0.0
    %2387 = vmatpush2.msra.mxu0 0.0
    %2388 = vmatprep.subr.mxu0 0.0
    %2389 = vmatpush2.msra.mxu0 0.0
    %2390 = vmatprep.mubr.f32.mxu0 0.0
    %2391 = vmatmul.mubr.f32.gmra.mxu0 %v2324
    %v2392 = vpop.f32.mrf.mxu0
    %v2393 = vadd.f32 %v1458, %v2392
    %v2394 = vpop.f32.mrf.mxu0
    %2395 = vdwg.mxu0
    %v2396 = vxor.u32 %v2393, 2147483648
    %v2397 = vmul.f32 %v2396, 1.442695
    %v2398 = vpow.pop %v2397
    %v2399 = vadd.f32 %v2398, 1.0
    %v2400 = vrcp.pop %v2399
    %v2401 = vmul.f32 1.0, %v2400
    %v2402 = vtanh.pop %v2393
    %v2403 = vmul.f32 %v2401, %v2197
    %2405 = vrot.lane.b32.xlu0 %v2402, 64
    %v2406 = vpop.permute.xlu0 %2405
    %v2408 = vmul.f32 %v2401, %v2406
    %2410 = vrot.lane.b32.xlu0 %v2408, 32
    %v2411 = vpop.permute.xlu0 %2410
    %v2413 = vadd.f32 %v2403, %v2411
    %v2414 = vtanh.pop %v2413
    %2416 = vrot.lane.b32.xlu0 %v2414, 64
    %v2417 = vpop.permute.xlu0 %2416
    %v2419 = vmul.f32 %v2401, %v2417
    %v2420 = vrot.slane %v772, 5
    %v2422 = vrot.slane %v1325, 4
    %v2424 = vsel %vm1348, %v2420, %v2422
    %2426 = vrot.lane.b32.xlu0 %v2419, 32
    %v2427 = vpop.permute.xlu0 %2426
    %2429 = vrot.lane.b32.xlu0 %v2314, 64
    %v2430 = vpop.permute.xlu0 %2429
    %v2432 = vsel %vm622, %v2427, %v2430
    %v2434 = vsel %vm1350, %v2432, 0
    %2436 = vmatprep.subr.mxu0 0.0
    %2437 = vmatpush1.msra.mxu0 0.0
    %2438 = vmatprep.subr.mxu0 0.0
    %2439 = vmatpush1.msra.mxu0 0.0
    %2440 = vmatprep.subr.mxu0 0.0
    %2441 = vmatpush1.msra.mxu0 0.0
    %2442 = vmatprep.subr.mxu0 0.0
    %2443 = vmatpush1.msra.mxu0 0.0
    %2444 = vmatprep.subr.mxu0 0.0
    %2445 = vmatpush1.msra.mxu0 0.0
    %2446 = vmatprep.subr.mxu0 0.0
    %2447 = vmatpush1.msra.mxu0 0.0
    %2448 = vmatprep.subr.mxu0 0.0
    %2449 = vmatpush1.msra.mxu0 0.0
    %2450 = vmatprep.subr.mxu0 0.0
    %2451 = vmatpush1.msra.mxu0 0.0
    %2452 = vmatprep.subr.mxu0 0.0
    %2453 = vmatpush1.msra.mxu0 %v1335
    %2454 = vmatprep.subr.mxu0 0.0
    %2455 = vmatpush1.msra.mxu0 %v1334
    %2456 = vmatprep.subr.mxu0 0.0
    %2457 = vmatpush1.msra.mxu0 %v1333
    %2458 = vmatprep.subr.mxu0 0.0
    %2459 = vmatpush1.msra.mxu0 %v1332
    %2460 = vmatprep.subr.mxu0 0.0
    %2461 = vmatpush1.msra.mxu0 %v1331
    %2462 = vmatprep.subr.mxu0 0.0
    %2463 = vmatpush1.msra.mxu0 %v1330
    %2464 = vmatprep.subr.mxu0 0.0
    %2465 = vmatpush1.msra.mxu0 %v1329
    %2466 = vmatprep.subr.mxu0 0.0
    %2467 = vmatpush1.msra.mxu0 %v1328
    %2468 = vmatprep.subr.mxu0 0.0
    %2469 = vmatpush2.msra.mxu0 0.0
    %2470 = vmatprep.subr.mxu0 0.0
    %2471 = vmatpush2.msra.mxu0 0.0
    %2472 = vmatprep.subr.mxu0 0.0
    %2473 = vmatpush2.msra.mxu0 0.0
    %2474 = vmatprep.subr.mxu0 0.0
    %2475 = vmatpush2.msra.mxu0 0.0
    %2476 = vmatprep.subr.mxu0 0.0
    %2477 = vmatpush2.msra.mxu0 0.0
    %2478 = vmatprep.subr.mxu0 0.0
    %2479 = vmatpush2.msra.mxu0 0.0
    %2480 = vmatprep.subr.mxu0 0.0
    %2481 = vmatpush2.msra.mxu0 0.0
    %2482 = vmatprep.subr.mxu0 0.0
    %2483 = vmatpush2.msra.mxu0 0.0
    %2484 = vmatprep.subr.mxu0 0.0
    %2485 = vmatpush2.msra.mxu0 0.0
    %2486 = vmatprep.subr.mxu0 0.0
    %2487 = vmatpush2.msra.mxu0 0.0
    %2488 = vmatprep.subr.mxu0 0.0
    %2489 = vmatpush2.msra.mxu0 0.0
    %2490 = vmatprep.subr.mxu0 0.0
    %2491 = vmatpush2.msra.mxu0 0.0
    %2492 = vmatprep.subr.mxu0 0.0
    %2493 = vmatpush2.msra.mxu0 0.0
    %2494 = vmatprep.subr.mxu0 0.0
    %2495 = vmatpush2.msra.mxu0 0.0
    %2496 = vmatprep.subr.mxu0 0.0
    %2497 = vmatpush2.msra.mxu0 0.0
    %2498 = vmatprep.subr.mxu0 0.0
    %2499 = vmatpush2.msra.mxu0 0.0
    %2500 = vmatprep.mubr.f32.mxu0 0.0
    %2501 = vmatmul.mubr.f32.gmra.mxu0 %v2434
    %v2502 = vpop.f32.mrf.mxu0
    %v2503 = vadd.f32 0.0, %v2502
    %v2504 = vpop.f32.mrf.mxu0
    %2505 = vdwg.mxu0
    %v2506 = vadd.f32 %v2424, %v2503
    %v2507 = vxor.u32 %v2506, 2147483648
    %v2508 = vmul.f32 %v2507, 1.442695
    %v2509 = vpow.pop %v2508
    %v2510 = vadd.f32 %v2509, 1.0
    %v2511 = vrcp.pop %v2510
    %v2512 = vmul.f32 1.0, %v2511
    %v2513 = vtanh.pop %v2506
    %v2514 = vmul.f32 %v2512, %v2308
    %2516 = vrot.lane.b32.xlu0 %v2513, 64
    %v2517 = vpop.permute.xlu0 %2516
    %v2519 = vmul.f32 %v2512, %v2517
    %2521 = vrot.lane.b32.xlu0 %v2519, 32
    %v2522 = vpop.permute.xlu0 %2521
    %v2524 = vadd.f32 %v2514, %v2522
    %v2525 = vtanh.pop %v2524
    %2527 = vrot.lane.b32.xlu0 %v2525, 64
    %v2528 = vpop.permute.xlu0 %2527
    %v2530 = vmul.f32 %v2512, %v2528
    %2532 = vrot.lane.b32.xlu0 %v2530, 32
    %v2533 = vpop.permute.xlu0 %2532
    %2535 = vrot.lane.b32.xlu0 %v2419, 64
    %v2536 = vpop.permute.xlu0 %2535
    %v2538 = vsel %vm622, %v2533, %v2536
    %v2540 = vsel %vm1350, %v2538, 0
    %2542 = vmatprep.subr.mxu0 0.0
    %2543 = vmatpush1.msra.mxu0 0.0
    %2544 = vmatprep.subr.mxu0 0.0
    %2545 = vmatpush1.msra.mxu0 0.0
    %2546 = vmatprep.subr.mxu0 0.0
    %2547 = vmatpush1.msra.mxu0 0.0
    %2548 = vmatprep.subr.mxu0 0.0
    %2549 = vmatpush1.msra.mxu0 0.0
    %2550 = vmatprep.subr.mxu0 0.0
    %2551 = vmatpush1.msra.mxu0 0.0
    %2552 = vmatprep.subr.mxu0 0.0
    %2553 = vmatpush1.msra.mxu0 0.0
    %2554 = vmatprep.subr.mxu0 0.0
    %2555 = vmatpush1.msra.mxu0 0.0
    %2556 = vmatprep.subr.mxu0 0.0
    %2557 = vmatpush1.msra.mxu0 0.0
    %2558 = vmatprep.subr.mxu0 0.0
    %2559 = vmatpush1.msra.mxu0 %v1343
    %2560 = vmatprep.subr.mxu0 0.0
    %2561 = vmatpush1.msra.mxu0 %v1342
    %2562 = vmatprep.subr.mxu0 0.0
    %2563 = vmatpush1.msra.mxu0 %v1341
    %2564 = vmatprep.subr.mxu0 0.0
    %2565 = vmatpush1.msra.mxu0 %v1340
    %2566 = vmatprep.subr.mxu0 0.0
    %2567 = vmatpush1.msra.mxu0 %v1339
    %2568 = vmatprep.subr.mxu0 0.0
    %2569 = vmatpush1.msra.mxu0 %v1338
    %2570 = vmatprep.subr.mxu0 0.0
    %2571 = vmatpush1.msra.mxu0 %v1337
    %2572 = vmatprep.subr.mxu0 0.0
    %2573 = vmatpush1.msra.mxu0 %v1336
    %2574 = vmatprep.subr.mxu0 0.0
    %2575 = vmatpush2.msra.mxu0 0.0
    %2576 = vmatprep.subr.mxu0 0.0
    %2577 = vmatpush2.msra.mxu0 0.0
    %2578 = vmatprep.subr.mxu0 0.0
    %2579 = vmatpush2.msra.mxu0 0.0
    %2580 = vmatprep.subr.mxu0 0.0
    %2581 = vmatpush2.msra.mxu0 0.0
    %2582 = vmatprep.subr.mxu0 0.0
    %2583 = vmatpush2.msra.mxu0 0.0
    %2584 = vmatprep.subr.mxu0 0.0
    %2585 = vmatpush2.msra.mxu0 0.0
    %2586 = vmatprep.subr.mxu0 0.0
    %2587 = vmatpush2.msra.mxu0 0.0
    %2588 = vmatprep.subr.mxu0 0.0
    %2589 = vmatpush2.msra.mxu0 0.0
    %2590 = vmatprep.subr.mxu0 0.0
    %2591 = vmatpush2.msra.mxu0 0.0
    %2592 = vmatprep.subr.mxu0 0.0
    %2593 = vmatpush2.msra.mxu0 0.0
    %2594 = vmatprep.subr.mxu0 0.0
    %2595 = vmatpush2.msra.mxu0 0.0
    %2596 = vmatprep.subr.mxu0 0.0
    %2597 = vmatpush2.msra.mxu0 0.0
    %2598 = vmatprep.subr.mxu0 0.0
    %2599 = vmatpush2.msra.mxu0 0.0
    %2600 = vmatprep.subr.mxu0 0.0
    %2601 = vmatpush2.msra.mxu0 0.0
    %2602 = vmatprep.subr.mxu0 0.0
    %2603 = vmatpush2.msra.mxu0 0.0
    %2604 = vmatprep.subr.mxu0 0.0
    %2605 = vmatpush2.msra.mxu0 0.0
    %2606 = vmatprep.mubr.f32.mxu0 0.0
    %2607 = vmatmul.mubr.f32.gmra.mxu0 %v2540
    %v2608 = vpop.f32.mrf.mxu0
    %v2609 = vadd.f32 %v1458, %v2608
    %v2610 = vpop.f32.mrf.mxu0
    %2611 = vdwg.mxu0
    %v2612 = vxor.u32 %v2609, 2147483648
    %v2613 = vmul.f32 %v2612, 1.442695
    %v2614 = vpow.pop %v2613
    %v2615 = vadd.f32 %v2614, 1.0
    %v2616 = vrcp.pop %v2615
    %v2617 = vmul.f32 1.0, %v2616
    %v2618 = vtanh.pop %v2609
    %v2619 = vmul.f32 %v2617, %v2413
    %2621 = vrot.lane.b32.xlu0 %v2618, 64
    %v2622 = vpop.permute.xlu0 %2621
    %v2624 = vmul.f32 %v2617, %v2622
    %2626 = vrot.lane.b32.xlu0 %v2624, 32
    %v2627 = vpop.permute.xlu0 %2626
    %v2629 = vadd.f32 %v2619, %v2627
    %v2630 = vtanh.pop %v2629
    %2632 = vrot.lane.b32.xlu0 %v2630, 64
    %v2633 = vpop.permute.xlu0 %2632
    %v2635 = vmul.f32 %v2617, %v2633
    %v2636 = vrot.slane %v772, 6
    %v2638 = vrot.slane %v1325, 5
    %v2640 = vsel %vm1348, %v2636, %v2638
    %2642 = vrot.lane.b32.xlu0 %v2635, 32
    %v2643 = vpop.permute.xlu0 %2642
    %2645 = vrot.lane.b32.xlu0 %v2530, 64
    %v2646 = vpop.permute.xlu0 %2645
    %v2648 = vsel %vm622, %v2643, %v2646
    %v2650 = vsel %vm1350, %v2648, 0
    %2652 = vmatprep.subr.mxu0 0.0
    %2653 = vmatpush1.msra.mxu0 0.0
    %2654 = vmatprep.subr.mxu0 0.0
    %2655 = vmatpush1.msra.mxu0 0.0
    %2656 = vmatprep.subr.mxu0 0.0
    %2657 = vmatpush1.msra.mxu0 0.0
    %2658 = vmatprep.subr.mxu0 0.0
    %2659 = vmatpush1.msra.mxu0 0.0
    %2660 = vmatprep.subr.mxu0 0.0
    %2661 = vmatpush1.msra.mxu0 0.0
    %2662 = vmatprep.subr.mxu0 0.0
    %2663 = vmatpush1.msra.mxu0 0.0
    %2664 = vmatprep.subr.mxu0 0.0
    %2665 = vmatpush1.msra.mxu0 0.0
    %2666 = vmatprep.subr.mxu0 0.0
    %2667 = vmatpush1.msra.mxu0 0.0
    %2668 = vmatprep.subr.mxu0 0.0
    %2669 = vmatpush1.msra.mxu0 %v1335
    %2670 = vmatprep.subr.mxu0 0.0
    %2671 = vmatpush1.msra.mxu0 %v1334
    %2672 = vmatprep.subr.mxu0 0.0
    %2673 = vmatpush1.msra.mxu0 %v1333
    %2674 = vmatprep.subr.mxu0 0.0
    %2675 = vmatpush1.msra.mxu0 %v1332
    %2676 = vmatprep.subr.mxu0 0.0
    %2677 = vmatpush1.msra.mxu0 %v1331
    %2678 = vmatprep.subr.mxu0 0.0
    %2679 = vmatpush1.msra.mxu0 %v1330
    %2680 = vmatprep.subr.mxu0 0.0
    %2681 = vmatpush1.msra.mxu0 %v1329
    %2682 = vmatprep.subr.mxu0 0.0
    %2683 = vmatpush1.msra.mxu0 %v1328
    %2684 = vmatprep.subr.mxu0 0.0
    %2685 = vmatpush2.msra.mxu0 0.0
    %2686 = vmatprep.subr.mxu0 0.0
    %2687 = vmatpush2.msra.mxu0 0.0
    %2688 = vmatprep.subr.mxu0 0.0
    %2689 = vmatpush2.msra.mxu0 0.0
    %2690 = vmatprep.subr.mxu0 0.0
    %2691 = vmatpush2.msra.mxu0 0.0
    %2692 = vmatprep.subr.mxu0 0.0
    %2693 = vmatpush2.msra.mxu0 0.0
    %2694 = vmatprep.subr.mxu0 0.0
    %2695 = vmatpush2.msra.mxu0 0.0
    %2696 = vmatprep.subr.mxu0 0.0
    %2697 = vmatpush2.msra.mxu0 0.0
    %2698 = vmatprep.subr.mxu0 0.0
    %2699 = vmatpush2.msra.mxu0 0.0
    %2700 = vmatprep.subr.mxu0 0.0
    %2701 = vmatpush2.msra.mxu0 0.0
    %2702 = vmatprep.subr.mxu0 0.0
    %2703 = vmatpush2.msra.mxu0 0.0
    %2704 = vmatprep.subr.mxu0 0.0
    %2705 = vmatpush2.msra.mxu0 0.0
    %2706 = vmatprep.subr.mxu0 0.0
    %2707 = vmatpush2.msra.mxu0 0.0
    %2708 = vmatprep.subr.mxu0 0.0
    %2709 = vmatpush2.msra.mxu0 0.0
    %2710 = vmatprep.subr.mxu0 0.0
    %2711 = vmatpush2.msra.mxu0 0.0
    %2712 = vmatprep.subr.mxu0 0.0
    %2713 = vmatpush2.msra.mxu0 0.0
    %2714 = vmatprep.subr.mxu0 0.0
    %2715 = vmatpush2.msra.mxu0 0.0
    %2716 = vmatprep.mubr.f32.mxu0 0.0
    %2717 = vmatmul.mubr.f32.gmra.mxu0 %v2650
    %v2718 = vpop.f32.mrf.mxu0
    %v2719 = vadd.f32 0.0, %v2718
    %v2720 = vpop.f32.mrf.mxu0
    %2721 = vdwg.mxu0
    %v2722 = vadd.f32 %v2640, %v2719
    %v2723 = vxor.u32 %v2722, 2147483648
    %v2724 = vmul.f32 %v2723, 1.442695
    %v2725 = vpow.pop %v2724
    %v2726 = vadd.f32 %v2725, 1.0
    %v2727 = vrcp.pop %v2726
    %v2728 = vmul.f32 1.0, %v2727
    %v2729 = vtanh.pop %v2722
    %v2730 = vmul.f32 %v2728, %v2524
    %2732 = vrot.lane.b32.xlu0 %v2729, 64
    %v2733 = vpop.permute.xlu0 %2732
    %v2735 = vmul.f32 %v2728, %v2733
    %2737 = vrot.lane.b32.xlu0 %v2735, 32
    %v2738 = vpop.permute.xlu0 %2737
    %v2740 = vadd.f32 %v2730, %v2738
    %v2741 = vtanh.pop %v2740
    %2743 = vrot.lane.b32.xlu0 %v2741, 64
    %v2744 = vpop.permute.xlu0 %2743
    %v2746 = vmul.f32 %v2728, %v2744
    %2748 = vrot.lane.b32.xlu0 %v2746, 32
    %v2749 = vpop.permute.xlu0 %2748
    %2751 = vrot.lane.b32.xlu0 %v2635, 64
    %v2752 = vpop.permute.xlu0 %2751
    %v2754 = vsel %vm622, %v2749, %v2752
    %v2756 = vsel %vm1350, %v2754, 0
    %2758 = vmatprep.subr.mxu0 0.0
    %2759 = vmatpush1.msra.mxu0 0.0
    %2760 = vmatprep.subr.mxu0 0.0
    %2761 = vmatpush1.msra.mxu0 0.0
    %2762 = vmatprep.subr.mxu0 0.0
    %2763 = vmatpush1.msra.mxu0 0.0
    %2764 = vmatprep.subr.mxu0 0.0
    %2765 = vmatpush1.msra.mxu0 0.0
    %2766 = vmatprep.subr.mxu0 0.0
    %2767 = vmatpush1.msra.mxu0 0.0
    %2768 = vmatprep.subr.mxu0 0.0
    %2769 = vmatpush1.msra.mxu0 0.0
    %2770 = vmatprep.subr.mxu0 0.0
    %2771 = vmatpush1.msra.mxu0 0.0
    %2772 = vmatprep.subr.mxu0 0.0
    %2773 = vmatpush1.msra.mxu0 0.0
    %2774 = vmatprep.subr.mxu0 0.0
    %2775 = vmatpush1.msra.mxu0 %v1343
    %2776 = vmatprep.subr.mxu0 0.0
    %2777 = vmatpush1.msra.mxu0 %v1342
    %2778 = vmatprep.subr.mxu0 0.0
    %2779 = vmatpush1.msra.mxu0 %v1341
    %2780 = vmatprep.subr.mxu0 0.0
    %2781 = vmatpush1.msra.mxu0 %v1340
    %2782 = vmatprep.subr.mxu0 0.0
    %2783 = vmatpush1.msra.mxu0 %v1339
    %2784 = vmatprep.subr.mxu0 0.0
    %2785 = vmatpush1.msra.mxu0 %v1338
    %2786 = vmatprep.subr.mxu0 0.0
    %2787 = vmatpush1.msra.mxu0 %v1337
    %2788 = vmatprep.subr.mxu0 0.0
    %2789 = vmatpush1.msra.mxu0 %v1336
    %2790 = vmatprep.subr.mxu0 0.0
    %2791 = vmatpush2.msra.mxu0 0.0
    %2792 = vmatprep.subr.mxu0 0.0
    %2793 = vmatpush2.msra.mxu0 0.0
    %2794 = vmatprep.subr.mxu0 0.0
    %2795 = vmatpush2.msra.mxu0 0.0
    %2796 = vmatprep.subr.mxu0 0.0
    %2797 = vmatpush2.msra.mxu0 0.0
    %2798 = vmatprep.subr.mxu0 0.0
    %2799 = vmatpush2.msra.mxu0 0.0
    %2800 = vmatprep.subr.mxu0 0.0
    %2801 = vmatpush2.msra.mxu0 0.0
    %2802 = vmatprep.subr.mxu0 0.0
    %2803 = vmatpush2.msra.mxu0 0.0
    %2804 = vmatprep.subr.mxu0 0.0
    %2805 = vmatpush2.msra.mxu0 0.0
    %2806 = vmatprep.subr.mxu0 0.0
    %2807 = vmatpush2.msra.mxu0 0.0
    %2808 = vmatprep.subr.mxu0 0.0
    %2809 = vmatpush2.msra.mxu0 0.0
    %2810 = vmatprep.subr.mxu0 0.0
    %2811 = vmatpush2.msra.mxu0 0.0
    %2812 = vmatprep.subr.mxu0 0.0
    %2813 = vmatpush2.msra.mxu0 0.0
    %2814 = vmatprep.subr.mxu0 0.0
    %2815 = vmatpush2.msra.mxu0 0.0
    %2816 = vmatprep.subr.mxu0 0.0
    %2817 = vmatpush2.msra.mxu0 0.0
    %2818 = vmatprep.subr.mxu0 0.0
    %2819 = vmatpush2.msra.mxu0 0.0
    %2820 = vmatprep.subr.mxu0 0.0
    %2821 = vmatpush2.msra.mxu0 0.0
    %2822 = vmatprep.mubr.f32.mxu0 0.0
    %2823 = vmatmul.mubr.f32.gmra.mxu0 %v2756
    %v2824 = vpop.f32.mrf.mxu0
    %v2825 = vadd.f32 %v1458, %v2824
    %v2826 = vpop.f32.mrf.mxu0
    %2827 = vdwg.mxu0
    %v2828 = vxor.u32 %v2825, 2147483648
    %v2829 = vmul.f32 %v2828, 1.442695
    %v2830 = vpow.pop %v2829
    %v2831 = vadd.f32 %v2830, 1.0
    %v2832 = vrcp.pop %v2831
    %v2833 = vmul.f32 1.0, %v2832
    %v2834 = vtanh.pop %v2825
    %v2835 = vmul.f32 %v2833, %v2629
    %2837 = vrot.lane.b32.xlu0 %v2834, 64
    %v2838 = vpop.permute.xlu0 %2837
    %v2840 = vmul.f32 %v2833, %v2838
    %2842 = vrot.lane.b32.xlu0 %v2840, 32
    %v2843 = vpop.permute.xlu0 %2842
    %v2845 = vadd.f32 %v2835, %v2843
    %v2846 = vtanh.pop %v2845
    %2848 = vrot.lane.b32.xlu0 %v2846, 64
    %v2849 = vpop.permute.xlu0 %2848
    %v2851 = vmul.f32 %v2833, %v2849
    %v2852 = vrot.slane %v772, 7
    %v2854 = vrot.slane %v1325, 6
    %v2856 = vsel %vm1348, %v2852, %v2854
    %2858 = vrot.lane.b32.xlu0 %v2851, 32
    %v2859 = vpop.permute.xlu0 %2858
    %2861 = vrot.lane.b32.xlu0 %v2746, 64
    %v2862 = vpop.permute.xlu0 %2861
    %v2864 = vsel %vm622, %v2859, %v2862
    %v2866 = vsel %vm1350, %v2864, 0
    %2868 = vmatprep.subr.mxu0 0.0
    %2869 = vmatpush1.msra.mxu0 0.0
    %2870 = vmatprep.subr.mxu0 0.0
    %2871 = vmatpush1.msra.mxu0 0.0
    %2872 = vmatprep.subr.mxu0 0.0
    %2873 = vmatpush1.msra.mxu0 0.0
    %2874 = vmatprep.subr.mxu0 0.0
    %2875 = vmatpush1.msra.mxu0 0.0
    %2876 = vmatprep.subr.mxu0 0.0
    %2877 = vmatpush1.msra.mxu0 0.0
    %2878 = vmatprep.subr.mxu0 0.0
    %2879 = vmatpush1.msra.mxu0 0.0
    %2880 = vmatprep.subr.mxu0 0.0
    %2881 = vmatpush1.msra.mxu0 0.0
    %2882 = vmatprep.subr.mxu0 0.0
    %2883 = vmatpush1.msra.mxu0 0.0
    %2884 = vmatprep.subr.mxu0 0.0
    %2885 = vmatpush1.msra.mxu0 %v1335
    %2886 = vmatprep.subr.mxu0 0.0
    %2887 = vmatpush1.msra.mxu0 %v1334
    %2888 = vmatprep.subr.mxu0 0.0
    %2889 = vmatpush1.msra.mxu0 %v1333
    %2890 = vmatprep.subr.mxu0 0.0
    %2891 = vmatpush1.msra.mxu0 %v1332
    %2892 = vmatprep.subr.mxu0 0.0
    %2893 = vmatpush1.msra.mxu0 %v1331
    %2894 = vmatprep.subr.mxu0 0.0
    %2895 = vmatpush1.msra.mxu0 %v1330
    %2896 = vmatprep.subr.mxu0 0.0
    %2897 = vmatpush1.msra.mxu0 %v1329
    %2898 = vmatprep.subr.mxu0 0.0
    %2899 = vmatpush1.msra.mxu0 %v1328
    %2900 = vmatprep.subr.mxu0 0.0
    %2901 = vmatpush2.msra.mxu0 0.0
    %2902 = vmatprep.subr.mxu0 0.0
    %2903 = vmatpush2.msra.mxu0 0.0
    %2904 = vmatprep.subr.mxu0 0.0
    %2905 = vmatpush2.msra.mxu0 0.0
    %2906 = vmatprep.subr.mxu0 0.0
    %2907 = vmatpush2.msra.mxu0 0.0
    %2908 = vmatprep.subr.mxu0 0.0
    %2909 = vmatpush2.msra.mxu0 0.0
    %2910 = vmatprep.subr.mxu0 0.0
    %2911 = vmatpush2.msra.mxu0 0.0
    %2912 = vmatprep.subr.mxu0 0.0
    %2913 = vmatpush2.msra.mxu0 0.0
    %2914 = vmatprep.subr.mxu0 0.0
    %2915 = vmatpush2.msra.mxu0 0.0
    %2916 = vmatprep.subr.mxu0 0.0
    %2917 = vmatpush2.msra.mxu0 0.0
    %2918 = vmatprep.subr.mxu0 0.0
    %2919 = vmatpush2.msra.mxu0 0.0
    %2920 = vmatprep.subr.mxu0 0.0
    %2921 = vmatpush2.msra.mxu0 0.0
    %2922 = vmatprep.subr.mxu0 0.0
    %2923 = vmatpush2.msra.mxu0 0.0
    %2924 = vmatprep.subr.mxu0 0.0
    %2925 = vmatpush2.msra.mxu0 0.0
    %2926 = vmatprep.subr.mxu0 0.0
    %2927 = vmatpush2.msra.mxu0 0.0
    %2928 = vmatprep.subr.mxu0 0.0
    %2929 = vmatpush2.msra.mxu0 0.0
    %2930 = vmatprep.subr.mxu0 0.0
    %2931 = vmatpush2.msra.mxu0 0.0
    %2932 = vmatprep.mubr.f32.mxu0 0.0
    %2933 = vmatmul.mubr.f32.gmra.mxu0 %v2866
    %v2934 = vpop.f32.mrf.mxu0
    %v2935 = vadd.f32 0.0, %v2934
    %v2936 = vpop.f32.mrf.mxu0
    %2937 = vdwg.mxu0
    %v2938 = vadd.f32 %v2856, %v2935
    %v2939 = vxor.u32 %v2938, 2147483648
    %v2940 = vmul.f32 %v2939, 1.442695
    %v2941 = vpow.pop %v2940
    %v2942 = vadd.f32 %v2941, 1.0
    %v2943 = vrcp.pop %v2942
    %v2944 = vmul.f32 1.0, %v2943
    %v2945 = vtanh.pop %v2938
    %v2946 = vmul.f32 %v2944, %v2740
    %2948 = vrot.lane.b32.xlu0 %v2945, 64
    %v2949 = vpop.permute.xlu0 %2948
    %v2951 = vmul.f32 %v2944, %v2949
    %2953 = vrot.lane.b32.xlu0 %v2951, 32
    %v2954 = vpop.permute.xlu0 %2953
    %v2956 = vadd.f32 %v2946, %v2954
    %v2957 = vtanh.pop %v2956
    %2959 = vrot.lane.b32.xlu0 %v2957, 64
    %v2960 = vpop.permute.xlu0 %2959
    %v2962 = vmul.f32 %v2944, %v2960
    %v2963 = vrot.slane %v1666, 7
    %v2965 = vrot.slane %v1882, 6
    %v2967 = vrot.slane %v2098, 5
    %v2969 = vrot.slane %v2314, 4
    %v2971 = vrot.slane %v2530, 3
    %v2973 = vrot.slane %v2746, 2
    %v2976 = vrot.slane %v2962, 1
    %v2978 = vsel %vm1348, %v1448, %v2963
    %vm2979 = vcmask 1041408
    %v2980 = vsel %vm2979, %v2978, %v2965
    %vm2981 = vcmask 1042432
    %v2982 = vsel %vm2981, %v2980, %v2967
    %vm2983 = vcmask 1043456
    %v2984 = vsel %vm2983, %v2982, %v2969
    %vm2985 = vcmask 1044480
    %v2986 = vsel %vm2985, %v2984, %v2971
    %vm2987 = vcmask 1045504
    %v2988 = vsel %vm2987, %v2986, %v2973
    %vm2989 = vcmask 1046528
    %v2990 = vsel %vm2989, %v2988, %v2976
    %v2991 = vrot.slane %v1448, 1
    %v2993 = vrot.slane %v1882, 7
    %v2995 = vrot.slane %v2098, 6
    %v2997 = vrot.slane %v2314, 5
    %v2999 = vrot.slane %v2530, 4
    %v3001 = vrot.slane %v2746, 3
    %v3003 = vrot.slane %v2962, 2
    %v3005 = vsel %vm1348, %v2991, %v1666
    %v3006 = vsel %vm2979, %v3005, %v2993
    %v3007 = vsel %vm2981, %v3006, %v2995
    %v3008 = vsel %vm2983, %v3007, %v2997
    %v3009 = vsel %vm2985, %v3008, %v2999
    %v3010 = vsel %vm2987, %v3009, %v3001
    %v3011 = vsel %vm2989, %v3010, %v3003
    %v3012 = vld [vmem:[%s9] sm:$0xff]
    %v3013 = vld [vmem:[%s9 + $0x8] sm:$0xff]
    %v3014 = vld [vmem:[%s9 + $0x10] sm:$0xff]
    %v3015 = vld [vmem:[%s9 + $0x18] sm:$0xff]
    %v3016 = vld [vmem:[%s9 + $0x20] sm:$0xff]
    %v3017 = vld [vmem:[%s9 + $0x28] sm:$0xff]
    %v3018 = vld [vmem:[%s9 + $0x30] sm:$0xff]
    %v3019 = vld [vmem:[%s9 + $0x38] sm:$0xff]
    %v3020 = vld [vmem:[%s10] sm:$0xff]
    %v3021 = vld [vmem:[%s10 + $0x8] sm:$0xff]
    %v3022 = vld [vmem:[%s10 + $0x10] sm:$0xff]
    %v3023 = vld [vmem:[%s10 + $0x18] sm:$0xff]
    %v3024 = vld [vmem:[%s10 + $0x20] sm:$0xff]
    %v3025 = vld [vmem:[%s10 + $0x28] sm:$0xff]
    %v3026 = vld [vmem:[%s10 + $0x30] sm:$0xff]
    %v3027 = vld [vmem:[%s10 + $0x38] sm:$0xff]
    %v3028 = vld [vmem:[#allocation11] sm:$0x1]
    %v3029 = vld [vmem:[%s12] sm:$0xff]
    %v3030 = vld [vmem:[%s12 + $0x8] sm:$0xff]
    %v3031 = vld [vmem:[%s12 + $0x10] sm:$0xff]
    %v3032 = vld [vmem:[%s12 + $0x18] sm:$0xff]
    %v3033 = vld [vmem:[#allocation13] sm:$0x1]
    %3035 = vrot.lane.b32.xlu0 %v2990, 32
    %v3036 = vpop.permute.xlu0 %3035
    %v3037 = vsel %vm622, %v3036, 0
    %3039 = vmatprep.subr.mxu0 0.0
    %3040 = vmatpush1.msra.mxu0 0.0
    %3041 = vmatprep.subr.mxu0 0.0
    %3042 = vmatpush1.msra.mxu0 0.0
    %3043 = vmatprep.subr.mxu0 0.0
    %3044 = vmatpush1.msra.mxu0 0.0
    %3045 = vmatprep.subr.mxu0 0.0
    %3046 = vmatpush1.msra.mxu0 0.0
    %3047 = vmatprep.subr.mxu0 0.0
    %3048 = vmatpush1.msra.mxu0 0.0
    %3049 = vmatprep.subr.mxu0 0.0
    %3050 = vmatpush1.msra.mxu0 0.0
    %3051 = vmatprep.subr.mxu0 0.0
    %3052 = vmatpush1.msra.mxu0 0.0
    %3053 = vmatprep.subr.mxu0 0.0
    %3054 = vmatpush1.msra.mxu0 0.0
    %3055 = vmatprep.subr.mxu0 0.0
    %3056 = vmatpush1.msra.mxu0 0.0
    %3057 = vmatprep.subr.mxu0 0.0
    %3058 = vmatpush1.msra.mxu0 0.0
    %3059 = vmatprep.subr.mxu0 0.0
    %3060 = vmatpush1.msra.mxu0 0.0
    %3061 = vmatprep.subr.mxu0 0.0
    %3062 = vmatpush1.msra.mxu0 0.0
    %3063 = vmatprep.subr.mxu0 %v3019
    %3064 = vmatpush1.msra.mxu0 %v3018
    %3065 = vmatprep.subr.mxu0 %v3017
    %3066 = vmatpush1.msra.mxu0 %v3016
    %3067 = vmatprep.subr.mxu0 %v3015
    %3068 = vmatpush1.msra.mxu0 %v3014
    %3069 = vmatprep.subr.mxu0 %v3013
    %3070 = vmatpush1.msra.mxu0 %v3012
    %3071 = vmatprep.subr.mxu0 0.0
    %3072 = vmatpush2.msra.mxu0 0.0
    %3073 = vmatprep.subr.mxu0 0.0
    %3074 = vmatpush2.msra.mxu0 0.0
    %3075 = vmatprep.subr.mxu0 0.0
    %3076 = vmatpush2.msra.mxu0 0.0
    %3077 = vmatprep.subr.mxu0 0.0
    %3078 = vmatpush2.msra.mxu0 0.0
    %3079 = vmatprep.subr.mxu0 0.0
    %3080 = vmatpush2.msra.mxu0 0.0
    %3081 = vmatprep.subr.mxu0 0.0
    %3082 = vmatpush2.msra.mxu0 0.0
    %3083 = vmatprep.subr.mxu0 0.0
    %3084 = vmatpush2.msra.mxu0 0.0
    %3085 = vmatprep.subr.mxu0 0.0
    %3086 = vmatpush2.msra.mxu0 0.0
    %3087 = vmatprep.subr.mxu0 0.0
    %3088 = vmatpush2.msra.mxu0 0.0
    %3089 = vmatprep.subr.mxu0 0.0
    %3090 = vmatpush2.msra.mxu0 0.0
    %3091 = vmatprep.subr.mxu0 0.0
    %3092 = vmatpush2.msra.mxu0 0.0
    %3093 = vmatprep.subr.mxu0 0.0
    %3094 = vmatpush2.msra.mxu0 0.0
    %3095 = vmatprep.subr.mxu0 0.0
    %3096 = vmatpush2.msra.mxu0 0.0
    %3097 = vmatprep.subr.mxu0 0.0
    %3098 = vmatpush2.msra.mxu0 0.0
    %3099 = vmatprep.subr.mxu0 0.0
    %3100 = vmatpush2.msra.mxu0 0.0
    %3101 = vmatprep.subr.mxu0 0.0
    %3102 = vmatpush2.msra.mxu0 0.0
    %3103 = vmatprep.mubr.f32.mxu0 0.0
    %3104 = vmatmul.mubr.f32.gmra.mxu0 %v3037
    %v3105 = vpop.f32.mrf.mxu0
    %v3106 = vadd.f32 0.0, %v3105
    %v3107 = vpop.f32.mrf.mxu0
    %v3108 = vadd.f32 0.0, %v3107
    %3109 = vdwg.mxu0
    %3111 = vrot.lane.b32.xlu0 %v3106, 32
    %v3112 = vpop.permute.xlu0 %3111
    %3113 = vrot.lane.b32.xlu0 %v3106, 96
    %v3114 = vpop.permute.xlu0 %3113
    %v3115 = vsel %vm622, %v3112, 0
    %v3117 = vsel %vm622, %v3114, 0
    %3119 = vmatprep.subr.mxu0 0.0
    %3120 = vmatpush1.xpose.msra.mxu0 0.0
    %3121 = vmatprep.subr.mxu0 0.0
    %3122 = vmatpush1.xpose.msra.mxu0 0.0
    %3123 = vmatprep.subr.mxu0 0.0
    %3124 = vmatpush1.xpose.msra.mxu0 0.0
    %3125 = vmatprep.subr.mxu0 0.0
    %3126 = vmatpush1.xpose.msra.mxu0 0.0
    %3127 = vmatprep.subr.mxu0 0.0
    %3128 = vmatpush1.xpose.msra.mxu0 0.0
    %3129 = vmatprep.subr.mxu0 0.0
    %3130 = vmatpush1.xpose.msra.mxu0 0.0
    %3131 = vmatprep.subr.mxu0 0.0
    %3132 = vmatpush1.xpose.msra.mxu0 0.0
    %3133 = vmatprep.subr.mxu0 0.0
    %3134 = vmatpush1.xpose.msra.mxu0 0.0
    %3135 = vmatprep.subr.mxu0 0.0
    %3136 = vmatpush1.xpose.msra.mxu0 0.0
    %3137 = vmatprep.subr.mxu0 0.0
    %3138 = vmatpush1.xpose.msra.mxu0 0.0
    %3139 = vmatprep.subr.mxu0 0.0
    %3140 = vmatpush1.xpose.msra.mxu0 0.0
    %3141 = vmatprep.subr.mxu0 0.0
    %3142 = vmatpush1.xpose.msra.mxu0 0.0
    %3143 = vmatprep.subr.mxu0 0.0
    %3144 = vmatpush1.xpose.msra.mxu0 0.0
    %3145 = vmatprep.subr.mxu0 0.0
    %3146 = vmatpush1.xpose.msra.mxu0 0.0
    %3147 = vmatprep.subr.mxu0 0.0
    %3148 = vmatpush1.xpose.msra.mxu0 0.0
    %3149 = vmatprep.subr.mxu0 0.0
    %3150 = vmatpush1.xpose.msra.mxu0 %v3117
    %3151 = vmatprep.subr.mxu0 0.0
    %3152 = vmatpush2.xpose.msra.mxu0 0.0
    %3153 = vmatprep.subr.mxu0 0.0
    %3154 = vmatpush2.xpose.msra.mxu0 0.0
    %3155 = vmatprep.subr.mxu0 0.0
    %3156 = vmatpush2.xpose.msra.mxu0 0.0
    %3157 = vmatprep.subr.mxu0 0.0
    %3158 = vmatpush2.xpose.msra.mxu0 0.0
    %3159 = vmatprep.subr.mxu0 0.0
    %3160 = vmatpush2.xpose.msra.mxu0 0.0
    %3161 = vmatprep.subr.mxu0 0.0
    %3162 = vmatpush2.xpose.msra.mxu0 0.0
    %3163 = vmatprep.subr.mxu0 0.0
    %3164 = vmatpush2.xpose.msra.mxu0 0.0
    %3165 = vmatprep.subr.mxu0 0.0
    %3166 = vmatpush2.xpose.msra.mxu0 0.0
    %3167 = vmatprep.subr.mxu0 0.0
    %3168 = vmatpush2.xpose.msra.mxu0 0.0
    %3169 = vmatprep.subr.mxu0 0.0
    %3170 = vmatpush2.xpose.msra.mxu0 0.0
    %3171 = vmatprep.subr.mxu0 0.0
    %3172 = vmatpush2.xpose.msra.mxu0 0.0
    %3173 = vmatprep.subr.mxu0 0.0
    %3174 = vmatpush2.xpose.msra.mxu0 0.0
    %3175 = vmatprep.subr.mxu0 0.0
    %3176 = vmatpush2.xpose.msra.mxu0 0.0
    %3177 = vmatprep.subr.mxu0 0.0
    %3178 = vmatpush2.xpose.msra.mxu0 0.0
    %3179 = vmatprep.subr.mxu0 0.0
    %3180 = vmatpush2.xpose.msra.mxu0 0.0
    %3181 = vmatprep.subr.mxu0 0.0
    %3182 = vmatpush2.xpose.msra.mxu0 0.0
    %3183 = vmatprep.mubr.f32.mxu0 0.0
    %3184 = vmatmul.mubr.f32.gmra.mxu0 %v3115
    %v3185 = vpop.f32.mrf.mxu0
    %v3186 = vadd.f32 0.0, %v3185
    %v3187 = vpop.f32.mrf.mxu0
    %3188 = vdwg.mxu0
    %v3189 = vsel %vm360, %v3186, -inf
    %3190 = vmax.xlane.f32.xlu0 %v3189
    %v3191 = vpop.xlane.xlu0 %3190
    %v3192 = vsub.f32 %v3186, %v3191
    %v3193 = vmul.f32 %v3192, 1.442695
    %v3194 = vpow.pop %v3193
    %v3195 = vsel %vm360, %v3194, 0.0
    %3196 = vadd.xlane.f32.xlu0 %v3195
    %v3197 = vpop.xlane.xlu0 %3196
    %v3198 = vrcp.pop %v3197
    %v3199 = vmul.f32 %v3194, %v3198
    %v3200 = vsel %vm622, %v3106, 0
    %v3203 = vsel %vm622, %v3108, 0
    %3205 = vmatprep.subr.mxu0 0.0
    %3206 = vmatpush1.xpose.msra.mxu0 0.0
    %3207 = vmatprep.subr.mxu0 0.0
    %3208 = vmatpush1.xpose.msra.mxu0 0.0
    %3209 = vmatprep.subr.mxu0 0.0
    %3210 = vmatpush1.xpose.msra.mxu0 0.0
    %3211 = vmatprep.subr.mxu0 0.0
    %3212 = vmatpush1.xpose.msra.mxu0 0.0
    %3213 = vmatprep.subr.mxu0 0.0
    %3214 = vmatpush1.xpose.msra.mxu0 0.0
    %3215 = vmatprep.subr.mxu0 0.0
    %3216 = vmatpush1.xpose.msra.mxu0 0.0
    %3217 = vmatprep.subr.mxu0 0.0
    %3218 = vmatpush1.xpose.msra.mxu0 0.0
    %3219 = vmatprep.subr.mxu0 0.0
    %3220 = vmatpush1.xpose.msra.mxu0 0.0
    %3221 = vmatprep.subr.mxu0 0.0
    %3222 = vmatpush1.xpose.msra.mxu0 0.0
    %3223 = vmatprep.subr.mxu0 0.0
    %3224 = vmatpush1.xpose.msra.mxu0 0.0
    %3225 = vmatprep.subr.mxu0 0.0
    %3226 = vmatpush1.xpose.msra.mxu0 0.0
    %3227 = vmatprep.subr.mxu0 0.0
    %3228 = vmatpush1.xpose.msra.mxu0 0.0
    %3229 = vmatprep.subr.mxu0 0.0
    %3230 = vmatpush1.xpose.msra.mxu0 0.0
    %3231 = vmatprep.subr.mxu0 0.0
    %3232 = vmatpush1.xpose.msra.mxu0 0.0
    %3233 = vmatprep.subr.mxu0 0.0
    %3234 = vmatpush1.xpose.msra.mxu0 0.0
    %3235 = vmatprep.subr.mxu0 0.0
    %3236 = vmatpush1.xpose.msra.mxu0 %v3203
    %3237 = vmatprep.subr.mxu0 0.0
    %3238 = vmatpush2.xpose.msra.mxu0 0.0
    %3239 = vmatprep.subr.mxu0 0.0
    %3240 = vmatpush2.xpose.msra.mxu0 0.0
    %3241 = vmatprep.subr.mxu0 0.0
    %3242 = vmatpush2.xpose.msra.mxu0 0.0
    %3243 = vmatprep.subr.mxu0 0.0
    %3244 = vmatpush2.xpose.msra.mxu0 0.0
    %3245 = vmatprep.subr.mxu0 0.0
    %3246 = vmatpush2.xpose.msra.mxu0 0.0
    %3247 = vmatprep.subr.mxu0 0.0
    %3248 = vmatpush2.xpose.msra.mxu0 0.0
    %3249 = vmatprep.subr.mxu0 0.0
    %3250 = vmatpush2.xpose.msra.mxu0 0.0
    %3251 = vmatprep.subr.mxu0 0.0
    %3252 = vmatpush2.xpose.msra.mxu0 0.0
    %3253 = vmatprep.subr.mxu0 0.0
    %3254 = vmatpush2.xpose.msra.mxu0 0.0
    %3255 = vmatprep.subr.mxu0 0.0
    %3256 = vmatpush2.xpose.msra.mxu0 0.0
    %3257 = vmatprep.subr.mxu0 0.0
    %3258 = vmatpush2.xpose.msra.mxu0 0.0
    %3259 = vmatprep.subr.mxu0 0.0
    %3260 = vmatpush2.xpose.msra.mxu0 0.0
    %3261 = vmatprep.subr.mxu0 0.0
    %3262 = vmatpush2.xpose.msra.mxu0 0.0
    %3263 = vmatprep.subr.mxu0 0.0
    %3264 = vmatpush2.xpose.msra.mxu0 0.0
    %3265 = vmatprep.subr.mxu0 0.0
    %3266 = vmatpush2.xpose.msra.mxu0 0.0
    %3267 = vmatprep.subr.mxu0 0.0
    %3268 = vmatpush2.xpose.msra.mxu0 0.0
    %3269 = vmatprep.mubr.f32.mxu0 0.0
    %3270 = vmatmul.mubr.f32.gmra.mxu0 %v3200
    %v3271 = vpop.f32.mrf.mxu0
    %v3272 = vadd.f32 0.0, %v3271
    %v3273 = vpop.f32.mrf.mxu0
    %3274 = vdwg.mxu0
    %v3275 = vsel %vm360, %v3272, -inf
    %3276 = vmax.xlane.f32.xlu0 %v3275
    %v3277 = vpop.xlane.xlu0 %3276
    %v3278 = vsub.f32 %v3272, %v3277
    %v3279 = vmul.f32 %v3278, 1.442695
    %v3280 = vpow.pop %v3279
    %v3281 = vsel %vm360, %v3280, 0.0
    %3282 = vadd.xlane.f32.xlu0 %v3281
    %v3283 = vpop.xlane.xlu0 %3282
    %v3284 = vrcp.pop %v3283
    %v3285 = vmul.f32 %v3280, %v3284
    %3286 = vrot.lane.b32.xlu0 %v3106, 64
    %v3287 = vpop.permute.xlu0 %3286
    %v3290 = vsel %vm360, %v3199, 0
    %3292 = vmatprep.subr.mxu0 0.0
    %3293 = vmatpush1.msra.mxu0 0.0
    %3294 = vmatprep.subr.mxu0 0.0
    %3295 = vmatpush1.msra.mxu0 0.0
    %3296 = vmatprep.subr.mxu0 0.0
    %3297 = vmatpush1.msra.mxu0 0.0
    %3298 = vmatprep.subr.mxu0 0.0
    %3299 = vmatpush1.msra.mxu0 0.0
    %3300 = vmatprep.subr.mxu0 0.0
    %3301 = vmatpush1.msra.mxu0 0.0
    %3302 = vmatprep.subr.mxu0 0.0
    %3303 = vmatpush1.msra.mxu0 0.0
    %3304 = vmatprep.subr.mxu0 0.0
    %3305 = vmatpush1.msra.mxu0 0.0
    %3306 = vmatprep.subr.mxu0 0.0
    %3307 = vmatpush1.msra.mxu0 0.0
    %3308 = vmatprep.subr.mxu0 0.0
    %3309 = vmatpush1.msra.mxu0 0.0
    %3310 = vmatprep.subr.mxu0 0.0
    %3311 = vmatpush1.msra.mxu0 0.0
    %3312 = vmatprep.subr.mxu0 0.0
    %3313 = vmatpush1.msra.mxu0 0.0
    %3314 = vmatprep.subr.mxu0 0.0
    %3315 = vmatpush1.msra.mxu0 0.0
    %3316 = vmatprep.subr.mxu0 0.0
    %3317 = vmatpush1.msra.mxu0 0.0
    %3318 = vmatprep.subr.mxu0 0.0
    %3319 = vmatpush1.msra.mxu0 0.0
    %3320 = vmatprep.subr.mxu0 0.0
    %3321 = vmatpush1.msra.mxu0 0.0
    %3322 = vmatprep.subr.mxu0 0.0
    %3323 = vmatpush1.msra.mxu0 %v3287
    %3324 = vmatprep.subr.mxu0 0.0
    %3325 = vmatpush2.msra.mxu0 0.0
    %3326 = vmatprep.subr.mxu0 0.0
    %3327 = vmatpush2.msra.mxu0 0.0
    %3328 = vmatprep.subr.mxu0 0.0
    %3329 = vmatpush2.msra.mxu0 0.0
    %3330 = vmatprep.subr.mxu0 0.0
    %3331 = vmatpush2.msra.mxu0 0.0
    %3332 = vmatprep.subr.mxu0 0.0
    %3333 = vmatpush2.msra.mxu0 0.0
    %3334 = vmatprep.subr.mxu0 0.0
    %3335 = vmatpush2.msra.mxu0 0.0
    %3336 = vmatprep.subr.mxu0 0.0
    %3337 = vmatpush2.msra.mxu0 0.0
    %3338 = vmatprep.subr.mxu0 0.0
    %3339 = vmatpush2.msra.mxu0 0.0
    %3340 = vmatprep.subr.mxu0 0.0
    %3341 = vmatpush2.msra.mxu0 0.0
    %3342 = vmatprep.subr.mxu0 0.0
    %3343 = vmatpush2.msra.mxu0 0.0
    %3344 = vmatprep.subr.mxu0 0.0
    %3345 = vmatpush2.msra.mxu0 0.0
    %3346 = vmatprep.subr.mxu0 0.0
    %3347 = vmatpush2.msra.mxu0 0.0
    %3348 = vmatprep.subr.mxu0 0.0
    %3349 = vmatpush2.msra.mxu0 0.0
    %3350 = vmatprep.subr.mxu0 0.0
    %3351 = vmatpush2.msra.mxu0 0.0
    %3352 = vmatprep.subr.mxu0 0.0
    %3353 = vmatpush2.msra.mxu0 0.0
    %3354 = vmatprep.subr.mxu0 0.0
    %3355 = vmatpush2.msra.mxu0 0.0
    %3356 = vmatprep.mubr.f32.mxu0 0.0
    %3357 = vmatmul.mubr.f32.gmra.mxu0 %v3290
    %v3358 = vpop.f32.mrf.mxu0
    %v3359 = vadd.f32 0.0, %v3358
    %v3360 = vpop.f32.mrf.mxu0
    %3361 = vdwg.mxu0
    %3362 = vrot.lane.b32.xlu0 %v3108, 96
    %v3363 = vpop.permute.xlu0 %3362
    %v3366 = vsel %vm360, %v3285, 0
    %3368 = vmatprep.subr.mxu0 0.0
    %3369 = vmatpush1.msra.mxu0 0.0
    %3370 = vmatprep.subr.mxu0 0.0
    %3371 = vmatpush1.msra.mxu0 0.0
    %3372 = vmatprep.subr.mxu0 0.0
    %3373 = vmatpush1.msra.mxu0 0.0
    %3374 = vmatprep.subr.mxu0 0.0
    %3375 = vmatpush1.msra.mxu0 0.0
    %3376 = vmatprep.subr.mxu0 0.0
    %3377 = vmatpush1.msra.mxu0 0.0
    %3378 = vmatprep.subr.mxu0 0.0
    %3379 = vmatpush1.msra.mxu0 0.0
    %3380 = vmatprep.subr.mxu0 0.0
    %3381 = vmatpush1.msra.mxu0 0.0
    %3382 = vmatprep.subr.mxu0 0.0
    %3383 = vmatpush1.msra.mxu0 0.0
    %3384 = vmatprep.subr.mxu0 0.0
    %3385 = vmatpush1.msra.mxu0 0.0
    %3386 = vmatprep.subr.mxu0 0.0
    %3387 = vmatpush1.msra.mxu0 0.0
    %3388 = vmatprep.subr.mxu0 0.0
    %3389 = vmatpush1.msra.mxu0 0.0
    %3390 = vmatprep.subr.mxu0 0.0
    %3391 = vmatpush1.msra.mxu0 0.0
    %3392 = vmatprep.subr.mxu0 0.0
    %3393 = vmatpush1.msra.mxu0 0.0
    %3394 = vmatprep.subr.mxu0 0.0
    %3395 = vmatpush1.msra.mxu0 0.0
    %3396 = vmatprep.subr.mxu0 0.0
    %3397 = vmatpush1.msra.mxu0 0.0
    %3398 = vmatprep.subr.mxu0 0.0
    %3399 = vmatpush1.msra.mxu0 %v3363
    %3400 = vmatprep.subr.mxu0 0.0
    %3401 = vmatpush2.msra.mxu0 0.0
    %3402 = vmatprep.subr.mxu0 0.0
    %3403 = vmatpush2.msra.mxu0 0.0
    %3404 = vmatprep.subr.mxu0 0.0
    %3405 = vmatpush2.msra.mxu0 0.0
    %3406 = vmatprep.subr.mxu0 0.0
    %3407 = vmatpush2.msra.mxu0 0.0
    %3408 = vmatprep.subr.mxu0 0.0
    %3409 = vmatpush2.msra.mxu0 0.0
    %3410 = vmatprep.subr.mxu0 0.0
    %3411 = vmatpush2.msra.mxu0 0.0
    %3412 = vmatprep.subr.mxu0 0.0
    %3413 = vmatpush2.msra.mxu0 0.0
    %3414 = vmatprep.subr.mxu0 0.0
    %3415 = vmatpush2.msra.mxu0 0.0
    %3416 = vmatprep.subr.mxu0 0.0
    %3417 = vmatpush2.msra.mxu0 0.0
    %3418 = vmatprep.subr.mxu0 0.0
    %3419 = vmatpush2.msra.mxu0 0.0
    %3420 = vmatprep.subr.mxu0 0.0
    %3421 = vmatpush2.msra.mxu0 0.0
    %3422 = vmatprep.subr.mxu0 0.0
    %3423 = vmatpush2.msra.mxu0 0.0
    %3424 = vmatprep.subr.mxu0 0.0
    %3425 = vmatpush2.msra.mxu0 0.0
    %3426 = vmatprep.subr.mxu0 0.0
    %3427 = vmatpush2.msra.mxu0 0.0
    %3428 = vmatprep.subr.mxu0 0.0
    %3429 = vmatpush2.msra.mxu0 0.0
    %3430 = vmatprep.subr.mxu0 0.0
    %3431 = vmatpush2.msra.mxu0 0.0
    %3432 = vmatprep.mubr.f32.mxu0 0.0
    %3433 = vmatmul.mubr.f32.gmra.mxu0 %v3366
    %v3434 = vpop.f32.mrf.mxu0
    %v3435 = vadd.f32 0.0, %v3434
    %v3436 = vpop.f32.mrf.mxu0
    %3437 = vdwg.mxu0
    %3439 = vrot.lane.b32.xlu0 %v3435, 32
    %v3440 = vpop.permute.xlu0 %3439
    %v3442 = vsel %vm622, %v3359, %v3440
    %v3444 = vlaneseq
    %v3445 = vshrl.u32 %v3444, 7
    %v3446 = vsub.s32 0, %v3445
    %v3447 = vrot.slane %v3028, %v3446
    %v3450 = vsel %vm1350, %v3442, 0
    %3452 = vmatprep.subr.mxu0 0.0
    %3453 = vmatpush1.msra.mxu0 0.0
    %3454 = vmatprep.subr.mxu0 0.0
    %3455 = vmatpush1.msra.mxu0 0.0
    %3456 = vmatprep.subr.mxu0 0.0
    %3457 = vmatpush1.msra.mxu0 0.0
    %3458 = vmatprep.subr.mxu0 0.0
    %3459 = vmatpush1.msra.mxu0 0.0
    %3460 = vmatprep.subr.mxu0 0.0
    %3461 = vmatpush1.msra.mxu0 0.0
    %3462 = vmatprep.subr.mxu0 0.0
    %3463 = vmatpush1.msra.mxu0 0.0
    %3464 = vmatprep.subr.mxu0 0.0
    %3465 = vmatpush1.msra.mxu0 0.0
    %3466 = vmatprep.subr.mxu0 0.0
    %3467 = vmatpush1.msra.mxu0 0.0
    %3468 = vmatprep.subr.mxu0 0.0
    %3469 = vmatpush1.msra.mxu0 %v3027
    %3470 = vmatprep.subr.mxu0 0.0
    %3471 = vmatpush1.msra.mxu0 %v3026
    %3472 = vmatprep.subr.mxu0 0.0
    %3473 = vmatpush1.msra.mxu0 %v3025
    %3474 = vmatprep.subr.mxu0 0.0
    %3475 = vmatpush1.msra.mxu0 %v3024
    %3476 = vmatprep.subr.mxu0 0.0
    %3477 = vmatpush1.msra.mxu0 %v3023
    %3478 = vmatprep.subr.mxu0 0.0
    %3479 = vmatpush1.msra.mxu0 %v3022
    %3480 = vmatprep.subr.mxu0 0.0
    %3481 = vmatpush1.msra.mxu0 %v3021
    %3482 = vmatprep.subr.mxu0 0.0
    %3483 = vmatpush1.msra.mxu0 %v3020
    %3484 = vmatprep.subr.mxu0 0.0
    %3485 = vmatpush2.msra.mxu0 0.0
    %3486 = vmatprep.subr.mxu0 0.0
    %3487 = vmatpush2.msra.mxu0 0.0
    %3488 = vmatprep.subr.mxu0 0.0
    %3489 = vmatpush2.msra.mxu0 0.0
    %3490 = vmatprep.subr.mxu0 0.0
    %3491 = vmatpush2.msra.mxu0 0.0
    %3492 = vmatprep.subr.mxu0 0.0
    %3493 = vmatpush2.msra.mxu0 0.0
    %3494 = vmatprep.subr.mxu0 0.0
    %3495 = vmatpush2.msra.mxu0 0.0
    %3496 = vmatprep.subr.mxu0 0.0
    %3497 = vmatpush2.msra.mxu0 0.0
    %3498 = vmatprep.subr.mxu0 0.0
    %3499 = vmatpush2.msra.mxu0 0.0
    %3500 = vmatprep.subr.mxu0 0.0
    %3501 = vmatpush2.msra.mxu0 0.0
    %3502 = vmatprep.subr.mxu0 0.0
    %3503 = vmatpush2.msra.mxu0 0.0
    %3504 = vmatprep.subr.mxu0 0.0
    %3505 = vmatpush2.msra.mxu0 0.0
    %3506 = vmatprep.subr.mxu0 0.0
    %3507 = vmatpush2.msra.mxu0 0.0
    %3508 = vmatprep.subr.mxu0 0.0
    %3509 = vmatpush2.msra.mxu0 0.0
    %3510 = vmatprep.subr.mxu0 0.0
    %3511 = vmatpush2.msra.mxu0 0.0
    %3512 = vmatprep.subr.mxu0 0.0
    %3513 = vmatpush2.msra.mxu0 0.0
    %3514 = vmatprep.subr.mxu0 0.0
    %3515 = vmatpush2.msra.mxu0 0.0
    %3516 = vmatprep.mubr.f32.mxu0 0.0
    %3517 = vmatmul.mubr.f32.gmra.mxu0 %v3450
    %v3518 = vpop.f32.mrf.mxu0
    %v3519 = vadd.f32 %v3447, %v3518
    %v3520 = vpop.f32.mrf.mxu0
    %3521 = vdwg.mxu0
    %v3523 = vlaneseq
    %v3524 = vshrl.u32 %v3523, 7
    %v3525 = vsub.s32 0, %v3524
    %v3526 = vrot.slane %v3033, %v3525
    %v3529 = vsel %vm622, %v3519, 0
    %3531 = vmatprep.subr.mxu0 0.0
    %3532 = vmatpush1.msra.mxu0 0.0
    %3533 = vmatprep.subr.mxu0 0.0
    %3534 = vmatpush1.msra.mxu0 0.0
    %3535 = vmatprep.subr.mxu0 0.0
    %3536 = vmatpush1.msra.mxu0 0.0
    %3537 = vmatprep.subr.mxu0 0.0
    %3538 = vmatpush1.msra.mxu0 0.0
    %3539 = vmatprep.subr.mxu0 0.0
    %3540 = vmatpush1.msra.mxu0 0.0
    %3541 = vmatprep.subr.mxu0 0.0
    %3542 = vmatpush1.msra.mxu0 0.0
    %3543 = vmatprep.subr.mxu0 0.0
    %3544 = vmatpush1.msra.mxu0 0.0
    %3545 = vmatprep.subr.mxu0 0.0
    %3546 = vmatpush1.msra.mxu0 0.0
    %3547 = vmatprep.subr.mxu0 0.0
    %3548 = vmatpush1.msra.mxu0 0.0
    %3549 = vmatprep.subr.mxu0 0.0
    %3550 = vmatpush1.msra.mxu0 0.0
    %3551 = vmatprep.subr.mxu0 0.0
    %3552 = vmatpush1.msra.mxu0 0.0
    %3553 = vmatprep.subr.mxu0 0.0
    %3554 = vmatpush1.msra.mxu0 0.0
    %3555 = vmatprep.subr.mxu0 0.0
    %3556 = vmatpush1.msra.mxu0 %v3032
    %3557 = vmatprep.subr.mxu0 0.0
    %3558 = vmatpush1.msra.mxu0 %v3031
    %3559 = vmatprep.subr.mxu0 0.0
    %3560 = vmatpush1.msra.mxu0 %v3030
    %3561 = vmatprep.subr.mxu0 0.0
    %3562 = vmatpush1.msra.mxu0 %v3029
    %3563 = vmatprep.subr.mxu0 0.0
    %3564 = vmatpush2.msra.mxu0 0.0
    %3565 = vmatprep.subr.mxu0 0.0
    %3566 = vmatpush2.msra.mxu0 0.0
    %3567 = vmatprep.subr.mxu0 0.0
    %3568 = vmatpush2.msra.mxu0 0.0
    %3569 = vmatprep.subr.mxu0 0.0
    %3570 = vmatpush2.msra.mxu0 0.0
    %3571 = vmatprep.subr.mxu0 0.0
    %3572 = vmatpush2.msra.mxu0 0.0
    %3573 = vmatprep.subr.mxu0 0.0
    %3574 = vmatpush2.msra.mxu0 0.0
    %3575 = vmatprep.subr.mxu0 0.0
    %3576 = vmatpush2.msra.mxu0 0.0
    %3577 = vmatprep.subr.mxu0 0.0
    %3578 = vmatpush2.msra.mxu0 0.0
    %3579 = vmatprep.subr.mxu0 0.0
    %3580 = vmatpush2.msra.mxu0 0.0
    %3581 = vmatprep.subr.mxu0 0.0
    %3582 = vmatpush2.msra.mxu0 0.0
    %3583 = vmatprep.subr.mxu0 0.0
    %3584 = vmatpush2.msra.mxu0 0.0
    %3585 = vmatprep.subr.mxu0 0.0
    %3586 = vmatpush2.msra.mxu0 0.0
    %3587 = vmatprep.subr.mxu0 0.0
    %3588 = vmatpush2.msra.mxu0 0.0
    %3589 = vmatprep.subr.mxu0 0.0
    %3590 = vmatpush2.msra.mxu0 0.0
    %3591 = vmatprep.subr.mxu0 0.0
    %3592 = vmatpush2.msra.mxu0 0.0
    %3593 = vmatprep.subr.mxu0 0.0
    %3594 = vmatpush2.msra.mxu0 0.0
    %3595 = vmatprep.mubr.f32.mxu0 0.0
    %3596 = vmatmul.mubr.f32.gmra.mxu0 %v3529
    %v3597 = vpop.f32.mrf.mxu0
    %v3598 = vadd.f32 %v3526, %v3597
    %v3599 = vpop.f32.mrf.mxu0
    %3600 = vdwg.mxu0
    %3602 = vrot.lane.b32.xlu0 %v3011, 32
    %v3603 = vpop.permute.xlu0 %3602
    %v3604 = vsel %vm622, %v3603, 0
    %3606 = vmatprep.subr.mxu0 0.0
    %3607 = vmatpush1.msra.mxu0 0.0
    %3608 = vmatprep.subr.mxu0 0.0
    %3609 = vmatpush1.msra.mxu0 0.0
    %3610 = vmatprep.subr.mxu0 0.0
    %3611 = vmatpush1.msra.mxu0 0.0
    %3612 = vmatprep.subr.mxu0 0.0
    %3613 = vmatpush1.msra.mxu0 0.0
    %3614 = vmatprep.subr.mxu0 0.0
    %3615 = vmatpush1.msra.mxu0 0.0
    %3616 = vmatprep.subr.mxu0 0.0
    %3617 = vmatpush1.msra.mxu0 0.0
    %3618 = vmatprep.subr.mxu0 0.0
    %3619 = vmatpush1.msra.mxu0 0.0
    %3620 = vmatprep.subr.mxu0 0.0
    %3621 = vmatpush1.msra.mxu0 0.0
    %3622 = vmatprep.subr.mxu0 0.0
    %3623 = vmatpush1.msra.mxu0 0.0
    %3624 = vmatprep.subr.mxu0 0.0
    %3625 = vmatpush1.msra.mxu0 0.0
    %3626 = vmatprep.subr.mxu0 0.0
    %3627 = vmatpush1.msra.mxu0 0.0
    %3628 = vmatprep.subr.mxu0 0.0
    %3629 = vmatpush1.msra.mxu0 0.0
    %3630 = vmatprep.subr.mxu0 %v3019
    %3631 = vmatpush1.msra.mxu0 %v3018
    %3632 = vmatprep.subr.mxu0 %v3017
    %3633 = vmatpush1.msra.mxu0 %v3016
    %3634 = vmatprep.subr.mxu0 %v3015
    %3635 = vmatpush1.msra.mxu0 %v3014
    %3636 = vmatprep.subr.mxu0 %v3013
    %3637 = vmatpush1.msra.mxu0 %v3012
    %3638 = vmatprep.subr.mxu0 0.0
    %3639 = vmatpush2.msra.mxu0 0.0
    %3640 = vmatprep.subr.mxu0 0.0
    %3641 = vmatpush2.msra.mxu0 0.0
    %3642 = vmatprep.subr.mxu0 0.0
    %3643 = vmatpush2.msra.mxu0 0.0
    %3644 = vmatprep.subr.mxu0 0.0
    %3645 = vmatpush2.msra.mxu0 0.0
    %3646 = vmatprep.subr.mxu0 0.0
    %3647 = vmatpush2.msra.mxu0 0.0
    %3648 = vmatprep.subr.mxu0 0.0
    %3649 = vmatpush2.msra.mxu0 0.0
    %3650 = vmatprep.subr.mxu0 0.0
    %3651 = vmatpush2.msra.mxu0 0.0
    %3652 = vmatprep.subr.mxu0 0.0
    %3653 = vmatpush2.msra.mxu0 0.0
    %3654 = vmatprep.subr.mxu0 0.0
    %3655 = vmatpush2.msra.mxu0 0.0
    %3656 = vmatprep.subr.mxu0 0.0
    %3657 = vmatpush2.msra.mxu0 0.0
    %3658 = vmatprep.subr.mxu0 0.0
    %3659 = vmatpush2.msra.mxu0 0.0
    %3660 = vmatprep.subr.mxu0 0.0
    %3661 = vmatpush2.msra.mxu0 0.0
    %3662 = vmatprep.subr.mxu0 0.0
    %3663 = vmatpush2.msra.mxu0 0.0
    %3664 = vmatprep.subr.mxu0 0.0
    %3665 = vmatpush2.msra.mxu0 0.0
    %3666 = vmatprep.subr.mxu0 0.0
    %3667 = vmatpush2.msra.mxu0 0.0
    %3668 = vmatprep.subr.mxu0 0.0
    %3669 = vmatpush2.msra.mxu0 0.0
    %3670 = vmatprep.mubr.f32.mxu0 0.0
    %3671 = vmatmul.mubr.f32.gmra.mxu0 %v3604
    %v3672 = vpop.f32.mrf.mxu0
    %v3673 = vadd.f32 0.0, %v3672
    %v3674 = vpop.f32.mrf.mxu0
    %v3675 = vadd.f32 0.0, %v3674
    %3676 = vdwg.mxu0
    %3678 = vrot.lane.b32.xlu0 %v3673, 32
    %v3679 = vpop.permute.xlu0 %3678
    %3680 = vrot.lane.b32.xlu0 %v3673, 96
    %v3681 = vpop.permute.xlu0 %3680
    %v3682 = vsel %vm622, %v3679, 0
    %v3684 = vsel %vm622, %v3681, 0
    %3686 = vmatprep.subr.mxu0 0.0
    %3687 = vmatpush1.xpose.msra.mxu0 0.0
    %3688 = vmatprep.subr.mxu0 0.0
    %3689 = vmatpush1.xpose.msra.mxu0 0.0
    %3690 = vmatprep.subr.mxu0 0.0
    %3691 = vmatpush1.xpose.msra.mxu0 0.0
    %3692 = vmatprep.subr.mxu0 0.0
    %3693 = vmatpush1.xpose.msra.mxu0 0.0
    %3694 = vmatprep.subr.mxu0 0.0
    %3695 = vmatpush1.xpose.msra.mxu0 0.0
    %3696 = vmatprep.subr.mxu0 0.0
    %3697 = vmatpush1.xpose.msra.mxu0 0.0
    %3698 = vmatprep.subr.mxu0 0.0
    %3699 = vmatpush1.xpose.msra.mxu0 0.0
    %3700 = vmatprep.subr.mxu0 0.0
    %3701 = vmatpush1.xpose.msra.mxu0 0.0
    %3702 = vmatprep.subr.mxu0 0.0
    %3703 = vmatpush1.xpose.msra.mxu0 0.0
    %3704 = vmatprep.subr.mxu0 0.0
    %3705 = vmatpush1.xpose.msra.mxu0 0.0
    %3706 = vmatprep.subr.mxu0 0.0
    %3707 = vmatpush1.xpose.msra.mxu0 0.0
    %3708 = vmatprep.subr.mxu0 0.0
    %3709 = vmatpush1.xpose.msra.mxu0 0.0
    %3710 = vmatprep.subr.mxu0 0.0
    %3711 = vmatpush1.xpose.msra.mxu0 0.0
    %3712 = vmatprep.subr.mxu0 0.0
    %3713 = vmatpush1.xpose.msra.mxu0 0.0
    %3714 = vmatprep.subr.mxu0 0.0
    %3715 = vmatpush1.xpose.msra.mxu0 0.0
    %3716 = vmatprep.subr.mxu0 0.0
    %3717 = vmatpush1.xpose.msra.mxu0 %v3684
    %3718 = vmatprep.subr.mxu0 0.0
    %3719 = vmatpush2.xpose.msra.mxu0 0.0
    %3720 = vmatprep.subr.mxu0 0.0
    %3721 = vmatpush2.xpose.msra.mxu0 0.0
    %3722 = vmatprep.subr.mxu0 0.0
    %3723 = vmatpush2.xpose.msra.mxu0 0.0
    %3724 = vmatprep.subr.mxu0 0.0
    %3725 = vmatpush2.xpose.msra.mxu0 0.0
    %3726 = vmatprep.subr.mxu0 0.0
    %3727 = vmatpush2.xpose.msra.mxu0 0.0
    %3728 = vmatprep.subr.mxu0 0.0
    %3729 = vmatpush2.xpose.msra.mxu0 0.0
    %3730 = vmatprep.subr.mxu0 0.0
    %3731 = vmatpush2.xpose.msra.mxu0 0.0
    %3732 = vmatprep.subr.mxu0 0.0
    %3733 = vmatpush2.xpose.msra.mxu0 0.0
    %3734 = vmatprep.subr.mxu0 0.0
    %3735 = vmatpush2.xpose.msra.mxu0 0.0
    %3736 = vmatprep.subr.mxu0 0.0
    %3737 = vmatpush2.xpose.msra.mxu0 0.0
    %3738 = vmatprep.subr.mxu0 0.0
    %3739 = vmatpush2.xpose.msra.mxu0 0.0
    %3740 = vmatprep.subr.mxu0 0.0
    %3741 = vmatpush2.xpose.msra.mxu0 0.0
    %3742 = vmatprep.subr.mxu0 0.0
    %3743 = vmatpush2.xpose.msra.mxu0 0.0
    %3744 = vmatprep.subr.mxu0 0.0
    %3745 = vmatpush2.xpose.msra.mxu0 0.0
    %3746 = vmatprep.subr.mxu0 0.0
    %3747 = vmatpush2.xpose.msra.mxu0 0.0
    %3748 = vmatprep.subr.mxu0 0.0
    %3749 = vmatpush2.xpose.msra.mxu0 0.0
    %3750 = vmatprep.mubr.f32.mxu0 0.0
    %3751 = vmatmul.mubr.f32.gmra.mxu0 %v3682
    %v3752 = vpop.f32.mrf.mxu0
    %v3753 = vadd.f32 0.0, %v3752
    %v3754 = vpop.f32.mrf.mxu0
    %3755 = vdwg.mxu0
    %v3756 = vsel %vm360, %v3753, -inf
    %3757 = vmax.xlane.f32.xlu0 %v3756
    %v3758 = vpop.xlane.xlu0 %3757
    %v3759 = vsub.f32 %v3753, %v3758
    %v3760 = vmul.f32 %v3759, 1.442695
    %v3761 = vpow.pop %v3760
    %v3762 = vsel %vm360, %v3761, 0.0
    %3763 = vadd.xlane.f32.xlu0 %v3762
    %v3764 = vpop.xlane.xlu0 %3763
    %v3765 = vrcp.pop %v3764
    %v3766 = vmul.f32 %v3761, %v3765
    %v3767 = vsel %vm622, %v3673, 0
    %v3770 = vsel %vm622, %v3675, 0
    %3772 = vmatprep.subr.mxu0 0.0
    %3773 = vmatpush1.xpose.msra.mxu0 0.0
    %3774 = vmatprep.subr.mxu0 0.0
    %3775 = vmatpush1.xpose.msra.mxu0 0.0
    %3776 = vmatprep.subr.mxu0 0.0
    %3777 = vmatpush1.xpose.msra.mxu0 0.0
    %3778 = vmatprep.subr.mxu0 0.0
    %3779 = vmatpush1.xpose.msra.mxu0 0.0
    %3780 = vmatprep.subr.mxu0 0.0
    %3781 = vmatpush1.xpose.msra.mxu0 0.0
    %3782 = vmatprep.subr.mxu0 0.0
    %3783 = vmatpush1.xpose.msra.mxu0 0.0
    %3784 = vmatprep.subr.mxu0 0.0
    %3785 = vmatpush1.xpose.msra.mxu0 0.0
    %3786 = vmatprep.subr.mxu0 0.0
    %3787 = vmatpush1.xpose.msra.mxu0 0.0
    %3788 = vmatprep.subr.mxu0 0.0
    %3789 = vmatpush1.xpose.msra.mxu0 0.0
    %3790 = vmatprep.subr.mxu0 0.0
    %3791 = vmatpush1.xpose.msra.mxu0 0.0
    %3792 = vmatprep.subr.mxu0 0.0
    %3793 = vmatpush1.xpose.msra.mxu0 0.0
    %3794 = vmatprep.subr.mxu0 0.0
    %3795 = vmatpush1.xpose.msra.mxu0 0.0
    %3796 = vmatprep.subr.mxu0 0.0
    %3797 = vmatpush1.xpose.msra.mxu0 0.0
    %3798 = vmatprep.subr.mxu0 0.0
    %3799 = vmatpush1.xpose.msra.mxu0 0.0
    %3800 = vmatprep.subr.mxu0 0.0
    %3801 = vmatpush1.xpose.msra.mxu0 0.0
    %3802 = vmatprep.subr.mxu0 0.0
    %3803 = vmatpush1.xpose.msra.mxu0 %v3770
    %3804 = vmatprep.subr.mxu0 0.0
    %3805 = vmatpush2.xpose.msra.mxu0 0.0
    %3806 = vmatprep.subr.mxu0 0.0
    %3807 = vmatpush2.xpose.msra.mxu0 0.0
    %3808 = vmatprep.subr.mxu0 0.0
    %3809 = vmatpush2.xpose.msra.mxu0 0.0
    %3810 = vmatprep.subr.mxu0 0.0
    %3811 = vmatpush2.xpose.msra.mxu0 0.0
    %3812 = vmatprep.subr.mxu0 0.0
    %3813 = vmatpush2.xpose.msra.mxu0 0.0
    %3814 = vmatprep.subr.mxu0 0.0
    %3815 = vmatpush2.xpose.msra.mxu0 0.0
    %3816 = vmatprep.subr.mxu0 0.0
    %3817 = vmatpush2.xpose.msra.mxu0 0.0
    %3818 = vmatprep.subr.mxu0 0.0
    %3819 = vmatpush2.xpose.msra.mxu0 0.0
    %3820 = vmatprep.subr.mxu0 0.0
    %3821 = vmatpush2.xpose.msra.mxu0 0.0
    %3822 = vmatprep.subr.mxu0 0.0
    %3823 = vmatpush2.xpose.msra.mxu0 0.0
    %3824 = vmatprep.subr.mxu0 0.0
    %3825 = vmatpush2.xpose.msra.mxu0 0.0
    %3826 = vmatprep.subr.mxu0 0.0
    %3827 = vmatpush2.xpose.msra.mxu0 0.0
    %3828 = vmatprep.subr.mxu0 0.0
    %3829 = vmatpush2.xpose.msra.mxu0 0.0
    %3830 = vmatprep.subr.mxu0 0.0
    %3831 = vmatpush2.xpose.msra.mxu0 0.0
    %3832 = vmatprep.subr.mxu0 0.0
    %3833 = vmatpush2.xpose.msra.mxu0 0.0
    %3834 = vmatprep.subr.mxu0 0.0
    %3835 = vmatpush2.xpose.msra.mxu0 0.0
    %3836 = vmatprep.mubr.f32.mxu0 0.0
    %3837 = vmatmul.mubr.f32.gmra.mxu0 %v3767
    %v3838 = vpop.f32.mrf.mxu0
    %v3839 = vadd.f32 0.0, %v3838
    %v3840 = vpop.f32.mrf.mxu0
    %3841 = vdwg.mxu0
    %v3842 = vsel %vm360, %v3839, -inf
    %3843 = vmax.xlane.f32.xlu0 %v3842
    %v3844 = vpop.xlane.xlu0 %3843
    %v3845 = vsub.f32 %v3839, %v3844
    %v3846 = vmul.f32 %v3845, 1.442695
    %v3847 = vpow.pop %v3846
    %v3848 = vsel %vm360, %v3847, 0.0
    %3849 = vadd.xlane.f32.xlu0 %v3848
    %v3850 = vpop.xlane.xlu0 %3849
    %v3851 = vrcp.pop %v3850
    %v3852 = vmul.f32 %v3847, %v3851
    %3853 = vrot.lane.b32.xlu0 %v3673, 64
    %v3854 = vpop.permute.xlu0 %3853
    %v3857 = vsel %vm360, %v3766, 0
    %3859 = vmatprep.subr.mxu0 0.0
    %3860 = vmatpush1.msra.mxu0 0.0
    %3861 = vmatprep.subr.mxu0 0.0
    %3862 = vmatpush1.msra.mxu0 0.0
    %3863 = vmatprep.subr.mxu0 0.0
    %3864 = vmatpush1.msra.mxu0 0.0
    %3865 = vmatprep.subr.mxu0 0.0
    %3866 = vmatpush1.msra.mxu0 0.0
    %3867 = vmatprep.subr.mxu0 0.0
    %3868 = vmatpush1.msra.mxu0 0.0
    %3869 = vmatprep.subr.mxu0 0.0
    %3870 = vmatpush1.msra.mxu0 0.0
    %3871 = vmatprep.subr.mxu0 0.0
    %3872 = vmatpush1.msra.mxu0 0.0
    %3873 = vmatprep.subr.mxu0 0.0
    %3874 = vmatpush1.msra.mxu0 0.0
    %3875 = vmatprep.subr.mxu0 0.0
    %3876 = vmatpush1.msra.mxu0 0.0
    %3877 = vmatprep.subr.mxu0 0.0
    %3878 = vmatpush1.msra.mxu0 0.0
    %3879 = vmatprep.subr.mxu0 0.0
    %3880 = vmatpush1.msra.mxu0 0.0
    %3881 = vmatprep.subr.mxu0 0.0
    %3882 = vmatpush1.msra.mxu0 0.0
    %3883 = vmatprep.subr.mxu0 0.0
    %3884 = vmatpush1.msra.mxu0 0.0
    %3885 = vmatprep.subr.mxu0 0.0
    %3886 = vmatpush1.msra.mxu0 0.0
    %3887 = vmatprep.subr.mxu0 0.0
    %3888 = vmatpush1.msra.mxu0 0.0
    %3889 = vmatprep.subr.mxu0 0.0
    %3890 = vmatpush1.msra.mxu0 %v3854
    %3891 = vmatprep.subr.mxu0 0.0
    %3892 = vmatpush2.msra.mxu0 0.0
    %3893 = vmatprep.subr.mxu0 0.0
    %3894 = vmatpush2.msra.mxu0 0.0
    %3895 = vmatprep.subr.mxu0 0.0
    %3896 = vmatpush2.msra.mxu0 0.0
    %3897 = vmatprep.subr.mxu0 0.0
    %3898 = vmatpush2.msra.mxu0 0.0
    %3899 = vmatprep.subr.mxu0 0.0
    %3900 = vmatpush2.msra.mxu0 0.0
    %3901 = vmatprep.subr.mxu0 0.0
    %3902 = vmatpush2.msra.mxu0 0.0
    %3903 = vmatprep.subr.mxu0 0.0
    %3904 = vmatpush2.msra.mxu0 0.0
    %3905 = vmatprep.subr.mxu0 0.0
    %3906 = vmatpush2.msra.mxu0 0.0
    %3907 = vmatprep.subr.mxu0 0.0
    %3908 = vmatpush2.msra.mxu0 0.0
    %3909 = vmatprep.subr.mxu0 0.0
    %3910 = vmatpush2.msra.mxu0 0.0
    %3911 = vmatprep.subr.mxu0 0.0
    %3912 = vmatpush2.msra.mxu0 0.0
    %3913 = vmatprep.subr.mxu0 0.0
    %3914 = vmatpush2.msra.mxu0 0.0
    %3915 = vmatprep.subr.mxu0 0.0
    %3916 = vmatpush2.msra.mxu0 0.0
    %3917 = vmatprep.subr.mxu0 0.0
    %3918 = vmatpush2.msra.mxu0 0.0
    %3919 = vmatprep.subr.mxu0 0.0
    %3920 = vmatpush2.msra.mxu0 0.0
    %3921 = vmatprep.subr.mxu0 0.0
    %3922 = vmatpush2.msra.mxu0 0.0
    %3923 = vmatprep.mubr.f32.mxu0 0.0
    %3924 = vmatmul.mubr.f32.gmra.mxu0 %v3857
    %v3925 = vpop.f32.mrf.mxu0
    %v3926 = vadd.f32 0.0, %v3925
    %v3927 = vpop.f32.mrf.mxu0
    %3928 = vdwg.mxu0
    %3929 = vrot.lane.b32.xlu0 %v3675, 96
    %v3930 = vpop.permute.xlu0 %3929
    %v3933 = vsel %vm360, %v3852, 0
    %3935 = vmatprep.subr.mxu0 0.0
    %3936 = vmatpush1.msra.mxu0 0.0
    %3937 = vmatprep.subr.mxu0 0.0
    %3938 = vmatpush1.msra.mxu0 0.0
    %3939 = vmatprep.subr.mxu0 0.0
    %3940 = vmatpush1.msra.mxu0 0.0
    %3941 = vmatprep.subr.mxu0 0.0
    %3942 = vmatpush1.msra.mxu0 0.0
    %3943 = vmatprep.subr.mxu0 0.0
    %3944 = vmatpush1.msra.mxu0 0.0
    %3945 = vmatprep.subr.mxu0 0.0
    %3946 = vmatpush1.msra.mxu0 0.0
    %3947 = vmatprep.subr.mxu0 0.0
    %3948 = vmatpush1.msra.mxu0 0.0
    %3949 = vmatprep.subr.mxu0 0.0
    %3950 = vmatpush1.msra.mxu0 0.0
    %3951 = vmatprep.subr.mxu0 0.0
    %3952 = vmatpush1.msra.mxu0 0.0
    %3953 = vmatprep.subr.mxu0 0.0
    %3954 = vmatpush1.msra.mxu0 0.0
    %3955 = vmatprep.subr.mxu0 0.0
    %3956 = vmatpush1.msra.mxu0 0.0
    %3957 = vmatprep.subr.mxu0 0.0
    %3958 = vmatpush1.msra.mxu0 0.0
    %3959 = vmatprep.subr.mxu0 0.0
    %3960 = vmatpush1.msra.mxu0 0.0
    %3961 = vmatprep.subr.mxu0 0.0
    %3962 = vmatpush1.msra.mxu0 0.0
    %3963 = vmatprep.subr.mxu0 0.0
    %3964 = vmatpush1.msra.mxu0 0.0
    %3965 = vmatprep.subr.mxu0 0.0
    %3966 = vmatpush1.msra.mxu0 %v3930
    %3967 = vmatprep.subr.mxu0 0.0
    %3968 = vmatpush2.msra.mxu0 0.0
    %3969 = vmatprep.subr.mxu0 0.0
    %3970 = vmatpush2.msra.mxu0 0.0
    %3971 = vmatprep.subr.mxu0 0.0
    %3972 = vmatpush2.msra.mxu0 0.0
    %3973 = vmatprep.subr.mxu0 0.0
    %3974 = vmatpush2.msra.mxu0 0.0
    %3975 = vmatprep.subr.mxu0 0.0
    %3976 = vmatpush2.msra.mxu0 0.0
    %3977 = vmatprep.subr.mxu0 0.0
    %3978 = vmatpush2.msra.mxu0 0.0
    %3979 = vmatprep.subr.mxu0 0.0
    %3980 = vmatpush2.msra.mxu0 0.0
    %3981 = vmatprep.subr.mxu0 0.0
    %3982 = vmatpush2.msra.mxu0 0.0
    %3983 = vmatprep.subr.mxu0 0.0
    %3984 = vmatpush2.msra.mxu0 0.0
    %3985 = vmatprep.subr.mxu0 0.0
    %3986 = vmatpush2.msra.mxu0 0.0
    %3987 = vmatprep.subr.mxu0 0.0
    %3988 = vmatpush2.msra.mxu0 0.0
    %3989 = vmatprep.subr.mxu0 0.0
    %3990 = vmatpush2.msra.mxu0 0.0
    %3991 = vmatprep.subr.mxu0 0.0
    %3992 = vmatpush2.msra.mxu0 0.0
    %3993 = vmatprep.subr.mxu0 0.0
    %3994 = vmatpush2.msra.mxu0 0.0
    %3995 = vmatprep.subr.mxu0 0.0
    %3996 = vmatpush2.msra.mxu0 0.0
    %3997 = vmatprep.subr.mxu0 0.0
    %3998 = vmatpush2.msra.mxu0 0.0
    %3999 = vmatprep.mubr.f32.mxu0 0.0
    %4000 = vmatmul.mubr.f32.gmra.mxu0 %v3933
    %v4001 = vpop.f32.mrf.mxu0
    %v4002 = vadd.f32 0.0, %v4001
    %v4003 = vpop.f32.mrf.mxu0
    %4004 = vdwg.mxu0
    %4006 = vrot.lane.b32.xlu0 %v4002, 32
    %v4007 = vpop.permute.xlu0 %4006
    %v4009 = vsel %vm622, %v3926, %v4007
    %v4011 = vsel %vm1350, %v4009, 0
    %4013 = vmatprep.subr.mxu0 0.0
    %4014 = vmatpush1.msra.mxu0 0.0
    %4015 = vmatprep.subr.mxu0 0.0
    %4016 = vmatpush1.msra.mxu0 0.0
    %4017 = vmatprep.subr.mxu0 0.0
    %4018 = vmatpush1.msra.mxu0 0.0
    %4019 = vmatprep.subr.mxu0 0.0
    %4020 = vmatpush1.msra.mxu0 0.0
    %4021 = vmatprep.subr.mxu0 0.0
    %4022 = vmatpush1.msra.mxu0 0.0
    %4023 = vmatprep.subr.mxu0 0.0
    %4024 = vmatpush1.msra.mxu0 0.0
    %4025 = vmatprep.subr.mxu0 0.0
    %4026 = vmatpush1.msra.mxu0 0.0
    %4027 = vmatprep.subr.mxu0 0.0
    %4028 = vmatpush1.msra.mxu0 0.0
    %4029 = vmatprep.subr.mxu0 0.0
    %4030 = vmatpush1.msra.mxu0 %v3027
    %4031 = vmatprep.subr.mxu0 0.0
    %4032 = vmatpush1.msra.mxu0 %v3026
    %4033 = vmatprep.subr.mxu0 0.0
    %4034 = vmatpush1.msra.mxu0 %v3025
    %4035 = vmatprep.subr.mxu0 0.0
    %4036 = vmatpush1.msra.mxu0 %v3024
    %4037 = vmatprep.subr.mxu0 0.0
    %4038 = vmatpush1.msra.mxu0 %v3023
    %4039 = vmatprep.subr.mxu0 0.0
    %4040 = vmatpush1.msra.mxu0 %v3022
    %4041 = vmatprep.subr.mxu0 0.0
    %4042 = vmatpush1.msra.mxu0 %v3021
    %4043 = vmatprep.subr.mxu0 0.0
    %4044 = vmatpush1.msra.mxu0 %v3020
    %4045 = vmatprep.subr.mxu0 0.0
    %4046 = vmatpush2.msra.mxu0 0.0
    %4047 = vmatprep.subr.mxu0 0.0
    %4048 = vmatpush2.msra.mxu0 0.0
    %4049 = vmatprep.subr.mxu0 0.0
    %4050 = vmatpush2.msra.mxu0 0.0
    %4051 = vmatprep.subr.mxu0 0.0
    %4052 = vmatpush2.msra.mxu0 0.0
    %4053 = vmatprep.subr.mxu0 0.0
    %4054 = vmatpush2.msra.mxu0 0.0
    %4055 = vmatprep.subr.mxu0 0.0
    %4056 = vmatpush2.msra.mxu0 0.0
    %4057 = vmatprep.subr.mxu0 0.0
    %4058 = vmatpush2.msra.mxu0 0.0
    %4059 = vmatprep.subr.mxu0 0.0
    %4060 = vmatpush2.msra.mxu0 0.0
    %4061 = vmatprep.subr.mxu0 0.0
    %4062 = vmatpush2.msra.mxu0 0.0
    %4063 = vmatprep.subr.mxu0 0.0
    %4064 = vmatpush2.msra.mxu0 0.0
    %4065 = vmatprep.subr.mxu0 0.0
    %4066 = vmatpush2.msra.mxu0 0.0
    %4067 = vmatprep.subr.mxu0 0.0
    %4068 = vmatpush2.msra.mxu0 0.0
    %4069 = vmatprep.subr.mxu0 0.0
    %4070 = vmatpush2.msra.mxu0 0.0
    %4071 = vmatprep.subr.mxu0 0.0
    %4072 = vmatpush2.msra.mxu0 0.0
    %4073 = vmatprep.subr.mxu0 0.0
    %4074 = vmatpush2.msra.mxu0 0.0
    %4075 = vmatprep.subr.mxu0 0.0
    %4076 = vmatpush2.msra.mxu0 0.0
    %4077 = vmatprep.mubr.f32.mxu0 0.0
    %4078 = vmatmul.mubr.f32.gmra.mxu0 %v4011
    %v4079 = vpop.f32.mrf.mxu0
    %v4080 = vadd.f32 %v3447, %v4079
    %v4081 = vpop.f32.mrf.mxu0
    %4082 = vdwg.mxu0
    %v4084 = vsel %vm622, %v4080, 0
    %4086 = vmatprep.subr.mxu0 0.0
    %4087 = vmatpush1.msra.mxu0 0.0
    %4088 = vmatprep.subr.mxu0 0.0
    %4089 = vmatpush1.msra.mxu0 0.0
    %4090 = vmatprep.subr.mxu0 0.0
    %4091 = vmatpush1.msra.mxu0 0.0
    %4092 = vmatprep.subr.mxu0 0.0
    %4093 = vmatpush1.msra.mxu0 0.0
    %4094 = vmatprep.subr.mxu0 0.0
    %4095 = vmatpush1.msra.mxu0 0.0
    %4096 = vmatprep.subr.mxu0 0.0
    %4097 = vmatpush1.msra.mxu0 0.0
    %4098 = vmatprep.subr.mxu0 0.0
    %4099 = vmatpush1.msra.mxu0 0.0
    %4100 = vmatprep.subr.mxu0 0.0
    %4101 = vmatpush1.msra.mxu0 0.0
    %4102 = vmatprep.subr.mxu0 0.0
    %4103 = vmatpush1.msra.mxu0 0.0
    %4104 = vmatprep.subr.mxu0 0.0
    %4105 = vmatpush1.msra.mxu0 0.0
    %4106 = vmatprep.subr.mxu0 0.0
    %4107 = vmatpush1.msra.mxu0 0.0
    %4108 = vmatprep.subr.mxu0 0.0
    %4109 = vmatpush1.msra.mxu0 0.0
    %4110 = vmatprep.subr.mxu0 0.0
    %4111 = vmatpush1.msra.mxu0 %v3032
    %4112 = vmatprep.subr.mxu0 0.0
    %4113 = vmatpush1.msra.mxu0 %v3031
    %4114 = vmatprep.subr.mxu0 0.0
    %4115 = vmatpush1.msra.mxu0 %v3030
    %4116 = vmatprep.subr.mxu0 0.0
    %4117 = vmatpush1.msra.mxu0 %v3029
    %4118 = vmatprep.subr.mxu0 0.0
    %4119 = vmatpush2.msra.mxu0 0.0
    %4120 = vmatprep.subr.mxu0 0.0
    %4121 = vmatpush2.msra.mxu0 0.0
    %4122 = vmatprep.subr.mxu0 0.0
    %4123 = vmatpush2.msra.mxu0 0.0
    %4124 = vmatprep.subr.mxu0 0.0
    %4125 = vmatpush2.msra.mxu0 0.0
    %4126 = vmatprep.subr.mxu0 0.0
    %4127 = vmatpush2.msra.mxu0 0.0
    %4128 = vmatprep.subr.mxu0 0.0
    %4129 = vmatpush2.msra.mxu0 0.0
    %4130 = vmatprep.subr.mxu0 0.0
    %4131 = vmatpush2.msra.mxu0 0.0
    %4132 = vmatprep.subr.mxu0 0.0
    %4133 = vmatpush2.msra.mxu0 0.0
    %4134 = vmatprep.subr.mxu0 0.0
    %4135 = vmatpush2.msra.mxu0 0.0
    %4136 = vmatprep.subr.mxu0 0.0
    %4137 = vmatpush2.msra.mxu0 0.0
    %4138 = vmatprep.subr.mxu0 0.0
    %4139 = vmatpush2.msra.mxu0 0.0
    %4140 = vmatprep.subr.mxu0 0.0
    %4141 = vmatpush2.msra.mxu0 0.0
    %4142 = vmatprep.subr.mxu0 0.0
    %4143 = vmatpush2.msra.mxu0 0.0
    %4144 = vmatprep.subr.mxu0 0.0
    %4145 = vmatpush2.msra.mxu0 0.0
    %4146 = vmatprep.subr.mxu0 0.0
    %4147 = vmatpush2.msra.mxu0 0.0
    %4148 = vmatprep.subr.mxu0 0.0
    %4149 = vmatpush2.msra.mxu0 0.0
    %4150 = vmatprep.mubr.f32.mxu0 0.0
    %4151 = vmatmul.mubr.f32.gmra.mxu0 %v4084
    %v4152 = vpop.f32.mrf.mxu0
    %v4153 = vadd.f32 %v3526, %v4152
    %v4154 = vpop.f32.mrf.mxu0
    %4155 = vdwg.mxu0
    %v4156 = vld [vmem:[%s14] sm:$0xff]
    %v4157 = vld [vmem:[%s14 + $0x8] sm:$0xff]
    %v4158 = vld [vmem:[%s14 + $0x10] sm:$0xff]
    %v4159 = vld [vmem:[%s14 + $0x18] sm:$0xff]
    %v4160 = vld [vmem:[%s14 + $0x20] sm:$0xff]
    %v4161 = vld [vmem:[%s14 + $0x28] sm:$0xff]
    %v4162 = vld [vmem:[%s14 + $0x30] sm:$0xff]
    %v4163 = vld [vmem:[%s14 + $0x38] sm:$0xff]
    %v4164 = vld [vmem:[#allocation14] sm:$0xff]
    %v4165 = vld [vmem:[#allocation14 + $0x8] sm:$0xff]
    %v4166 = vld [vmem:[#allocation14 + $0x10] sm:$0xff]
    %v4167 = vld [vmem:[#allocation14 + $0x18] sm:$0xff]
    %v4168 = vld [vmem:[#allocation14 + $0x20] sm:$0xff]
    %v4169 = vld [vmem:[#allocation14 + $0x28] sm:$0xff]
    %v4170 = vld [vmem:[#allocation14 + $0x30] sm:$0xff]
    %v4171 = vld [vmem:[#allocation14 + $0x38] sm:$0xff]
    %v4172 = vld [vmem:[#allocation16] sm:$0x1]
    %v4174 = vrot.slane %v4153, 7
    %v4176 = vsel %vm1348, %v3598, %v4174
    %4177 = vmatprep.subr.mxu0 0.0
    %4178 = vmatpush1.msra.mxu0 0.0
    %4179 = vmatprep.subr.mxu0 0.0
    %4180 = vmatpush1.msra.mxu0 0.0
    %4181 = vmatprep.subr.mxu0 0.0
    %4182 = vmatpush1.msra.mxu0 0.0
    %4183 = vmatprep.subr.mxu0 0.0
    %4184 = vmatpush1.msra.mxu0 0.0
    %4185 = vmatprep.subr.mxu0 0.0
    %4186 = vmatpush1.msra.mxu0 0.0
    %4187 = vmatprep.subr.mxu0 0.0
    %4188 = vmatpush1.msra.mxu0 0.0
    %4189 = vmatprep.subr.mxu0 0.0
    %4190 = vmatpush1.msra.mxu0 0.0
    %4191 = vmatprep.subr.mxu0 0.0
    %4192 = vmatpush1.msra.mxu0 0.0
    %4193 = vmatprep.subr.mxu0 0.0
    %4194 = vmatpush1.msra.mxu0 %v4163
    %4195 = vmatprep.subr.mxu0 0.0
    %4196 = vmatpush1.msra.mxu0 %v4162
    %4197 = vmatprep.subr.mxu0 0.0
    %4198 = vmatpush1.msra.mxu0 %v4161
    %4199 = vmatprep.subr.mxu0 0.0
    %4200 = vmatpush1.msra.mxu0 %v4160
    %4201 = vmatprep.subr.mxu0 0.0
    %4202 = vmatpush1.msra.mxu0 %v4159
    %4203 = vmatprep.subr.mxu0 0.0
    %4204 = vmatpush1.msra.mxu0 %v4158
    %4205 = vmatprep.subr.mxu0 0.0
    %4206 = vmatpush1.msra.mxu0 %v4157
    %4207 = vmatprep.subr.mxu0 0.0
    %4208 = vmatpush1.msra.mxu0 %v4156
    %4209 = vmatprep.subr.mxu0 0.0
    %4210 = vmatpush2.msra.mxu0 0.0
    %4211 = vmatprep.subr.mxu0 0.0
    %4212 = vmatpush2.msra.mxu0 0.0
    %4213 = vmatprep.subr.mxu0 0.0
    %4214 = vmatpush2.msra.mxu0 0.0
    %4215 = vmatprep.subr.mxu0 0.0
    %4216 = vmatpush2.msra.mxu0 0.0
    %4217 = vmatprep.subr.mxu0 0.0
    %4218 = vmatpush2.msra.mxu0 0.0
    %4219 = vmatprep.subr.mxu0 0.0
    %4220 = vmatpush2.msra.mxu0 0.0
    %4221 = vmatprep.subr.mxu0 0.0
    %4222 = vmatpush2.msra.mxu0 0.0
    %4223 = vmatprep.subr.mxu0 0.0
    %4224 = vmatpush2.msra.mxu0 0.0
    %4225 = vmatprep.subr.mxu0 0.0
    %4226 = vmatpush2.msra.mxu0 0.0
    %4227 = vmatprep.subr.mxu0 0.0
    %4228 = vmatpush2.msra.mxu0 0.0
    %4229 = vmatprep.subr.mxu0 0.0
    %4230 = vmatpush2.msra.mxu0 0.0
    %4231 = vmatprep.subr.mxu0 0.0
    %4232 = vmatpush2.msra.mxu0 0.0
    %4233 = vmatprep.subr.mxu0 0.0
    %4234 = vmatpush2.msra.mxu0 0.0
    %4235 = vmatprep.subr.mxu0 0.0
    %4236 = vmatpush2.msra.mxu0 0.0
    %4237 = vmatprep.subr.mxu0 0.0
    %4238 = vmatpush2.msra.mxu0 0.0
    %4239 = vmatprep.subr.mxu0 0.0
    %4240 = vmatpush2.msra.mxu0 0.0
    %4241 = vmatprep.mubr.f32.mxu0 0.0
    %4242 = vmatmul.mubr.f32.gmra.mxu0 %v1352
    %v4243 = vpop.f32.mrf.mxu0
    %v4244 = vadd.f32 0.0, %v4243
    %v4245 = vpop.f32.mrf.mxu0
    %4246 = vdwg.mxu0
    %v4247 = vadd.f32 %v4176, %v4244
    %v4248 = vxor.u32 %v4247, 2147483648
    %v4249 = vmul.f32 %v4248, 1.442695
    %v4250 = vpow.pop %v4249
    %v4251 = vadd.f32 %v4250, 1.0
    %v4252 = vrcp.pop %v4251
    %v4253 = vmul.f32 1.0, %v4252
    %v4254 = vtanh.pop %v4247
    %v4255 = vmul.f32 %v4253, 0.0
    %4257 = vrot.lane.b32.xlu0 %v4254, 64
    %v4258 = vpop.permute.xlu0 %4257
    %v4260 = vmul.f32 %v4253, %v4258
    %4262 = vrot.lane.b32.xlu0 %v4260, 32
    %v4263 = vpop.permute.xlu0 %4262
    %v4265 = vadd.f32 %v4255, %v4263
    %v4266 = vtanh.pop %v4265
    %4268 = vrot.lane.b32.xlu0 %v4266, 64
    %v4269 = vpop.permute.xlu0 %4268
    %v4271 = vmul.f32 %v4253, %v4269
    %4273 = vrot.lane.b32.xlu0 %v4271, 32
    %v4274 = vpop.permute.xlu0 %4273
    %v4276 = vsel %vm622, %v4274, 0.0
    %v4278 = vlaneseq
    %v4279 = vshrl.u32 %v4278, 7
    %v4280 = vsub.s32 0, %v4279
    %v4281 = vrot.slane %v4172, %v4280
    %v4284 = vsel %vm1350, %v4276, 0
    %4286 = vmatprep.subr.mxu0 0.0
    %4287 = vmatpush1.msra.mxu0 0.0
    %4288 = vmatprep.subr.mxu0 0.0
    %4289 = vmatpush1.msra.mxu0 0.0
    %4290 = vmatprep.subr.mxu0 0.0
    %4291 = vmatpush1.msra.mxu0 0.0
    %4292 = vmatprep.subr.mxu0 0.0
    %4293 = vmatpush1.msra.mxu0 0.0
    %4294 = vmatprep.subr.mxu0 0.0
    %4295 = vmatpush1.msra.mxu0 0.0
    %4296 = vmatprep.subr.mxu0 0.0
    %4297 = vmatpush1.msra.mxu0 0.0
    %4298 = vmatprep.subr.mxu0 0.0
    %4299 = vmatpush1.msra.mxu0 0.0
    %4300 = vmatprep.subr.mxu0 0.0
    %4301 = vmatpush1.msra.mxu0 0.0
    %4302 = vmatprep.subr.mxu0 0.0
    %4303 = vmatpush1.msra.mxu0 %v4171
    %4304 = vmatprep.subr.mxu0 0.0
    %4305 = vmatpush1.msra.mxu0 %v4170
    %4306 = vmatprep.subr.mxu0 0.0
    %4307 = vmatpush1.msra.mxu0 %v4169
    %4308 = vmatprep.subr.mxu0 0.0
    %4309 = vmatpush1.msra.mxu0 %v4168
    %4310 = vmatprep.subr.mxu0 0.0
    %4311 = vmatpush1.msra.mxu0 %v4167
    %4312 = vmatprep.subr.mxu0 0.0
    %4313 = vmatpush1.msra.mxu0 %v4166
    %4314 = vmatprep.subr.mxu0 0.0
    %4315 = vmatpush1.msra.mxu0 %v4165
    %4316 = vmatprep.subr.mxu0 0.0
    %4317 = vmatpush1.msra.mxu0 %v4164
    %4318 = vmatprep.subr.mxu0 0.0
    %4319 = vmatpush2.msra.mxu0 0.0
    %4320 = vmatprep.subr.mxu0 0.0
    %4321 = vmatpush2.msra.mxu0 0.0
    %4322 = vmatprep.subr.mxu0 0.0
    %4323 = vmatpush2.msra.mxu0 0.0
    %4324 = vmatprep.subr.mxu0 0.0
    %4325 = vmatpush2.msra.mxu0 0.0
    %4326 = vmatprep.subr.mxu0 0.0
    %4327 = vmatpush2.msra.mxu0 0.0
    %4328 = vmatprep.subr.mxu0 0.0
    %4329 = vmatpush2.msra.mxu0 0.0
    %4330 = vmatprep.subr.mxu0 0.0
    %4331 = vmatpush2.msra.mxu0 0.0
    %4332 = vmatprep.subr.mxu0 0.0
    %4333 = vmatpush2.msra.mxu0 0.0
    %4334 = vmatprep.subr.mxu0 0.0
    %4335 = vmatpush2.msra.mxu0 0.0
    %4336 = vmatprep.subr.mxu0 0.0
    %4337 = vmatpush2.msra.mxu0 0.0
    %4338 = vmatprep.subr.mxu0 0.0
    %4339 = vmatpush2.msra.mxu0 0.0
    %4340 = vmatprep.subr.mxu0 0.0
    %4341 = vmatpush2.msra.mxu0 0.0
    %4342 = vmatprep.subr.mxu0 0.0
    %4343 = vmatpush2.msra.mxu0 0.0
    %4344 = vmatprep.subr.mxu0 0.0
    %4345 = vmatpush2.msra.mxu0 0.0
    %4346 = vmatprep.subr.mxu0 0.0
    %4347 = vmatpush2.msra.mxu0 0.0
    %4348 = vmatprep.subr.mxu0 0.0
    %4349 = vmatpush2.msra.mxu0 0.0
    %4350 = vmatprep.mubr.f32.mxu0 0.0
    %4351 = vmatmul.mubr.f32.gmra.mxu0 %v4284
    %v4352 = vpop.f32.mrf.mxu0
    %v4353 = vadd.f32 %v4281, %v4352
    %v4354 = vpop.f32.mrf.mxu0
    %4355 = vdwg.mxu0
    %v4356 = vxor.u32 %v4353, 2147483648
    %v4357 = vmul.f32 %v4356, 1.442695
    %v4358 = vpow.pop %v4357
    %v4359 = vadd.f32 %v4358, 1.0
    %v4360 = vrcp.pop %v4359
    %v4361 = vmul.f32 1.0, %v4360
    %v4362 = vtanh.pop %v4353
    %v4363 = vmul.f32 %v4361, 0.0
    %4365 = vrot.lane.b32.xlu0 %v4362, 64
    %v4366 = vpop.permute.xlu0 %4365
    %v4368 = vmul.f32 %v4361, %v4366
    %4370 = vrot.lane.b32.xlu0 %v4368, 32
    %v4371 = vpop.permute.xlu0 %4370
    %v4373 = vadd.f32 %v4363, %v4371
    %v4374 = vtanh.pop %v4373
    %4376 = vrot.lane.b32.xlu0 %v4374, 64
    %v4377 = vpop.permute.xlu0 %4376
    %v4379 = vmul.f32 %v4361, %v4377
    %v4381 = vrot.slane %v3598, 1
    %v4383 = vsel %vm1348, %v4381, %v4153
    %4385 = vrot.lane.b32.xlu0 %v4379, 32
    %v4386 = vpop.permute.xlu0 %4385
    %4388 = vrot.lane.b32.xlu0 %v4271, 64
    %v4389 = vpop.permute.xlu0 %4388
    %v4391 = vsel %vm622, %v4386, %v4389
    %v4393 = vsel %vm1350, %v4391, 0
    %4395 = vmatprep.subr.mxu0 0.0
    %4396 = vmatpush1.msra.mxu0 0.0
    %4397 = vmatprep.subr.mxu0 0.0
    %4398 = vmatpush1.msra.mxu0 0.0
    %4399 = vmatprep.subr.mxu0 0.0
    %4400 = vmatpush1.msra.mxu0 0.0
    %4401 = vmatprep.subr.mxu0 0.0
    %4402 = vmatpush1.msra.mxu0 0.0
    %4403 = vmatprep.subr.mxu0 0.0
    %4404 = vmatpush1.msra.mxu0 0.0
    %4405 = vmatprep.subr.mxu0 0.0
    %4406 = vmatpush1.msra.mxu0 0.0
    %4407 = vmatprep.subr.mxu0 0.0
    %4408 = vmatpush1.msra.mxu0 0.0
    %4409 = vmatprep.subr.mxu0 0.0
    %4410 = vmatpush1.msra.mxu0 0.0
    %4411 = vmatprep.subr.mxu0 0.0
    %4412 = vmatpush1.msra.mxu0 %v4163
    %4413 = vmatprep.subr.mxu0 0.0
    %4414 = vmatpush1.msra.mxu0 %v4162
    %4415 = vmatprep.subr.mxu0 0.0
    %4416 = vmatpush1.msra.mxu0 %v4161
    %4417 = vmatprep.subr.mxu0 0.0
    %4418 = vmatpush1.msra.mxu0 %v4160
    %4419 = vmatprep.subr.mxu0 0.0
    %4420 = vmatpush1.msra.mxu0 %v4159
    %4421 = vmatprep.subr.mxu0 0.0
    %4422 = vmatpush1.msra.mxu0 %v4158
    %4423 = vmatprep.subr.mxu0 0.0
    %4424 = vmatpush1.msra.mxu0 %v4157
    %4425 = vmatprep.subr.mxu0 0.0
    %4426 = vmatpush1.msra.mxu0 %v4156
    %4427 = vmatprep.subr.mxu0 0.0
    %4428 = vmatpush2.msra.mxu0 0.0
    %4429 = vmatprep.subr.mxu0 0.0
    %4430 = vmatpush2.msra.mxu0 0.0
    %4431 = vmatprep.subr.mxu0 0.0
    %4432 = vmatpush2.msra.mxu0 0.0
    %4433 = vmatprep.subr.mxu0 0.0
    %4434 = vmatpush2.msra.mxu0 0.0
    %4435 = vmatprep.subr.mxu0 0.0
    %4436 = vmatpush2.msra.mxu0 0.0
    %4437 = vmatprep.subr.mxu0 0.0
    %4438 = vmatpush2.msra.mxu0 0.0
    %4439 = vmatprep.subr.mxu0 0.0
    %4440 = vmatpush2.msra.mxu0 0.0
    %4441 = vmatprep.subr.mxu0 0.0
    %4442 = vmatpush2.msra.mxu0 0.0
    %4443 = vmatprep.subr.mxu0 0.0
    %4444 = vmatpush2.msra.mxu0 0.0
    %4445 = vmatprep.subr.mxu0 0.0
    %4446 = vmatpush2.msra.mxu0 0.0
    %4447 = vmatprep.subr.mxu0 0.0
    %4448 = vmatpush2.msra.mxu0 0.0
    %4449 = vmatprep.subr.mxu0 0.0
    %4450 = vmatpush2.msra.mxu0 0.0
    %4451 = vmatprep.subr.mxu0 0.0
    %4452 = vmatpush2.msra.mxu0 0.0
    %4453 = vmatprep.subr.mxu0 0.0
    %4454 = vmatpush2.msra.mxu0 0.0
    %4455 = vmatprep.subr.mxu0 0.0
    %4456 = vmatpush2.msra.mxu0 0.0
    %4457 = vmatprep.subr.mxu0 0.0
    %4458 = vmatpush2.msra.mxu0 0.0
    %4459 = vmatprep.mubr.f32.mxu0 0.0
    %4460 = vmatmul.mubr.f32.gmra.mxu0 %v4393
    %v4461 = vpop.f32.mrf.mxu0
    %v4462 = vadd.f32 0.0, %v4461
    %v4463 = vpop.f32.mrf.mxu0
    %4464 = vdwg.mxu0
    %v4465 = vadd.f32 %v4383, %v4462
    %v4466 = vxor.u32 %v4465, 2147483648
    %v4467 = vmul.f32 %v4466, 1.442695
    %v4468 = vpow.pop %v4467
    %v4469 = vadd.f32 %v4468, 1.0
    %v4470 = vrcp.pop %v4469
    %v4471 = vmul.f32 1.0, %v4470
    %v4472 = vtanh.pop %v4465
    %v4473 = vmul.f32 %v4471, %v4265
    %4475 = vrot.lane.b32.xlu0 %v4472, 64
    %v4476 = vpop.permute.xlu0 %4475
    %v4478 = vmul.f32 %v4471, %v4476
    %4480 = vrot.lane.b32.xlu0 %v4478, 32
    %v4481 = vpop.permute.xlu0 %4480
    %v4483 = vadd.f32 %v4473, %v4481
    %v4484 = vtanh.pop %v4483
    %4486 = vrot.lane.b32.xlu0 %v4484, 64
    %v4487 = vpop.permute.xlu0 %4486
    %v4489 = vmul.f32 %v4471, %v4487
    %4491 = vrot.lane.b32.xlu0 %v4489, 32
    %v4492 = vpop.permute.xlu0 %4491
    %4494 = vrot.lane.b32.xlu0 %v4379, 64
    %v4495 = vpop.permute.xlu0 %4494
    %v4497 = vsel %vm622, %v4492, %v4495
    %v4499 = vsel %vm1350, %v4497, 0
    %4501 = vmatprep.subr.mxu0 0.0
    %4502 = vmatpush1.msra.mxu0 0.0
    %4503 = vmatprep.subr.mxu0 0.0
    %4504 = vmatpush1.msra.mxu0 0.0
    %4505 = vmatprep.subr.mxu0 0.0
    %4506 = vmatpush1.msra.mxu0 0.0
    %4507 = vmatprep.subr.mxu0 0.0
    %4508 = vmatpush1.msra.mxu0 0.0
    %4509 = vmatprep.subr.mxu0 0.0
    %4510 = vmatpush1.msra.mxu0 0.0
    %4511 = vmatprep.subr.mxu0 0.0
    %4512 = vmatpush1.msra.mxu0 0.0
    %4513 = vmatprep.subr.mxu0 0.0
    %4514 = vmatpush1.msra.mxu0 0.0
    %4515 = vmatprep.subr.mxu0 0.0
    %4516 = vmatpush1.msra.mxu0 0.0
    %4517 = vmatprep.subr.mxu0 0.0
    %4518 = vmatpush1.msra.mxu0 %v4171
    %4519 = vmatprep.subr.mxu0 0.0
    %4520 = vmatpush1.msra.mxu0 %v4170
    %4521 = vmatprep.subr.mxu0 0.0
    %4522 = vmatpush1.msra.mxu0 %v4169
    %4523 = vmatprep.subr.mxu0 0.0
    %4524 = vmatpush1.msra.mxu0 %v4168
    %4525 = vmatprep.subr.mxu0 0.0
    %4526 = vmatpush1.msra.mxu0 %v4167
    %4527 = vmatprep.subr.mxu0 0.0
    %4528 = vmatpush1.msra.mxu0 %v4166
    %4529 = vmatprep.subr.mxu0 0.0
    %4530 = vmatpush1.msra.mxu0 %v4165
    %4531 = vmatprep.subr.mxu0 0.0
    %4532 = vmatpush1.msra.mxu0 %v4164
    %4533 = vmatprep.subr.mxu0 0.0
    %4534 = vmatpush2.msra.mxu0 0.0
    %4535 = vmatprep.subr.mxu0 0.0
    %4536 = vmatpush2.msra.mxu0 0.0
    %4537 = vmatprep.subr.mxu0 0.0
    %4538 = vmatpush2.msra.mxu0 0.0
    %4539 = vmatprep.subr.mxu0 0.0
    %4540 = vmatpush2.msra.mxu0 0.0
    %4541 = vmatprep.subr.mxu0 0.0
    %4542 = vmatpush2.msra.mxu0 0.0
    %4543 = vmatprep.subr.mxu0 0.0
    %4544 = vmatpush2.msra.mxu0 0.0
    %4545 = vmatprep.subr.mxu0 0.0
    %4546 = vmatpush2.msra.mxu0 0.0
    %4547 = vmatprep.subr.mxu0 0.0
    %4548 = vmatpush2.msra.mxu0 0.0
    %4549 = vmatprep.subr.mxu0 0.0
    %4550 = vmatpush2.msra.mxu0 0.0
    %4551 = vmatprep.subr.mxu0 0.0
    %4552 = vmatpush2.msra.mxu0 0.0
    %4553 = vmatprep.subr.mxu0 0.0
    %4554 = vmatpush2.msra.mxu0 0.0
    %4555 = vmatprep.subr.mxu0 0.0
    %4556 = vmatpush2.msra.mxu0 0.0
    %4557 = vmatprep.subr.mxu0 0.0
    %4558 = vmatpush2.msra.mxu0 0.0
    %4559 = vmatprep.subr.mxu0 0.0
    %4560 = vmatpush2.msra.mxu0 0.0
    %4561 = vmatprep.subr.mxu0 0.0
    %4562 = vmatpush2.msra.mxu0 0.0
    %4563 = vmatprep.subr.mxu0 0.0
    %4564 = vmatpush2.msra.mxu0 0.0
    %4565 = vmatprep.mubr.f32.mxu0 0.0
    %4566 = vmatmul.mubr.f32.gmra.mxu0 %v4499
    %v4567 = vpop.f32.mrf.mxu0
    %v4568 = vadd.f32 %v4281, %v4567
    %v4569 = vpop.f32.mrf.mxu0
    %4570 = vdwg.mxu0
    %v4571 = vxor.u32 %v4568, 2147483648
    %v4572 = vmul.f32 %v4571, 1.442695
    %v4573 = vpow.pop %v4572
    %v4574 = vadd.f32 %v4573, 1.0
    %v4575 = vrcp.pop %v4574
    %v4576 = vmul.f32 1.0, %v4575
    %v4577 = vtanh.pop %v4568
    %v4578 = vmul.f32 %v4576, %v4373
    %4580 = vrot.lane.b32.xlu0 %v4577, 64
    %v4581 = vpop.permute.xlu0 %4580
    %v4583 = vmul.f32 %v4576, %v4581
    %4585 = vrot.lane.b32.xlu0 %v4583, 32
    %v4586 = vpop.permute.xlu0 %4585
    %v4588 = vadd.f32 %v4578, %v4586
    %v4589 = vtanh.pop %v4588
    %4591 = vrot.lane.b32.xlu0 %v4589, 64
    %v4592 = vpop.permute.xlu0 %4591
    %v4594 = vmul.f32 %v4576, %v4592
    %v4595 = vrot.slane %v3598, 2
    %v4597 = vrot.slane %v4153, 1
    %v4599 = vsel %vm1348, %v4595, %v4597
    %4601 = vrot.lane.b32.xlu0 %v4594, 32
    %v4602 = vpop.permute.xlu0 %4601
    %4604 = vrot.lane.b32.xlu0 %v4489, 64
    %v4605 = vpop.permute.xlu0 %4604
    %v4607 = vsel %vm622, %v4602, %v4605
    %v4609 = vsel %vm1350, %v4607, 0
    %4611 = vmatprep.subr.mxu0 0.0
    %4612 = vmatpush1.msra.mxu0 0.0
    %4613 = vmatprep.subr.mxu0 0.0
    %4614 = vmatpush1.msra.mxu0 0.0
    %4615 = vmatprep.subr.mxu0 0.0
    %4616 = vmatpush1.msra.mxu0 0.0
    %4617 = vmatprep.subr.mxu0 0.0
    %4618 = vmatpush1.msra.mxu0 0.0
    %4619 = vmatprep.subr.mxu0 0.0
    %4620 = vmatpush1.msra.mxu0 0.0
    %4621 = vmatprep.subr.mxu0 0.0
    %4622 = vmatpush1.msra.mxu0 0.0
    %4623 = vmatprep.subr.mxu0 0.0
    %4624 = vmatpush1.msra.mxu0 0.0
    %4625 = vmatprep.subr.mxu0 0.0
    %4626 = vmatpush1.msra.mxu0 0.0
    %4627 = vmatprep.subr.mxu0 0.0
    %4628 = vmatpush1.msra.mxu0 %v4163
    %4629 = vmatprep.subr.mxu0 0.0
    %4630 = vmatpush1.msra.mxu0 %v4162
    %4631 = vmatprep.subr.mxu0 0.0
    %4632 = vmatpush1.msra.mxu0 %v4161
    %4633 = vmatprep.subr.mxu0 0.0
    %4634 = vmatpush1.msra.mxu0 %v4160
    %4635 = vmatprep.subr.mxu0 0.0
    %4636 = vmatpush1.msra.mxu0 %v4159
    %4637 = vmatprep.subr.mxu0 0.0
    %4638 = vmatpush1.msra.mxu0 %v4158
    %4639 = vmatprep.subr.mxu0 0.0
    %4640 = vmatpush1.msra.mxu0 %v4157
    %4641 = vmatprep.subr.mxu0 0.0
    %4642 = vmatpush1.msra.mxu0 %v4156
    %4643 = vmatprep.subr.mxu0 0.0
    %4644 = vmatpush2.msra.mxu0 0.0
    %4645 = vmatprep.subr.mxu0 0.0
    %4646 = vmatpush2.msra.mxu0 0.0
    %4647 = vmatprep.subr.mxu0 0.0
    %4648 = vmatpush2.msra.mxu0 0.0
    %4649 = vmatprep.subr.mxu0 0.0
    %4650 = vmatpush2.msra.mxu0 0.0
    %4651 = vmatprep.subr.mxu0 0.0
    %4652 = vmatpush2.msra.mxu0 0.0
    %4653 = vmatprep.subr.mxu0 0.0
    %4654 = vmatpush2.msra.mxu0 0.0
    %4655 = vmatprep.subr.mxu0 0.0
    %4656 = vmatpush2.msra.mxu0 0.0
    %4657 = vmatprep.subr.mxu0 0.0
    %4658 = vmatpush2.msra.mxu0 0.0
    %4659 = vmatprep.subr.mxu0 0.0
    %4660 = vmatpush2.msra.mxu0 0.0
    %4661 = vmatprep.subr.mxu0 0.0
    %4662 = vmatpush2.msra.mxu0 0.0
    %4663 = vmatprep.subr.mxu0 0.0
    %4664 = vmatpush2.msra.mxu0 0.0
    %4665 = vmatprep.subr.mxu0 0.0
    %4666 = vmatpush2.msra.mxu0 0.0
    %4667 = vmatprep.subr.mxu0 0.0
    %4668 = vmatpush2.msra.mxu0 0.0
    %4669 = vmatprep.subr.mxu0 0.0
    %4670 = vmatpush2.msra.mxu0 0.0
    %4671 = vmatprep.subr.mxu0 0.0
    %4672 = vmatpush2.msra.mxu0 0.0
    %4673 = vmatprep.subr.mxu0 0.0
    %4674 = vmatpush2.msra.mxu0 0.0
    %4675 = vmatprep.mubr.f32.mxu0 0.0
    %4676 = vmatmul.mubr.f32.gmra.mxu0 %v4609
    %v4677 = vpop.f32.mrf.mxu0
    %v4678 = vadd.f32 0.0, %v4677
    %v4679 = vpop.f32.mrf.mxu0
    %4680 = vdwg.mxu0
    %v4681 = vadd.f32 %v4599, %v4678
    %v4682 = vxor.u32 %v4681, 2147483648
    %v4683 = vmul.f32 %v4682, 1.442695
    %v4684 = vpow.pop %v4683
    %v4685 = vadd.f32 %v4684, 1.0
    %v4686 = vrcp.pop %v4685
    %v4687 = vmul.f32 1.0, %v4686
    %v4688 = vtanh.pop %v4681
    %v4689 = vmul.f32 %v4687, %v4483
    %4691 = vrot.lane.b32.xlu0 %v4688, 64
    %v4692 = vpop.permute.xlu0 %4691
    %v4694 = vmul.f32 %v4687, %v4692
    %4696 = vrot.lane.b32.xlu0 %v4694, 32
    %v4697 = vpop.permute.xlu0 %4696
    %v4699 = vadd.f32 %v4689, %v4697
    %v4700 = vtanh.pop %v4699
    %4702 = vrot.lane.b32.xlu0 %v4700, 64
    %v4703 = vpop.permute.xlu0 %4702
    %v4705 = vmul.f32 %v4687, %v4703
    %4707 = vrot.lane.b32.xlu0 %v4705, 32
    %v4708 = vpop.permute.xlu0 %4707
    %4710 = vrot.lane.b32.xlu0 %v4594, 64
    %v4711 = vpop.permute.xlu0 %4710
    %v4713 = vsel %vm622, %v4708, %v4711
    %v4715 = vsel %vm1350, %v4713, 0
    %4717 = vmatprep.subr.mxu0 0.0
    %4718 = vmatpush1.msra.mxu0 0.0
    %4719 = vmatprep.subr.mxu0 0.0
    %4720 = vmatpush1.msra.mxu0 0.0
    %4721 = vmatprep.subr.mxu0 0.0
    %4722 = vmatpush1.msra.mxu0 0.0
    %4723 = vmatprep.subr.mxu0 0.0
    %4724 = vmatpush1.msra.mxu0 0.0
    %4725 = vmatprep.subr.mxu0 0.0
    %4726 = vmatpush1.msra.mxu0 0.0
    %4727 = vmatprep.subr.mxu0 0.0
    %4728 = vmatpush1.msra.mxu0 0.0
    %4729 = vmatprep.subr.mxu0 0.0
    %4730 = vmatpush1.msra.mxu0 0.0
    %4731 = vmatprep.subr.mxu0 0.0
    %4732 = vmatpush1.msra.mxu0 0.0
    %4733 = vmatprep.subr.mxu0 0.0
    %4734 = vmatpush1.msra.mxu0 %v4171
    %4735 = vmatprep.subr.mxu0 0.0
    %4736 = vmatpush1.msra.mxu0 %v4170
    %4737 = vmatprep.subr.mxu0 0.0
    %4738 = vmatpush1.msra.mxu0 %v4169
    %4739 = vmatprep.subr.mxu0 0.0
    %4740 = vmatpush1.msra.mxu0 %v4168
    %4741 = vmatprep.subr.mxu0 0.0
    %4742 = vmatpush1.msra.mxu0 %v4167
    %4743 = vmatprep.subr.mxu0 0.0
    %4744 = vmatpush1.msra.mxu0 %v4166
    %4745 = vmatprep.subr.mxu0 0.0
    %4746 = vmatpush1.msra.mxu0 %v4165
    %4747 = vmatprep.subr.mxu0 0.0
    %4748 = vmatpush1.msra.mxu0 %v4164
    %4749 = vmatprep.subr.mxu0 0.0
    %4750 = vmatpush2.msra.mxu0 0.0
    %4751 = vmatprep.subr.mxu0 0.0
    %4752 = vmatpush2.msra.mxu0 0.0
    %4753 = vmatprep.subr.mxu0 0.0
    %4754 = vmatpush2.msra.mxu0 0.0
    %4755 = vmatprep.subr.mxu0 0.0
    %4756 = vmatpush2.msra.mxu0 0.0
    %4757 = vmatprep.subr.mxu0 0.0
    %4758 = vmatpush2.msra.mxu0 0.0
    %4759 = vmatprep.subr.mxu0 0.0
    %4760 = vmatpush2.msra.mxu0 0.0
    %4761 = vmatprep.subr.mxu0 0.0
    %4762 = vmatpush2.msra.mxu0 0.0
    %4763 = vmatprep.subr.mxu0 0.0
    %4764 = vmatpush2.msra.mxu0 0.0
    %4765 = vmatprep.subr.mxu0 0.0
    %4766 = vmatpush2.msra.mxu0 0.0
    %4767 = vmatprep.subr.mxu0 0.0
    %4768 = vmatpush2.msra.mxu0 0.0
    %4769 = vmatprep.subr.mxu0 0.0
    %4770 = vmatpush2.msra.mxu0 0.0
    %4771 = vmatprep.subr.mxu0 0.0
    %4772 = vmatpush2.msra.mxu0 0.0
    %4773 = vmatprep.subr.mxu0 0.0
    %4774 = vmatpush2.msra.mxu0 0.0
    %4775 = vmatprep.subr.mxu0 0.0
    %4776 = vmatpush2.msra.mxu0 0.0
    %4777 = vmatprep.subr.mxu0 0.0
    %4778 = vmatpush2.msra.mxu0 0.0
    %4779 = vmatprep.subr.mxu0 0.0
    %4780 = vmatpush2.msra.mxu0 0.0
    %4781 = vmatprep.mubr.f32.mxu0 0.0
    %4782 = vmatmul.mubr.f32.gmra.mxu0 %v4715
    %v4783 = vpop.f32.mrf.mxu0
    %v4784 = vadd.f32 %v4281, %v4783
    %v4785 = vpop.f32.mrf.mxu0
    %4786 = vdwg.mxu0
    %v4787 = vxor.u32 %v4784, 2147483648
    %v4788 = vmul.f32 %v4787, 1.442695
    %v4789 = vpow.pop %v4788
    %v4790 = vadd.f32 %v4789, 1.0
    %v4791 = vrcp.pop %v4790
    %v4792 = vmul.f32 1.0, %v4791
    %v4793 = vtanh.pop %v4784
    %v4794 = vmul.f32 %v4792, %v4588
    %4796 = vrot.lane.b32.xlu0 %v4793, 64
    %v4797 = vpop.permute.xlu0 %4796
    %v4799 = vmul.f32 %v4792, %v4797
    %4801 = vrot.lane.b32.xlu0 %v4799, 32
    %v4802 = vpop.permute.xlu0 %4801
    %v4804 = vadd.f32 %v4794, %v4802
    %v4805 = vtanh.pop %v4804
    %4807 = vrot.lane.b32.xlu0 %v4805, 64
    %v4808 = vpop.permute.xlu0 %4807
    %v4810 = vmul.f32 %v4792, %v4808
    %v4811 = vrot.slane %v3598, 3
    %v4813 = vrot.slane %v4153, 2
    %v4815 = vsel %vm1348, %v4811, %v4813
    %4817 = vrot.lane.b32.xlu0 %v4810, 32
    %v4818 = vpop.permute.xlu0 %4817
    %4820 = vrot.lane.b32.xlu0 %v4705, 64
    %v4821 = vpop.permute.xlu0 %4820
    %v4823 = vsel %vm622, %v4818, %v4821
    %v4825 = vsel %vm1350, %v4823, 0
    %4827 = vmatprep.subr.mxu0 0.0
    %4828 = vmatpush1.msra.mxu0 0.0
    %4829 = vmatprep.subr.mxu0 0.0
    %4830 = vmatpush1.msra.mxu0 0.0
    %4831 = vmatprep.subr.mxu0 0.0
    %4832 = vmatpush1.msra.mxu0 0.0
    %4833 = vmatprep.subr.mxu0 0.0
    %4834 = vmatpush1.msra.mxu0 0.0
    %4835 = vmatprep.subr.mxu0 0.0
    %4836 = vmatpush1.msra.mxu0 0.0
    %4837 = vmatprep.subr.mxu0 0.0
    %4838 = vmatpush1.msra.mxu0 0.0
    %4839 = vmatprep.subr.mxu0 0.0
    %4840 = vmatpush1.msra.mxu0 0.0
    %4841 = vmatprep.subr.mxu0 0.0
    %4842 = vmatpush1.msra.mxu0 0.0
    %4843 = vmatprep.subr.mxu0 0.0
    %4844 = vmatpush1.msra.mxu0 %v4163
    %4845 = vmatprep.subr.mxu0 0.0
    %4846 = vmatpush1.msra.mxu0 %v4162
    %4847 = vmatprep.subr.mxu0 0.0
    %4848 = vmatpush1.msra.mxu0 %v4161
    %4849 = vmatprep.subr.mxu0 0.0
    %4850 = vmatpush1.msra.mxu0 %v4160
    %4851 = vmatprep.subr.mxu0 0.0
    %4852 = vmatpush1.msra.mxu0 %v4159
    %4853 = vmatprep.subr.mxu0 0.0
    %4854 = vmatpush1.msra.mxu0 %v4158
    %4855 = vmatprep.subr.mxu0 0.0
    %4856 = vmatpush1.msra.mxu0 %v4157
    %4857 = vmatprep.subr.mxu0 0.0
    %4858 = vmatpush1.msra.mxu0 %v4156
    %4859 = vmatprep.subr.mxu0 0.0
    %4860 = vmatpush2.msra.mxu0 0.0
    %4861 = vmatprep.subr.mxu0 0.0
    %4862 = vmatpush2.msra.mxu0 0.0
    %4863 = vmatprep.subr.mxu0 0.0
    %4864 = vmatpush2.msra.mxu0 0.0
    %4865 = vmatprep.subr.mxu0 0.0
    %4866 = vmatpush2.msra.mxu0 0.0
    %4867 = vmatprep.subr.mxu0 0.0
    %4868 = vmatpush2.msra.mxu0 0.0
    %4869 = vmatprep.subr.mxu0 0.0
    %4870 = vmatpush2.msra.mxu0 0.0
    %4871 = vmatprep.subr.mxu0 0.0
    %4872 = vmatpush2.msra.mxu0 0.0
    %4873 = vmatprep.subr.mxu0 0.0
    %4874 = vmatpush2.msra.mxu0 0.0
    %4875 = vmatprep.subr.mxu0 0.0
    %4876 = vmatpush2.msra.mxu0 0.0
    %4877 = vmatprep.subr.mxu0 0.0
    %4878 = vmatpush2.msra.mxu0 0.0
    %4879 = vmatprep.subr.mxu0 0.0
    %4880 = vmatpush2.msra.mxu0 0.0
    %4881 = vmatprep.subr.mxu0 0.0
    %4882 = vmatpush2.msra.mxu0 0.0
    %4883 = vmatprep.subr.mxu0 0.0
    %4884 = vmatpush2.msra.mxu0 0.0
    %4885 = vmatprep.subr.mxu0 0.0
    %4886 = vmatpush2.msra.mxu0 0.0
    %4887 = vmatprep.subr.mxu0 0.0
    %4888 = vmatpush2.msra.mxu0 0.0
    %4889 = vmatprep.subr.mxu0 0.0
    %4890 = vmatpush2.msra.mxu0 0.0
    %4891 = vmatprep.mubr.f32.mxu0 0.0
    %4892 = vmatmul.mubr.f32.gmra.mxu0 %v4825
    %v4893 = vpop.f32.mrf.mxu0
    %v4894 = vadd.f32 0.0, %v4893
    %v4895 = vpop.f32.mrf.mxu0
    %4896 = vdwg.mxu0
    %v4897 = vadd.f32 %v4815, %v4894
    %v4898 = vxor.u32 %v4897, 2147483648
    %v4899 = vmul.f32 %v4898, 1.442695
    %v4900 = vpow.pop %v4899
    %v4901 = vadd.f32 %v4900, 1.0
    %v4902 = vrcp.pop %v4901
    %v4903 = vmul.f32 1.0, %v4902
    %v4904 = vtanh.pop %v4897
    %v4905 = vmul.f32 %v4903, %v4699
    %4907 = vrot.lane.b32.xlu0 %v4904, 64
    %v4908 = vpop.permute.xlu0 %4907
    %v4910 = vmul.f32 %v4903, %v4908
    %4912 = vrot.lane.b32.xlu0 %v4910, 32
    %v4913 = vpop.permute.xlu0 %4912
    %v4915 = vadd.f32 %v4905, %v4913
    %v4916 = vtanh.pop %v4915
    %4918 = vrot.lane.b32.xlu0 %v4916, 64
    %v4919 = vpop.permute.xlu0 %4918
    %v4921 = vmul.f32 %v4903, %v4919
    %4923 = vrot.lane.b32.xlu0 %v4921, 32
    %v4924 = vpop.permute.xlu0 %4923
    %4926 = vrot.lane.b32.xlu0 %v4810, 64
    %v4927 = vpop.permute.xlu0 %4926
    %v4929 = vsel %vm622, %v4924, %v4927
    %v4931 = vsel %vm1350, %v4929, 0
    %4933 = vmatprep.subr.mxu0 0.0
    %4934 = vmatpush1.msra.mxu0 0.0
    %4935 = vmatprep.subr.mxu0 0.0
    %4936 = vmatpush1.msra.mxu0 0.0
    %4937 = vmatprep.subr.mxu0 0.0
    %4938 = vmatpush1.msra.mxu0 0.0
    %4939 = vmatprep.subr.mxu0 0.0
    %4940 = vmatpush1.msra.mxu0 0.0
    %4941 = vmatprep.subr.mxu0 0.0
    %4942 = vmatpush1.msra.mxu0 0.0
    %4943 = vmatprep.subr.mxu0 0.0
    %4944 = vmatpush1.msra.mxu0 0.0
    %4945 = vmatprep.subr.mxu0 0.0
    %4946 = vmatpush1.msra.mxu0 0.0
    %4947 = vmatprep.subr.mxu0 0.0
    %4948 = vmatpush1.msra.mxu0 0.0
    %4949 = vmatprep.subr.mxu0 0.0
    %4950 = vmatpush1.msra.mxu0 %v4171
    %4951 = vmatprep.subr.mxu0 0.0
    %4952 = vmatpush1.msra.mxu0 %v4170
    %4953 = vmatprep.subr.mxu0 0.0
    %4954 = vmatpush1.msra.mxu0 %v4169
    %4955 = vmatprep.subr.mxu0 0.0
    %4956 = vmatpush1.msra.mxu0 %v4168
    %4957 = vmatprep.subr.mxu0 0.0
    %4958 = vmatpush1.msra.mxu0 %v4167
    %4959 = vmatprep.subr.mxu0 0.0
    %4960 = vmatpush1.msra.mxu0 %v4166
    %4961 = vmatprep.subr.mxu0 0.0
    %4962 = vmatpush1.msra.mxu0 %v4165
    %4963 = vmatprep.subr.mxu0 0.0
    %4964 = vmatpush1.msra.mxu0 %v4164
    %4965 = vmatprep.subr.mxu0 0.0
    %4966 = vmatpush2.msra.mxu0 0.0
    %4967 = vmatprep.subr.mxu0 0.0
    %4968 = vmatpush2.msra.mxu0 0.0
    %4969 = vmatprep.subr.mxu0 0.0
    %4970 = vmatpush2.msra.mxu0 0.0
    %4971 = vmatprep.subr.mxu0 0.0
    %4972 = vmatpush2.msra.mxu0 0.0
    %4973 = vmatprep.subr.mxu0 0.0
    %4974 = vmatpush2.msra.mxu0 0.0
    %4975 = vmatprep.subr.mxu0 0.0
    %4976 = vmatpush2.msra.mxu0 0.0
    %4977 = vmatprep.subr.mxu0 0.0
    %4978 = vmatpush2.msra.mxu0 0.0
    %4979 = vmatprep.subr.mxu0 0.0
    %4980 = vmatpush2.msra.mxu0 0.0
    %4981 = vmatprep.subr.mxu0 0.0
    %4982 = vmatpush2.msra.mxu0 0.0
    %4983 = vmatprep.subr.mxu0 0.0
    %4984 = vmatpush2.msra.mxu0 0.0
    %4985 = vmatprep.subr.mxu0 0.0
    %4986 = vmatpush2.msra.mxu0 0.0
    %4987 = vmatprep.subr.mxu0 0.0
    %4988 = vmatpush2.msra.mxu0 0.0
    %4989 = vmatprep.subr.mxu0 0.0
    %4990 = vmatpush2.msra.mxu0 0.0
    %4991 = vmatprep.subr.mxu0 0.0
    %4992 = vmatpush2.msra.mxu0 0.0
    %4993 = vmatprep.subr.mxu0 0.0
    %4994 = vmatpush2.msra.mxu0 0.0
    %4995 = vmatprep.subr.mxu0 0.0
    %4996 = vmatpush2.msra.mxu0 0.0
    %4997 = vmatprep.mubr.f32.mxu0 0.0
    %4998 = vmatmul.mubr.f32.gmra.mxu0 %v4931
    %v4999 = vpop.f32.mrf.mxu0
    %v5000 = vadd.f32 %v4281, %v4999
    %v5001 = vpop.f32.mrf.mxu0
    %5002 = vdwg.mxu0
    %v5003 = vxor.u32 %v5000, 2147483648
    %v5004 = vmul.f32 %v5003, 1.442695
    %v5005 = vpow.pop %v5004
    %v5006 = vadd.f32 %v5005, 1.0
    %v5007 = vrcp.pop %v5006
    %v5008 = vmul.f32 1.0, %v5007
    %v5009 = vtanh.pop %v5000
    %v5010 = vmul.f32 %v5008, %v4804
    %5012 = vrot.lane.b32.xlu0 %v5009, 64
    %v5013 = vpop.permute.xlu0 %5012
    %v5015 = vmul.f32 %v5008, %v5013
    %5017 = vrot.lane.b32.xlu0 %v5015, 32
    %v5018 = vpop.permute.xlu0 %5017
    %v5020 = vadd.f32 %v5010, %v5018
    %v5021 = vtanh.pop %v5020
    %5023 = vrot.lane.b32.xlu0 %v5021, 64
    %v5024 = vpop.permute.xlu0 %5023
    %v5026 = vmul.f32 %v5008, %v5024
    %v5027 = vrot.slane %v3598, 4
    %v5029 = vrot.slane %v4153, 3
    %v5031 = vsel %vm1348, %v5027, %v5029
    %5033 = vrot.lane.b32.xlu0 %v5026, 32
    %v5034 = vpop.permute.xlu0 %5033
    %5036 = vrot.lane.b32.xlu0 %v4921, 64
    %v5037 = vpop.permute.xlu0 %5036
    %v5039 = vsel %vm622, %v5034, %v5037
    %v5041 = vsel %vm1350, %v5039, 0
    %5043 = vmatprep.subr.mxu0 0.0
    %5044 = vmatpush1.msra.mxu0 0.0
    %5045 = vmatprep.subr.mxu0 0.0
    %5046 = vmatpush1.msra.mxu0 0.0
    %5047 = vmatprep.subr.mxu0 0.0
    %5048 = vmatpush1.msra.mxu0 0.0
    %5049 = vmatprep.subr.mxu0 0.0
    %5050 = vmatpush1.msra.mxu0 0.0
    %5051 = vmatprep.subr.mxu0 0.0
    %5052 = vmatpush1.msra.mxu0 0.0
    %5053 = vmatprep.subr.mxu0 0.0
    %5054 = vmatpush1.msra.mxu0 0.0
    %5055 = vmatprep.subr.mxu0 0.0
    %5056 = vmatpush1.msra.mxu0 0.0
    %5057 = vmatprep.subr.mxu0 0.0
    %5058 = vmatpush1.msra.mxu0 0.0
    %5059 = vmatprep.subr.mxu0 0.0
    %5060 = vmatpush1.msra.mxu0 %v4163
    %5061 = vmatprep.subr.mxu0 0.0
    %5062 = vmatpush1.msra.mxu0 %v4162
    %5063 = vmatprep.subr.mxu0 0.0
    %5064 = vmatpush1.msra.mxu0 %v4161
    %5065 = vmatprep.subr.mxu0 0.0
    %5066 = vmatpush1.msra.mxu0 %v4160
    %5067 = vmatprep.subr.mxu0 0.0
    %5068 = vmatpush1.msra.mxu0 %v4159
    %5069 = vmatprep.subr.mxu0 0.0
    %5070 = vmatpush1.msra.mxu0 %v4158
    %5071 = vmatprep.subr.mxu0 0.0
    %5072 = vmatpush1.msra.mxu0 %v4157
    %5073 = vmatprep.subr.mxu0 0.0
    %5074 = vmatpush1.msra.mxu0 %v4156
    %5075 = vmatprep.subr.mxu0 0.0
    %5076 = vmatpush2.msra.mxu0 0.0
    %5077 = vmatprep.subr.mxu0 0.0
    %5078 = vmatpush2.msra.mxu0 0.0
    %5079 = vmatprep.subr.mxu0 0.0
    %5080 = vmatpush2.msra.mxu0 0.0
    %5081 = vmatprep.subr.mxu0 0.0
    %5082 = vmatpush2.msra.mxu0 0.0
    %5083 = vmatprep.subr.mxu0 0.0
    %5084 = vmatpush2.msra.mxu0 0.0
    %5085 = vmatprep.subr.mxu0 0.0
    %5086 = vmatpush2.msra.mxu0 0.0
    %5087 = vmatprep.subr.mxu0 0.0
    %5088 = vmatpush2.msra.mxu0 0.0
    %5089 = vmatprep.subr.mxu0 0.0
    %5090 = vmatpush2.msra.mxu0 0.0
    %5091 = vmatprep.subr.mxu0 0.0
    %5092 = vmatpush2.msra.mxu0 0.0
    %5093 = vmatprep.subr.mxu0 0.0
    %5094 = vmatpush2.msra.mxu0 0.0
    %5095 = vmatprep.subr.mxu0 0.0
    %5096 = vmatpush2.msra.mxu0 0.0
    %5097 = vmatprep.subr.mxu0 0.0
    %5098 = vmatpush2.msra.mxu0 0.0
    %5099 = vmatprep.subr.mxu0 0.0
    %5100 = vmatpush2.msra.mxu0 0.0
    %5101 = vmatprep.subr.mxu0 0.0
    %5102 = vmatpush2.msra.mxu0 0.0
    %5103 = vmatprep.subr.mxu0 0.0
    %5104 = vmatpush2.msra.mxu0 0.0
    %5105 = vmatprep.subr.mxu0 0.0
    %5106 = vmatpush2.msra.mxu0 0.0
    %5107 = vmatprep.mubr.f32.mxu0 0.0
    %5108 = vmatmul.mubr.f32.gmra.mxu0 %v5041
    %v5109 = vpop.f32.mrf.mxu0
    %v5110 = vadd.f32 0.0, %v5109
    %v5111 = vpop.f32.mrf.mxu0
    %5112 = vdwg.mxu0
    %v5113 = vadd.f32 %v5031, %v5110
    %v5114 = vxor.u32 %v5113, 2147483648
    %v5115 = vmul.f32 %v5114, 1.442695
    %v5116 = vpow.pop %v5115
    %v5117 = vadd.f32 %v5116, 1.0
    %v5118 = vrcp.pop %v5117
    %v5119 = vmul.f32 1.0, %v5118
    %v5120 = vtanh.pop %v5113
    %v5121 = vmul.f32 %v5119, %v4915
    %5123 = vrot.lane.b32.xlu0 %v5120, 64
    %v5124 = vpop.permute.xlu0 %5123
    %v5126 = vmul.f32 %v5119, %v5124
    %5128 = vrot.lane.b32.xlu0 %v5126, 32
    %v5129 = vpop.permute.xlu0 %5128
    %v5131 = vadd.f32 %v5121, %v5129
    %v5132 = vtanh.pop %v5131
    %5134 = vrot.lane.b32.xlu0 %v5132, 64
    %v5135 = vpop.permute.xlu0 %5134
    %v5137 = vmul.f32 %v5119, %v5135
    %5139 = vrot.lane.b32.xlu0 %v5137, 32
    %v5140 = vpop.permute.xlu0 %5139
    %5142 = vrot.lane.b32.xlu0 %v5026, 64
    %v5143 = vpop.permute.xlu0 %5142
    %v5145 = vsel %vm622, %v5140, %v5143
    %v5147 = vsel %vm1350, %v5145, 0
    %5149 = vmatprep.subr.mxu0 0.0
    %5150 = vmatpush1.msra.mxu0 0.0
    %5151 = vmatprep.subr.mxu0 0.0
    %5152 = vmatpush1.msra.mxu0 0.0
    %5153 = vmatprep.subr.mxu0 0.0
    %5154 = vmatpush1.msra.mxu0 0.0
    %5155 = vmatprep.subr.mxu0 0.0
    %5156 = vmatpush1.msra.mxu0 0.0
    %5157 = vmatprep.subr.mxu0 0.0
    %5158 = vmatpush1.msra.mxu0 0.0
    %5159 = vmatprep.subr.mxu0 0.0
    %5160 = vmatpush1.msra.mxu0 0.0
    %5161 = vmatprep.subr.mxu0 0.0
    %5162 = vmatpush1.msra.mxu0 0.0
    %5163 = vmatprep.subr.mxu0 0.0
    %5164 = vmatpush1.msra.mxu0 0.0
    %5165 = vmatprep.subr.mxu0 0.0
    %5166 = vmatpush1.msra.mxu0 %v4171
    %5167 = vmatprep.subr.mxu0 0.0
    %5168 = vmatpush1.msra.mxu0 %v4170
    %5169 = vmatprep.subr.mxu0 0.0
    %5170 = vmatpush1.msra.mxu0 %v4169
    %5171 = vmatprep.subr.mxu0 0.0
    %5172 = vmatpush1.msra.mxu0 %v4168
    %5173 = vmatprep.subr.mxu0 0.0
    %5174 = vmatpush1.msra.mxu0 %v4167
    %5175 = vmatprep.subr.mxu0 0.0
    %5176 = vmatpush1.msra.mxu0 %v4166
    %5177 = vmatprep.subr.mxu0 0.0
    %5178 = vmatpush1.msra.mxu0 %v4165
    %5179 = vmatprep.subr.mxu0 0.0
    %5180 = vmatpush1.msra.mxu0 %v4164
    %5181 = vmatprep.subr.mxu0 0.0
    %5182 = vmatpush2.msra.mxu0 0.0
    %5183 = vmatprep.subr.mxu0 0.0
    %5184 = vmatpush2.msra.mxu0 0.0
    %5185 = vmatprep.subr.mxu0 0.0
    %5186 = vmatpush2.msra.mxu0 0.0
    %5187 = vmatprep.subr.mxu0 0.0
    %5188 = vmatpush2.msra.mxu0 0.0
    %5189 = vmatprep.subr.mxu0 0.0
    %5190 = vmatpush2.msra.mxu0 0.0
    %5191 = vmatprep.subr.mxu0 0.0
    %5192 = vmatpush2.msra.mxu0 0.0
    %5193 = vmatprep.subr.mxu0 0.0
    %5194 = vmatpush2.msra.mxu0 0.0
    %5195 = vmatprep.subr.mxu0 0.0
    %5196 = vmatpush2.msra.mxu0 0.0
    %5197 = vmatprep.subr.mxu0 0.0
    %5198 = vmatpush2.msra.mxu0 0.0
    %5199 = vmatprep.subr.mxu0 0.0
    %5200 = vmatpush2.msra.mxu0 0.0
    %5201 = vmatprep.subr.mxu0 0.0
    %5202 = vmatpush2.msra.mxu0 0.0
    %5203 = vmatprep.subr.mxu0 0.0
    %5204 = vmatpush2.msra.mxu0 0.0
    %5205 = vmatprep.subr.mxu0 0.0
    %5206 = vmatpush2.msra.mxu0 0.0
    %5207 = vmatprep.subr.mxu0 0.0
    %5208 = vmatpush2.msra.mxu0 0.0
    %5209 = vmatprep.subr.mxu0 0.0
    %5210 = vmatpush2.msra.mxu0 0.0
    %5211 = vmatprep.subr.mxu0 0.0
    %5212 = vmatpush2.msra.mxu0 0.0
    %5213 = vmatprep.mubr.f32.mxu0 0.0
    %5214 = vmatmul.mubr.f32.gmra.mxu0 %v5147
    %v5215 = vpop.f32.mrf.mxu0
    %v5216 = vadd.f32 %v4281, %v5215
    %v5217 = vpop.f32.mrf.mxu0
    %5218 = vdwg.mxu0
    %v5219 = vxor.u32 %v5216, 2147483648
    %v5220 = vmul.f32 %v5219, 1.442695
    %v5221 = vpow.pop %v5220
    %v5222 = vadd.f32 %v5221, 1.0
    %v5223 = vrcp.pop %v5222
    %v5224 = vmul.f32 1.0, %v5223
    %v5225 = vtanh.pop %v5216
    %v5226 = vmul.f32 %v5224, %v5020
    %5228 = vrot.lane.b32.xlu0 %v5225, 64
    %v5229 = vpop.permute.xlu0 %5228
    %v5231 = vmul.f32 %v5224, %v5229
    %5233 = vrot.lane.b32.xlu0 %v5231, 32
    %v5234 = vpop.permute.xlu0 %5233
    %v5236 = vadd.f32 %v5226, %v5234
    %v5237 = vtanh.pop %v5236
    %5239 = vrot.lane.b32.xlu0 %v5237, 64
    %v5240 = vpop.permute.xlu0 %5239
    %v5242 = vmul.f32 %v5224, %v5240
    %v5243 = vrot.slane %v3598, 5
    %v5245 = vrot.slane %v4153, 4
    %v5247 = vsel %vm1348, %v5243, %v5245
    %5249 = vrot.lane.b32.xlu0 %v5242, 32
    %v5250 = vpop.permute.xlu0 %5249
    %5252 = vrot.lane.b32.xlu0 %v5137, 64
    %v5253 = vpop.permute.xlu0 %5252
    %v5255 = vsel %vm622, %v5250, %v5253
    %v5257 = vsel %vm1350, %v5255, 0
    %5259 = vmatprep.subr.mxu0 0.0
    %5260 = vmatpush1.msra.mxu0 0.0
    %5261 = vmatprep.subr.mxu0 0.0
    %5262 = vmatpush1.msra.mxu0 0.0
    %5263 = vmatprep.subr.mxu0 0.0
    %5264 = vmatpush1.msra.mxu0 0.0
    %5265 = vmatprep.subr.mxu0 0.0
    %5266 = vmatpush1.msra.mxu0 0.0
    %5267 = vmatprep.subr.mxu0 0.0
    %5268 = vmatpush1.msra.mxu0 0.0
    %5269 = vmatprep.subr.mxu0 0.0
    %5270 = vmatpush1.msra.mxu0 0.0
    %5271 = vmatprep.subr.mxu0 0.0
    %5272 = vmatpush1.msra.mxu0 0.0
    %5273 = vmatprep.subr.mxu0 0.0
    %5274 = vmatpush1.msra.mxu0 0.0
    %5275 = vmatprep.subr.mxu0 0.0
    %5276 = vmatpush1.msra.mxu0 %v4163
    %5277 = vmatprep.subr.mxu0 0.0
    %5278 = vmatpush1.msra.mxu0 %v4162
    %5279 = vmatprep.subr.mxu0 0.0
    %5280 = vmatpush1.msra.mxu0 %v4161
    %5281 = vmatprep.subr.mxu0 0.0
    %5282 = vmatpush1.msra.mxu0 %v4160
    %5283 = vmatprep.subr.mxu0 0.0
    %5284 = vmatpush1.msra.mxu0 %v4159
    %5285 = vmatprep.subr.mxu0 0.0
    %5286 = vmatpush1.msra.mxu0 %v4158
    %5287 = vmatprep.subr.mxu0 0.0
    %5288 = vmatpush1.msra.mxu0 %v4157
    %5289 = vmatprep.subr.mxu0 0.0
    %5290 = vmatpush1.msra.mxu0 %v4156
    %5291 = vmatprep.subr.mxu0 0.0
    %5292 = vmatpush2.msra.mxu0 0.0
    %5293 = vmatprep.subr.mxu0 0.0
    %5294 = vmatpush2.msra.mxu0 0.0
    %5295 = vmatprep.subr.mxu0 0.0
    %5296 = vmatpush2.msra.mxu0 0.0
    %5297 = vmatprep.subr.mxu0 0.0
    %5298 = vmatpush2.msra.mxu0 0.0
    %5299 = vmatprep.subr.mxu0 0.0
    %5300 = vmatpush2.msra.mxu0 0.0
    %5301 = vmatprep.subr.mxu0 0.0
    %5302 = vmatpush2.msra.mxu0 0.0
    %5303 = vmatprep.subr.mxu0 0.0
    %5304 = vmatpush2.msra.mxu0 0.0
    %5305 = vmatprep.subr.mxu0 0.0
    %5306 = vmatpush2.msra.mxu0 0.0
    %5307 = vmatprep.subr.mxu0 0.0
    %5308 = vmatpush2.msra.mxu0 0.0
    %5309 = vmatprep.subr.mxu0 0.0
    %5310 = vmatpush2.msra.mxu0 0.0
    %5311 = vmatprep.subr.mxu0 0.0
    %5312 = vmatpush2.msra.mxu0 0.0
    %5313 = vmatprep.subr.mxu0 0.0
    %5314 = vmatpush2.msra.mxu0 0.0
    %5315 = vmatprep.subr.mxu0 0.0
    %5316 = vmatpush2.msra.mxu0 0.0
    %5317 = vmatprep.subr.mxu0 0.0
    %5318 = vmatpush2.msra.mxu0 0.0
    %5319 = vmatprep.subr.mxu0 0.0
    %5320 = vmatpush2.msra.mxu0 0.0
    %5321 = vmatprep.subr.mxu0 0.0
    %5322 = vmatpush2.msra.mxu0 0.0
    %5323 = vmatprep.mubr.f32.mxu0 0.0
    %5324 = vmatmul.mubr.f32.gmra.mxu0 %v5257
    %v5325 = vpop.f32.mrf.mxu0
    %v5326 = vadd.f32 0.0, %v5325
    %v5327 = vpop.f32.mrf.mxu0
    %5328 = vdwg.mxu0
    %v5329 = vadd.f32 %v5247, %v5326
    %v5330 = vxor.u32 %v5329, 2147483648
    %v5331 = vmul.f32 %v5330, 1.442695
    %v5332 = vpow.pop %v5331
    %v5333 = vadd.f32 %v5332, 1.0
    %v5334 = vrcp.pop %v5333
    %v5335 = vmul.f32 1.0, %v5334
    %v5336 = vtanh.pop %v5329
    %v5337 = vmul.f32 %v5335, %v5131
    %5339 = vrot.lane.b32.xlu0 %v5336, 64
    %v5340 = vpop.permute.xlu0 %5339
    %v5342 = vmul.f32 %v5335, %v5340
    %5344 = vrot.lane.b32.xlu0 %v5342, 32
    %v5345 = vpop.permute.xlu0 %5344
    %v5347 = vadd.f32 %v5337, %v5345
    %v5348 = vtanh.pop %v5347
    %5350 = vrot.lane.b32.xlu0 %v5348, 64
    %v5351 = vpop.permute.xlu0 %5350
    %v5353 = vmul.f32 %v5335, %v5351
    %5355 = vrot.lane.b32.xlu0 %v5353, 32
    %v5356 = vpop.permute.xlu0 %5355
    %5358 = vrot.lane.b32.xlu0 %v5242, 64
    %v5359 = vpop.permute.xlu0 %5358
    %v5361 = vsel %vm622, %v5356, %v5359
    %v5363 = vsel %vm1350, %v5361, 0
    %5365 = vmatprep.subr.mxu0 0.0
    %5366 = vmatpush1.msra.mxu0 0.0
    %5367 = vmatprep.subr.mxu0 0.0
    %5368 = vmatpush1.msra.mxu0 0.0
    %5369 = vmatprep.subr.mxu0 0.0
    %5370 = vmatpush1.msra.mxu0 0.0
    %5371 = vmatprep.subr.mxu0 0.0
    %5372 = vmatpush1.msra.mxu0 0.0
    %5373 = vmatprep.subr.mxu0 0.0
    %5374 = vmatpush1.msra.mxu0 0.0
    %5375 = vmatprep.subr.mxu0 0.0
    %5376 = vmatpush1.msra.mxu0 0.0
    %5377 = vmatprep.subr.mxu0 0.0
    %5378 = vmatpush1.msra.mxu0 0.0
    %5379 = vmatprep.subr.mxu0 0.0
    %5380 = vmatpush1.msra.mxu0 0.0
    %5381 = vmatprep.subr.mxu0 0.0
    %5382 = vmatpush1.msra.mxu0 %v4171
    %5383 = vmatprep.subr.mxu0 0.0
    %5384 = vmatpush1.msra.mxu0 %v4170
    %5385 = vmatprep.subr.mxu0 0.0
    %5386 = vmatpush1.msra.mxu0 %v4169
    %5387 = vmatprep.subr.mxu0 0.0
    %5388 = vmatpush1.msra.mxu0 %v4168
    %5389 = vmatprep.subr.mxu0 0.0
    %5390 = vmatpush1.msra.mxu0 %v4167
    %5391 = vmatprep.subr.mxu0 0.0
    %5392 = vmatpush1.msra.mxu0 %v4166
    %5393 = vmatprep.subr.mxu0 0.0
    %5394 = vmatpush1.msra.mxu0 %v4165
    %5395 = vmatprep.subr.mxu0 0.0
    %5396 = vmatpush1.msra.mxu0 %v4164
    %5397 = vmatprep.subr.mxu0 0.0
    %5398 = vmatpush2.msra.mxu0 0.0
    %5399 = vmatprep.subr.mxu0 0.0
    %5400 = vmatpush2.msra.mxu0 0.0
    %5401 = vmatprep.subr.mxu0 0.0
    %5402 = vmatpush2.msra.mxu0 0.0
    %5403 = vmatprep.subr.mxu0 0.0
    %5404 = vmatpush2.msra.mxu0 0.0
    %5405 = vmatprep.subr.mxu0 0.0
    %5406 = vmatpush2.msra.mxu0 0.0
    %5407 = vmatprep.subr.mxu0 0.0
    %5408 = vmatpush2.msra.mxu0 0.0
    %5409 = vmatprep.subr.mxu0 0.0
    %5410 = vmatpush2.msra.mxu0 0.0
    %5411 = vmatprep.subr.mxu0 0.0
    %5412 = vmatpush2.msra.mxu0 0.0
    %5413 = vmatprep.subr.mxu0 0.0
    %5414 = vmatpush2.msra.mxu0 0.0
    %5415 = vmatprep.subr.mxu0 0.0
    %5416 = vmatpush2.msra.mxu0 0.0
    %5417 = vmatprep.subr.mxu0 0.0
    %5418 = vmatpush2.msra.mxu0 0.0
    %5419 = vmatprep.subr.mxu0 0.0
    %5420 = vmatpush2.msra.mxu0 0.0
    %5421 = vmatprep.subr.mxu0 0.0
    %5422 = vmatpush2.msra.mxu0 0.0
    %5423 = vmatprep.subr.mxu0 0.0
    %5424 = vmatpush2.msra.mxu0 0.0
    %5425 = vmatprep.subr.mxu0 0.0
    %5426 = vmatpush2.msra.mxu0 0.0
    %5427 = vmatprep.subr.mxu0 0.0
    %5428 = vmatpush2.msra.mxu0 0.0
    %5429 = vmatprep.mubr.f32.mxu0 0.0
    %5430 = vmatmul.mubr.f32.gmra.mxu0 %v5363
    %v5431 = vpop.f32.mrf.mxu0
    %v5432 = vadd.f32 %v4281, %v5431
    %v5433 = vpop.f32.mrf.mxu0
    %5434 = vdwg.mxu0
    %v5435 = vxor.u32 %v5432, 2147483648
    %v5436 = vmul.f32 %v5435, 1.442695
    %v5437 = vpow.pop %v5436
    %v5438 = vadd.f32 %v5437, 1.0
    %v5439 = vrcp.pop %v5438
    %v5440 = vmul.f32 1.0, %v5439
    %v5441 = vtanh.pop %v5432
    %v5442 = vmul.f32 %v5440, %v5236
    %5444 = vrot.lane.b32.xlu0 %v5441, 64
    %v5445 = vpop.permute.xlu0 %5444
    %v5447 = vmul.f32 %v5440, %v5445
    %5449 = vrot.lane.b32.xlu0 %v5447, 32
    %v5450 = vpop.permute.xlu0 %5449
    %v5452 = vadd.f32 %v5442, %v5450
    %v5453 = vtanh.pop %v5452
    %5455 = vrot.lane.b32.xlu0 %v5453, 64
    %v5456 = vpop.permute.xlu0 %5455
    %v5458 = vmul.f32 %v5440, %v5456
    %v5459 = vrot.slane %v3598, 6
    %v5461 = vrot.slane %v4153, 5
    %v5463 = vsel %vm1348, %v5459, %v5461
    %5465 = vrot.lane.b32.xlu0 %v5458, 32
    %v5466 = vpop.permute.xlu0 %5465
    %5468 = vrot.lane.b32.xlu0 %v5353, 64
    %v5469 = vpop.permute.xlu0 %5468
    %v5471 = vsel %vm622, %v5466, %v5469
    %v5473 = vsel %vm1350, %v5471, 0
    %5475 = vmatprep.subr.mxu0 0.0
    %5476 = vmatpush1.msra.mxu0 0.0
    %5477 = vmatprep.subr.mxu0 0.0
    %5478 = vmatpush1.msra.mxu0 0.0
    %5479 = vmatprep.subr.mxu0 0.0
    %5480 = vmatpush1.msra.mxu0 0.0
    %5481 = vmatprep.subr.mxu0 0.0
    %5482 = vmatpush1.msra.mxu0 0.0
    %5483 = vmatprep.subr.mxu0 0.0
    %5484 = vmatpush1.msra.mxu0 0.0
    %5485 = vmatprep.subr.mxu0 0.0
    %5486 = vmatpush1.msra.mxu0 0.0
    %5487 = vmatprep.subr.mxu0 0.0
    %5488 = vmatpush1.msra.mxu0 0.0
    %5489 = vmatprep.subr.mxu0 0.0
    %5490 = vmatpush1.msra.mxu0 0.0
    %5491 = vmatprep.subr.mxu0 0.0
    %5492 = vmatpush1.msra.mxu0 %v4163
    %5493 = vmatprep.subr.mxu0 0.0
    %5494 = vmatpush1.msra.mxu0 %v4162
    %5495 = vmatprep.subr.mxu0 0.0
    %5496 = vmatpush1.msra.mxu0 %v4161
    %5497 = vmatprep.subr.mxu0 0.0
    %5498 = vmatpush1.msra.mxu0 %v4160
    %5499 = vmatprep.subr.mxu0 0.0
    %5500 = vmatpush1.msra.mxu0 %v4159
    %5501 = vmatprep.subr.mxu0 0.0
    %5502 = vmatpush1.msra.mxu0 %v4158
    %5503 = vmatprep.subr.mxu0 0.0
    %5504 = vmatpush1.msra.mxu0 %v4157
    %5505 = vmatprep.subr.mxu0 0.0
    %5506 = vmatpush1.msra.mxu0 %v4156
    %5507 = vmatprep.subr.mxu0 0.0
    %5508 = vmatpush2.msra.mxu0 0.0
    %5509 = vmatprep.subr.mxu0 0.0
    %5510 = vmatpush2.msra.mxu0 0.0
    %5511 = vmatprep.subr.mxu0 0.0
    %5512 = vmatpush2.msra.mxu0 0.0
    %5513 = vmatprep.subr.mxu0 0.0
    %5514 = vmatpush2.msra.mxu0 0.0
    %5515 = vmatprep.subr.mxu0 0.0
    %5516 = vmatpush2.msra.mxu0 0.0
    %5517 = vmatprep.subr.mxu0 0.0
    %5518 = vmatpush2.msra.mxu0 0.0
    %5519 = vmatprep.subr.mxu0 0.0
    %5520 = vmatpush2.msra.mxu0 0.0
    %5521 = vmatprep.subr.mxu0 0.0
    %5522 = vmatpush2.msra.mxu0 0.0
    %5523 = vmatprep.subr.mxu0 0.0
    %5524 = vmatpush2.msra.mxu0 0.0
    %5525 = vmatprep.subr.mxu0 0.0
    %5526 = vmatpush2.msra.mxu0 0.0
    %5527 = vmatprep.subr.mxu0 0.0
    %5528 = vmatpush2.msra.mxu0 0.0
    %5529 = vmatprep.subr.mxu0 0.0
    %5530 = vmatpush2.msra.mxu0 0.0
    %5531 = vmatprep.subr.mxu0 0.0
    %5532 = vmatpush2.msra.mxu0 0.0
    %5533 = vmatprep.subr.mxu0 0.0
    %5534 = vmatpush2.msra.mxu0 0.0
    %5535 = vmatprep.subr.mxu0 0.0
    %5536 = vmatpush2.msra.mxu0 0.0
    %5537 = vmatprep.subr.mxu0 0.0
    %5538 = vmatpush2.msra.mxu0 0.0
    %5539 = vmatprep.mubr.f32.mxu0 0.0
    %5540 = vmatmul.mubr.f32.gmra.mxu0 %v5473
    %v5541 = vpop.f32.mrf.mxu0
    %v5542 = vadd.f32 0.0, %v5541
    %v5543 = vpop.f32.mrf.mxu0
    %5544 = vdwg.mxu0
    %v5545 = vadd.f32 %v5463, %v5542
    %v5546 = vxor.u32 %v5545, 2147483648
    %v5547 = vmul.f32 %v5546, 1.442695
    %v5548 = vpow.pop %v5547
    %v5549 = vadd.f32 %v5548, 1.0
    %v5550 = vrcp.pop %v5549
    %v5551 = vmul.f32 1.0, %v5550
    %v5552 = vtanh.pop %v5545
    %v5553 = vmul.f32 %v5551, %v5347
    %5555 = vrot.lane.b32.xlu0 %v5552, 64
    %v5556 = vpop.permute.xlu0 %5555
    %v5558 = vmul.f32 %v5551, %v5556
    %5560 = vrot.lane.b32.xlu0 %v5558, 32
    %v5561 = vpop.permute.xlu0 %5560
    %v5563 = vadd.f32 %v5553, %v5561
    %v5564 = vtanh.pop %v5563
    %5566 = vrot.lane.b32.xlu0 %v5564, 64
    %v5567 = vpop.permute.xlu0 %5566
    %v5569 = vmul.f32 %v5551, %v5567
    %5571 = vrot.lane.b32.xlu0 %v5569, 32
    %v5572 = vpop.permute.xlu0 %5571
    %5574 = vrot.lane.b32.xlu0 %v5458, 64
    %v5575 = vpop.permute.xlu0 %5574
    %v5577 = vsel %vm622, %v5572, %v5575
    %v5579 = vsel %vm1350, %v5577, 0
    %5581 = vmatprep.subr.mxu0 0.0
    %5582 = vmatpush1.msra.mxu0 0.0
    %5583 = vmatprep.subr.mxu0 0.0
    %5584 = vmatpush1.msra.mxu0 0.0
    %5585 = vmatprep.subr.mxu0 0.0
    %5586 = vmatpush1.msra.mxu0 0.0
    %5587 = vmatprep.subr.mxu0 0.0
    %5588 = vmatpush1.msra.mxu0 0.0
    %5589 = vmatprep.subr.mxu0 0.0
    %5590 = vmatpush1.msra.mxu0 0.0
    %5591 = vmatprep.subr.mxu0 0.0
    %5592 = vmatpush1.msra.mxu0 0.0
    %5593 = vmatprep.subr.mxu0 0.0
    %5594 = vmatpush1.msra.mxu0 0.0
    %5595 = vmatprep.subr.mxu0 0.0
    %5596 = vmatpush1.msra.mxu0 0.0
    %5597 = vmatprep.subr.mxu0 0.0
    %5598 = vmatpush1.msra.mxu0 %v4171
    %5599 = vmatprep.subr.mxu0 0.0
    %5600 = vmatpush1.msra.mxu0 %v4170
    %5601 = vmatprep.subr.mxu0 0.0
    %5602 = vmatpush1.msra.mxu0 %v4169
    %5603 = vmatprep.subr.mxu0 0.0
    %5604 = vmatpush1.msra.mxu0 %v4168
    %5605 = vmatprep.subr.mxu0 0.0
    %5606 = vmatpush1.msra.mxu0 %v4167
    %5607 = vmatprep.subr.mxu0 0.0
    %5608 = vmatpush1.msra.mxu0 %v4166
    %5609 = vmatprep.subr.mxu0 0.0
    %5610 = vmatpush1.msra.mxu0 %v4165
    %5611 = vmatprep.subr.mxu0 0.0
    %5612 = vmatpush1.msra.mxu0 %v4164
    %5613 = vmatprep.subr.mxu0 0.0
    %5614 = vmatpush2.msra.mxu0 0.0
    %5615 = vmatprep.subr.mxu0 0.0
    %5616 = vmatpush2.msra.mxu0 0.0
    %5617 = vmatprep.subr.mxu0 0.0
    %5618 = vmatpush2.msra.mxu0 0.0
    %5619 = vmatprep.subr.mxu0 0.0
    %5620 = vmatpush2.msra.mxu0 0.0
    %5621 = vmatprep.subr.mxu0 0.0
    %5622 = vmatpush2.msra.mxu0 0.0
    %5623 = vmatprep.subr.mxu0 0.0
    %5624 = vmatpush2.msra.mxu0 0.0
    %5625 = vmatprep.subr.mxu0 0.0
    %5626 = vmatpush2.msra.mxu0 0.0
    %5627 = vmatprep.subr.mxu0 0.0
    %5628 = vmatpush2.msra.mxu0 0.0
    %5629 = vmatprep.subr.mxu0 0.0
    %5630 = vmatpush2.msra.mxu0 0.0
    %5631 = vmatprep.subr.mxu0 0.0
    %5632 = vmatpush2.msra.mxu0 0.0
    %5633 = vmatprep.subr.mxu0 0.0
    %5634 = vmatpush2.msra.mxu0 0.0
    %5635 = vmatprep.subr.mxu0 0.0
    %5636 = vmatpush2.msra.mxu0 0.0
    %5637 = vmatprep.subr.mxu0 0.0
    %5638 = vmatpush2.msra.mxu0 0.0
    %5639 = vmatprep.subr.mxu0 0.0
    %5640 = vmatpush2.msra.mxu0 0.0
    %5641 = vmatprep.subr.mxu0 0.0
    %5642 = vmatpush2.msra.mxu0 0.0
    %5643 = vmatprep.subr.mxu0 0.0
    %5644 = vmatpush2.msra.mxu0 0.0
    %5645 = vmatprep.mubr.f32.mxu0 0.0
    %5646 = vmatmul.mubr.f32.gmra.mxu0 %v5579
    %v5647 = vpop.f32.mrf.mxu0
    %v5648 = vadd.f32 %v4281, %v5647
    %v5649 = vpop.f32.mrf.mxu0
    %5650 = vdwg.mxu0
    %v5651 = vxor.u32 %v5648, 2147483648
    %v5652 = vmul.f32 %v5651, 1.442695
    %v5653 = vpow.pop %v5652
    %v5654 = vadd.f32 %v5653, 1.0
    %v5655 = vrcp.pop %v5654
    %v5656 = vmul.f32 1.0, %v5655
    %v5657 = vtanh.pop %v5648
    %v5658 = vmul.f32 %v5656, %v5452
    %5660 = vrot.lane.b32.xlu0 %v5657, 64
    %v5661 = vpop.permute.xlu0 %5660
    %v5663 = vmul.f32 %v5656, %v5661
    %5665 = vrot.lane.b32.xlu0 %v5663, 32
    %v5666 = vpop.permute.xlu0 %5665
    %v5668 = vadd.f32 %v5658, %v5666
    %v5669 = vtanh.pop %v5668
    %5671 = vrot.lane.b32.xlu0 %v5669, 64
    %v5672 = vpop.permute.xlu0 %5671
    %v5674 = vmul.f32 %v5656, %v5672
    %v5675 = vrot.slane %v3598, 7
    %v5677 = vrot.slane %v4153, 6
    %v5679 = vsel %vm1348, %v5675, %v5677
    %5681 = vrot.lane.b32.xlu0 %v5674, 32
    %v5682 = vpop.permute.xlu0 %5681
    %5684 = vrot.lane.b32.xlu0 %v5569, 64
    %v5685 = vpop.permute.xlu0 %5684
    %v5687 = vsel %vm622, %v5682, %v5685
    %v5689 = vsel %vm1350, %v5687, 0
    %5691 = vmatprep.subr.mxu0 0.0
    %5692 = vmatpush1.msra.mxu0 0.0
    %5693 = vmatprep.subr.mxu0 0.0
    %5694 = vmatpush1.msra.mxu0 0.0
    %5695 = vmatprep.subr.mxu0 0.0
    %5696 = vmatpush1.msra.mxu0 0.0
    %5697 = vmatprep.subr.mxu0 0.0
    %5698 = vmatpush1.msra.mxu0 0.0
    %5699 = vmatprep.subr.mxu0 0.0
    %5700 = vmatpush1.msra.mxu0 0.0
    %5701 = vmatprep.subr.mxu0 0.0
    %5702 = vmatpush1.msra.mxu0 0.0
    %5703 = vmatprep.subr.mxu0 0.0
    %5704 = vmatpush1.msra.mxu0 0.0
    %5705 = vmatprep.subr.mxu0 0.0
    %5706 = vmatpush1.msra.mxu0 0.0
    %5707 = vmatprep.subr.mxu0 0.0
    %5708 = vmatpush1.msra.mxu0 %v4163
    %5709 = vmatprep.subr.mxu0 0.0
    %5710 = vmatpush1.msra.mxu0 %v4162
    %5711 = vmatprep.subr.mxu0 0.0
    %5712 = vmatpush1.msra.mxu0 %v4161
    %5713 = vmatprep.subr.mxu0 0.0
    %5714 = vmatpush1.msra.mxu0 %v4160
    %5715 = vmatprep.subr.mxu0 0.0
    %5716 = vmatpush1.msra.mxu0 %v4159
    %5717 = vmatprep.subr.mxu0 0.0
    %5718 = vmatpush1.msra.mxu0 %v4158
    %5719 = vmatprep.subr.mxu0 0.0
    %5720 = vmatpush1.msra.mxu0 %v4157
    %5721 = vmatprep.subr.mxu0 0.0
    %5722 = vmatpush1.msra.mxu0 %v4156
    %5723 = vmatprep.subr.mxu0 0.0
    %5724 = vmatpush2.msra.mxu0 0.0
    %5725 = vmatprep.subr.mxu0 0.0
    %5726 = vmatpush2.msra.mxu0 0.0
    %5727 = vmatprep.subr.mxu0 0.0
    %5728 = vmatpush2.msra.mxu0 0.0
    %5729 = vmatprep.subr.mxu0 0.0
    %5730 = vmatpush2.msra.mxu0 0.0
    %5731 = vmatprep.subr.mxu0 0.0
    %5732 = vmatpush2.msra.mxu0 0.0
    %5733 = vmatprep.subr.mxu0 0.0
    %5734 = vmatpush2.msra.mxu0 0.0
    %5735 = vmatprep.subr.mxu0 0.0
    %5736 = vmatpush2.msra.mxu0 0.0
    %5737 = vmatprep.subr.mxu0 0.0
    %5738 = vmatpush2.msra.mxu0 0.0
    %5739 = vmatprep.subr.mxu0 0.0
    %5740 = vmatpush2.msra.mxu0 0.0
    %5741 = vmatprep.subr.mxu0 0.0
    %5742 = vmatpush2.msra.mxu0 0.0
    %5743 = vmatprep.subr.mxu0 0.0
    %5744 = vmatpush2.msra.mxu0 0.0
    %5745 = vmatprep.subr.mxu0 0.0
    %5746 = vmatpush2.msra.mxu0 0.0
    %5747 = vmatprep.subr.mxu0 0.0
    %5748 = vmatpush2.msra.mxu0 0.0
    %5749 = vmatprep.subr.mxu0 0.0
    %5750 = vmatpush2.msra.mxu0 0.0
    %5751 = vmatprep.subr.mxu0 0.0
    %5752 = vmatpush2.msra.mxu0 0.0
    %5753 = vmatprep.subr.mxu0 0.0
    %5754 = vmatpush2.msra.mxu0 0.0
    %5755 = vmatprep.mubr.f32.mxu0 0.0
    %5756 = vmatmul.mubr.f32.gmra.mxu0 %v5689
    %v5757 = vpop.f32.mrf.mxu0
    %v5758 = vadd.f32 0.0, %v5757
    %v5759 = vpop.f32.mrf.mxu0
    %5760 = vdwg.mxu0
    %v5761 = vadd.f32 %v5679, %v5758
    %v5762 = vxor.u32 %v5761, 2147483648
    %v5763 = vmul.f32 %v5762, 1.442695
    %v5764 = vpow.pop %v5763
    %v5765 = vadd.f32 %v5764, 1.0
    %v5766 = vrcp.pop %v5765
    %v5767 = vmul.f32 1.0, %v5766
    %v5768 = vtanh.pop %v5761
    %v5769 = vmul.f32 %v5767, %v5563
    %5771 = vrot.lane.b32.xlu0 %v5768, 64
    %v5772 = vpop.permute.xlu0 %5771
    %v5774 = vmul.f32 %v5767, %v5772
    %5776 = vrot.lane.b32.xlu0 %v5774, 32
    %v5777 = vpop.permute.xlu0 %5776
    %v5779 = vadd.f32 %v5769, %v5777
    %v5780 = vtanh.pop %v5779
    %5782 = vrot.lane.b32.xlu0 %v5780, 64
    %v5783 = vpop.permute.xlu0 %5782
    %v5785 = vmul.f32 %v5767, %v5783
    %5787 = vrot.lane.b32.xlu0 %v5785, 32
    %v5788 = vpop.permute.xlu0 %5787
    %5790 = vrot.lane.b32.xlu0 %v5674, 64
    %v5791 = vpop.permute.xlu0 %5790
    %v5793 = vsel %vm622, %v5788, %v5791
    %v5795 = vsel %vm1350, %v5793, 0
    %5797 = vmatprep.subr.mxu0 0.0
    %5798 = vmatpush1.msra.mxu0 0.0
    %5799 = vmatprep.subr.mxu0 0.0
    %5800 = vmatpush1.msra.mxu0 0.0
    %5801 = vmatprep.subr.mxu0 0.0
    %5802 = vmatpush1.msra.mxu0 0.0
    %5803 = vmatprep.subr.mxu0 0.0
    %5804 = vmatpush1.msra.mxu0 0.0
    %5805 = vmatprep.subr.mxu0 0.0
    %5806 = vmatpush1.msra.mxu0 0.0
    %5807 = vmatprep.subr.mxu0 0.0
    %5808 = vmatpush1.msra.mxu0 0.0
    %5809 = vmatprep.subr.mxu0 0.0
    %5810 = vmatpush1.msra.mxu0 0.0
    %5811 = vmatprep.subr.mxu0 0.0
    %5812 = vmatpush1.msra.mxu0 0.0
    %5813 = vmatprep.subr.mxu0 0.0
    %5814 = vmatpush1.msra.mxu0 %v4171
    %5815 = vmatprep.subr.mxu0 0.0
    %5816 = vmatpush1.msra.mxu0 %v4170
    %5817 = vmatprep.subr.mxu0 0.0
    %5818 = vmatpush1.msra.mxu0 %v4169
    %5819 = vmatprep.subr.mxu0 0.0
    %5820 = vmatpush1.msra.mxu0 %v4168
    %5821 = vmatprep.subr.mxu0 0.0
    %5822 = vmatpush1.msra.mxu0 %v4167
    %5823 = vmatprep.subr.mxu0 0.0
    %5824 = vmatpush1.msra.mxu0 %v4166
    %5825 = vmatprep.subr.mxu0 0.0
    %5826 = vmatpush1.msra.mxu0 %v4165
    %5827 = vmatprep.subr.mxu0 0.0
    %5828 = vmatpush1.msra.mxu0 %v4164
    %5829 = vmatprep.subr.mxu0 0.0
    %5830 = vmatpush2.msra.mxu0 0.0
    %5831 = vmatprep.subr.mxu0 0.0
    %5832 = vmatpush2.msra.mxu0 0.0
    %5833 = vmatprep.subr.mxu0 0.0
    %5834 = vmatpush2.msra.mxu0 0.0
    %5835 = vmatprep.subr.mxu0 0.0
    %5836 = vmatpush2.msra.mxu0 0.0
    %5837 = vmatprep.subr.mxu0 0.0
    %5838 = vmatpush2.msra.mxu0 0.0
    %5839 = vmatprep.subr.mxu0 0.0
    %5840 = vmatpush2.msra.mxu0 0.0
    %5841 = vmatprep.subr.mxu0 0.0
    %5842 = vmatpush2.msra.mxu0 0.0
    %5843 = vmatprep.subr.mxu0 0.0
    %5844 = vmatpush2.msra.mxu0 0.0
    %5845 = vmatprep.subr.mxu0 0.0
    %5846 = vmatpush2.msra.mxu0 0.0
    %5847 = vmatprep.subr.mxu0 0.0
    %5848 = vmatpush2.msra.mxu0 0.0
    %5849 = vmatprep.subr.mxu0 0.0
    %5850 = vmatpush2.msra.mxu0 0.0
    %5851 = vmatprep.subr.mxu0 0.0
    %5852 = vmatpush2.msra.mxu0 0.0
    %5853 = vmatprep.subr.mxu0 0.0
    %5854 = vmatpush2.msra.mxu0 0.0
    %5855 = vmatprep.subr.mxu0 0.0
    %5856 = vmatpush2.msra.mxu0 0.0
    %5857 = vmatprep.subr.mxu0 0.0
    %5858 = vmatpush2.msra.mxu0 0.0
    %5859 = vmatprep.subr.mxu0 0.0
    %5860 = vmatpush2.msra.mxu0 0.0
    %5861 = vmatprep.mubr.f32.mxu0 0.0
    %5862 = vmatmul.mubr.f32.gmra.mxu0 %v5795
    %v5863 = vpop.f32.mrf.mxu0
    %v5864 = vadd.f32 %v4281, %v5863
    %v5865 = vpop.f32.mrf.mxu0
    %5866 = vdwg.mxu0
    %v5867 = vxor.u32 %v5864, 2147483648
    %v5868 = vmul.f32 %v5867, 1.442695
    %v5869 = vpow.pop %v5868
    %v5870 = vadd.f32 %v5869, 1.0
    %v5871 = vrcp.pop %v5870
    %v5872 = vmul.f32 1.0, %v5871
    %v5873 = vtanh.pop %v5864
    %v5874 = vmul.f32 %v5872, %v5668
    %5876 = vrot.lane.b32.xlu0 %v5873, 64
    %v5877 = vpop.permute.xlu0 %5876
    %v5879 = vmul.f32 %v5872, %v5877
    %5881 = vrot.lane.b32.xlu0 %v5879, 32
    %v5882 = vpop.permute.xlu0 %5881
    %v5884 = vadd.f32 %v5874, %v5882
    %v5885 = vtanh.pop %v5884
    %5887 = vrot.lane.b32.xlu0 %v5885, 64
    %v5888 = vpop.permute.xlu0 %5887
    %v5890 = vmul.f32 %v5872, %v5888
    %v5891 = vrot.slane %v4489, 6
    %v5893 = vrot.slane %v4705, 4
    %v5895 = vrot.slane %v4921, 2
    %v5897 = vrot.slane %v5353, 6
    %v5899 = vrot.slane %v5569, 4
    %v5901 = vrot.slane %v5785, 2
    %v5903 = vsel %vm2979, %v4271, %v5891
    %v5904 = vsel %vm2983, %v5903, %v5893
    %v5905 = vsel %vm2987, %v5904, %v5895
    %v5906 = vsel %vm2979, %v5137, %v5897
    %v5907 = vsel %vm2983, %v5906, %v5899
    %v5908 = vsel %vm2987, %v5907, %v5901
    %v5909 = vrot.slane %v4594, 6
    %v5911 = vrot.slane %v4810, 4
    %v5913 = vrot.slane %v5026, 2
    %v5915 = vrot.slane %v5458, 6
    %v5917 = vrot.slane %v5674, 4
    %v5920 = vrot.slane %v5890, 2
    %v5922 = vsel %vm2979, %v4379, %v5909
    %v5923 = vsel %vm2983, %v5922, %v5911
    %v5924 = vsel %vm2987, %v5923, %v5913
    %v5925 = vsel %vm2979, %v5242, %v5915
    %v5926 = vsel %vm2983, %v5925, %v5917
    %v5927 = vsel %vm2987, %v5926, %v5920
    %v5928 = vld [vmem:[%s17] sm:$0xff]
    %v5929 = vld [vmem:[%s17 + $0x8] sm:$0xff]
    %v5930 = vld [vmem:[%s17 + $0x10] sm:$0xff]
    %v5931 = vld [vmem:[%s17 + $0x18] sm:$0xff]
    %v5932 = vld [vmem:[%s18] sm:$0x1]
    %v5934 = vlaneseq
    %v5935 = vshrl.u32 %v5934, 7
    %v5936 = vsub.s32 0, %v5935
    %v5937 = vrot.slane %v5932, %v5936
    %5941 = vrot.lane.b32.xlu0 %v5905, 32
    %v5942 = vpop.permute.xlu0 %5941
    %5943 = vrot.lane.b32.xlu0 %v5908, 32
    %v5944 = vpop.permute.xlu0 %5943
    %v5945 = vsel %vm622, %v5942, 0
    %v5947 = vsel %vm622, %v5944, 0
    %5949 = vmatprep.subr.mxu0 0.0
    %5950 = vmatpush1.msra.mxu0 0.0
    %5951 = vmatprep.subr.mxu0 0.0
    %5952 = vmatpush1.msra.mxu0 0.0
    %5953 = vmatprep.subr.mxu0 0.0
    %5954 = vmatpush1.msra.mxu0 0.0
    %5955 = vmatprep.subr.mxu0 0.0
    %5956 = vmatpush1.msra.mxu0 0.0
    %5957 = vmatprep.subr.mxu0 0.0
    %5958 = vmatpush1.msra.mxu0 0.0
    %5959 = vmatprep.subr.mxu0 0.0
    %5960 = vmatpush1.msra.mxu0 0.0
    %5961 = vmatprep.subr.mxu0 0.0
    %5962 = vmatpush1.msra.mxu0 0.0
    %5963 = vmatprep.subr.mxu0 0.0
    %5964 = vmatpush1.msra.mxu0 0.0
    %5965 = vmatprep.subr.mxu0 0.0
    %5966 = vmatpush1.msra.mxu0 0.0
    %5967 = vmatprep.subr.mxu0 0.0
    %5968 = vmatpush1.msra.mxu0 0.0
    %5969 = vmatprep.subr.mxu0 0.0
    %5970 = vmatpush1.msra.mxu0 0.0
    %5971 = vmatprep.subr.mxu0 0.0
    %5972 = vmatpush1.msra.mxu0 0.0
    %5973 = vmatprep.subr.mxu0 0.0
    %5974 = vmatpush1.msra.mxu0 %v5931
    %5975 = vmatprep.subr.mxu0 0.0
    %5976 = vmatpush1.msra.mxu0 %v5930
    %5977 = vmatprep.subr.mxu0 0.0
    %5978 = vmatpush1.msra.mxu0 %v5929
    %5979 = vmatprep.subr.mxu0 0.0
    %5980 = vmatpush1.msra.mxu0 %v5928
    %5981 = vmatprep.subr.mxu0 0.0
    %5982 = vmatpush2.msra.mxu0 0.0
    %5983 = vmatprep.subr.mxu0 0.0
    %5984 = vmatpush2.msra.mxu0 0.0
    %5985 = vmatprep.subr.mxu0 0.0
    %5986 = vmatpush2.msra.mxu0 0.0
    %5987 = vmatprep.subr.mxu0 0.0
    %5988 = vmatpush2.msra.mxu0 0.0
    %5989 = vmatprep.subr.mxu0 0.0
    %5990 = vmatpush2.msra.mxu0 0.0
    %5991 = vmatprep.subr.mxu0 0.0
    %5992 = vmatpush2.msra.mxu0 0.0
    %5993 = vmatprep.subr.mxu0 0.0
    %5994 = vmatpush2.msra.mxu0 0.0
    %5995 = vmatprep.subr.mxu0 0.0
    %5996 = vmatpush2.msra.mxu0 0.0
    %5997 = vmatprep.subr.mxu0 0.0
    %5998 = vmatpush2.msra.mxu0 0.0
    %5999 = vmatprep.subr.mxu0 0.0
    %6000 = vmatpush2.msra.mxu0 0.0
    %6001 = vmatprep.subr.mxu0 0.0
    %6002 = vmatpush2.msra.mxu0 0.0
    %6003 = vmatprep.subr.mxu0 0.0
    %6004 = vmatpush2.msra.mxu0 0.0
    %6005 = vmatprep.subr.mxu0 0.0
    %6006 = vmatpush2.msra.mxu0 0.0
    %6007 = vmatprep.subr.mxu0 0.0
    %6008 = vmatpush2.msra.mxu0 0.0
    %6009 = vmatprep.subr.mxu0 0.0
    %6010 = vmatpush2.msra.mxu0 0.0
    %6011 = vmatprep.subr.mxu0 0.0
    %6012 = vmatpush2.msra.mxu0 0.0
    %6013 = vmatprep.mubr.f32.mxu0 0.0
    %6014 = vmatmul.mubr.f32.gmra.mxu0 %v5945
    %v6015 = vpop.f32.mrf.mxu0
    %v6016 = vadd.f32 %v5937, %v6015
    %v6017 = vpop.f32.mrf.mxu0
    %6018 = vmatprep.mubr.f32.mxu0 0.0
    %6019 = vmatmul.mubr.f32.gmra.mxu0 %v5947
    %v6020 = vpop.f32.mrf.mxu0
    %v6021 = vadd.f32 %v5937, %v6020
    %v6022 = vpop.f32.mrf.mxu0
    %6023 = vdwg.mxu0
    %6024 = vst.msk [vmem:[#allocation19] sm:$0xff] %vm207, %v6016
    %6025 = vst.msk [vmem:[#allocation19 + $0x8] sm:$0xff] %vm207, %v6021
    %v6026 = vld [vmem:[%s19] sm:$0xff]
    %v6027 = vld [vmem:[%s19 + $0x8] sm:$0xff]
    %v6028 = vld [vmem:[%s19 + $0x10] sm:$0xff]
    %v6029 = vld [vmem:[%s19 + $0x18] sm:$0xff]
    %v6030 = vld [vmem:[#allocation17] sm:$0x1]
    %v6032 = vlaneseq
    %v6033 = vshrl.u32 %v6032, 7
    %v6034 = vsub.s32 0, %v6033
    %v6035 = vrot.slane %v6030, %v6034
    %6039 = vrot.lane.b32.xlu0 %v5924, 32
    %v6040 = vpop.permute.xlu0 %6039
    %6041 = vrot.lane.b32.xlu0 %v5927, 32
    %v6042 = vpop.permute.xlu0 %6041
    %v6043 = vsel %vm622, %v6040, 0
    %v6045 = vsel %vm622, %v6042, 0
    %6047 = vmatprep.subr.mxu0 0.0
    %6048 = vmatpush1.msra.mxu0 0.0
    %6049 = vmatprep.subr.mxu0 0.0
    %6050 = vmatpush1.msra.mxu0 0.0
    %6051 = vmatprep.subr.mxu0 0.0
    %6052 = vmatpush1.msra.mxu0 0.0
    %6053 = vmatprep.subr.mxu0 0.0
    %6054 = vmatpush1.msra.mxu0 0.0
    %6055 = vmatprep.subr.mxu0 0.0
    %6056 = vmatpush1.msra.mxu0 0.0
    %6057 = vmatprep.subr.mxu0 0.0
    %6058 = vmatpush1.msra.mxu0 0.0
    %6059 = vmatprep.subr.mxu0 0.0
    %6060 = vmatpush1.msra.mxu0 0.0
    %6061 = vmatprep.subr.mxu0 0.0
    %6062 = vmatpush1.msra.mxu0 0.0
    %6063 = vmatprep.subr.mxu0 0.0
    %6064 = vmatpush1.msra.mxu0 0.0
    %6065 = vmatprep.subr.mxu0 0.0
    %6066 = vmatpush1.msra.mxu0 0.0
    %6067 = vmatprep.subr.mxu0 0.0
    %6068 = vmatpush1.msra.mxu0 0.0
    %6069 = vmatprep.subr.mxu0 0.0
    %6070 = vmatpush1.msra.mxu0 0.0
    %6071 = vmatprep.subr.mxu0 0.0
    %6072 = vmatpush1.msra.mxu0 %v6029
    %6073 = vmatprep.subr.mxu0 0.0
    %6074 = vmatpush1.msra.mxu0 %v6028
    %6075 = vmatprep.subr.mxu0 0.0
    %6076 = vmatpush1.msra.mxu0 %v6027
    %6077 = vmatprep.subr.mxu0 0.0
    %6078 = vmatpush1.msra.mxu0 %v6026
    %6079 = vmatprep.subr.mxu0 0.0
    %6080 = vmatpush2.msra.mxu0 0.0
    %6081 = vmatprep.subr.mxu0 0.0
    %6082 = vmatpush2.msra.mxu0 0.0
    %6083 = vmatprep.subr.mxu0 0.0
    %6084 = vmatpush2.msra.mxu0 0.0
    %6085 = vmatprep.subr.mxu0 0.0
    %6086 = vmatpush2.msra.mxu0 0.0
    %6087 = vmatprep.subr.mxu0 0.0
    %6088 = vmatpush2.msra.mxu0 0.0
    %6089 = vmatprep.subr.mxu0 0.0
    %6090 = vmatpush2.msra.mxu0 0.0
    %6091 = vmatprep.subr.mxu0 0.0
    %6092 = vmatpush2.msra.mxu0 0.0
    %6093 = vmatprep.subr.mxu0 0.0
    %6094 = vmatpush2.msra.mxu0 0.0
    %6095 = vmatprep.subr.mxu0 0.0
    %6096 = vmatpush2.msra.mxu0 0.0
    %6097 = vmatprep.subr.mxu0 0.0
    %6098 = vmatpush2.msra.mxu0 0.0
    %6099 = vmatprep.subr.mxu0 0.0
    %6100 = vmatpush2.msra.mxu0 0.0
    %6101 = vmatprep.subr.mxu0 0.0
    %6102 = vmatpush2.msra.mxu0 0.0
    %6103 = vmatprep.subr.mxu0 0.0
    %6104 = vmatpush2.msra.mxu0 0.0
    %6105 = vmatprep.subr.mxu0 0.0
    %6106 = vmatpush2.msra.mxu0 0.0
    %6107 = vmatprep.subr.mxu0 0.0
    %6108 = vmatpush2.msra.mxu0 0.0
    %6109 = vmatprep.subr.mxu0 0.0
    %6110 = vmatpush2.msra.mxu0 0.0
    %6111 = vmatprep.mubr.f32.mxu0 0.0
    %6112 = vmatmul.mubr.f32.gmra.mxu0 %v6043
    %v6113 = vpop.f32.mrf.mxu0
    %v6114 = vadd.f32 %v6035, %v6113
    %v6115 = vpop.f32.mrf.mxu0
    %6116 = vmatprep.mubr.f32.mxu0 0.0
    %6117 = vmatmul.mubr.f32.gmra.mxu0 %v6045
    %v6118 = vpop.f32.mrf.mxu0
    %v6119 = vadd.f32 %v6035, %v6118
    %v6120 = vpop.f32.mrf.mxu0
    %6121 = vdwg.mxu0
    %6122 = vst.msk [vmem:[#allocation20] sm:$0xff] %vm207, %v6114
    %6123 = vst.msk [vmem:[#allocation20 + $0x8] sm:$0xff] %vm207, %v6119
    // Predicated region
    $region126: #{mul_grid_lstm_net.1} parent=1 // pred_check
      _
    $region127: #{mul_grid_lstm_net.1} parent=1 // pred_check_branch
      %6125 = sbr.rel (0) target = $region129
    $region128: #{mul_grid_lstm_net.1} parent=1 // pred_region
      %s6127 = ssub.s32 256, 256
      %6128 = vsyncadd [#allocation4], %s6127
      %s6129 = sshll.u32 [#allocation19], 4
      %s6130 = int_to_ptr.vmem [resolvable:$true] %s6129
      %6135 = dma.vmem_to_hbm [thread:$0]  %s6130, 256, %s21, [#allocation4], 128, 128, 8
    $region129: #{mul_grid_lstm_net.1} parent=1 // pred_fallthru
      _
    // Predicated region
    $region130: #{mul_grid_lstm_net.1} parent=1 // pred_check
      _
    $region131: #{mul_grid_lstm_net.1} parent=1 // pred_check_branch
      %6137 = sbr.rel (0) target = $region133
    $region132: #{mul_grid_lstm_net.1} parent=1 // pred_region
      %s6139 = ssub.s32 256, 256
      %6140 = vsyncadd [#allocation21], %s6139
      %s6141 = sshll.u32 [#allocation20], 4
      %s6142 = int_to_ptr.vmem [resolvable:$true] %s6141
      %6147 = dma.vmem_to_hbm [thread:$0]  %s6142, 256, %s22, [#allocation21], 128, 128, 8
    $region133: #{mul_grid_lstm_net.1} parent=1 // pred_fallthru
      _
    // Predicated region
    $region134: #{mul_grid_lstm_net.1} parent=1 // pred_check
      _
    $region135: #{mul_grid_lstm_net.1} parent=1 // pred_check_branch
      %6149 = sbr.rel (0) target = $region137
    $region136: #{mul_grid_lstm_net.1} parent=1 // pred_region
      %6150 = dma.done [#allocation4], 256
    $region137: #{mul_grid_lstm_net.1} parent=1 // pred_fallthru
      _
    // Predicated region
    $region138: #{mul_grid_lstm_net.1} parent=1 // pred_check
      _
    $region139: #{mul_grid_lstm_net.1} parent=1 // pred_check_branch
      %6152 = sbr.rel (0) target = $region141
    $region140: #{mul_grid_lstm_net.1} parent=1 // pred_region
      %6153 = dma.done [#allocation21], 256
    $region141: #{mul_grid_lstm_net.1} parent=1 // pred_fallthru
      _
    %6154 = vsyncpa [#allocation3], 1
    %6155 = vsyncpa [#allocation6], 1
    %6156 = vsyncpa [#allocation9], 1
    %6157 = vsyncpa [#allocation12], 1
    %6158 = vsyncpa [#allocation15], 1
    %6159 = vsyncpa [#allocation18], 1
    %6160 = vsyncpa [#allocation4], 1
    %6161 = vsyncpa [#allocation21], 1

</llo_original>
